<compile_context>
chip_gen: v5e
topology: v5e:2x2
jax: 0.10.0
libtpu: 0.0.40
codegen_flags: <defaults>
</compile_context>

<pallas_src>
import functools

import numpy as np
import jax
import jax.numpy as jnp
from jax import lax
from jax.experimental import pallas as pl
from jax.experimental.pallas import tpu as pltpu

LN_EPS = 1e-5
BN_EPS = 1e-5
BF16 = jnp.bfloat16


# ----------------------------------------------------------------------------
# small helpers
# ----------------------------------------------------------------------------
def _round_up(n, m):
    return ((n + m - 1) // m) * m


def _choose_tile(n, cap):
    """Row tile: multiple of 8, <= cap, >=2 tiles whenever possible (v7x has 2 TCs)."""
    t = _round_up(max(1, (n + 1) // 2), 8)
    return max(8, min(t, cap))


def _pad_rows(x, rows):
    pad = rows - x.shape[0]
    if pad <= 0:
        return x
    widths = [(0, pad)] + [(0, 0)] * (x.ndim - 1)
    return jnp.pad(x, widths)


def _full_spec(arr):
    nd = arr.ndim
    return pl.BlockSpec(arr.shape, lambda i, _nd=nd: (0,) * _nd)


def _cparams(sem):
    return pltpu.CompilerParams(dimension_semantics=sem,
                                vmem_limit_bytes=32 * 1024 * 1024)


def _mish(y):
    # Mish(y) = y * tanh(softplus(y)) == y * (1 - 2 / ((1 + exp(y))^2 + 1))
    t = 1.0 + jnp.exp(y)
    return y * (1.0 - 2.0 / (t * t + 1.0))


def _gelu(y):  # exact (erf) GELU = PyTorch nn.GELU default
    return 0.5 * y * (1.0 + lax.erf(y * 0.7071067811865476))


def _apply_act(y, act):
    if act == "relu":
        return jnp.maximum(y, 0.0)
    if act == "mish":
        return _mish(y)
    if act == "gelu":
        return _gelu(y)
    return y


def _layernorm(y, g, b):
    mu = jnp.mean(y, axis=-1, keepdims=True)
    var = jnp.mean(jnp.square(y - mu), axis=-1, keepdims=True)
    return (y - mu) * lax.rsqrt(var + LN_EPS) * g + b


# ----------------------------------------------------------------------------
# Generic fused single-branch MLP kernel (Linear [+LN] [+act] chain)
# ----------------------------------------------------------------------------
def _mlp_kernel(*refs, plan):
    x_ref, o_ref = refs[0], refs[-1]
    params = refs[1:-1]
    h = x_ref[...]
    idx = 0
    for use_ln, act in plan:
        wt = params[idx][...]          # pre-cast bf16
        b = params[idx + 1][...]
        idx += 2
        y = jnp.dot(h.astype(BF16), wt, preferred_element_type=jnp.float32) + b
        if use_ln:
            g = params[idx][...]
            bt = params[idx + 1][...]
            idx += 2
            y = _layernorm(y, g, bt)
        h = _apply_act(y, act)
    o_ref[...] = h


def fused_mlp(x, layers, row_cap=512):
    """layers: list of (w_bf16, b, gamma_or_None, beta_or_None, act)."""
    N, Din = x.shape
    tm = _choose_tile(N, row_cap)
    Np = _round_up(N, tm)
    xp = _pad_rows(x, Np)
    flat, plan = [], []
    for (wt, b, g, bt, act) in layers:
        flat += [wt, b]
        use_ln = g is not None
        if use_ln:
            flat += [g, bt]
        plan.append((use_ln, act))
    Dout = layers[-1][0].shape[1]
    out = pl.pallas_call(
        functools.partial(_mlp_kernel, plan=tuple(plan)),
        out_shape=jax.ShapeDtypeStruct((Np, Dout), jnp.float32),
        grid=(Np // tm,),
        in_specs=[pl.BlockSpec((tm, Din), lambda i: (i, 0))]
                 + [_full_spec(q) for q in flat],
        out_specs=pl.BlockSpec((tm, Dout), lambda i: (i, 0)),
        compiler_params=_cparams(("parallel",)),
    )(xp, *flat)
    return out[:N]


# ----------------------------------------------------------------------------
# Fused node encoder: MA-module + node_attr_encoder + node_grid_encoder + concat.
# Conv3x3+BN(eval)+Mish layers are dense structured matmuls over the flattened
# (C*H*W) grid; AdaptiveAvgPool2d(1)+Flatten is a final small matmul.
# ----------------------------------------------------------------------------
def _node_encoder_kernel(x_ref, g_ref,
                         ma_w1, ma_b1, naf_w, naf_b, na_g1, na_be1,
                         na_w2, na_b2, na_g2, na_be2,
                         cw1, cb1, cw2, cb2, cw3, cb3, pw, o_ref):
    # ---- face-attribute branch (MA linear-2 + affine folded into naf_w/naf_b)
    a = jnp.dot(x_ref[...].astype(BF16), ma_w1[...],
                preferred_element_type=jnp.float32) + ma_b1[...]
    a = jnp.maximum(a, 0.0)
    a = jnp.dot(a.astype(BF16), naf_w[...],
                preferred_element_type=jnp.float32) + naf_b[...]
    a = jnp.maximum(_layernorm(a, na_g1[...], na_be1[...]), 0.0)
    a = jnp.dot(a.astype(BF16), na_w2[...],
                preferred_element_type=jnp.float32) + na_b2[...]
    a = _mish(_layernorm(a, na_g2[...], na_be2[...]))

    # ---- uv-grid branch: 3x (conv3x3 + folded BN + Mish) + avg-pool, all matmuls
    g = g_ref[...]
    g = _mish(jnp.dot(g.astype(BF16), cw1[...],
                      preferred_element_type=jnp.float32) + cb1[...])
    g = _mish(jnp.dot(g.astype(BF16), cw2[...],
                      preferred_element_type=jnp.float32) + cb2[...])
    g = _mish(jnp.dot(g.astype(BF16), cw3[...],
                      preferred_element_type=jnp.float32) + cb3[...])
    pooled = jnp.dot(g.astype(BF16), pw[...], preferred_element_type=jnp.float32)

    o_ref[...] = jnp.concatenate([a, pooled], axis=-1)


def node_encoder(p, node_x, node_grid_nchw):
    N, nad = node_x.shape
    gflat = node_grid_nchw.reshape(N, -1)        # channel-major lanes (matches weights)
    nae = p["na_w2"].shape[1]
    nge = p["pool_w"].shape[1]
    tn = _choose_tile(N, 128)
    Np = _round_up(N, tn)
    xp = _pad_rows(node_x, Np)
    gp = _pad_rows(gflat, Np)
    weights = [p["ma_w1"], p["ma_b1"], p["naf_w"], p["naf_b"],
               p["na_g1"], p["na_be1"], p["na_w2"], p["na_b2"],
               p["na_g2"], p["na_be2"],
               p["cv1_w"], p["cv1_b"], p["cv2_w"], p["cv2_b"],
               p["cv3_w"], p["cv3_b"], p["pool_w"]]
    out = pl.pallas_call(
        _node_encoder_kernel,
        out_shape=jax.ShapeDtypeStruct((Np, nae + nge), jnp.float32),
        grid=(Np // tn,),
        in_specs=[pl.BlockSpec((tn, nad), lambda i: (i, 0)),
                  pl.BlockSpec((tn, gflat.shape[1]), lambda i: (i, 0))]
                 + [_full_spec(wt) for wt in weights],
        out_specs=pl.BlockSpec((tn, nae + nge), lambda i: (i, 0)),
        compiler_params=_cparams(("parallel",)),
    )(xp, gp, *weights)
    return out[:N]


# ----------------------------------------------------------------------------
# Packed heads kernel: seg_head | Wq | Wk | bottom_head as 3 wide matmuls.
# Per-branch LayerNorm stats computed on the MXU via a block-diagonal averaging
# matrix; output is one lane-dense [tm, 128] slab [q | k | seg | bottom | pad].
# ----------------------------------------------------------------------------
def _head_kernel(x_ref, w1, b1, g1, be1, avg, w2, b2, g2, be2, w3, b3, o_ref):
    hp = w1.shape[1]           # packed width = 4 * hh
    hh = hp // 4

    def group_ln(y, gamma, beta):
        mu = jnp.dot(y.astype(BF16), avg[...], preferred_element_type=jnp.float32)
        d = y - mu
        var = jnp.dot((d * d).astype(BF16), avg[...],
                      preferred_element_type=jnp.float32)
        return d * lax.rsqrt(var + LN_EPS) * gamma[...] + beta[...]

    lane = lax.broadcasted_iota(jnp.int32, (1, hp), 1)

    x = x_ref[...].astype(BF16)
    h1 = jnp.dot(x, w1[...], preferred_element_type=jnp.float32) + b1[...]
    h1 = group_ln(h1, g1, be1)
    h1 = jnp.where(lane < 3 * hh, _mish(h1), _gelu(h1))      # seg/Wq/Wk: Mish, bottom: GELU

    h2 = jnp.dot(h1.astype(BF16), w2[...], preferred_element_type=jnp.float32) + b2[...]
    h2n = group_ln(h2, g2, be2)
    y2 = jnp.where(lane < 3 * hh, h2n, h2)                   # no LN on the seg-output group
    y2 = jnp.where((lane >= 2 * hh) & (lane < 3 * hh), _gelu(y2), y2)  # GELU on bottom group

    o_ref[...] = jnp.dot(y2.astype(BF16), w3[...],
                         preferred_element_type=jnp.float32) + b3[...]


def head_forward(p, feat, ncls, hh):
    N, fdim = feat.shape
    tm = _choose_tile(N, 512)
    Np = _round_up(N, tm)
    fp = _pad_rows(feat, Np)
    weights = [p["hd_w1"], p["hd_b1"], p["hd_g1"], p["hd_be1"], p["hd_avg"],
               p["hd_w2"], p["hd_b2"], p["hd_g2"], p["hd_be2"],
               p["hd_w3"], p["hd_b3"]]
    out_w = p["hd_w3"].shape[1]
    slab = pl.pallas_call(
        _head_kernel,
        out_shape=jax.ShapeDtypeStruct((Np, out_w), jnp.float32),
        grid=(Np // tm,),
        in_specs=[pl.BlockSpec((tm, fdim), lambda i: (i, 0))]
                 + [_full_spec(wt) for wt in weights],
        out_specs=pl.BlockSpec((tm, out_w), lambda i: (i, 0)),
        compiler_params=_cparams(("parallel",)),
    )(fp, *weights)
    slab = slab[:N]
    q = slab[:, 0:hh]
    k = slab[:, hh:2 * hh]
    seg = slab[:, 2 * hh:2 * hh + ncls]
    bottom = slab[:, 2 * hh + ncls:2 * hh + ncls + 1]
    return seg, q, k, bottom


# ----------------------------------------------------------------------------
# InnerProductDecoder: sigmoid(Q K^T), 2-D tiled so output tiles stay bounded.
# ----------------------------------------------------------------------------
def _inner_product_kernel(q_ref, k_ref, o_ref):
    s = lax.dot_general(q_ref[...].astype(BF16), k_ref[...].astype(BF16),
                        dimension_numbers=(((1,), (1,)), ((), ())),
                        preferred_element_type=jnp.float32)
    o_ref[...] = pl.reciprocal(1.0 + jnp.exp(-s), approx=True)


def inner_product_decode(q, k):
    N, Hh = q.shape
    NP = _round_up(N, 128)
    tc = 512 if NP % 512 == 0 else (256 if NP % 256 == 0 else 128)
    if NP % 256 == 0 and NP // 256 >= 2:
        tr = 256
    elif NP // 128 >= 2:
        tr = 128
    else:
        tr = 64
    qp = _pad_rows(q, NP)
    kp = _pad_rows(k, NP)
    out = pl.pallas_call(
        _inner_product_kernel,
        out_shape=jax.ShapeDtypeStruct((NP, NP), jnp.float32),
        grid=(NP // tr, NP // tc),
        in_specs=[pl.BlockSpec((tr, Hh), lambda i, j: (i, 0)),
                  pl.BlockSpec((tc, Hh), lambda i, j: (j, 0))],
        out_specs=pl.BlockSpec((tr, tc), lambda i, j: (i, j)),
        compiler_params=_cparams(("parallel", "parallel")),
    )(qp, kp)
    return out[:N, :N]


# ----------------------------------------------------------------------------
# Deterministic parameter initialization (weights pre-cast to bf16, BN folded,
# MA linear-2 folded into node_attr linear-1, heads packed, convs as dense mats)
# ----------------------------------------------------------------------------
def _init_linear(key, din, dout):
    k1, k2 = jax.random.split(key)
    w = jax.random.normal(k1, (din, dout), jnp.float32) / jnp.sqrt(float(din))
    b = jax.random.normal(k2, (1, dout), jnp.float32) * 0.01
    return w, b


def _init_ln(dout):
    return jnp.ones((1, dout), jnp.float32), jnp.zeros((1, dout), jnp.float32)


def _init_conv_dense(key, cin, cout, side):
    """Conv2d(3x3, pad 1) + folded eval-BatchNorm as a dense (cin*hw, cout*hw) matmul."""
    h = w = side
    hw = h * w
    k1, k2, k3, k4 = jax.random.split(key, 4)
    wconv = jax.random.normal(k1, (3, 3, cin, cout), jnp.float32) / jnp.sqrt(9.0 * cin)
    b = jax.random.normal(k2, (1, cout), jnp.float32) * 0.01
    run_mean = jax.random.normal(k3, (1, cout), jnp.float32) * 0.1
    run_var = jnp.abs(jax.random.normal(k4, (1, cout), jnp.float32)) * 0.1 + 1.0
    scale = 1.0 / jnp.sqrt(run_var + BN_EPS)      # BN gamma=1, beta=0 at init
    shift = -run_mean * scale
    wf = np.asarray(wconv * scale)                # (3,3,cin,cout), BN folded
    bf = np.asarray(b * scale + shift)[0]         # (cout,)
    Wd = np.zeros((cin * hw, cout * hw), np.float32)
    cin_off = hw * np.arange(cin)
    cout_off = hw * np.arange(cout)
    for po in range(hw):
        ho, wo = po // w, po % w
        for ky in range(3):
            for kx in range(3):
                hi, wi = ho + ky - 1, wo + kx - 1
                if 0 <= hi < h and 0 <= wi < w:
                    pi = hi * w + wi
                    Wd[np.ix_(pi + cin_off, po + cout_off)] = wf[ky, kx]
    Bd = np.repeat(bf, hw)[None, :]               # lane = co*hw + p
    return jnp.asarray(Wd, BF16), jnp.asarray(Bd, jnp.float32)


def _pool_matrix(cout, hw):
    P = np.kron(np.eye(cout, dtype=np.float32), np.ones((hw, 1), np.float32) / hw)
    return jnp.asarray(P, BF16)


def init_params(key, cfg, grid_side):
    ks = iter(jax.random.split(key, 64))
    nad, nae = cfg["node_attr_dim"], cfg["node_attr_emb"]
    ead, eae = cfg["edge_attr_dim"], cfg["edge_attr_emb"]
    ngd, nge = cfg["node_grid_dim"], cfg["node_grid_emb"]
    hh, ncls = cfg["head_hidden_dim"], cfg["num_classes"]
    node_emb = nae + nge
    fdim = 2 * node_emb
    hw = grid_side * grid_side
    p = {}

    # TODO(synk): MappingAndAffineModule source unavailable; modeled as
    #             Linear(nad,256)+ReLU+Linear(256,nad)+affine; linear-2 and affine are
    #             algebraically folded into node_attr_encoder's first linear (exact).
    ma_w1, ma_b1 = _init_linear(next(ks), nad, 256)
    ma_w2, ma_b2 = _init_linear(next(ks), 256, nad)
    ma_gamma = jnp.ones((1, nad), jnp.float32)
    ma_beta = jnp.zeros((1, nad), jnp.float32)
    ma_w2f = ma_w2 * ma_gamma
    ma_b2f = ma_b2 * ma_gamma + ma_beta

    na_w1, na_b1 = _init_linear(next(ks), nad, nae)
    naf_w = ma_w2f @ na_w1
    naf_b = ma_b2f @ na_w1 + na_b1
    na_g1, na_be1 = _init_ln(nae)
    na_w2, na_b2 = _init_linear(next(ks), nae, nae)
    na_g2, na_be2 = _init_ln(nae)
    p.update(ma_w1=ma_w1.astype(BF16), ma_b1=ma_b1,
             naf_w=naf_w.astype(BF16), naf_b=naf_b,
             na_g1=na_g1, na_be1=na_be1,
             na_w2=na_w2.astype(BF16), na_b2=na_b2, na_g2=na_g2, na_be2=na_be2)

    # node_grid_encoder: 3x (Conv3x3 + BN + Mish), AdaptiveAvgPool2d(1), Flatten
    p["cv1_w"], p["cv1_b"] = _init_conv_dense(next(ks), ngd, nge // 4, grid_side)
    p["cv2_w"], p["cv2_b"] = _init_conv_dense(next(ks), nge // 4, nge // 2, grid_side)
    p["cv3_w"], p["cv3_b"] = _init_conv_dense(next(ks), nge // 2, nge, grid_side)
    p["pool_w"] = _pool_matrix(nge, hw)

    # edge_attr_encoder
    ea_w1, ea_b1 = _init_linear(next(ks), ead, eae)
    ea_g1, ea_be1 = _init_ln(eae)
    ea_w2, ea_b2 = _init_linear(next(ks), eae, eae)
    ea_g2, ea_be2 = _init_ln(eae)
    p.update(ea_w1=ea_w1.astype(BF16), ea_b1=ea_b1, ea_g1=ea_g1, ea_be1=ea_be1,
             ea_w2=ea_w2.astype(BF16), ea_b2=ea_b2, ea_g2=ea_g2, ea_be2=ea_be2)

    # graph_encoder node-update (see TODO in forward)
    ge_w, ge_b = _init_linear(next(ks), node_emb + eae, node_emb)
    ge_g, ge_be = _init_ln(node_emb)
    p.update(ge_w=ge_w.astype(BF16), ge_b=ge_b, ge_g=ge_g, ge_be=ge_be)

    # heads: seg / Wq / Wk / bottom, packed into 3 wide matmuls
    assert ncls <= hh and hh % 2 == 0
    hb = hh // 2
    sg_w1, sg_b1 = _init_linear(next(ks), fdim, hh); sg_g1, sg_be1 = _init_ln(hh)
    sg_w2, sg_b2 = _init_linear(next(ks), hh, ncls)
    wq_w1, wq_b1 = _init_linear(next(ks), fdim, hh); wq_g1, wq_be1 = _init_ln(hh)
    wq_w2, wq_b2 = _init_linear(next(ks), hh, hh);  wq_g2, wq_be2 = _init_ln(hh)
    wk_w1, wk_b1 = _init_linear(next(ks), fdim, hh); wk_g1, wk_be1 = _init_ln(hh)
    wk_w2, wk_b2 = _init_linear(next(ks), hh, hh);  wk_g2, wk_be2 = _init_ln(hh)
    bh_w1, bh_b1 = _init_linear(next(ks), fdim, hh); bh_g1, bh_be1 = _init_ln(hh)
    bh_w2, bh_b2 = _init_linear(next(ks), hh, hb);  bh_g2, bh_be2 = _init_ln(hb)
    bh_w3, bh_b3 = _init_linear(next(ks), hb, 1)

    # layer 1: lanes [sg | wq | wk | bh]
    w1p = jnp.concatenate([sg_w1, wq_w1, wk_w1, bh_w1], axis=1)
    b1p = jnp.concatenate([sg_b1, wq_b1, wk_b1, bh_b1], axis=1)
    g1p = jnp.concatenate([sg_g1, wq_g1, wk_g1, bh_g1], axis=1)
    be1p = jnp.concatenate([sg_be1, wq_be1, wk_be1, bh_be1], axis=1)

    # layer 2 (block-diagonal): output lanes [q | k | bottom-mid (duplicated) | seg | pad]
    W2 = jnp.zeros((4 * hh, 4 * hh), jnp.float32)
    W2 = W2.at[0:hh, 3 * hh:3 * hh + ncls].set(sg_w2)
    W2 = W2.at[hh:2 * hh, 0:hh].set(wq_w2)
    W2 = W2.at[2 * hh:3 * hh, hh:2 * hh].set(wk_w2)
    W2 = W2.at[3 * hh:4 * hh, 2 * hh:2 * hh + hb].set(bh_w2)
    W2 = W2.at[3 * hh:4 * hh, 2 * hh + hb:3 * hh].set(bh_w2)
    b2p = jnp.concatenate([wq_b2, wk_b2, bh_b2, bh_b2, sg_b2,
                           jnp.zeros((1, hh - ncls), jnp.float32)], axis=1)
    g2p = jnp.concatenate([wq_g2, wk_g2, bh_g2, bh_g2,
                           jnp.ones((1, hh), jnp.float32)], axis=1)
    be2p = jnp.concatenate([wq_be2, wk_be2, bh_be2, bh_be2,
                            jnp.zeros((1, hh), jnp.float32)], axis=1)

    # layer 3: pass-through for q/k/seg + bottom linear, lane-dense padded output slab
    out_w = _round_up(2 * hh + ncls + 1, 128)
    W3 = jnp.zeros((4 * hh, out_w), jnp.float32)
    eye = jnp.eye(hh, dtype=jnp.float32)
    W3 = W3.at[0:hh, 0:hh].set(eye)
    W3 = W3.at[hh:2 * hh, hh:2 * hh].set(eye)
    W3 = W3.at[2 * hh:2 * hh + hb, 2 * hh + ncls:2 * hh + ncls + 1].set(bh_w3)
    W3 = W3.at[3 * hh:3 * hh + ncls, 2 * hh:2 * hh + ncls].set(jnp.eye(ncls, dtype=jnp.float32))
    b3p = jnp.zeros((1, out_w), jnp.float32).at[0, 2 * hh + ncls].set(bh_b3[0, 0])

    # block-diagonal per-branch averaging matrix for LayerNorm stats on the MXU
    gavg = jnp.kron(jnp.eye(4, dtype=jnp.float32),
                    jnp.full((hh, hh), 1.0 / hh, jnp.float32))

    p.update(hd_w1=w1p.astype(BF16), hd_b1=b1p, hd_g1=g1p, hd_be1=be1p,
             hd_w2=W2.astype(BF16), hd_b2=b2p, hd_g2=g2p, hd_be2=be2p,
             hd_w3=W3.astype(BF16), hd_b3=b3p, hd_avg=gavg.astype(BF16))
    return p


# ----------------------------------------------------------------------------
# Forward pass
# ----------------------------------------------------------------------------
def sfrgnn_forward(p, node_x, node_grid_nchw, edge_x, edge_dst, batch_num_nodes, cfg):
    N = node_x.shape[0]
    E = edge_x.shape[0]
    G = len(batch_num_nodes)
    hh, ncls = cfg["head_hidden_dim"], cfg["num_classes"]

    # --- MA-module + node_attr_encoder + node_grid_encoder + concat : ONE fused kernel
    node_feat = node_encoder(p, node_x, node_grid_nchw)              # (N, node_emb)

    # --- edge_attr_encoder : one fused 2-layer kernel
    ef = fused_mlp(edge_x, [
        (p["ea_w1"], p["ea_b1"], p["ea_g1"], p["ea_be1"], "relu"),
        (p["ea_w2"], p["ea_b2"], p["ea_g2"], p["ea_be2"], "mish"),
    ])

    # --- graph_encoder
    # TODO(synk): `encoders.<arch>` source unavailable; modeled as mean aggregation of
    #             encoded edge features to destination nodes + Linear+LN+Mish node
    #             update + per-graph mean pooling for graph_emb.
    msg_sum = jax.ops.segment_sum(ef, edge_dst, num_segments=N)      # wrapper glue
    deg = jax.ops.segment_sum(jnp.ones((E,), jnp.float32), edge_dst, num_segments=N)
    node_msg = msg_sum / jnp.maximum(deg, 1.0)[:, None]
    node_emb = fused_mlp(jnp.concatenate([node_feat, node_msg], axis=1),
                         [(p["ge_w"], p["ge_b"], p["ge_g"], p["ge_be"], "mish")])

    nn_arr = jnp.array(batch_num_nodes, jnp.int32)
    seg_ids = jnp.repeat(jnp.arange(G, dtype=jnp.int32), nn_arr, total_repeat_length=N)
    graph_emb = (jax.ops.segment_sum(node_emb, seg_ids, num_segments=G)
                 / nn_arr.astype(jnp.float32)[:, None])
    graph_rep = jnp.repeat(graph_emb, nn_arr, axis=0, total_repeat_length=N)
    local_global_feat = jnp.concatenate([node_emb, graph_rep], axis=1)   # (N, 2*node_emb)

    # --- seg_head + inst_head(Wq,Wk) + bottom_head : one packed kernel, [N,128] slab
    seg_out, q, k, bottom_out = head_forward(p, local_global_feat, ncls, hh)

    # TODO(synk): InnerProductDecoder source unavailable; computing dense sigmoid(Q K^T)
    #             over all node pairs (per-graph block structure not applied).
    inst_out = inner_product_decode(q, k)

    return seg_out, inst_out, bottom_out, local_global_feat


# ----------------------------------------------------------------------------
# Main
# ----------------------------------------------------------------------------
if __name__ == "__main__":
    cfg = dict(num_classes=5, node_attr_dim=8, node_attr_emb=16,
               edge_attr_dim=6, edge_attr_emb=16,
               node_grid_dim=4, node_grid_emb=16,
               edge_grid_dim=0, edge_grid_emb=0, head_hidden_dim=32)

    key = jax.random.PRNGKey(0)
    kp, kn, kg, ke, kd = jax.random.split(key, 5)

    N_NODES, N_EDGES, GRID_HW = 16, 24, 8
    batch_num_nodes = (8, 8)          # two graphs in the batch

    params = init_params(kp, cfg, GRID_HW)

    node_x = jax.random.normal(kn, (N_NODES, cfg["node_attr_dim"]), jnp.float32)
    node_grid = jax.random.normal(
        kg, (N_NODES, cfg["node_grid_dim"], GRID_HW, GRID_HW), jnp.float32)  # NCHW input
    edge_x = jax.random.normal(ke, (N_EDGES, cfg["edge_attr_dim"]), jnp.float32)
    edge_dst = jnp.concatenate([
        jax.random.randint(kd, (N_EDGES // 2,), 0, 8, jnp.int32),
        jax.random.randint(jax.random.fold_in(kd, 1), (N_EDGES // 2,), 8, 16, jnp.int32),
    ])

    fwd = jax.jit(functools.partial(sfrgnn_forward,
                                    batch_num_nodes=batch_num_nodes, cfg=cfg))
    seg_out, inst_out, bottom_out, lgf = fwd(params, node_x, node_grid, edge_x, edge_dst)
    jax.block_until_ready((seg_out, inst_out, bottom_out, lgf))

    node_emb_dim = cfg["node_attr_emb"] + cfg["node_grid_emb"]
    assert seg_out.shape == (N_NODES, cfg["num_classes"])
    assert inst_out.shape == (N_NODES, N_NODES)
    assert bottom_out.shape == (N_NODES, 1)
    assert lgf.shape == (N_NODES, 2 * node_emb_dim)
    assert bool(jnp.all(jnp.isfinite(seg_out))) and bool(jnp.all(jnp.isfinite(inst_out)))
    assert bool(jnp.all(jnp.isfinite(bottom_out))) and bool(jnp.all(jnp.isfinite(lgf)))
    print("KERNEL_OK")
</pallas_src>

<mosaic_0001>
module attributes {stable_mosaic.version = 11 : i64} {
  func.func @_mlp_kernel(%arg0: i32, %arg1: memref<16x6xf32, #tpu.memory_space<vmem>>, %arg2: memref<6x16xbf16, #tpu.memory_space<vmem>>, %arg3: memref<1x16xf32, #tpu.memory_space<vmem>>, %arg4: memref<1x16xf32, #tpu.memory_space<vmem>>, %arg5: memref<1x16xf32, #tpu.memory_space<vmem>>, %arg6: memref<16x16xbf16, #tpu.memory_space<vmem>>, %arg7: memref<1x16xf32, #tpu.memory_space<vmem>>, %arg8: memref<1x16xf32, #tpu.memory_space<vmem>>, %arg9: memref<1x16xf32, #tpu.memory_space<vmem>>, %arg10: memref<16x16xf32, #tpu.memory_space<vmem>>) attributes {dimension_semantics = [#tpu.dimension_semantics<parallel>], iteration_bounds = array<i64: 2>, scalar_prefetch = 0 : i64, scratch_operands = 0 : i64, tpu.core_type = #tpu.core_type<tc>, window_params = [{transform_indices = @transform_0, window_bounds = array<i64: 16, 6>}, {pipeline_mode = #tpu.pipeline_mode<synchronous>, transform_indices = @transform_1, window_bounds = array<i64: 6, 16>}, {pipeline_mode = #tpu.pipeline_mode<synchronous>, transform_indices = @transform_2, window_bounds = array<i64: 1, 16>}, {pipeline_mode = #tpu.pipeline_mode<synchronous>, transform_indices = @transform_3, window_bounds = array<i64: 1, 16>}, {pipeline_mode = #tpu.pipeline_mode<synchronous>, transform_indices = @transform_4, window_bounds = array<i64: 1, 16>}, {pipeline_mode = #tpu.pipeline_mode<synchronous>, transform_indices = @transform_5, window_bounds = array<i64: 16, 16>}, {pipeline_mode = #tpu.pipeline_mode<synchronous>, transform_indices = @transform_6, window_bounds = array<i64: 1, 16>}, {pipeline_mode = #tpu.pipeline_mode<synchronous>, transform_indices = @transform_7, window_bounds = array<i64: 1, 16>}, {pipeline_mode = #tpu.pipeline_mode<synchronous>, transform_indices = @transform_8, window_bounds = array<i64: 1, 16>}, {transform_indices = @transform_9, window_bounds = array<i64: 16, 16>}]} {
    %c0 = arith.constant 0 : index
    %c0_0 = arith.constant 0 : index
    %0 = vector.load %arg1[%c0, %c0_0] : memref<16x6xf32, #tpu.memory_space<vmem>>, vector<16x6xf32>
    %c0_1 = arith.constant 0 : index
    %c0_2 = arith.constant 0 : index
    %1 = vector.load %arg2[%c0_1, %c0_2] : memref<6x16xbf16, #tpu.memory_space<vmem>>, vector<6x16xbf16>
    %c0_3 = arith.constant 0 : index
    %c0_4 = arith.constant 0 : index
    %2 = vector.load %arg3[%c0_3, %c0_4] : memref<1x16xf32, #tpu.memory_space<vmem>>, vector<1x16xf32>
    %3 = arith.truncf %0 : vector<16x6xf32> to vector<16x6xbf16>
    %cst = arith.constant dense<0.000000e+00> : vector<16x16xf32>
    %4 = tpu.matmul %3, %1, %cst {dimension_numbers = #tpu.dot_dimension_numbers<[1], [0], [0], [1], [0, 0, 1, 1], [], []>} : vector<16x6xbf16>, vector<6x16xbf16>, vector<16x16xf32> -> vector<16x16xf32>
    %5 = vector.broadcast %2 : vector<1x16xf32> to vector<16x16xf32>
    %6 = arith.addf %4, %5 : vector<16x16xf32>
    %c0_5 = arith.constant 0 : index
    %c0_6 = arith.constant 0 : index
    %7 = vector.load %arg4[%c0_5, %c0_6] : memref<1x16xf32, #tpu.memory_space<vmem>>, vector<1x16xf32>
    %c0_7 = arith.constant 0 : index
    %c0_8 = arith.constant 0 : index
    %8 = vector.load %arg5[%c0_7, %c0_8] : memref<1x16xf32, #tpu.memory_space<vmem>>, vector<1x16xf32>
    %cst_9 = arith.constant dense<0.000000e+00> : vector<16xf32>
    %9 = vector.multi_reduction <add>, %6, %cst_9 [1] : vector<16x16xf32> to vector<16xf32>
    %10 = vector.shape_cast %9 : vector<16xf32> to vector<16x1xf32>
    %cst_10 = arith.constant 1.600000e+01 : f32
    %11 = vector.broadcast %cst_10 : f32 to vector<16x1xf32>
    %12 = arith.divf %10, %11 : vector<16x1xf32>
    %13 = vector.broadcast %12 : vector<16x1xf32> to vector<16x16xf32>
    %14 = arith.subf %6, %13 : vector<16x16xf32>
    %15 = arith.mulf %14, %14 : vector<16x16xf32>
    %cst_11 = arith.constant dense<0.000000e+00> : vector<16xf32>
    %16 = vector.multi_reduction <add>, %15, %cst_11 [1] : vector<16x16xf32> to vector<16xf32>
    %17 = vector.shape_cast %16 : vector<16xf32> to vector<16x1xf32>
    %cst_12 = arith.constant 1.600000e+01 : f32
    %18 = vector.broadcast %cst_12 : f32 to vector<16x1xf32>
    %19 = arith.divf %17, %18 : vector<16x1xf32>
    %20 = vector.broadcast %12 : vector<16x1xf32> to vector<16x16xf32>
    %21 = arith.subf %6, %20 : vector<16x16xf32>
    %cst_13 = arith.constant 9.99999974E-6 : f32
    %22 = vector.broadcast %cst_13 : f32 to vector<16x1xf32>
    %23 = arith.addf %19, %22 : vector<16x1xf32>
    %24 = math.rsqrt %23 : vector<16x1xf32>
    %25 = vector.broadcast %24 : vector<16x1xf32> to vector<16x16xf32>
    %26 = arith.mulf %21, %25 : vector<16x16xf32>
    %27 = vector.broadcast %7 : vector<1x16xf32> to vector<16x16xf32>
    %28 = arith.mulf %26, %27 : vector<16x16xf32>
    %29 = vector.broadcast %8 : vector<1x16xf32> to vector<16x16xf32>
    %30 = arith.addf %28, %29 : vector<16x16xf32>
    %cst_14 = arith.constant 0.000000e+00 : f32
    %31 = vector.broadcast %cst_14 : f32 to vector<16x16xf32>
    %32 = arith.maximumf %30, %31 : vector<16x16xf32>
    %c0_15 = arith.constant 0 : index
    %c0_16 = arith.constant 0 : index
    %33 = vector.load %arg6[%c0_15, %c0_16] : memref<16x16xbf16, #tpu.memory_space<vmem>>, vector<16x16xbf16>
    %c0_17 = arith.constant 0 : index
    %c0_18 = arith.constant 0 : index
    %34 = vector.load %arg7[%c0_17, %c0_18] : memref<1x16xf32, #tpu.memory_space<vmem>>, vector<1x16xf32>
    %35 = arith.truncf %32 : vector<16x16xf32> to vector<16x16xbf16>
    %cst_19 = arith.constant dense<0.000000e+00> : vector<16x16xf32>
    %36 = tpu.matmul %35, %33, %cst_19 {dimension_numbers = #tpu.dot_dimension_numbers<[1], [0], [0], [1], [0, 0, 1, 1], [], []>} : vector<16x16xbf16>, vector<16x16xbf16>, vector<16x16xf32> -> vector<16x16xf32>
    %37 = vector.broadcast %34 : vector<1x16xf32> to vector<16x16xf32>
    %38 = arith.addf %36, %37 : vector<16x16xf32>
    %c0_20 = arith.constant 0 : index
    %c0_21 = arith.constant 0 : index
    %39 = vector.load %arg8[%c0_20, %c0_21] : memref<1x16xf32, #tpu.memory_space<vmem>>, vector<1x16xf32>
    %c0_22 = arith.constant 0 : index
    %c0_23 = arith.constant 0 : index
    %40 = vector.load %arg9[%c0_22, %c0_23] : memref<1x16xf32, #tpu.memory_space<vmem>>, vector<1x16xf32>
    %cst_24 = arith.constant dense<0.000000e+00> : vector<16xf32>
    %41 = vector.multi_reduction <add>, %38, %cst_24 [1] : vector<16x16xf32> to vector<16xf32>
    %42 = vector.shape_cast %41 : vector<16xf32> to vector<16x1xf32>
    %cst_25 = arith.constant 1.600000e+01 : f32
    %43 = vector.broadcast %cst_25 : f32 to vector<16x1xf32>
    %44 = arith.divf %42, %43 : vector<16x1xf32>
    %45 = vector.broadcast %44 : vector<16x1xf32> to vector<16x16xf32>
    %46 = arith.subf %38, %45 : vector<16x16xf32>
    %47 = arith.mulf %46, %46 : vector<16x16xf32>
    %cst_26 = arith.constant dense<0.000000e+00> : vector<16xf32>
    %48 = vector.multi_reduction <add>, %47, %cst_26 [1] : vector<16x16xf32> to vector<16xf32>
    %49 = vector.shape_cast %48 : vector<16xf32> to vector<16x1xf32>
    %cst_27 = arith.constant 1.600000e+01 : f32
    %50 = vector.broadcast %cst_27 : f32 to vector<16x1xf32>
    %51 = arith.divf %49, %50 : vector<16x1xf32>
    %52 = vector.broadcast %44 : vector<16x1xf32> to vector<16x16xf32>
    %53 = arith.subf %38, %52 : vector<16x16xf32>
    %cst_28 = arith.constant 9.99999974E-6 : f32
    %54 = vector.broadcast %cst_28 : f32 to vector<16x1xf32>
    %55 = arith.addf %51, %54 : vector<16x1xf32>
    %56 = math.rsqrt %55 : vector<16x1xf32>
    %57 = vector.broadcast %56 : vector<16x1xf32> to vector<16x16xf32>
    %58 = arith.mulf %53, %57 : vector<16x16xf32>
    %59 = vector.broadcast %39 : vector<1x16xf32> to vector<16x16xf32>
    %60 = arith.mulf %58, %59 : vector<16x16xf32>
    %61 = vector.broadcast %40 : vector<1x16xf32> to vector<16x16xf32>
    %62 = arith.addf %60, %61 : vector<16x16xf32>
    %63 = math.exp %62 : vector<16x16xf32>
    %cst_29 = arith.constant 1.000000e+00 : f32
    %64 = vector.broadcast %cst_29 : f32 to vector<16x16xf32>
    %65 = arith.addf %64, %63 : vector<16x16xf32>
    %66 = arith.mulf %65, %65 : vector<16x16xf32>
    %cst_30 = arith.constant 1.000000e+00 : f32
    %67 = vector.broadcast %cst_30 : f32 to vector<16x16xf32>
    %68 = arith.addf %66, %67 : vector<16x16xf32>
    %cst_31 = arith.constant 2.000000e+00 : f32
    %69 = vector.broadcast %cst_31 : f32 to vector<16x16xf32>
    %70 = arith.divf %69, %68 : vector<16x16xf32>
    %cst_32 = arith.constant 1.000000e+00 : f32
    %71 = vector.broadcast %cst_32 : f32 to vector<16x16xf32>
    %72 = arith.subf %71, %70 : vector<16x16xf32>
    %73 = arith.mulf %62, %72 : vector<16x16xf32>
    %c0_33 = arith.constant 0 : index
    %c0_34 = arith.constant 0 : index
    %74 = vector.load %arg10[%c0_33, %c0_34] : memref<16x16xf32, #tpu.memory_space<vmem>>, vector<16x16xf32>
    tpu.vector_store %arg10[%c0_33, %c0_34], %73 {strides = array<i32>} : memref<16x16xf32, #tpu.memory_space<vmem>>, vector<16x16xf32>,
    return
  }
  func.func @transform_0(%arg0: i32) -> (i32, i32) {
    %c0_i32 = arith.constant 0 : i32
    %c0_i32_0 = arith.constant 0 : i32
    return %arg0, %c0_i32 : i32, i32
  }
  func.func @transform_1(%arg0: i32) -> (i32, i32) {
    %c0_i32 = arith.constant 0 : i32
    %c0_i32_0 = arith.constant 0 : i32
    %c0_i32_1 = arith.constant 0 : i32
    return %c0_i32, %c0_i32_0 : i32, i32
  }
  func.func @transform_2(%arg0: i32) -> (i32, i32) {
    %c0_i32 = arith.constant 0 : i32
    %c0_i32_0 = arith.constant 0 : i32
    %c0_i32_1 = arith.constant 0 : i32
    return %c0_i32, %c0_i32_0 : i32, i32
  }
  func.func @transform_3(%arg0: i32) -> (i32, i32) {
    %c0_i32 = arith.constant 0 : i32
    %c0_i32_0 = arith.constant 0 : i32
    %c0_i32_1 = arith.constant 0 : i32
    return %c0_i32, %c0_i32_0 : i32, i32
  }
  func.func @transform_4(%arg0: i32) -> (i32, i32) {
    %c0_i32 = arith.constant 0 : i32
    %c0_i32_0 = arith.constant 0 : i32
    %c0_i32_1 = arith.constant 0 : i32
    return %c0_i32, %c0_i32_0 : i32, i32
  }
  func.func @transform_5(%arg0: i32) -> (i32, i32) {
    %c0_i32 = arith.constant 0 : i32
    %c0_i32_0 = arith.constant 0 : i32
    %c0_i32_1 = arith.constant 0 : i32
    return %c0_i32, %c0_i32_0 : i32, i32
  }
  func.func @transform_6(%arg0: i32) -> (i32, i32) {
    %c0_i32 = arith.constant 0 : i32
    %c0_i32_0 = arith.constant 0 : i32
    %c0_i32_1 = arith.constant 0 : i32
    return %c0_i32, %c0_i32_0 : i32, i32
  }
  func.func @transform_7(%arg0: i32) -> (i32, i32) {
    %c0_i32 = arith.constant 0 : i32
    %c0_i32_0 = arith.constant 0 : i32
    %c0_i32_1 = arith.constant 0 : i32
    return %c0_i32, %c0_i32_0 : i32, i32
  }
  func.func @transform_8(%arg0: i32) -> (i32, i32) {
    %c0_i32 = arith.constant 0 : i32
    %c0_i32_0 = arith.constant 0 : i32
    %c0_i32_1 = arith.constant 0 : i32
    return %c0_i32, %c0_i32_0 : i32, i32
  }
  func.func @transform_9(%arg0: i32) -> (i32, i32) {
    %c0_i32 = arith.constant 0 : i32
    %c0_i32_0 = arith.constant 0 : i32
    return %arg0, %c0_i32 : i32, i32
  }
}

module attributes {stable_mosaic.version = 11 : i64} {
  func.func @_node_encoder_kernel(%arg0: i32, %arg1: memref<8x8xf32, #tpu.memory_space<vmem>>, %arg2: memref<8x256xf32, #tpu.memory_space<vmem>>, %arg3: memref<8x256xbf16, #tpu.memory_space<vmem>>, %arg4: memref<1x256xf32, #tpu.memory_space<vmem>>, %arg5: memref<256x16xbf16, #tpu.memory_space<vmem>>, %arg6: memref<1x16xf32, #tpu.memory_space<vmem>>, %arg7: memref<1x16xf32, #tpu.memory_space<vmem>>, %arg8: memref<1x16xf32, #tpu.memory_space<vmem>>, %arg9: memref<16x16xbf16, #tpu.memory_space<vmem>>, %arg10: memref<1x16xf32, #tpu.memory_space<vmem>>, %arg11: memref<1x16xf32, #tpu.memory_space<vmem>>, %arg12: memref<1x16xf32, #tpu.memory_space<vmem>>, %arg13: memref<256x256xbf16, #tpu.memory_space<vmem>>, %arg14: memref<1x256xf32, #tpu.memory_space<vmem>>, %arg15: memref<256x512xbf16, #tpu.memory_space<vmem>>, %arg16: memref<1x512xf32, #tpu.memory_space<vmem>>, %arg17: memref<512x1024xbf16, #tpu.memory_space<vmem>>, %arg18: memref<1x1024xf32, #tpu.memory_space<vmem>>, %arg19: memref<1024x16xbf16, #tpu.memory_space<vmem>>, %arg20: memref<8x32xf32, #tpu.memory_space<vmem>>) attributes {dimension_semantics = [#tpu.dimension_semantics<parallel>], iteration_bounds = array<i64: 2>, scalar_prefetch = 0 : i64, scratch_operands = 0 : i64, tpu.core_type = #tpu.core_type<tc>, window_params = [{transform_indices = @transform_0, window_bounds = array<i64: 8, 8>}, {transform_indices = @transform_1, window_bounds = array<i64: 8, 256>}, {pipeline_mode = #tpu.pipeline_mode<synchronous>, transform_indices = @transform_2, window_bounds = array<i64: 8, 256>}, {pipeline_mode = #tpu.pipeline_mode<synchronous>, transform_indices = @transform_3, window_bounds = array<i64: 1, 256>}, {pipeline_mode = #tpu.pipeline_mode<synchronous>, transform_indices = @transform_4, window_bounds = array<i64: 256, 16>}, {pipeline_mode = #tpu.pipeline_mode<synchronous>, transform_indices = @transform_5, window_bounds = array<i64: 1, 16>}, {pipeline_mode = #tpu.pipeline_mode<synchronous>, transform_indices = @transform_6, window_bounds = array<i64: 1, 16>}, {pipeline_mode = #tpu.pipeline_mode<synchronous>, transform_indices = @transform_7, window_bounds = array<i64: 1, 16>}, {pipeline_mode = #tpu.pipeline_mode<synchronous>, transform_indices = @transform_8, window_bounds = array<i64: 16, 16>}, {pipeline_mode = #tpu.pipeline_mode<synchronous>, transform_indices = @transform_9, window_bounds = array<i64: 1, 16>}, {pipeline_mode = #tpu.pipeline_mode<synchronous>, transform_indices = @transform_10, window_bounds = array<i64: 1, 16>}, {pipeline_mode = #tpu.pipeline_mode<synchronous>, transform_indices = @transform_11, window_bounds = array<i64: 1, 16>}, {pipeline_mode = #tpu.pipeline_mode<synchronous>, transform_indices = @transform_12, window_bounds = array<i64: 256, 256>}, {pipeline_mode = #tpu.pipeline_mode<synchronous>, transform_indices = @transform_13, window_bounds = array<i64: 1, 256>}, {pipeline_mode = #tpu.pipeline_mode<synchronous>, transform_indices = @transform_14, window_bounds = array<i64: 256, 512>}, {pipeline_mode = #tpu.pipeline_mode<synchronous>, transform_indices = @transform_15, window_bounds = array<i64: 1, 512>}, {pipeline_mode = #tpu.pipeline_mode<synchronous>, transform_indices = @transform_16, window_bounds = array<i64: 512, 1024>}, {pipeline_mode = #tpu.pipeline_mode<synchronous>, transform_indices = @transform_17, window_bounds = array<i64: 1, 1024>}, {pipeline_mode = #tpu.pipeline_mode<synchronous>, transform_indices = @transform_18, window_bounds = array<i64: 1024, 16>}, {transform_indices = @transform_19, window_bounds = array<i64: 8, 32>}]} {
    %c0 = arith.constant 0 : index
    %c0_0 = arith.constant 0 : index
    %0 = vector.load %arg1[%c0, %c0_0] : memref<8x8xf32, #tpu.memory_space<vmem>>, vector<8x8xf32>
    %1 = arith.truncf %0 : vector<8x8xf32> to vector<8x8xbf16>
    %c0_1 = arith.constant 0 : index
    %c0_2 = arith.constant 0 : index
    %2 = vector.load %arg3[%c0_1, %c0_2] : memref<8x256xbf16, #tpu.memory_space<vmem>>, vector<8x256xbf16>
    %cst = arith.constant dense<0.000000e+00> : vector<8x256xf32>
    %3 = tpu.matmul %1, %2, %cst {dimension_numbers = #tpu.dot_dimension_numbers<[1], [0], [0], [1], [0, 0, 1, 1], [], []>} : vector<8x8xbf16>, vector<8x256xbf16>, vector<8x256xf32> -> vector<8x256xf32>
    %c0_3 = arith.constant 0 : index
    %c0_4 = arith.constant 0 : index
    %4 = vector.load %arg4[%c0_3, %c0_4] : memref<1x256xf32, #tpu.memory_space<vmem>>, vector<1x256xf32>
    %5 = vector.broadcast %4 : vector<1x256xf32> to vector<8x256xf32>
    %6 = arith.addf %3, %5 : vector<8x256xf32>
    %cst_5 = arith.constant 0.000000e+00 : f32
    %7 = vector.broadcast %cst_5 : f32 to vector<8x256xf32>
    %8 = arith.maximumf %6, %7 : vector<8x256xf32>
    %9 = arith.truncf %8 : vector<8x256xf32> to vector<8x256xbf16>
    %c0_6 = arith.constant 0 : index
    %c0_7 = arith.constant 0 : index
    %10 = vector.load %arg5[%c0_6, %c0_7] : memref<256x16xbf16, #tpu.memory_space<vmem>>, vector<256x16xbf16>
    %cst_8 = arith.constant dense<0.000000e+00> : vector<8x16xf32>
    %11 = tpu.matmul %9, %10, %cst_8 {dimension_numbers = #tpu.dot_dimension_numbers<[1], [0], [0], [1], [0, 0, 1, 1], [], []>} : vector<8x256xbf16>, vector<256x16xbf16>, vector<8x16xf32> -> vector<8x16xf32>
    %c0_9 = arith.constant 0 : index
    %c0_10 = arith.constant 0 : index
    %12 = vector.load %arg6[%c0_9, %c0_10] : memref<1x16xf32, #tpu.memory_space<vmem>>, vector<1x16xf32>
    %13 = vector.broadcast %12 : vector<1x16xf32> to vector<8x16xf32>
    %14 = arith.addf %11, %13 : vector<8x16xf32>
    %c0_11 = arith.constant 0 : index
    %c0_12 = arith.constant 0 : index
    %15 = vector.load %arg7[%c0_11, %c0_12] : memref<1x16xf32, #tpu.memory_space<vmem>>, vector<1x16xf32>
    %c0_13 = arith.constant 0 : index
    %c0_14 = arith.constant 0 : index
    %16 = vector.load %arg8[%c0_13, %c0_14] : memref<1x16xf32, #tpu.memory_space<vmem>>, vector<1x16xf32>
    %cst_15 = arith.constant dense<0.000000e+00> : vector<8xf32>
    %17 = vector.multi_reduction <add>, %14, %cst_15 [1] : vector<8x16xf32> to vector<8xf32>
    %18 = vector.shape_cast %17 : vector<8xf32> to vector<8x1xf32>
    %cst_16 = arith.constant 1.600000e+01 : f32
    %19 = vector.broadcast %cst_16 : f32 to vector<8x1xf32>
    %20 = arith.divf %18, %19 : vector<8x1xf32>
    %21 = vector.broadcast %20 : vector<8x1xf32> to vector<8x16xf32>
    %22 = arith.subf %14, %21 : vector<8x16xf32>
    %23 = arith.mulf %22, %22 : vector<8x16xf32>
    %cst_17 = arith.constant dense<0.000000e+00> : vector<8xf32>
    %24 = vector.multi_reduction <add>, %23, %cst_17 [1] : vector<8x16xf32> to vector<8xf32>
    %25 = vector.shape_cast %24 : vector<8xf32> to vector<8x1xf32>
    %cst_18 = arith.constant 1.600000e+01 : f32
    %26 = vector.broadcast %cst_18 : f32 to vector<8x1xf32>
    %27 = arith.divf %25, %26 : vector<8x1xf32>
    %28 = vector.broadcast %20 : vector<8x1xf32> to vector<8x16xf32>
    %29 = arith.subf %14, %28 : vector<8x16xf32>
    %cst_19 = arith.constant 9.99999974E-6 : f32
    %30 = vector.broadcast %cst_19 : f32 to vector<8x1xf32>
    %31 = arith.addf %27, %30 : vector<8x1xf32>
    %32 = math.rsqrt %31 : vector<8x1xf32>
    %33 = vector.broadcast %32 : vector<8x1xf32> to vector<8x16xf32>
    %34 = arith.mulf %29, %33 : vector<8x16xf32>
    %35 = vector.broadcast %15 : vector<1x16xf32> to vector<8x16xf32>
    %36 = arith.mulf %34, %35 : vector<8x16xf32>
    %37 = vector.broadcast %16 : vector<1x16xf32> to vector<8x16xf32>
    %38 = arith.addf %36, %37 : vector<8x16xf32>
    %cst_20 = arith.constant 0.000000e+00 : f32
    %39 = vector.broadcast %cst_20 : f32 to vector<8x16xf32>
    %40 = arith.maximumf %38, %39 : vector<8x16xf32>
    %41 = arith.truncf %40 : vector<8x16xf32> to vector<8x16xbf16>
    %c0_21 = arith.constant 0 : index
    %c0_22 = arith.constant 0 : index
    %42 = vector.load %arg9[%c0_21, %c0_22] : memref<16x16xbf16, #tpu.memory_space<vmem>>, vector<16x16xbf16>
    %cst_23 = arith.constant dense<0.000000e+00> : vector<8x16xf32>
    %43 = tpu.matmul %41, %42, %cst_23 {dimension_numbers = #tpu.dot_dimension_numbers<[1], [0], [0], [1], [0, 0, 1, 1], [], []>} : vector<8x16xbf16>, vector<16x16xbf16>, vector<8x16xf32> -> vector<8x16xf32>
    %c0_24 = arith.constant 0 : index
    %c0_25 = arith.constant 0 : index
    %44 = vector.load %arg10[%c0_24, %c0_25] : memref<1x16xf32, #tpu.memory_space<vmem>>, vector<1x16xf32>
    %45 = vector.broadcast %44 : vector<1x16xf32> to vector<8x16xf32>
    %46 = arith.addf %43, %45 : vector<8x16xf32>
    %c0_26 = arith.constant 0 : index
    %c0_27 = arith.constant 0 : index
    %47 = vector.load %arg11[%c0_26, %c0_27] : memref<1x16xf32, #tpu.memory_space<vmem>>, vector<1x16xf32>
    %c0_28 = arith.constant 0 : index
    %c0_29 = arith.constant 0 : index
    %48 = vector.load %arg12[%c0_28, %c0_29] : memref<1x16xf32, #tpu.memory_space<vmem>>, vector<1x16xf32>
    %cst_30 = arith.constant dense<0.000000e+00> : vector<8xf32>
    %49 = vector.multi_reduction <add>, %46, %cst_30 [1] : vector<8x16xf32> to vector<8xf32>
    %50 = vector.shape_cast %49 : vector<8xf32> to vector<8x1xf32>
    %cst_31 = arith.constant 1.600000e+01 : f32
    %51 = vector.broadcast %cst_31 : f32 to vector<8x1xf32>
    %52 = arith.divf %50, %51 : vector<8x1xf32>
    %53 = vector.broadcast %52 : vector<8x1xf32> to vector<8x16xf32>
    %54 = arith.subf %46, %53 : vector<8x16xf32>
    %55 = arith.mulf %54, %54 : vector<8x16xf32>
    %cst_32 = arith.constant dense<0.000000e+00> : vector<8xf32>
    %56 = vector.multi_reduction <add>, %55, %cst_32 [1] : vector<8x16xf32> to vector<8xf32>
    %57 = vector.shape_cast %56 : vector<8xf32> to vector<8x1xf32>
    %cst_33 = arith.constant 1.600000e+01 : f32
    %58 = vector.broadcast %cst_33 : f32 to vector<8x1xf32>
    %59 = arith.divf %57, %58 : vector<8x1xf32>
    %60 = vector.broadcast %52 : vector<8x1xf32> to vector<8x16xf32>
    %61 = arith.subf %46, %60 : vector<8x16xf32>
    %cst_34 = arith.constant 9.99999974E-6 : f32
    %62 = vector.broadcast %cst_34 : f32 to vector<8x1xf32>
    %63 = arith.addf %59, %62 : vector<8x1xf32>
    %64 = math.rsqrt %63 : vector<8x1xf32>
    %65 = vector.broadcast %64 : vector<8x1xf32> to vector<8x16xf32>
    %66 = arith.mulf %61, %65 : vector<8x16xf32>
    %67 = vector.broadcast %47 : vector<1x16xf32> to vector<8x16xf32>
    %68 = arith.mulf %66, %67 : vector<8x16xf32>
    %69 = vector.broadcast %48 : vector<1x16xf32> to vector<8x16xf32>
    %70 = arith.addf %68, %69 : vector<8x16xf32>
    %71 = math.exp %70 : vector<8x16xf32>
    %cst_35 = arith.constant 1.000000e+00 : f32
    %72 = vector.broadcast %cst_35 : f32 to vector<8x16xf32>
    %73 = arith.addf %72, %71 : vector<8x16xf32>
    %74 = arith.mulf %73, %73 : vector<8x16xf32>
    %cst_36 = arith.constant 1.000000e+00 : f32
    %75 = vector.broadcast %cst_36 : f32 to vector<8x16xf32>
    %76 = arith.addf %74, %75 : vector<8x16xf32>
    %cst_37 = arith.constant 2.000000e+00 : f32
    %77 = vector.broadcast %cst_37 : f32 to vector<8x16xf32>
    %78 = arith.divf %77, %76 : vector<8x16xf32>
    %cst_38 = arith.constant 1.000000e+00 : f32
    %79 = vector.broadcast %cst_38 : f32 to vector<8x16xf32>
    %80 = arith.subf %79, %78 : vector<8x16xf32>
    %81 = arith.mulf %70, %80 : vector<8x16xf32>
    %c0_39 = arith.constant 0 : index
    %c0_40 = arith.constant 0 : index
    %82 = vector.load %arg2[%c0_39, %c0_40] : memref<8x256xf32, #tpu.memory_space<vmem>>, vector<8x256xf32>
    %83 = arith.truncf %82 : vector<8x256xf32> to vector<8x256xbf16>
    %c0_41 = arith.constant 0 : index
    %c0_42 = arith.constant 0 : index
    %84 = vector.load %arg13[%c0_41, %c0_42] : memref<256x256xbf16, #tpu.memory_space<vmem>>, vector<256x256xbf16>
    %cst_43 = arith.constant dense<0.000000e+00> : vector<8x256xf32>
    %85 = tpu.matmul %83, %84, %cst_43 {dimension_numbers = #tpu.dot_dimension_numbers<[1], [0], [0], [1], [0, 0, 1, 1], [], []>} : vector<8x256xbf16>, vector<256x256xbf16>, vector<8x256xf32> -> vector<8x256xf32>
    %c0_44 = arith.constant 0 : index
    %c0_45 = arith.constant 0 : index
    %86 = vector.load %arg14[%c0_44, %c0_45] : memref<1x256xf32, #tpu.memory_space<vmem>>, vector<1x256xf32>
    %87 = vector.broadcast %86 : vector<1x256xf32> to vector<8x256xf32>
    %88 = arith.addf %85, %87 : vector<8x256xf32>
    %89 = math.exp %88 : vector<8x256xf32>
    %cst_46 = arith.constant 1.000000e+00 : f32
    %90 = vector.broadcast %cst_46 : f32 to vector<8x256xf32>
    %91 = arith.addf %90, %89 : vector<8x256xf32>
    %92 = arith.mulf %91, %91 : vector<8x256xf32>
    %cst_47 = arith.constant 1.000000e+00 : f32
    %93 = vector.broadcast %cst_47 : f32 to vector<8x256xf32>
    %94 = arith.addf %92, %93 : vector<8x256xf32>
    %cst_48 = arith.constant 2.000000e+00 : f32
    %95 = vector.broadcast %cst_48 : f32 to vector<8x256xf32>
    %96 = arith.divf %95, %94 : vector<8x256xf32>
    %cst_49 = arith.constant 1.000000e+00 : f32
    %97 = vector.broadcast %cst_49 : f32 to vector<8x256xf32>
    %98 = arith.subf %97, %96 : vector<8x256xf32>
    %99 = arith.mulf %88, %98 : vector<8x256xf32>
    %100 = arith.truncf %99 : vector<8x256xf32> to vector<8x256xbf16>
    %c0_50 = arith.constant 0 : index
    %c0_51 = arith.constant 0 : index
    %101 = vector.load %arg15[%c0_50, %c0_51] : memref<256x512xbf16, #tpu.memory_space<vmem>>, vector<256x512xbf16>
    %cst_52 = arith.constant dense<0.000000e+00> : vector<8x512xf32>
    %102 = tpu.matmul %100, %101, %cst_52 {dimension_numbers = #tpu.dot_dimension_numbers<[1], [0], [0], [1], [0, 0, 1, 1], [], []>} : vector<8x256xbf16>, vector<256x512xbf16>, vector<8x512xf32> -> vector<8x512xf32>
    %c0_53 = arith.constant 0 : index
    %c0_54 = arith.constant 0 : index
    %103 = vector.load %arg16[%c0_53, %c0_54] : memref<1x512xf32, #tpu.memory_space<vmem>>, vector<1x512xf32>
    %104 = vector.broadcast %103 : vector<1x512xf32> to vector<8x512xf32>
    %105 = arith.addf %102, %104 : vector<8x512xf32>
    %106 = math.exp %105 : vector<8x512xf32>
    %cst_55 = arith.constant 1.000000e+00 : f32
    %107 = vector.broadcast %cst_55 : f32 to vector<8x512xf32>
    %108 = arith.addf %107, %106 : vector<8x512xf32>
    %109 = arith.mulf %108, %108 : vector<8x512xf32>
    %cst_56 = arith.constant 1.000000e+00 : f32
    %110 = vector.broadcast %cst_56 : f32 to vector<8x512xf32>
    %111 = arith.addf %109, %110 : vector<8x512xf32>
    %cst_57 = arith.constant 2.000000e+00 : f32
    %112 = vector.broadcast %cst_57 : f32 to vector<8x512xf32>
    %113 = arith.divf %112, %111 : vector<8x512xf32>
    %cst_58 = arith.constant 1.000000e+00 : f32
    %114 = vector.broadcast %cst_58 : f32 to vector<8x512xf32>
    %115 = arith.subf %114, %113 : vector<8x512xf32>
    %116 = arith.mulf %105, %115 : vector<8x512xf32>
    %117 = arith.truncf %116 : vector<8x512xf32> to vector<8x512xbf16>
    %c0_59 = arith.constant 0 : index
    %c0_60 = arith.constant 0 : index
    %118 = vector.load %arg17[%c0_59, %c0_60] : memref<512x1024xbf16, #tpu.memory_space<vmem>>, vector<512x1024xbf16>
    %cst_61 = arith.constant dense<0.000000e+00> : vector<8x1024xf32>
    %119 = tpu.matmul %117, %118, %cst_61 {dimension_numbers = #tpu.dot_dimension_numbers<[1], [0], [0], [1], [0, 0, 1, 1], [], []>} : vector<8x512xbf16>, vector<512x1024xbf16>, vector<8x1024xf32> -> vector<8x1024xf32>
    %c0_62 = arith.constant 0 : index
    %c0_63 = arith.constant 0 : index
    %120 = vector.load %arg18[%c0_62, %c0_63] : memref<1x1024xf32, #tpu.memory_space<vmem>>, vector<1x1024xf32>
    %121 = vector.broadcast %120 : vector<1x1024xf32> to vector<8x1024xf32>
    %122 = arith.addf %119, %121 : vector<8x1024xf32>
    %123 = math.exp %122 : vector<8x1024xf32>
    %cst_64 = arith.constant 1.000000e+00 : f32
    %124 = vector.broadcast %cst_64 : f32 to vector<8x1024xf32>
    %125 = arith.addf %124, %123 : vector<8x1024xf32>
    %126 = arith.mulf %125, %125 : vector<8x1024xf32>
    %cst_65 = arith.constant 1.000000e+00 : f32
    %127 = vector.broadcast %cst_65 : f32 to vector<8x1024xf32>
    %128 = arith.addf %126, %127 : vector<8x1024xf32>
    %cst_66 = arith.constant 2.000000e+00 : f32
    %129 = vector.broadcast %cst_66 : f32 to vector<8x1024xf32>
    %130 = arith.divf %129, %128 : vector<8x1024xf32>
    %cst_67 = arith.constant 1.000000e+00 : f32
    %131 = vector.broadcast %cst_67 : f32 to vector<8x1024xf32>
    %132 = arith.subf %131, %130 : vector<8x1024xf32>
    %133 = arith.mulf %122, %132 : vector<8x1024xf32>
    %134 = arith.truncf %133 : vector<8x1024xf32> to vector<8x1024xbf16>
    %c0_68 = arith.constant 0 : index
    %c0_69 = arith.constant 0 : index
    %135 = vector.load %arg19[%c0_68, %c0_69] : memref<1024x16xbf16, #tpu.memory_space<vmem>>, vector<1024x16xbf16>
    %cst_70 = arith.constant dense<0.000000e+00> : vector<8x16xf32>
    %136 = tpu.matmul %134, %135, %cst_70 {dimension_numbers = #tpu.dot_dimension_numbers<[1], [0], [0], [1], [0, 0, 1, 1], [], []>} : vector<8x1024xbf16>, vector<1024x16xbf16>, vector<8x16xf32> -> vector<8x16xf32>
    %137 = tpu.concatenate %81, %136 in 1 : vector<8x16xf32>, vector<8x16xf32> -> vector<8x32xf32>
    %c0_71 = arith.constant 0 : index
    %c0_72 = arith.constant 0 : index
    %138 = vector.load %arg20[%c0_71, %c0_72] : memref<8x32xf32, #tpu.memory_space<vmem>>, vector<8x32xf32>
    tpu.vector_store %arg20[%c0_71, %c0_72], %137 {strides = array<i32>} : memref<8x32xf32, #tpu.memory_space<vmem>>, vector<8x32xf32>,
    return
  }
  func.func @transform_0(%arg0: i32) -> (i32, i32) {
    %c0_i32 = arith.constant 0 : i32
    %c0_i32_0 = arith.constant 0 : i32
    return %arg0, %c0_i32 : i32, i32
  }
  func.func @transform_1(%arg0: i32) -> (i32, i32) {
    %c0_i32 = arith.constant 0 : i32
    %c0_i32_0 = arith.constant 0 : i32
    return %arg0, %c0_i32 : i32, i32
  }
  func.func @transform_2(%arg0: i32) -> (i32, i32) {
    %c0_i32 = arith.constant 0 : i32
    %c0_i32_0 = arith.constant 0 : i32
    %c0_i32_1 = arith.constant 0 : i32
    return %c0_i32, %c0_i32_0 : i32, i32
  }
  func.func @transform_3(%arg0: i32) -> (i32, i32) {
    %c0_i32 = arith.constant 0 : i32
    %c0_i32_0 = arith.constant 0 : i32
    %c0_i32_1 = arith.constant 0 : i32
    return %c0_i32, %c0_i32_0 : i32, i32
  }
  func.func @transform_4(%arg0: i32) -> (i32, i32) {
    %c0_i32 = arith.constant 0 : i32
    %c0_i32_0 = arith.constant 0 : i32
    %c0_i32_1 = arith.constant 0 : i32
    return %c0_i32, %c0_i32_0 : i32, i32
  }
  func.func @transform_5(%arg0: i32) -> (i32, i32) {
    %c0_i32 = arith.constant 0 : i32
    %c0_i32_0 = arith.constant 0 : i32
    %c0_i32_1 = arith.constant 0 : i32
    return %c0_i32, %c0_i32_0 : i32, i32
  }
  func.func @transform_6(%arg0: i32) -> (i32, i32) {
    %c0_i32 = arith.constant 0 : i32
    %c0_i32_0 = arith.constant 0 : i32
    %c0_i32_1 = arith.constant 0 : i32
    return %c0_i32, %c0_i32_0 : i32, i32
  }
  func.func @transform_7(%arg0: i32) -> (i32, i32) {
    %c0_i32 = arith.constant 0 : i32
    %c0_i32_0 = arith.constant 0 : i32
    %c0_i32_1 = arith.constant 0 : i32
    return %c0_i32, %c0_i32_0 : i32, i32
  }
  func.func @transform_8(%arg0: i32) -> (i32, i32) {
    %c0_i32 = arith.constant 0 : i32
    %c0_i32_0 = arith.constant 0 : i32
    %c0_i32_1 = arith.constant 0 : i32
    return %c0_i32, %c0_i32_0 : i32, i32
  }
  func.func @transform_9(%arg0: i32) -> (i32, i32) {
    %c0_i32 = arith.constant 0 : i32
    %c0_i32_0 = arith.constant 0 : i32
    %c0_i32_1 = arith.constant 0 : i32
    return %c0_i32, %c0_i32_0 : i32, i32
  }
  func.func @transform_10(%arg0: i32) -> (i32, i32) {
    %c0_i32 = arith.constant 0 : i32
    %c0_i32_0 = arith.constant 0 : i32
    %c0_i32_1 = arith.constant 0 : i32
    return %c0_i32, %c0_i32_0 : i32, i32
  }
  func.func @transform_11(%arg0: i32) -> (i32, i32) {
    %c0_i32 = arith.constant 0 : i32
    %c0_i32_0 = arith.constant 0 : i32
    %c0_i32_1 = arith.constant 0 : i32
    return %c0_i32, %c0_i32_0 : i32, i32
  }
  func.func @transform_12(%arg0: i32) -> (i32, i32) {
    %c0_i32 = arith.constant 0 : i32
    %c0_i32_0 = arith.constant 0 : i32
    %c0_i32_1 = arith.constant 0 : i32
    return %c0_i32, %c0_i32_0 : i32, i32
  }
  func.func @transform_13(%arg0: i32) -> (i32, i32) {
    %c0_i32 = arith.constant 0 : i32
    %c0_i32_0 = arith.constant 0 : i32
    %c0_i32_1 = arith.constant 0 : i32
    return %c0_i32, %c0_i32_0 : i32, i32
  }
  func.func @transform_14(%arg0: i32) -> (i32, i32) {
    %c0_i32 = arith.constant 0 : i32
    %c0_i32_0 = arith.constant 0 : i32
    %c0_i32_1 = arith.constant 0 : i32
    return %c0_i32, %c0_i32_0 : i32, i32
  }
  func.func @transform_15(%arg0: i32) -> (i32, i32) {
    %c0_i32 = arith.constant 0 : i32
    %c0_i32_0 = arith.constant 0 : i32
    %c0_i32_1 = arith.constant 0 : i32
    return %c0_i32, %c0_i32_0 : i32, i32
  }
  func.func @transform_16(%arg0: i32) -> (i32, i32) {
    %c0_i32 = arith.constant 0 : i32
    %c0_i32_0 = arith.constant 0 : i32
    %c0_i32_1 = arith.constant 0 : i32
    return %c0_i32, %c0_i32_0 : i32, i32
  }
  func.func @transform_17(%arg0: i32) -> (i32, i32) {
    %c0_i32 = arith.constant 0 : i32
    %c0_i32_0 = arith.constant 0 : i32
    %c0_i32_1 = arith.constant 0 : i32
    return %c0_i32, %c0_i32_0 : i32, i32
  }
  func.func @transform_18(%arg0: i32) -> (i32, i32) {
    %c0_i32 = arith.constant 0 : i32
    %c0_i32_0 = arith.constant 0 : i32
    %c0_i32_1 = arith.constant 0 : i32
    return %c0_i32, %c0_i32_0 : i32, i32
  }
  func.func @transform_19(%arg0: i32) -> (i32, i32) {
    %c0_i32 = arith.constant 0 : i32
    %c0_i32_0 = arith.constant 0 : i32
    return %arg0, %c0_i32 : i32, i32
  }
}

module attributes {stable_mosaic.version = 11 : i64} {
  func.func @_mlp_kernel(%arg0: i32, %arg1: memref<8x48xf32, #tpu.memory_space<vmem>>, %arg2: memref<48x32xbf16, #tpu.memory_space<vmem>>, %arg3: memref<1x32xf32, #tpu.memory_space<vmem>>, %arg4: memref<1x32xf32, #tpu.memory_space<vmem>>, %arg5: memref<1x32xf32, #tpu.memory_space<vmem>>, %arg6: memref<8x32xf32, #tpu.memory_space<vmem>>) attributes {dimension_semantics = [#tpu.dimension_semantics<parallel>], iteration_bounds = array<i64: 2>, scalar_prefetch = 0 : i64, scratch_operands = 0 : i64, tpu.core_type = #tpu.core_type<tc>, window_params = [{transform_indices = @transform_0, window_bounds = array<i64: 8, 48>}, {pipeline_mode = #tpu.pipeline_mode<synchronous>, transform_indices = @transform_1, window_bounds = array<i64: 48, 32>}, {pipeline_mode = #tpu.pipeline_mode<synchronous>, transform_indices = @transform_2, window_bounds = array<i64: 1, 32>}, {pipeline_mode = #tpu.pipeline_mode<synchronous>, transform_indices = @transform_3, window_bounds = array<i64: 1, 32>}, {pipeline_mode = #tpu.pipeline_mode<synchronous>, transform_indices = @transform_4, window_bounds = array<i64: 1, 32>}, {transform_indices = @transform_5, window_bounds = array<i64: 8, 32>}]} {
    %c0 = arith.constant 0 : index
    %c0_0 = arith.constant 0 : index
    %0 = vector.load %arg1[%c0, %c0_0] : memref<8x48xf32, #tpu.memory_space<vmem>>, vector<8x48xf32>
    %c0_1 = arith.constant 0 : index
    %c0_2 = arith.constant 0 : index
    %1 = vector.load %arg2[%c0_1, %c0_2] : memref<48x32xbf16, #tpu.memory_space<vmem>>, vector<48x32xbf16>
    %c0_3 = arith.constant 0 : index
    %c0_4 = arith.constant 0 : index
    %2 = vector.load %arg3[%c0_3, %c0_4] : memref<1x32xf32, #tpu.memory_space<vmem>>, vector<1x32xf32>
    %3 = arith.truncf %0 : vector<8x48xf32> to vector<8x48xbf16>
    %cst = arith.constant dense<0.000000e+00> : vector<8x32xf32>
    %4 = tpu.matmul %3, %1, %cst {dimension_numbers = #tpu.dot_dimension_numbers<[1], [0], [0], [1], [0, 0, 1, 1], [], []>} : vector<8x48xbf16>, vector<48x32xbf16>, vector<8x32xf32> -> vector<8x32xf32>
    %5 = vector.broadcast %2 : vector<1x32xf32> to vector<8x32xf32>
    %6 = arith.addf %4, %5 : vector<8x32xf32>
    %c0_5 = arith.constant 0 : index
    %c0_6 = arith.constant 0 : index
    %7 = vector.load %arg4[%c0_5, %c0_6] : memref<1x32xf32, #tpu.memory_space<vmem>>, vector<1x32xf32>
    %c0_7 = arith.constant 0 : index
    %c0_8 = arith.constant 0 : index
    %8 = vector.load %arg5[%c0_7, %c0_8] : memref<1x32xf32, #tpu.memory_space<vmem>>, vector<1x32xf32>
    %cst_9 = arith.constant dense<0.000000e+00> : vector<8xf32>
    %9 = vector.multi_reduction <add>, %6, %cst_9 [1] : vector<8x32xf32> to vector<8xf32>
    %10 = vector.shape_cast %9 : vector<8xf32> to vector<8x1xf32>
    %cst_10 = arith.constant 3.200000e+01 : f32
    %11 = vector.broadcast %cst_10 : f32 to vector<8x1xf32>
    %12 = arith.divf %10, %11 : vector<8x1xf32>
    %13 = vector.broadcast %12 : vector<8x1xf32> to vector<8x32xf32>
    %14 = arith.subf %6, %13 : vector<8x32xf32>
    %15 = arith.mulf %14, %14 : vector<8x32xf32>
    %cst_11 = arith.constant dense<0.000000e+00> : vector<8xf32>
    %16 = vector.multi_reduction <add>, %15, %cst_11 [1] : vector<8x32xf32> to vector<8xf32>
    %17 = vector.shape_cast %16 : vector<8xf32> to vector<8x1xf32>
    %cst_12 = arith.constant 3.200000e+01 : f32
    %18 = vector.broadcast %cst_12 : f32 to vector<8x1xf32>
    %19 = arith.divf %17, %18 : vector<8x1xf32>
    %20 = vector.broadcast %12 : vector<8x1xf32> to vector<8x32xf32>
    %21 = arith.subf %6, %20 : vector<8x32xf32>
    %cst_13 = arith.constant 9.99999974E-6 : f32
    %22 = vector.broadcast %cst_13 : f32 to vector<8x1xf32>
    %23 = arith.addf %19, %22 : vector<8x1xf32>
    %24 = math.rsqrt %23 : vector<8x1xf32>
    %25 = vector.broadcast %24 : vector<8x1xf32> to vector<8x32xf32>
    %26 = arith.mulf %21, %25 : vector<8x32xf32>
    %27 = vector.broadcast %7 : vector<1x32xf32> to vector<8x32xf32>
    %28 = arith.mulf %26, %27 : vector<8x32xf32>
    %29 = vector.broadcast %8 : vector<1x32xf32> to vector<8x32xf32>
    %30 = arith.addf %28, %29 : vector<8x32xf32>
    %31 = math.exp %30 : vector<8x32xf32>
    %cst_14 = arith.constant 1.000000e+00 : f32
    %32 = vector.broadcast %cst_14 : f32 to vector<8x32xf32>
    %33 = arith.addf %32, %31 : vector<8x32xf32>
    %34 = arith.mulf %33, %33 : vector<8x32xf32>
    %cst_15 = arith.constant 1.000000e+00 : f32
    %35 = vector.broadcast %cst_15 : f32 to vector<8x32xf32>
    %36 = arith.addf %34, %35 : vector<8x32xf32>
    %cst_16 = arith.constant 2.000000e+00 : f32
    %37 = vector.broadcast %cst_16 : f32 to vector<8x32xf32>
    %38 = arith.divf %37, %36 : vector<8x32xf32>
    %cst_17 = arith.constant 1.000000e+00 : f32
    %39 = vector.broadcast %cst_17 : f32 to vector<8x32xf32>
    %40 = arith.subf %39, %38 : vector<8x32xf32>
    %41 = arith.mulf %30, %40 : vector<8x32xf32>
    %c0_18 = arith.constant 0 : index
    %c0_19 = arith.constant 0 : index
    %42 = vector.load %arg6[%c0_18, %c0_19] : memref<8x32xf32, #tpu.memory_space<vmem>>, vector<8x32xf32>
    tpu.vector_store %arg6[%c0_18, %c0_19], %41 {strides = array<i32>} : memref<8x32xf32, #tpu.memory_space<vmem>>, vector<8x32xf32>,
    return
  }
  func.func @transform_0(%arg0: i32) -> (i32, i32) {
    %c0_i32 = arith.constant 0 : i32
    %c0_i32_0 = arith.constant 0 : i32
    return %arg0, %c0_i32 : i32, i32
  }
  func.func @transform_1(%arg0: i32) -> (i32, i32) {
    %c0_i32 = arith.constant 0 : i32
    %c0_i32_0 = arith.constant 0 : i32
    %c0_i32_1 = arith.constant 0 : i32
    return %c0_i32, %c0_i32_0 : i32, i32
  }
  func.func @transform_2(%arg0: i32) -> (i32, i32) {
    %c0_i32 = arith.constant 0 : i32
    %c0_i32_0 = arith.constant 0 : i32
    %c0_i32_1 = arith.constant 0 : i32
    return %c0_i32, %c0_i32_0 : i32, i32
  }
  func.func @transform_3(%arg0: i32) -> (i32, i32) {
    %c0_i32 = arith.constant 0 : i32
    %c0_i32_0 = arith.constant 0 : i32
    %c0_i32_1 = arith.constant 0 : i32
    return %c0_i32, %c0_i32_0 : i32, i32
  }
  func.func @transform_4(%arg0: i32) -> (i32, i32) {
    %c0_i32 = arith.constant 0 : i32
    %c0_i32_0 = arith.constant 0 : i32
    %c0_i32_1 = arith.constant 0 : i32
    return %c0_i32, %c0_i32_0 : i32, i32
  }
  func.func @transform_5(%arg0: i32) -> (i32, i32) {
    %c0_i32 = arith.constant 0 : i32
    %c0_i32_0 = arith.constant 0 : i32
    return %arg0, %c0_i32 : i32, i32
  }
}

module attributes {stable_mosaic.version = 11 : i64} {
  func.func @_head_kernel(%arg0: i32, %arg1: memref<8x64xf32, #tpu.memory_space<vmem>>, %arg2: memref<64x128xbf16, #tpu.memory_space<vmem>>, %arg3: memref<1x128xf32, #tpu.memory_space<vmem>>, %arg4: memref<1x128xf32, #tpu.memory_space<vmem>>, %arg5: memref<1x128xf32, #tpu.memory_space<vmem>>, %arg6: memref<128x128xbf16, #tpu.memory_space<vmem>>, %arg7: memref<128x128xbf16, #tpu.memory_space<vmem>>, %arg8: memref<1x128xf32, #tpu.memory_space<vmem>>, %arg9: memref<1x128xf32, #tpu.memory_space<vmem>>, %arg10: memref<1x128xf32, #tpu.memory_space<vmem>>, %arg11: memref<128x128xbf16, #tpu.memory_space<vmem>>, %arg12: memref<1x128xf32, #tpu.memory_space<vmem>>, %arg13: memref<8x128xf32, #tpu.memory_space<vmem>>) attributes {dimension_semantics = [#tpu.dimension_semantics<parallel>], iteration_bounds = array<i64: 2>, scalar_prefetch = 0 : i64, scratch_operands = 0 : i64, tpu.core_type = #tpu.core_type<tc>, window_params = [{transform_indices = @transform_0, window_bounds = array<i64: 8, 64>}, {pipeline_mode = #tpu.pipeline_mode<synchronous>, transform_indices = @transform_1, window_bounds = array<i64: 64, 128>}, {pipeline_mode = #tpu.pipeline_mode<synchronous>, transform_indices = @transform_2, window_bounds = array<i64: 1, 128>}, {pipeline_mode = #tpu.pipeline_mode<synchronous>, transform_indices = @transform_3, window_bounds = array<i64: 1, 128>}, {pipeline_mode = #tpu.pipeline_mode<synchronous>, transform_indices = @transform_4, window_bounds = array<i64: 1, 128>}, {pipeline_mode = #tpu.pipeline_mode<synchronous>, transform_indices = @transform_5, window_bounds = array<i64: 128, 128>}, {pipeline_mode = #tpu.pipeline_mode<synchronous>, transform_indices = @transform_6, window_bounds = array<i64: 128, 128>}, {pipeline_mode = #tpu.pipeline_mode<synchronous>, transform_indices = @transform_7, window_bounds = array<i64: 1, 128>}, {pipeline_mode = #tpu.pipeline_mode<synchronous>, transform_indices = @transform_8, window_bounds = array<i64: 1, 128>}, {pipeline_mode = #tpu.pipeline_mode<synchronous>, transform_indices = @transform_9, window_bounds = array<i64: 1, 128>}, {pipeline_mode = #tpu.pipeline_mode<synchronous>, transform_indices = @transform_10, window_bounds = array<i64: 128, 128>}, {pipeline_mode = #tpu.pipeline_mode<synchronous>, transform_indices = @transform_11, window_bounds = array<i64: 1, 128>}, {transform_indices = @transform_12, window_bounds = array<i64: 8, 128>}]} {
    %0 = tpu.iota {dimensions = array<i32: 1>} : vector<1x128xi32>
    %c0 = arith.constant 0 : index
    %c0_0 = arith.constant 0 : index
    %1 = vector.load %arg1[%c0, %c0_0] : memref<8x64xf32, #tpu.memory_space<vmem>>, vector<8x64xf32>
    %2 = arith.truncf %1 : vector<8x64xf32> to vector<8x64xbf16>
    %c0_1 = arith.constant 0 : index
    %c0_2 = arith.constant 0 : index
    %3 = vector.load %arg2[%c0_1, %c0_2] : memref<64x128xbf16, #tpu.memory_space<vmem>>, vector<64x128xbf16>
    %cst = arith.constant dense<0.000000e+00> : vector<8x128xf32>
    %4 = tpu.matmul %2, %3, %cst {dimension_numbers = #tpu.dot_dimension_numbers<[1], [0], [0], [1], [0, 0, 1, 1], [], []>} : vector<8x64xbf16>, vector<64x128xbf16>, vector<8x128xf32> -> vector<8x128xf32>
    %c0_3 = arith.constant 0 : index
    %c0_4 = arith.constant 0 : index
    %5 = vector.load %arg3[%c0_3, %c0_4] : memref<1x128xf32, #tpu.memory_space<vmem>>, vector<1x128xf32>
    %6 = vector.broadcast %5 : vector<1x128xf32> to vector<8x128xf32>
    %7 = arith.addf %4, %6 : vector<8x128xf32>
    %8 = arith.truncf %7 : vector<8x128xf32> to vector<8x128xbf16>
    %c0_5 = arith.constant 0 : index
    %c0_6 = arith.constant 0 : index
    %9 = vector.load %arg6[%c0_5, %c0_6] : memref<128x128xbf16, #tpu.memory_space<vmem>>, vector<128x128xbf16>
    %cst_7 = arith.constant dense<0.000000e+00> : vector<8x128xf32>
    %10 = tpu.matmul %8, %9, %cst_7 {dimension_numbers = #tpu.dot_dimension_numbers<[1], [0], [0], [1], [0, 0, 1, 1], [], []>} : vector<8x128xbf16>, vector<128x128xbf16>, vector<8x128xf32> -> vector<8x128xf32>
    %11 = arith.subf %7, %10 : vector<8x128xf32>
    %12 = arith.mulf %11, %11 : vector<8x128xf32>
    %13 = arith.truncf %12 : vector<8x128xf32> to vector<8x128xbf16>
    %c0_8 = arith.constant 0 : index
    %c0_9 = arith.constant 0 : index
    %14 = vector.load %arg6[%c0_8, %c0_9] : memref<128x128xbf16, #tpu.memory_space<vmem>>, vector<128x128xbf16>
    %cst_10 = arith.constant dense<0.000000e+00> : vector<8x128xf32>
    %15 = tpu.matmul %13, %14, %cst_10 {dimension_numbers = #tpu.dot_dimension_numbers<[1], [0], [0], [1], [0, 0, 1, 1], [], []>} : vector<8x128xbf16>, vector<128x128xbf16>, vector<8x128xf32> -> vector<8x128xf32>
    %cst_11 = arith.constant 9.99999974E-6 : f32
    %16 = vector.broadcast %cst_11 : f32 to vector<8x128xf32>
    %17 = arith.addf %15, %16 : vector<8x128xf32>
    %18 = math.rsqrt %17 : vector<8x128xf32>
    %19 = arith.mulf %11, %18 : vector<8x128xf32>
    %c0_12 = arith.constant 0 : index
    %c0_13 = arith.constant 0 : index
    %20 = vector.load %arg4[%c0_12, %c0_13] : memref<1x128xf32, #tpu.memory_space<vmem>>, vector<1x128xf32>
    %21 = vector.broadcast %20 : vector<1x128xf32> to vector<8x128xf32>
    %22 = arith.mulf %19, %21 : vector<8x128xf32>
    %c0_14 = arith.constant 0 : index
    %c0_15 = arith.constant 0 : index
    %23 = vector.load %arg5[%c0_14, %c0_15] : memref<1x128xf32, #tpu.memory_space<vmem>>, vector<1x128xf32>
    %24 = vector.broadcast %23 : vector<1x128xf32> to vector<8x128xf32>
    %25 = arith.addf %22, %24 : vector<8x128xf32>
    %c96_i32 = arith.constant 96 : i32
    %26 = vector.broadcast %c96_i32 : i32 to vector<1x128xi32>
    %27 = arith.cmpi slt, %0, %26 : vector<1x128xi32>
    %28 = math.exp %25 : vector<8x128xf32>
    %cst_16 = arith.constant 1.000000e+00 : f32
    %29 = vector.broadcast %cst_16 : f32 to vector<8x128xf32>
    %30 = arith.addf %29, %28 : vector<8x128xf32>
    %31 = arith.mulf %30, %30 : vector<8x128xf32>
    %cst_17 = arith.constant 1.000000e+00 : f32
    %32 = vector.broadcast %cst_17 : f32 to vector<8x128xf32>
    %33 = arith.addf %31, %32 : vector<8x128xf32>
    %cst_18 = arith.constant 2.000000e+00 : f32
    %34 = vector.broadcast %cst_18 : f32 to vector<8x128xf32>
    %35 = arith.divf %34, %33 : vector<8x128xf32>
    %cst_19 = arith.constant 1.000000e+00 : f32
    %36 = vector.broadcast %cst_19 : f32 to vector<8x128xf32>
    %37 = arith.subf %36, %35 : vector<8x128xf32>
    %38 = arith.mulf %25, %37 : vector<8x128xf32>
    %cst_20 = arith.constant 5.000000e-01 : f32
    %39 = vector.broadcast %cst_20 : f32 to vector<8x128xf32>
    %40 = arith.mulf %39, %25 : vector<8x128xf32>
    %cst_21 = arith.constant 0.707106769 : f32
    %41 = vector.broadcast %cst_21 : f32 to vector<8x128xf32>
    %42 = arith.mulf %25, %41 : vector<8x128xf32>
    %43 = math.erf %42 : vector<8x128xf32>
    %cst_22 = arith.constant 1.000000e+00 : f32
    %44 = vector.broadcast %cst_22 : f32 to vector<8x128xf32>
    %45 = arith.addf %44, %43 : vector<8x128xf32>
    %46 = arith.mulf %40, %45 : vector<8x128xf32>
    %47 = vector.shape_cast %27 : vector<1x128xi1> to vector<1x128xi1>
    %48 = vector.broadcast %47 : vector<1x128xi1> to vector<8x128xi1>
    %49 = arith.select %48, %38, %46 : vector<8x128xi1>, vector<8x128xf32>
    %50 = arith.truncf %49 : vector<8x128xf32> to vector<8x128xbf16>
    %c0_23 = arith.constant 0 : index
    %c0_24 = arith.constant 0 : index
    %51 = vector.load %arg7[%c0_23, %c0_24] : memref<128x128xbf16, #tpu.memory_space<vmem>>, vector<128x128xbf16>
    %cst_25 = arith.constant dense<0.000000e+00> : vector<8x128xf32>
    %52 = tpu.matmul %50, %51, %cst_25 {dimension_numbers = #tpu.dot_dimension_numbers<[1], [0], [0], [1], [0, 0, 1, 1], [], []>} : vector<8x128xbf16>, vector<128x128xbf16>, vector<8x128xf32> -> vector<8x128xf32>
    %c0_26 = arith.constant 0 : index
    %c0_27 = arith.constant 0 : index
    %53 = vector.load %arg8[%c0_26, %c0_27] : memref<1x128xf32, #tpu.memory_space<vmem>>, vector<1x128xf32>
    %54 = vector.broadcast %53 : vector<1x128xf32> to vector<8x128xf32>
    %55 = arith.addf %52, %54 : vector<8x128xf32>
    %56 = arith.truncf %55 : vector<8x128xf32> to vector<8x128xbf16>
    %c0_28 = arith.constant 0 : index
    %c0_29 = arith.constant 0 : index
    %57 = vector.load %arg6[%c0_28, %c0_29] : memref<128x128xbf16, #tpu.memory_space<vmem>>, vector<128x128xbf16>
    %cst_30 = arith.constant dense<0.000000e+00> : vector<8x128xf32>
    %58 = tpu.matmul %56, %57, %cst_30 {dimension_numbers = #tpu.dot_dimension_numbers<[1], [0], [0], [1], [0, 0, 1, 1], [], []>} : vector<8x128xbf16>, vector<128x128xbf16>, vector<8x128xf32> -> vector<8x128xf32>
    %59 = arith.subf %55, %58 : vector<8x128xf32>
    %60 = arith.mulf %59, %59 : vector<8x128xf32>
    %61 = arith.truncf %60 : vector<8x128xf32> to vector<8x128xbf16>
    %c0_31 = arith.constant 0 : index
    %c0_32 = arith.constant 0 : index
    %62 = vector.load %arg6[%c0_31, %c0_32] : memref<128x128xbf16, #tpu.memory_space<vmem>>, vector<128x128xbf16>
    %cst_33 = arith.constant dense<0.000000e+00> : vector<8x128xf32>
    %63 = tpu.matmul %61, %62, %cst_33 {dimension_numbers = #tpu.dot_dimension_numbers<[1], [0], [0], [1], [0, 0, 1, 1], [], []>} : vector<8x128xbf16>, vector<128x128xbf16>, vector<8x128xf32> -> vector<8x128xf32>
    %cst_34 = arith.constant 9.99999974E-6 : f32
    %64 = vector.broadcast %cst_34 : f32 to vector<8x128xf32>
    %65 = arith.addf %63, %64 : vector<8x128xf32>
    %66 = math.rsqrt %65 : vector<8x128xf32>
    %67 = arith.mulf %59, %66 : vector<8x128xf32>
    %c0_35 = arith.constant 0 : index
    %c0_36 = arith.constant 0 : index
    %68 = vector.load %arg9[%c0_35, %c0_36] : memref<1x128xf32, #tpu.memory_space<vmem>>, vector<1x128xf32>
    %69 = vector.broadcast %68 : vector<1x128xf32> to vector<8x128xf32>
    %70 = arith.mulf %67, %69 : vector<8x128xf32>
    %c0_37 = arith.constant 0 : index
    %c0_38 = arith.constant 0 : index
    %71 = vector.load %arg10[%c0_37, %c0_38] : memref<1x128xf32, #tpu.memory_space<vmem>>, vector<1x128xf32>
    %72 = vector.broadcast %71 : vector<1x128xf32> to vector<8x128xf32>
    %73 = arith.addf %70, %72 : vector<8x128xf32>
    %c96_i32_39 = arith.constant 96 : i32
    %74 = vector.broadcast %c96_i32_39 : i32 to vector<1x128xi32>
    %75 = arith.cmpi slt, %0, %74 : vector<1x128xi32>
    %76 = vector.shape_cast %75 : vector<1x128xi1> to vector<1x128xi1>
    %77 = vector.broadcast %76 : vector<1x128xi1> to vector<8x128xi1>
    %78 = arith.select %77, %73, %55 : vector<8x128xi1>, vector<8x128xf32>
    %c64_i32 = arith.constant 64 : i32
    %79 = vector.broadcast %c64_i32 : i32 to vector<1x128xi32>
    %80 = arith.cmpi sge, %0, %79 : vector<1x128xi32>
    %c96_i32_40 = arith.constant 96 : i32
    %81 = vector.broadcast %c96_i32_40 : i32 to vector<1x128xi32>
    %82 = arith.cmpi slt, %0, %81 : vector<1x128xi32>
    %83 = arith.andi %80, %82 : vector<1x128xi1>
    %cst_41 = arith.constant 5.000000e-01 : f32
    %84 = vector.broadcast %cst_41 : f32 to vector<8x128xf32>
    %85 = arith.mulf %84, %78 : vector<8x128xf32>
    %cst_42 = arith.constant 0.707106769 : f32
    %86 = vector.broadcast %cst_42 : f32 to vector<8x128xf32>
    %87 = arith.mulf %78, %86 : vector<8x128xf32>
    %88 = math.erf %87 : vector<8x128xf32>
    %cst_43 = arith.constant 1.000000e+00 : f32
    %89 = vector.broadcast %cst_43 : f32 to vector<8x128xf32>
    %90 = arith.addf %89, %88 : vector<8x128xf32>
    %91 = arith.mulf %85, %90 : vector<8x128xf32>
    %92 = vector.shape_cast %83 : vector<1x128xi1> to vector<1x128xi1>
    %93 = vector.broadcast %92 : vector<1x128xi1> to vector<8x128xi1>
    %94 = arith.select %93, %91, %78 : vector<8x128xi1>, vector<8x128xf32>
    %95 = arith.truncf %94 : vector<8x128xf32> to vector<8x128xbf16>
    %c0_44 = arith.constant 0 : index
    %c0_45 = arith.constant 0 : index
    %96 = vector.load %arg11[%c0_44, %c0_45] : memref<128x128xbf16, #tpu.memory_space<vmem>>, vector<128x128xbf16>
    %cst_46 = arith.constant dense<0.000000e+00> : vector<8x128xf32>
    %97 = tpu.matmul %95, %96, %cst_46 {dimension_numbers = #tpu.dot_dimension_numbers<[1], [0], [0], [1], [0, 0, 1, 1], [], []>} : vector<8x128xbf16>, vector<128x128xbf16>, vector<8x128xf32> -> vector<8x128xf32>
    %c0_47 = arith.constant 0 : index
    %c0_48 = arith.constant 0 : index
    %98 = vector.load %arg12[%c0_47, %c0_48] : memref<1x128xf32, #tpu.memory_space<vmem>>, vector<1x128xf32>
    %99 = vector.broadcast %98 : vector<1x128xf32> to vector<8x128xf32>
    %100 = arith.addf %97, %99 : vector<8x128xf32>
    %c0_49 = arith.constant 0 : index
    %c0_50 = arith.constant 0 : index
    %101 = vector.load %arg13[%c0_49, %c0_50] : memref<8x128xf32, #tpu.memory_space<vmem>>, vector<8x128xf32>
    tpu.vector_store %arg13[%c0_49, %c0_50], %100 {strides = array<i32>} : memref<8x128xf32, #tpu.memory_space<vmem>>, vector<8x128xf32>,
    return
  }
  func.func @transform_0(%arg0: i32) -> (i32, i32) {
    %c0_i32 = arith.constant 0 : i32
    %c0_i32_0 = arith.constant 0 : i32
    return %arg0, %c0_i32 : i32, i32
  }
  func.func @transform_1(%arg0: i32) -> (i32, i32) {
    %c0_i32 = arith.constant 0 : i32
    %c0_i32_0 = arith.constant 0 : i32
    %c0_i32_1 = arith.constant 0 : i32
    return %c0_i32, %c0_i32_0 : i32, i32
  }
  func.func @transform_2(%arg0: i32) -> (i32, i32) {
    %c0_i32 = arith.constant 0 : i32
    %c0_i32_0 = arith.constant 0 : i32
    %c0_i32_1 = arith.constant 0 : i32
    return %c0_i32, %c0_i32_0 : i32, i32
  }
  func.func @transform_3(%arg0: i32) -> (i32, i32) {
    %c0_i32 = arith.constant 0 : i32
    %c0_i32_0 = arith.constant 0 : i32
    %c0_i32_1 = arith.constant 0 : i32
    return %c0_i32, %c0_i32_0 : i32, i32
  }
  func.func @transform_4(%arg0: i32) -> (i32, i32) {
    %c0_i32 = arith.constant 0 : i32
    %c0_i32_0 = arith.constant 0 : i32
    %c0_i32_1 = arith.constant 0 : i32
    return %c0_i32, %c0_i32_0 : i32, i32
  }
  func.func @transform_5(%arg0: i32) -> (i32, i32) {
    %c0_i32 = arith.constant 0 : i32
    %c0_i32_0 = arith.constant 0 : i32
    %c0_i32_1 = arith.constant 0 : i32
    return %c0_i32, %c0_i32_0 : i32, i32
  }
  func.func @transform_6(%arg0: i32) -> (i32, i32) {
    %c0_i32 = arith.constant 0 : i32
    %c0_i32_0 = arith.constant 0 : i32
    %c0_i32_1 = arith.constant 0 : i32
    return %c0_i32, %c0_i32_0 : i32, i32
  }
  func.func @transform_7(%arg0: i32) -> (i32, i32) {
    %c0_i32 = arith.constant 0 : i32
    %c0_i32_0 = arith.constant 0 : i32
    %c0_i32_1 = arith.constant 0 : i32
    return %c0_i32, %c0_i32_0 : i32, i32
  }
  func.func @transform_8(%arg0: i32) -> (i32, i32) {
    %c0_i32 = arith.constant 0 : i32
    %c0_i32_0 = arith.constant 0 : i32
    %c0_i32_1 = arith.constant 0 : i32
    return %c0_i32, %c0_i32_0 : i32, i32
  }
  func.func @transform_9(%arg0: i32) -> (i32, i32) {
    %c0_i32 = arith.constant 0 : i32
    %c0_i32_0 = arith.constant 0 : i32
    %c0_i32_1 = arith.constant 0 : i32
    return %c0_i32, %c0_i32_0 : i32, i32
  }
  func.func @transform_10(%arg0: i32) -> (i32, i32) {
    %c0_i32 = arith.constant 0 : i32
    %c0_i32_0 = arith.constant 0 : i32
    %c0_i32_1 = arith.constant 0 : i32
    return %c0_i32, %c0_i32_0 : i32, i32
  }
  func.func @transform_11(%arg0: i32) -> (i32, i32) {
    %c0_i32 = arith.constant 0 : i32
    %c0_i32_0 = arith.constant 0 : i32
    %c0_i32_1 = arith.constant 0 : i32
    return %c0_i32, %c0_i32_0 : i32, i32
  }
  func.func @transform_12(%arg0: i32) -> (i32, i32) {
    %c0_i32 = arith.constant 0 : i32
    %c0_i32_0 = arith.constant 0 : i32
    return %arg0, %c0_i32 : i32, i32
  }
}

module attributes {stable_mosaic.version = 11 : i64} {
  func.func @_inner_product_kernel(%arg0: i32, %arg1: i32, %arg2: memref<64x32xf32, #tpu.memory_space<vmem>>, %arg3: memref<128x32xf32, #tpu.memory_space<vmem>>, %arg4: memref<64x128xf32, #tpu.memory_space<vmem>>) attributes {dimension_semantics = [#tpu.dimension_semantics<parallel>, #tpu.dimension_semantics<parallel>], iteration_bounds = array<i64: 2, 1>, scalar_prefetch = 0 : i64, scratch_operands = 0 : i64, tpu.core_type = #tpu.core_type<tc>, window_params = [{transform_indices = @transform_0, window_bounds = array<i64: 64, 32>}, {transform_indices = @transform_1, window_bounds = array<i64: 128, 32>}, {transform_indices = @transform_2, window_bounds = array<i64: 64, 128>}]} {
    %c0 = arith.constant 0 : index
    %c0_0 = arith.constant 0 : index
    %0 = vector.load %arg2[%c0, %c0_0] : memref<64x32xf32, #tpu.memory_space<vmem>>, vector<64x32xf32>
    %1 = arith.truncf %0 : vector<64x32xf32> to vector<64x32xbf16>
    %c0_1 = arith.constant 0 : index
    %c0_2 = arith.constant 0 : index
    %2 = vector.load %arg3[%c0_1, %c0_2] : memref<128x32xf32, #tpu.memory_space<vmem>>, vector<128x32xf32>
    %3 = arith.truncf %2 : vector<128x32xf32> to vector<128x32xbf16>
    %cst = arith.constant dense<0.000000e+00> : vector<64x128xf32>
    %4 = tpu.matmul %1, %3, %cst {dimension_numbers = #tpu.dot_dimension_numbers<[1], [1], [0], [0], [0, 0, 1, 0], [], []>} : vector<64x32xbf16>, vector<128x32xbf16>, vector<64x128xf32> -> vector<64x128xf32>
    %cst_3 = arith.constant 0.000000e+00 : f32
    %5 = vector.broadcast %cst_3 : f32 to vector<64x128xf32>
    %6 = arith.subf %5, %4 : vector<64x128xf32>
    %7 = math.exp %6 : vector<64x128xf32>
    %cst_4 = arith.constant 1.000000e+00 : f32
    %8 = vector.broadcast %cst_4 : f32 to vector<64x128xf32>
    %9 = arith.addf %8, %7 : vector<64x128xf32>
    %10 = tpu.reciprocal %9 {approx = true} : vector<64x128xf32> -> vector<64x128xf32>
    %c0_5 = arith.constant 0 : index
    %c0_6 = arith.constant 0 : index
    %11 = vector.load %arg4[%c0_5, %c0_6] : memref<64x128xf32, #tpu.memory_space<vmem>>, vector<64x128xf32>
    tpu.vector_store %arg4[%c0_5, %c0_6], %10 {strides = array<i32>} : memref<64x128xf32, #tpu.memory_space<vmem>>, vector<64x128xf32>,
    return
  }
  func.func @transform_0(%arg0: i32, %arg1: i32) -> (i32, i32) {
    %c0_i32 = arith.constant 0 : i32
    %c0_i32_0 = arith.constant 0 : i32
    return %arg0, %c0_i32 : i32, i32
  }
  func.func @transform_1(%arg0: i32, %arg1: i32) -> (i32, i32) {
    %c0_i32 = arith.constant 0 : i32
    %c0_i32_0 = arith.constant 0 : i32
    return %arg1, %c0_i32 : i32, i32
  }
  func.func @transform_2(%arg0: i32, %arg1: i32) -> (i32, i32) {
    %c0_i32 = arith.constant 0 : i32
    return %arg0, %arg1 : i32, i32
  }
}

</mosaic_0001>

<llo_original>
// kernel: sfrgnn_forward.7
$region0: #{sfrgnn_forward.7}
  #allocation0 [shape = 'u32[]', space=smem, size = 0x4, offset = 0x4, fixed_abs, tag = 'smem constant byte address 0x4 - core index']
  #allocation1 [shape = 'u32[72,128]{1,0:T(1,128)}', space=vmem, size = 0x9000, scoped, tag = 'internal scratch']
  %s0 = inlined_call_operand.vmem [shape: f32[16,48], index: 0, kind: input, shape index: {}]
  %s1 = inlined_call_operand.vmem [shape: bf16[48,32], index: 1, kind: input, shape index: {}]
  %s2 = inlined_call_operand.vmem [shape: f32[1,32], index: 2, kind: input, shape index: {}]
  %s3 = inlined_call_operand.vmem [shape: f32[1,32], index: 3, kind: input, shape index: {}]
  %s4 = inlined_call_operand.vmem [shape: f32[1,32], index: 4, kind: input, shape index: {}]
  %s5 = inlined_call_operand.vmem [shape: f32[16,32], index: 5, kind: output, shape index: {}]
  %s6 = sld [smem:[#allocation0]]
  $region53: #{sfrgnn_forward.7} parent=0
    _
  %s8 = ssub.s32 1, %s6
  %s9 = scalar_select 0, %s8, %s6
  loop: start=0, step=1, limit=4
  $region2: #{sfrgnn_forward.7} parent=0 // loop_pre_header
    _
  $region3: #{sfrgnn_forward.7} parent=0 // loop_header
    %s11 = sphi 0, %s15
    %p12 = scmp.ge.s32.totalorder %s11, 4
    %s21 = sphi 0, %s23
    %s24 = sphi 0, %s21
    %s25 = sphi 0, %s24
    %s41 = sphi 0, %s25
    %s45 = sphi 0, %s45
    %s47 = sphi 0, %s45
    %s48 = sphi 0, %s47
    %s62 = sphi 0, %s48
    %s66 = sphi 0, %s66
    %s68 = sphi 0, %s66
    %s69 = sphi 0, %s68
    %s83 = sphi 0, %s69
    %s87 = sphi 0, %s87
    %s89 = sphi 0, %s87
    %s90 = sphi 0, %s89
    %s104 = sphi 0, %s90
    %s108 = sphi 0, %s108
    %s110 = sphi 0, %s108
    %s111 = sphi 0, %s110
    %s125 = sphi 0, %s111
    %s131 = sphi 0, %s133
    %s134 = sphi 0, %s131
    %s135 = sphi 0, %s134
    %s151 = sphi 0, %s135
  $region4: #{sfrgnn_forward.7} parent=0 // loop_header_branch
    %14 = sbr.rel (%p12) target = $region8
  $region5: #{sfrgnn_forward.7} parent=0 // loop_body
    %s16 = ssub.s32 %s11, 1
    %s17 = ssub.s32 %s11, 2
    %s18 = sadd.s32 %s11, 1
    %s19 = ssub.s32 %s11, %s18
    %p20 = scmp.eq.s32.totalorder %s19, 0
    %s22 = sadd.s32 %s21, 1
    %s23 = scalar_select %p20, %s21, %s22
    %p26 = pneg %p20
    %p27 = scmp.eq.s32.totalorder %s11, 1
    %p28 = por %p26, %p27
    %p29 = scmp.ne.s32.totalorder %s21, %s24
    %p30 = scmp.eq.s32.totalorder %s11, 0
    %p31 = por %p29, %p30
    %p32 = scmp.ne.s32.totalorder %s21, %s24
    %p33 = scmp.eq.s32.totalorder %s16, 1
    %p34 = por %p32, %p33
    %p35 = scmp.ne.s32.totalorder %s24, %s25
    %p36 = scmp.eq.s32.totalorder %s16, 0
    %p37 = por %p35, %p36
    %p38 = scmp.ne.s32.totalorder %s24, %s25
    %p39 = scmp.eq.s32.totalorder %s17, 1
    %p40 = por %p38, %p39
    %p42 = scmp.ne.s32.totalorder %s25, %s41
    %p43 = scmp.eq.s32.totalorder %s17, 0
    %p44 = por %p42, %p43
    %s46 = sadd.s32 %s45, 1
    %p49 = scmp.eq.s32.totalorder %s11, 1
    %p50 = scmp.ne.s32.totalorder %s45, %s47
    %p51 = scmp.eq.s32.totalorder %s11, 0
    %p52 = por %p50, %p51
    %p53 = scmp.ne.s32.totalorder %s45, %s47
    %p54 = scmp.eq.s32.totalorder %s16, 1
    %p55 = por %p53, %p54
    %p56 = scmp.ne.s32.totalorder %s47, %s48
    %p57 = scmp.eq.s32.totalorder %s16, 0
    %p58 = por %p56, %p57
    %p59 = scmp.ne.s32.totalorder %s47, %s48
    %p60 = scmp.eq.s32.totalorder %s17, 1
    %p61 = por %p59, %p60
    %p63 = scmp.ne.s32.totalorder %s48, %s62
    %p64 = scmp.eq.s32.totalorder %s17, 0
    %p65 = por %p63, %p64
    %s67 = sadd.s32 %s66, 1
    %p70 = scmp.eq.s32.totalorder %s11, 1
    %p71 = scmp.ne.s32.totalorder %s66, %s68
    %p72 = scmp.eq.s32.totalorder %s11, 0
    %p73 = por %p71, %p72
    %p74 = scmp.ne.s32.totalorder %s66, %s68
    %p75 = scmp.eq.s32.totalorder %s16, 1
    %p76 = por %p74, %p75
    %p77 = scmp.ne.s32.totalorder %s68, %s69
    %p78 = scmp.eq.s32.totalorder %s16, 0
    %p79 = por %p77, %p78
    %p80 = scmp.ne.s32.totalorder %s68, %s69
    %p81 = scmp.eq.s32.totalorder %s17, 1
    %p82 = por %p80, %p81
    %p84 = scmp.ne.s32.totalorder %s69, %s83
    %p85 = scmp.eq.s32.totalorder %s17, 0
    %p86 = por %p84, %p85
    %s88 = sadd.s32 %s87, 1
    %p91 = scmp.eq.s32.totalorder %s11, 1
    %p92 = scmp.ne.s32.totalorder %s87, %s89
    %p93 = scmp.eq.s32.totalorder %s11, 0
    %p94 = por %p92, %p93
    %p95 = scmp.ne.s32.totalorder %s87, %s89
    %p96 = scmp.eq.s32.totalorder %s16, 1
    %p97 = por %p95, %p96
    %p98 = scmp.ne.s32.totalorder %s89, %s90
    %p99 = scmp.eq.s32.totalorder %s16, 0
    %p100 = por %p98, %p99
    %p101 = scmp.ne.s32.totalorder %s89, %s90
    %p102 = scmp.eq.s32.totalorder %s17, 1
    %p103 = por %p101, %p102
    %p105 = scmp.ne.s32.totalorder %s90, %s104
    %p106 = scmp.eq.s32.totalorder %s17, 0
    %p107 = por %p105, %p106
    %s109 = sadd.s32 %s108, 1
    %p112 = scmp.eq.s32.totalorder %s11, 1
    %p113 = scmp.ne.s32.totalorder %s108, %s110
    %p114 = scmp.eq.s32.totalorder %s11, 0
    %p115 = por %p113, %p114
    %p116 = scmp.ne.s32.totalorder %s108, %s110
    %p117 = scmp.eq.s32.totalorder %s16, 1
    %p118 = por %p116, %p117
    %p119 = scmp.ne.s32.totalorder %s110, %s111
    %p120 = scmp.eq.s32.totalorder %s16, 0
    %p121 = por %p119, %p120
    %p122 = scmp.ne.s32.totalorder %s110, %s111
    %p123 = scmp.eq.s32.totalorder %s17, 1
    %p124 = por %p122, %p123
    %p126 = scmp.ne.s32.totalorder %s111, %s125
    %p127 = scmp.eq.s32.totalorder %s17, 0
    %p128 = por %p126, %p127
    %s129 = ssub.s32 %s11, %s18
    %p130 = scmp.eq.s32.totalorder %s129, 0
    %s132 = sadd.s32 %s131, 1
    %s133 = scalar_select %p130, %s131, %s132
    %p136 = pneg %p130
    %p137 = scmp.eq.s32.totalorder %s11, 1
    %p138 = por %p136, %p137
    %p139 = scmp.ne.s32.totalorder %s131, %s134
    %p140 = scmp.eq.s32.totalorder %s11, 0
    %p141 = por %p139, %p140
    %p142 = scmp.ne.s32.totalorder %s131, %s134
    %p143 = scmp.eq.s32.totalorder %s16, 1
    %p144 = por %p142, %p143
    %p145 = scmp.ne.s32.totalorder %s134, %s135
    %p146 = scmp.eq.s32.totalorder %s16, 0
    %p147 = por %p145, %p146
    %p148 = scmp.ne.s32.totalorder %s134, %s135
    %p149 = scmp.eq.s32.totalorder %s17, 1
    %p150 = por %p148, %p149
    %p152 = scmp.ne.s32.totalorder %s135, %s151
    %p153 = scmp.eq.s32.totalorder %s17, 0
    %p154 = por %p152, %p153
    %p155 = scmp.le.s32.totalorder 1, %s11
    %p156 = scmp.lt.s32.totalorder %s11, 3
    %p157 = pnand %p155, %p156
    %p158 = pneg %p157
    // Predicated region
    $region9: #{sfrgnn_forward.7} parent=5 // pred_check
      _
    $region10: #{sfrgnn_forward.7} parent=5 // pred_check_branch
      %160 = sbr.rel (%p157) target = $region12
    $region11: #{sfrgnn_forward.7} parent=5 // pred_region
      %s161 = ssub.s32 %s11, 1
      // Predicated region
      $region13: #{sfrgnn_forward.7} parent=11 // pred_check
        %p162 = pneg %p58
      $region14: #{sfrgnn_forward.7} parent=11 // pred_check_branch
        %164 = sbr.rel (%p162) target = $region16
      $region15: #{sfrgnn_forward.7} parent=11 // pred_region
        _
      $region16: #{sfrgnn_forward.7} parent=11 // pred_fallthru
        _
      // Predicated region
      $region17: #{sfrgnn_forward.7} parent=11 // pred_check
        %p165 = pneg %p79
      $region18: #{sfrgnn_forward.7} parent=11 // pred_check_branch
        %167 = sbr.rel (%p165) target = $region20
      $region19: #{sfrgnn_forward.7} parent=11 // pred_region
        _
      $region20: #{sfrgnn_forward.7} parent=11 // pred_fallthru
        _
      // Predicated region
      $region21: #{sfrgnn_forward.7} parent=11 // pred_check
        %p168 = pneg %p100
      $region22: #{sfrgnn_forward.7} parent=11 // pred_check_branch
        %170 = sbr.rel (%p168) target = $region24
      $region23: #{sfrgnn_forward.7} parent=11 // pred_region
        _
      $region24: #{sfrgnn_forward.7} parent=11 // pred_fallthru
        _
      // Predicated region
      $region25: #{sfrgnn_forward.7} parent=11 // pred_check
        %p171 = pneg %p121
      $region26: #{sfrgnn_forward.7} parent=11 // pred_check_branch
        %173 = sbr.rel (%p171) target = $region28
      $region27: #{sfrgnn_forward.7} parent=11 // pred_region
        _
      $region28: #{sfrgnn_forward.7} parent=11 // pred_fallthru
        _
    $region12: #{sfrgnn_forward.7} parent=5 // pred_fallthru
      _
    %p174 = scmp.lt.s32.totalorder %s11, 2
    // Predicated region
    $region29: #{sfrgnn_forward.7} parent=5 // pred_check
      %p175 = pneg %p174
    $region30: #{sfrgnn_forward.7} parent=5 // pred_check_branch
      %177 = sbr.rel (%p175) target = $region32
    $region31: #{sfrgnn_forward.7} parent=5 // pred_region
      // Predicated region
      $region33: #{sfrgnn_forward.7} parent=31 // pred_check
        %p178 = pneg %p31
      $region34: #{sfrgnn_forward.7} parent=31 // pred_check_branch
        %180 = sbr.rel (%p178) target = $region36
      $region35: #{sfrgnn_forward.7} parent=31 // pred_region
        %p181 = scmp.lt.s32.totalorder %s11, 1
        %s182 = scalar_select %p181, %s11, 1
        %s183 = smul.addr %s182, 8
        %s184 = scalar_lea.vmem %s0, %s183
      $region36: #{sfrgnn_forward.7} parent=31 // pred_fallthru
        _
    $region32: #{sfrgnn_forward.7} parent=5 // pred_fallthru
      _
    %p185 = scmp.le.s32.totalorder 1, %s11
    %p186 = scmp.lt.s32.totalorder %s11, 3
    %p187 = pnand %p185, %p186
    %p188 = pneg %p187
    // Predicated region
    $region37: #{sfrgnn_forward.7} parent=5 // pred_check
      _
    $region38: #{sfrgnn_forward.7} parent=5 // pred_check_branch
      %190 = sbr.rel (%p187) target = $region40
    $region39: #{sfrgnn_forward.7} parent=5 // pred_region
      %s191 = ssub.s32 %s11, 1
      %p192 = scmp.lt.s32.totalorder %s16, 1
      %s193 = scalar_select %p192, %s16, 1
      %s194 = smul.addr %s193, 8
      %s195 = scalar_lea.vmem %s0, %s194
      %p196 = pneg %p37
      %p197 = pneg %p34
      %p198 = pneg %p58
      %p199 = pneg %p55
      %p200 = pneg %p79
      %p201 = pneg %p76
      %p202 = pneg %p100
      %p203 = pneg %p97
      %p204 = pneg %p121
      %p205 = pneg %p118
      %p206 = pneg %p147
      %p207 = pneg %p144
      %p208 = scmp.lt.s32.totalorder %s16, 1
      %s209 = scalar_select %p208, %s16, 1
      %s210 = smul.addr %s209, 8
      %s211 = scalar_lea.vmem %s5, %s210
      %p212 = scmp.lt.s32.totalorder %s16, 1
      %s213 = scalar_select %p212, %s16, 1
      %s214 = smul.addr %s213, 8
      %s215 = scalar_lea.vmem %s0, %s214
      %p216 = scmp.lt.s32.totalorder %s16, 1
      %s217 = scalar_select %p216, %s16, 1
      %s218 = smul.addr %s217, 8
      %s219 = scalar_lea.vmem %s5, %s218
      %v221 = vld [vmem:[%s215] sm:$0xff]
      %v222 = vld [vmem:[%s1] sm:$0xf]
      %v223 = vld [vmem:[%s1 + $0x4] sm:$0xf]
      %v224 = vld [vmem:[%s1 + $0x8] sm:$0xf]
      %v225 = vld [vmem:[%s1 + $0xc] sm:$0xf]
      %v226 = vld [vmem:[%s1 + $0x10] sm:$0xf]
      %v227 = vld [vmem:[%s1 + $0x14] sm:$0xf]
      %v228 = vld [vmem:[%s2] sm:$0x1]
      %v229 = vpack.c.bf16 %v221, %v221
      %v231 = vperm.slane %v228, 0
      %v239 = vunpack.c.l.b16 %v222
      %v240 = vunpack.c.l.b16 %v223
      %v241 = vunpack.c.l.b16 %v224
      %v242 = vunpack.c.l.b16 %v225
      %v243 = vunpack.c.l.b16 %v226
      %v244 = vunpack.c.l.b16 %v227
      %v245 = vpack.c.b16 %v240, %v239
      %v246 = vpack.c.b16 %v242, %v241
      %v247 = vpack.c.b16 %v244, %v243
      %vm251 = vcmask 392192
      %v253 = vsel %vm251, %v229, 0
      %255 = vmatpush.bf16.msra.mxu0 0
      %256 = vmatpush.bf16.msra.mxu0 0
      %257 = vmatpush.bf16.msra.mxu0 0
      %258 = vmatpush.bf16.msra.mxu0 0
      %259 = vmatpush.bf16.msra.mxu0 0
      %260 = vmatpush.bf16.msra.mxu0 %v247
      %261 = vmatpush.bf16.msra.mxu0 %v246
      %262 = vmatpush.bf16.msra.mxu0 %v245
      %263 = vmatmul.bf16.gmra.mxu0 %v253
      %v264 = vpop.f32.mrf.mxu0
      %v265 = vadd.f32 %v231, %v264
      %v266 = vpop.f32.mrf.mxu0
      %267 = vdwg.mxu0
      %v268 = vld [vmem:[%s3] sm:$0x1]
      %v269 = vld [vmem:[%s4] sm:$0x1]
      %vm270 = vcmask 261120
      %v271 = vsel %vm270, %v265, 0.0
      %272 = vadd.xlane.f32.xlu0 %v271
      %v273 = vpop.xlane.xlu0 %272
      %v274 = vrcp.pop 32.0
      %v275 = vmul.f32 32.0, %v274
      %v276 = vsub.f32 1.0, %v275
      %v277 = vmul.f32 %v274, %v276
      %v278 = vadd.f32 %v274, %v277
      %vm279 = vweird.f32 %v274
      %v280 = vsel %vm279, %v274, %v278
      %v281 = vmul.f32 %v273, %v280
      %v282 = vsub.f32 %v265, %v281
      %v283 = vmul.f32 %v282, %v282
      %v284 = vsel %vm270, %v283, 0.0
      %285 = vadd.xlane.f32.xlu0 %v284
      %v286 = vpop.xlane.xlu0 %285
      %v287 = vmul.f32 %v286, %v280
      %v288 = vadd.f32 %v287, 1e-05
      %v289 = vrsqrt.pop %v288
      %v290 = vmul.f32 %v289, %v288
      %v291 = vmul.f32 %v290, %v289
      %v292 = vmul.f32 0.5, %v291
      %v293 = vsub.f32 1.5, %v292
      %v294 = vmul.f32 %v289, %v293
      %vm295 = vweird.f32 %v288
      %vm296 = vweird.f32 %v289
      %vm297 = vmor %vm295, %vm296
      %v298 = vsel %vm297, %v289, %v294
      %v299 = vmul.f32 %v282, %v298
      %v301 = vperm.slane %v268, 0
      %v303 = vmul.f32 %v299, %v301
      %v305 = vperm.slane %v269, 0
      %v307 = vadd.f32 %v303, %v305
      %v308 = vmul.f32 %v307, 1.442695
      %v309 = vpow.pop %v308
      %v310 = vadd.f32 %v309, 1.0
      %v311 = vmul.f32 %v310, %v310
      %v312 = vadd.f32 %v311, 1.0
      %v313 = vrcp.pop %v312
      %v314 = vmul.f32 %v312, %v313
      %v315 = vsub.f32 1.0, %v314
      %v316 = vmul.f32 %v313, %v315
      %v317 = vadd.f32 %v313, %v316
      %vm318 = vweird.f32 %v312
      %vm319 = vweird.f32 %v313
      %vm320 = vmor %vm318, %vm319
      %v321 = vsel %vm320, %v313, %v317
      %v322 = vand.u32 2147483647, %v312
      %vm323 = vcmp.eq.f32.partialorder %v322, 8.507059e+37
      %v324 = vand.u32 %v312, 2147483648
      %v325 = vor.u32 1.1754944e-38, %v324
      %v326 = vsel %vm323, %v325, %v321
      %v327 = vmul.f32 2.0, %v326
      %v328 = vsub.f32 1.0, %v327
      %v329 = vmul.f32 %v307, %v328
      %330 = vst.msk [vmem:[%s219] sm:$0xff] %vm270, %v329
      %p331 = scmp.lt.s32.totalorder %s16, 1
      %s332 = scalar_select %p331, %s16, 1
      %s333 = smul.addr %s332, 8
      %s334 = scalar_lea.vmem %s5, %s333
      // Predicated region
      $region41: #{sfrgnn_forward.7} parent=39 // pred_check
        %p335 = pneg %p144
      $region42: #{sfrgnn_forward.7} parent=39 // pred_check_branch
        %337 = sbr.rel (%p335) target = $region44
      $region43: #{sfrgnn_forward.7} parent=39 // pred_region
        _
      $region44: #{sfrgnn_forward.7} parent=39 // pred_fallthru
        _
    $region40: #{sfrgnn_forward.7} parent=5 // pred_fallthru
      _
    %p338 = scmp.le.s32.totalorder 2, %s11
    // Predicated region
    $region45: #{sfrgnn_forward.7} parent=5 // pred_check
      %p339 = pneg %p338
    $region46: #{sfrgnn_forward.7} parent=5 // pred_check_branch
      %341 = sbr.rel (%p339) target = $region48
    $region47: #{sfrgnn_forward.7} parent=5 // pred_region
      %s342 = ssub.s32 %s11, 2
      // Predicated region
      $region49: #{sfrgnn_forward.7} parent=47 // pred_check
        %p343 = pneg %p150
      $region50: #{sfrgnn_forward.7} parent=47 // pred_check_branch
        %345 = sbr.rel (%p343) target = $region52
      $region51: #{sfrgnn_forward.7} parent=47 // pred_region
        %p346 = scmp.lt.s32.totalorder %s17, 1
        %s347 = scalar_select %p346, %s17, 1
        %s348 = smul.addr %s347, 8
        %s349 = scalar_lea.vmem %s5, %s348
      $region52: #{sfrgnn_forward.7} parent=47 // pred_fallthru
        _
    $region48: #{sfrgnn_forward.7} parent=5 // pred_fallthru
      _
  $region6: #{sfrgnn_forward.7} parent=0 // loop_footer
    %s15 = sadd.s32 1, %s11
  $region7: #{sfrgnn_forward.7} parent=0 // loop_footer_branch
    %10 = sbr.rel target = $region3
  $region8: #{sfrgnn_forward.7} parent=0 // loop_exit
    _

// kernel: sfrgnn_forward.6
$region0: #{sfrgnn_forward.6}
  #allocation0 [shape = 'u32[]', space=smem, size = 0x4, offset = 0x4, fixed_abs, tag = 'smem constant byte address 0x4 - core index']
  #allocation1 [shape = 'u32[72,128]{1,0:T(1,128)}', space=vmem, size = 0x9000, scoped, tag = 'internal scratch']
  %s0 = inlined_call_operand.vmem [shape: f32[32,6], index: 0, kind: input, shape index: {}]
  %s1 = inlined_call_operand.vmem [shape: bf16[6,16], index: 1, kind: input, shape index: {}]
  %s2 = inlined_call_operand.vmem [shape: f32[1,16], index: 2, kind: input, shape index: {}]
  %s3 = inlined_call_operand.vmem [shape: f32[1,16], index: 3, kind: input, shape index: {}]
  %s4 = inlined_call_operand.vmem [shape: f32[1,16], index: 4, kind: input, shape index: {}]
  %s5 = inlined_call_operand.vmem [shape: bf16[16,16], index: 5, kind: input, shape index: {}]
  %s6 = inlined_call_operand.vmem [shape: f32[1,16], index: 6, kind: input, shape index: {}]
  %s7 = inlined_call_operand.vmem [shape: f32[1,16], index: 7, kind: input, shape index: {}]
  %s8 = inlined_call_operand.vmem [shape: f32[1,16], index: 8, kind: input, shape index: {}]
  %s9 = inlined_call_operand.vmem [shape: f32[32,16], index: 9, kind: output, shape index: {}]
  %s10 = sld [smem:[#allocation0]]
  $region69: #{sfrgnn_forward.6} parent=0
    _
  %s12 = ssub.s32 1, %s10
  %s13 = scalar_select 0, %s12, %s10
  loop: start=0, step=1, limit=4
  $region2: #{sfrgnn_forward.6} parent=0 // loop_pre_header
    _
  $region3: #{sfrgnn_forward.6} parent=0 // loop_header
    %s15 = sphi 0, %s19
    %p16 = scmp.ge.s32.totalorder %s15, 4
    %s25 = sphi 0, %s27
    %s28 = sphi 0, %s25
    %s29 = sphi 0, %s28
    %s45 = sphi 0, %s29
    %s49 = sphi 0, %s49
    %s51 = sphi 0, %s49
    %s52 = sphi 0, %s51
    %s66 = sphi 0, %s52
    %s70 = sphi 0, %s70
    %s72 = sphi 0, %s70
    %s73 = sphi 0, %s72
    %s87 = sphi 0, %s73
    %s91 = sphi 0, %s91
    %s93 = sphi 0, %s91
    %s94 = sphi 0, %s93
    %s108 = sphi 0, %s94
    %s112 = sphi 0, %s112
    %s114 = sphi 0, %s112
    %s115 = sphi 0, %s114
    %s129 = sphi 0, %s115
    %s133 = sphi 0, %s133
    %s135 = sphi 0, %s133
    %s136 = sphi 0, %s135
    %s150 = sphi 0, %s136
    %s154 = sphi 0, %s154
    %s156 = sphi 0, %s154
    %s157 = sphi 0, %s156
    %s171 = sphi 0, %s157
    %s175 = sphi 0, %s175
    %s177 = sphi 0, %s175
    %s178 = sphi 0, %s177
    %s192 = sphi 0, %s178
    %s196 = sphi 0, %s196
    %s198 = sphi 0, %s196
    %s199 = sphi 0, %s198
    %s213 = sphi 0, %s199
    %s219 = sphi 0, %s221
    %s222 = sphi 0, %s219
    %s223 = sphi 0, %s222
    %s239 = sphi 0, %s223
  $region4: #{sfrgnn_forward.6} parent=0 // loop_header_branch
    %18 = sbr.rel (%p16) target = $region8
  $region5: #{sfrgnn_forward.6} parent=0 // loop_body
    %s20 = ssub.s32 %s15, 1
    %s21 = ssub.s32 %s15, 2
    %s22 = sadd.s32 %s15, 1
    %s23 = ssub.s32 %s15, %s22
    %p24 = scmp.eq.s32.totalorder %s23, 0
    %s26 = sadd.s32 %s25, 1
    %s27 = scalar_select %p24, %s25, %s26
    %p30 = pneg %p24
    %p31 = scmp.eq.s32.totalorder %s15, 1
    %p32 = por %p30, %p31
    %p33 = scmp.ne.s32.totalorder %s25, %s28
    %p34 = scmp.eq.s32.totalorder %s15, 0
    %p35 = por %p33, %p34
    %p36 = scmp.ne.s32.totalorder %s25, %s28
    %p37 = scmp.eq.s32.totalorder %s20, 1
    %p38 = por %p36, %p37
    %p39 = scmp.ne.s32.totalorder %s28, %s29
    %p40 = scmp.eq.s32.totalorder %s20, 0
    %p41 = por %p39, %p40
    %p42 = scmp.ne.s32.totalorder %s28, %s29
    %p43 = scmp.eq.s32.totalorder %s21, 1
    %p44 = por %p42, %p43
    %p46 = scmp.ne.s32.totalorder %s29, %s45
    %p47 = scmp.eq.s32.totalorder %s21, 0
    %p48 = por %p46, %p47
    %s50 = sadd.s32 %s49, 1
    %p53 = scmp.eq.s32.totalorder %s15, 1
    %p54 = scmp.ne.s32.totalorder %s49, %s51
    %p55 = scmp.eq.s32.totalorder %s15, 0
    %p56 = por %p54, %p55
    %p57 = scmp.ne.s32.totalorder %s49, %s51
    %p58 = scmp.eq.s32.totalorder %s20, 1
    %p59 = por %p57, %p58
    %p60 = scmp.ne.s32.totalorder %s51, %s52
    %p61 = scmp.eq.s32.totalorder %s20, 0
    %p62 = por %p60, %p61
    %p63 = scmp.ne.s32.totalorder %s51, %s52
    %p64 = scmp.eq.s32.totalorder %s21, 1
    %p65 = por %p63, %p64
    %p67 = scmp.ne.s32.totalorder %s52, %s66
    %p68 = scmp.eq.s32.totalorder %s21, 0
    %p69 = por %p67, %p68
    %s71 = sadd.s32 %s70, 1
    %p74 = scmp.eq.s32.totalorder %s15, 1
    %p75 = scmp.ne.s32.totalorder %s70, %s72
    %p76 = scmp.eq.s32.totalorder %s15, 0
    %p77 = por %p75, %p76
    %p78 = scmp.ne.s32.totalorder %s70, %s72
    %p79 = scmp.eq.s32.totalorder %s20, 1
    %p80 = por %p78, %p79
    %p81 = scmp.ne.s32.totalorder %s72, %s73
    %p82 = scmp.eq.s32.totalorder %s20, 0
    %p83 = por %p81, %p82
    %p84 = scmp.ne.s32.totalorder %s72, %s73
    %p85 = scmp.eq.s32.totalorder %s21, 1
    %p86 = por %p84, %p85
    %p88 = scmp.ne.s32.totalorder %s73, %s87
    %p89 = scmp.eq.s32.totalorder %s21, 0
    %p90 = por %p88, %p89
    %s92 = sadd.s32 %s91, 1
    %p95 = scmp.eq.s32.totalorder %s15, 1
    %p96 = scmp.ne.s32.totalorder %s91, %s93
    %p97 = scmp.eq.s32.totalorder %s15, 0
    %p98 = por %p96, %p97
    %p99 = scmp.ne.s32.totalorder %s91, %s93
    %p100 = scmp.eq.s32.totalorder %s20, 1
    %p101 = por %p99, %p100
    %p102 = scmp.ne.s32.totalorder %s93, %s94
    %p103 = scmp.eq.s32.totalorder %s20, 0
    %p104 = por %p102, %p103
    %p105 = scmp.ne.s32.totalorder %s93, %s94
    %p106 = scmp.eq.s32.totalorder %s21, 1
    %p107 = por %p105, %p106
    %p109 = scmp.ne.s32.totalorder %s94, %s108
    %p110 = scmp.eq.s32.totalorder %s21, 0
    %p111 = por %p109, %p110
    %s113 = sadd.s32 %s112, 1
    %p116 = scmp.eq.s32.totalorder %s15, 1
    %p117 = scmp.ne.s32.totalorder %s112, %s114
    %p118 = scmp.eq.s32.totalorder %s15, 0
    %p119 = por %p117, %p118
    %p120 = scmp.ne.s32.totalorder %s112, %s114
    %p121 = scmp.eq.s32.totalorder %s20, 1
    %p122 = por %p120, %p121
    %p123 = scmp.ne.s32.totalorder %s114, %s115
    %p124 = scmp.eq.s32.totalorder %s20, 0
    %p125 = por %p123, %p124
    %p126 = scmp.ne.s32.totalorder %s114, %s115
    %p127 = scmp.eq.s32.totalorder %s21, 1
    %p128 = por %p126, %p127
    %p130 = scmp.ne.s32.totalorder %s115, %s129
    %p131 = scmp.eq.s32.totalorder %s21, 0
    %p132 = por %p130, %p131
    %s134 = sadd.s32 %s133, 1
    %p137 = scmp.eq.s32.totalorder %s15, 1
    %p138 = scmp.ne.s32.totalorder %s133, %s135
    %p139 = scmp.eq.s32.totalorder %s15, 0
    %p140 = por %p138, %p139
    %p141 = scmp.ne.s32.totalorder %s133, %s135
    %p142 = scmp.eq.s32.totalorder %s20, 1
    %p143 = por %p141, %p142
    %p144 = scmp.ne.s32.totalorder %s135, %s136
    %p145 = scmp.eq.s32.totalorder %s20, 0
    %p146 = por %p144, %p145
    %p147 = scmp.ne.s32.totalorder %s135, %s136
    %p148 = scmp.eq.s32.totalorder %s21, 1
    %p149 = por %p147, %p148
    %p151 = scmp.ne.s32.totalorder %s136, %s150
    %p152 = scmp.eq.s32.totalorder %s21, 0
    %p153 = por %p151, %p152
    %s155 = sadd.s32 %s154, 1
    %p158 = scmp.eq.s32.totalorder %s15, 1
    %p159 = scmp.ne.s32.totalorder %s154, %s156
    %p160 = scmp.eq.s32.totalorder %s15, 0
    %p161 = por %p159, %p160
    %p162 = scmp.ne.s32.totalorder %s154, %s156
    %p163 = scmp.eq.s32.totalorder %s20, 1
    %p164 = por %p162, %p163
    %p165 = scmp.ne.s32.totalorder %s156, %s157
    %p166 = scmp.eq.s32.totalorder %s20, 0
    %p167 = por %p165, %p166
    %p168 = scmp.ne.s32.totalorder %s156, %s157
    %p169 = scmp.eq.s32.totalorder %s21, 1
    %p170 = por %p168, %p169
    %p172 = scmp.ne.s32.totalorder %s157, %s171
    %p173 = scmp.eq.s32.totalorder %s21, 0
    %p174 = por %p172, %p173
    %s176 = sadd.s32 %s175, 1
    %p179 = scmp.eq.s32.totalorder %s15, 1
    %p180 = scmp.ne.s32.totalorder %s175, %s177
    %p181 = scmp.eq.s32.totalorder %s15, 0
    %p182 = por %p180, %p181
    %p183 = scmp.ne.s32.totalorder %s175, %s177
    %p184 = scmp.eq.s32.totalorder %s20, 1
    %p185 = por %p183, %p184
    %p186 = scmp.ne.s32.totalorder %s177, %s178
    %p187 = scmp.eq.s32.totalorder %s20, 0
    %p188 = por %p186, %p187
    %p189 = scmp.ne.s32.totalorder %s177, %s178
    %p190 = scmp.eq.s32.totalorder %s21, 1
    %p191 = por %p189, %p190
    %p193 = scmp.ne.s32.totalorder %s178, %s192
    %p194 = scmp.eq.s32.totalorder %s21, 0
    %p195 = por %p193, %p194
    %s197 = sadd.s32 %s196, 1
    %p200 = scmp.eq.s32.totalorder %s15, 1
    %p201 = scmp.ne.s32.totalorder %s196, %s198
    %p202 = scmp.eq.s32.totalorder %s15, 0
    %p203 = por %p201, %p202
    %p204 = scmp.ne.s32.totalorder %s196, %s198
    %p205 = scmp.eq.s32.totalorder %s20, 1
    %p206 = por %p204, %p205
    %p207 = scmp.ne.s32.totalorder %s198, %s199
    %p208 = scmp.eq.s32.totalorder %s20, 0
    %p209 = por %p207, %p208
    %p210 = scmp.ne.s32.totalorder %s198, %s199
    %p211 = scmp.eq.s32.totalorder %s21, 1
    %p212 = por %p210, %p211
    %p214 = scmp.ne.s32.totalorder %s199, %s213
    %p215 = scmp.eq.s32.totalorder %s21, 0
    %p216 = por %p214, %p215
    %s217 = ssub.s32 %s15, %s22
    %p218 = scmp.eq.s32.totalorder %s217, 0
    %s220 = sadd.s32 %s219, 1
    %s221 = scalar_select %p218, %s219, %s220
    %p224 = pneg %p218
    %p225 = scmp.eq.s32.totalorder %s15, 1
    %p226 = por %p224, %p225
    %p227 = scmp.ne.s32.totalorder %s219, %s222
    %p228 = scmp.eq.s32.totalorder %s15, 0
    %p229 = por %p227, %p228
    %p230 = scmp.ne.s32.totalorder %s219, %s222
    %p231 = scmp.eq.s32.totalorder %s20, 1
    %p232 = por %p230, %p231
    %p233 = scmp.ne.s32.totalorder %s222, %s223
    %p234 = scmp.eq.s32.totalorder %s20, 0
    %p235 = por %p233, %p234
    %p236 = scmp.ne.s32.totalorder %s222, %s223
    %p237 = scmp.eq.s32.totalorder %s21, 1
    %p238 = por %p236, %p237
    %p240 = scmp.ne.s32.totalorder %s223, %s239
    %p241 = scmp.eq.s32.totalorder %s21, 0
    %p242 = por %p240, %p241
    %p243 = scmp.le.s32.totalorder 1, %s15
    %p244 = scmp.lt.s32.totalorder %s15, 3
    %p245 = pnand %p243, %p244
    %p246 = pneg %p245
    // Predicated region
    $region9: #{sfrgnn_forward.6} parent=5 // pred_check
      _
    $region10: #{sfrgnn_forward.6} parent=5 // pred_check_branch
      %248 = sbr.rel (%p245) target = $region12
    $region11: #{sfrgnn_forward.6} parent=5 // pred_region
      %s249 = ssub.s32 %s15, 1
      // Predicated region
      $region13: #{sfrgnn_forward.6} parent=11 // pred_check
        %p250 = pneg %p62
      $region14: #{sfrgnn_forward.6} parent=11 // pred_check_branch
        %252 = sbr.rel (%p250) target = $region16
      $region15: #{sfrgnn_forward.6} parent=11 // pred_region
        _
      $region16: #{sfrgnn_forward.6} parent=11 // pred_fallthru
        _
      // Predicated region
      $region17: #{sfrgnn_forward.6} parent=11 // pred_check
        %p253 = pneg %p83
      $region18: #{sfrgnn_forward.6} parent=11 // pred_check_branch
        %255 = sbr.rel (%p253) target = $region20
      $region19: #{sfrgnn_forward.6} parent=11 // pred_region
        _
      $region20: #{sfrgnn_forward.6} parent=11 // pred_fallthru
        _
      // Predicated region
      $region21: #{sfrgnn_forward.6} parent=11 // pred_check
        %p256 = pneg %p104
      $region22: #{sfrgnn_forward.6} parent=11 // pred_check_branch
        %258 = sbr.rel (%p256) target = $region24
      $region23: #{sfrgnn_forward.6} parent=11 // pred_region
        _
      $region24: #{sfrgnn_forward.6} parent=11 // pred_fallthru
        _
      // Predicated region
      $region25: #{sfrgnn_forward.6} parent=11 // pred_check
        %p259 = pneg %p125
      $region26: #{sfrgnn_forward.6} parent=11 // pred_check_branch
        %261 = sbr.rel (%p259) target = $region28
      $region27: #{sfrgnn_forward.6} parent=11 // pred_region
        _
      $region28: #{sfrgnn_forward.6} parent=11 // pred_fallthru
        _
      // Predicated region
      $region29: #{sfrgnn_forward.6} parent=11 // pred_check
        %p262 = pneg %p146
      $region30: #{sfrgnn_forward.6} parent=11 // pred_check_branch
        %264 = sbr.rel (%p262) target = $region32
      $region31: #{sfrgnn_forward.6} parent=11 // pred_region
        _
      $region32: #{sfrgnn_forward.6} parent=11 // pred_fallthru
        _
      // Predicated region
      $region33: #{sfrgnn_forward.6} parent=11 // pred_check
        %p265 = pneg %p167
      $region34: #{sfrgnn_forward.6} parent=11 // pred_check_branch
        %267 = sbr.rel (%p265) target = $region36
      $region35: #{sfrgnn_forward.6} parent=11 // pred_region
        _
      $region36: #{sfrgnn_forward.6} parent=11 // pred_fallthru
        _
      // Predicated region
      $region37: #{sfrgnn_forward.6} parent=11 // pred_check
        %p268 = pneg %p188
      $region38: #{sfrgnn_forward.6} parent=11 // pred_check_branch
        %270 = sbr.rel (%p268) target = $region40
      $region39: #{sfrgnn_forward.6} parent=11 // pred_region
        _
      $region40: #{sfrgnn_forward.6} parent=11 // pred_fallthru
        _
      // Predicated region
      $region41: #{sfrgnn_forward.6} parent=11 // pred_check
        %p271 = pneg %p209
      $region42: #{sfrgnn_forward.6} parent=11 // pred_check_branch
        %273 = sbr.rel (%p271) target = $region44
      $region43: #{sfrgnn_forward.6} parent=11 // pred_region
        _
      $region44: #{sfrgnn_forward.6} parent=11 // pred_fallthru
        _
    $region12: #{sfrgnn_forward.6} parent=5 // pred_fallthru
      _
    %p274 = scmp.lt.s32.totalorder %s15, 2
    // Predicated region
    $region45: #{sfrgnn_forward.6} parent=5 // pred_check
      %p275 = pneg %p274
    $region46: #{sfrgnn_forward.6} parent=5 // pred_check_branch
      %277 = sbr.rel (%p275) target = $region48
    $region47: #{sfrgnn_forward.6} parent=5 // pred_region
      // Predicated region
      $region49: #{sfrgnn_forward.6} parent=47 // pred_check
        %p278 = pneg %p35
      $region50: #{sfrgnn_forward.6} parent=47 // pred_check_branch
        %280 = sbr.rel (%p278) target = $region52
      $region51: #{sfrgnn_forward.6} parent=47 // pred_region
        %s281 = smul.u32 2, %s15
        %p282 = scmp.lt.s32.totalorder %s281, 3
        %s283 = scalar_select %p282, %s281, 3
        %s284 = smul.addr %s283, 8
        %s285 = scalar_lea.vmem %s0, %s284
        %s286 = smul.u32 2, %s15
      $region52: #{sfrgnn_forward.6} parent=47 // pred_fallthru
        _
    $region48: #{sfrgnn_forward.6} parent=5 // pred_fallthru
      _
    %p287 = scmp.le.s32.totalorder 1, %s15
    %p288 = scmp.lt.s32.totalorder %s15, 3
    %p289 = pnand %p287, %p288
    %p290 = pneg %p289
    // Predicated region
    $region53: #{sfrgnn_forward.6} parent=5 // pred_check
      _
    $region54: #{sfrgnn_forward.6} parent=5 // pred_check_branch
      %292 = sbr.rel (%p289) target = $region56
    $region55: #{sfrgnn_forward.6} parent=5 // pred_region
      %s293 = ssub.s32 %s15, 1
      %s294 = smul.u32 2, %s20
      %p295 = scmp.lt.s32.totalorder %s294, 3
      %s296 = scalar_select %p295, %s294, 3
      %s297 = smul.addr %s296, 8
      %s298 = scalar_lea.vmem %s0, %s297
      %p299 = pneg %p41
      %p300 = pneg %p38
      %p301 = pneg %p62
      %p302 = pneg %p59
      %p303 = pneg %p83
      %p304 = pneg %p80
      %p305 = pneg %p104
      %p306 = pneg %p101
      %p307 = pneg %p125
      %p308 = pneg %p122
      %p309 = pneg %p146
      %p310 = pneg %p143
      %p311 = pneg %p167
      %p312 = pneg %p164
      %p313 = pneg %p188
      %p314 = pneg %p185
      %p315 = pneg %p209
      %p316 = pneg %p206
      %p317 = pneg %p235
      %p318 = pneg %p232
      %s319 = smul.u32 2, %s20
      %p320 = scmp.lt.s32.totalorder %s319, 3
      %s321 = scalar_select %p320, %s319, 3
      %s322 = smul.addr %s321, 8
      %s323 = scalar_lea.vmem %s9, %s322
      %s324 = smul.u32 2, %s20
      %p325 = scmp.lt.s32.totalorder %s324, 3
      %s326 = scalar_select %p325, %s324, 3
      %s327 = smul.addr %s326, 8
      %s328 = scalar_lea.vmem %s0, %s327
      %s329 = smul.u32 2, %s20
      %s330 = smul.u32 2, %s20
      %p331 = scmp.lt.s32.totalorder %s330, 3
      %s332 = scalar_select %p331, %s330, 3
      %s333 = smul.addr %s332, 8
      %s334 = scalar_lea.vmem %s9, %s333
      %s335 = smul.u32 2, %s20
      %v337 = vld [vmem:[%s328] sm:$0xff]
      %v338 = vld [vmem:[%s328 + $0x8] sm:$0xff]
      %v339 = vld [vmem:[%s1] sm:$0x7]
      %v340 = vld [vmem:[%s2] sm:$0x1]
      %v341 = vpack.c.bf16 %v338, %v337
      %v343 = vperm.slane %v340, 0
      %vm345 = vcmask 48128
      %v347 = vsel %vm345, %v341, 0
      %vm349 = vcmask 1042432
      %v351 = vsel %vm349, %v339, 0
      %353 = vmatpush.bf16.msra.mxu0 0
      %354 = vmatpush.bf16.msra.mxu0 0
      %355 = vmatpush.bf16.msra.mxu0 0
      %356 = vmatpush.bf16.msra.mxu0 0
      %357 = vmatpush.bf16.msra.mxu0 0
      %358 = vmatpush.bf16.msra.mxu0 0
      %359 = vmatpush.bf16.msra.mxu0 0
      %360 = vmatpush.bf16.msra.mxu0 %v351
      %361 = vmatmul.bf16.gmra.mxu0 %v347
      %v362 = vpop.f32.mrf.mxu0
      %v363 = vadd.f32 %v343, %v362
      %v364 = vpop.f32.mrf.mxu0
      %v365 = vadd.f32 %v343, %v364
      %366 = vdwg.mxu0
      %v367 = vld [vmem:[%s3] sm:$0x1]
      %v368 = vld [vmem:[%s4] sm:$0x1]
      %vm369 = vcmask 130048
      %v370 = vsel %vm369, %v363, 0.0
      %371 = vadd.xlane.f32.xlu0 %v370
      %v372 = vpop.xlane.xlu0 %371
      %v373 = vsel %vm369, %v365, 0.0
      %374 = vadd.xlane.f32.xlu0 %v373
      %v375 = vpop.xlane.xlu0 %374
      %v376 = vrcp.pop 16.0
      %v377 = vmul.f32 16.0, %v376
      %v378 = vsub.f32 1.0, %v377
      %v379 = vmul.f32 %v376, %v378
      %v380 = vadd.f32 %v376, %v379
      %vm381 = vweird.f32 %v376
      %v382 = vsel %vm381, %v376, %v380
      %v383 = vmul.f32 %v372, %v382
      %v384 = vmul.f32 %v375, %v382
      %v385 = vsub.f32 %v363, %v383
      %v386 = vsub.f32 %v365, %v384
      %v387 = vmul.f32 %v385, %v385
      %v388 = vmul.f32 %v386, %v386
      %v389 = vsel %vm369, %v387, 0.0
      %390 = vadd.xlane.f32.xlu0 %v389
      %v391 = vpop.xlane.xlu0 %390
      %v392 = vsel %vm369, %v388, 0.0
      %393 = vadd.xlane.f32.xlu0 %v392
      %v394 = vpop.xlane.xlu0 %393
      %v395 = vmul.f32 %v391, %v382
      %v396 = vmul.f32 %v394, %v382
      %v397 = vadd.f32 %v395, 1e-05
      %v398 = vadd.f32 %v396, 1e-05
      %v399 = vrsqrt.pop %v397
      %v400 = vmul.f32 %v399, %v397
      %v401 = vmul.f32 %v400, %v399
      %v402 = vmul.f32 0.5, %v401
      %v403 = vsub.f32 1.5, %v402
      %v404 = vmul.f32 %v399, %v403
      %vm405 = vweird.f32 %v397
      %vm406 = vweird.f32 %v399
      %vm407 = vmor %vm405, %vm406
      %v408 = vsel %vm407, %v399, %v404
      %v409 = vrsqrt.pop %v398
      %v410 = vmul.f32 %v409, %v398
      %v411 = vmul.f32 %v410, %v409
      %v412 = vmul.f32 0.5, %v411
      %v413 = vsub.f32 1.5, %v412
      %v414 = vmul.f32 %v409, %v413
      %vm415 = vweird.f32 %v398
      %vm416 = vweird.f32 %v409
      %vm417 = vmor %vm415, %vm416
      %v418 = vsel %vm417, %v409, %v414
      %v419 = vmul.f32 %v385, %v408
      %v420 = vmul.f32 %v386, %v418
      %v422 = vperm.slane %v367, 0
      %v424 = vmul.f32 %v419, %v422
      %v425 = vmul.f32 %v420, %v422
      %v427 = vperm.slane %v368, 0
      %v429 = vadd.f32 %v424, %v427
      %v430 = vadd.f32 %v425, %v427
      %v431 = vmax.f32 %v429, 0.0
      %v432 = vmax.f32 %v430, 0.0
      %v433 = vld [vmem:[%s5] sm:$0xf]
      %v434 = vld [vmem:[%s5 + $0x4] sm:$0xf]
      %v435 = vld [vmem:[%s6] sm:$0x1]
      %v436 = vpack.c.bf16 %v432, %v431
      %v438 = vperm.slane %v435, 0
      %v442 = vunpack.c.l.b16 %v433
      %v443 = vunpack.c.l.b16 %v434
      %v444 = vpack.c.b16 %v443, %v442
      %v447 = vsel %vm369, %v436, 0
      %449 = vmatpush.bf16.msra.mxu0 0
      %450 = vmatpush.bf16.msra.mxu0 0
      %451 = vmatpush.bf16.msra.mxu0 0
      %452 = vmatpush.bf16.msra.mxu0 0
      %453 = vmatpush.bf16.msra.mxu0 0
      %454 = vmatpush.bf16.msra.mxu0 0
      %455 = vmatpush.bf16.msra.mxu0 0
      %456 = vmatpush.bf16.msra.mxu0 %v444
      %457 = vmatmul.bf16.gmra.mxu0 %v447
      %v458 = vpop.f32.mrf.mxu0
      %v459 = vadd.f32 %v438, %v458
      %v460 = vpop.f32.mrf.mxu0
      %v461 = vadd.f32 %v438, %v460
      %462 = vdwg.mxu0
      %v463 = vld [vmem:[%s7] sm:$0x1]
      %v464 = vld [vmem:[%s8] sm:$0x1]
      %v465 = vsel %vm369, %v459, 0.0
      %466 = vadd.xlane.f32.xlu0 %v465
      %v467 = vpop.xlane.xlu0 %466
      %v468 = vsel %vm369, %v461, 0.0
      %469 = vadd.xlane.f32.xlu0 %v468
      %v470 = vpop.xlane.xlu0 %469
      %v471 = vmul.f32 %v467, %v382
      %v472 = vmul.f32 %v470, %v382
      %v473 = vsub.f32 %v459, %v471
      %v474 = vsub.f32 %v461, %v472
      %v475 = vmul.f32 %v473, %v473
      %v476 = vmul.f32 %v474, %v474
      %v477 = vsel %vm369, %v475, 0.0
      %478 = vadd.xlane.f32.xlu0 %v477
      %v479 = vpop.xlane.xlu0 %478
      %v480 = vsel %vm369, %v476, 0.0
      %481 = vadd.xlane.f32.xlu0 %v480
      %v482 = vpop.xlane.xlu0 %481
      %v483 = vmul.f32 %v479, %v382
      %v484 = vmul.f32 %v482, %v382
      %v485 = vadd.f32 %v483, 1e-05
      %v486 = vadd.f32 %v484, 1e-05
      %v487 = vrsqrt.pop %v485
      %v488 = vmul.f32 %v487, %v485
      %v489 = vmul.f32 %v488, %v487
      %v490 = vmul.f32 0.5, %v489
      %v491 = vsub.f32 1.5, %v490
      %v492 = vmul.f32 %v487, %v491
      %vm493 = vweird.f32 %v485
      %vm494 = vweird.f32 %v487
      %vm495 = vmor %vm493, %vm494
      %v496 = vsel %vm495, %v487, %v492
      %v497 = vrsqrt.pop %v486
      %v498 = vmul.f32 %v497, %v486
      %v499 = vmul.f32 %v498, %v497
      %v500 = vmul.f32 0.5, %v499
      %v501 = vsub.f32 1.5, %v500
      %v502 = vmul.f32 %v497, %v501
      %vm503 = vweird.f32 %v486
      %vm504 = vweird.f32 %v497
      %vm505 = vmor %vm503, %vm504
      %v506 = vsel %vm505, %v497, %v502
      %v507 = vmul.f32 %v473, %v496
      %v508 = vmul.f32 %v474, %v506
      %v510 = vperm.slane %v463, 0
      %v512 = vmul.f32 %v507, %v510
      %v513 = vmul.f32 %v508, %v510
      %v515 = vperm.slane %v464, 0
      %v517 = vadd.f32 %v512, %v515
      %v518 = vadd.f32 %v513, %v515
      %v519 = vmul.f32 %v517, 1.442695
      %v520 = vpow.pop %v519
      %v521 = vmul.f32 %v518, 1.442695
      %v522 = vpow.pop %v521
      %v523 = vadd.f32 %v520, 1.0
      %v524 = vadd.f32 %v522, 1.0
      %v525 = vmul.f32 %v523, %v523
      %v526 = vmul.f32 %v524, %v524
      %v527 = vadd.f32 %v525, 1.0
      %v528 = vadd.f32 %v526, 1.0
      %v529 = vrcp.pop %v527
      %v530 = vmul.f32 %v527, %v529
      %v531 = vsub.f32 1.0, %v530
      %v532 = vmul.f32 %v529, %v531
      %v533 = vadd.f32 %v529, %v532
      %vm534 = vweird.f32 %v527
      %vm535 = vweird.f32 %v529
      %vm536 = vmor %vm534, %vm535
      %v537 = vsel %vm536, %v529, %v533
      %v538 = vand.u32 2147483647, %v527
      %vm539 = vcmp.eq.f32.partialorder %v538, 8.507059e+37
      %v540 = vand.u32 %v527, 2147483648
      %v541 = vor.u32 1.1754944e-38, %v540
      %v542 = vsel %vm539, %v541, %v537
      %v543 = vmul.f32 2.0, %v542
      %v544 = vrcp.pop %v528
      %v545 = vmul.f32 %v528, %v544
      %v546 = vsub.f32 1.0, %v545
      %v547 = vmul.f32 %v544, %v546
      %v548 = vadd.f32 %v544, %v547
      %vm549 = vweird.f32 %v528
      %vm550 = vweird.f32 %v544
      %vm551 = vmor %vm549, %vm550
      %v552 = vsel %vm551, %v544, %v548
      %v553 = vand.u32 2147483647, %v528
      %vm554 = vcmp.eq.f32.partialorder %v553, 8.507059e+37
      %v555 = vand.u32 %v528, 2147483648
      %v556 = vor.u32 1.1754944e-38, %v555
      %v557 = vsel %vm554, %v556, %v552
      %v558 = vmul.f32 2.0, %v557
      %v559 = vsub.f32 1.0, %v543
      %v560 = vsub.f32 1.0, %v558
      %v561 = vmul.f32 %v517, %v559
      %v562 = vmul.f32 %v518, %v560
      %563 = vst.msk [vmem:[%s334] sm:$0xff] %vm369, %v561
      %564 = vst.msk [vmem:[%s334 + $0x8] sm:$0xff] %vm369, %v562
      %s565 = smul.u32 2, %s20
      %p566 = scmp.lt.s32.totalorder %s565, 3
      %s567 = scalar_select %p566, %s565, 3
      %s568 = smul.addr %s567, 8
      %s569 = scalar_lea.vmem %s9, %s568
      // Predicated region
      $region57: #{sfrgnn_forward.6} parent=55 // pred_check
        %p570 = pneg %p232
      $region58: #{sfrgnn_forward.6} parent=55 // pred_check_branch
        %572 = sbr.rel (%p570) target = $region60
      $region59: #{sfrgnn_forward.6} parent=55 // pred_region
        %s573 = smul.u32 2, %s20
      $region60: #{sfrgnn_forward.6} parent=55 // pred_fallthru
        _
    $region56: #{sfrgnn_forward.6} parent=5 // pred_fallthru
      _
    %p574 = scmp.le.s32.totalorder 2, %s15
    // Predicated region
    $region61: #{sfrgnn_forward.6} parent=5 // pred_check
      %p575 = pneg %p574
    $region62: #{sfrgnn_forward.6} parent=5 // pred_check_branch
      %577 = sbr.rel (%p575) target = $region64
    $region63: #{sfrgnn_forward.6} parent=5 // pred_region
      %s578 = ssub.s32 %s15, 2
      // Predicated region
      $region65: #{sfrgnn_forward.6} parent=63 // pred_check
        %p579 = pneg %p238
      $region66: #{sfrgnn_forward.6} parent=63 // pred_check_branch
        %581 = sbr.rel (%p579) target = $region68
      $region67: #{sfrgnn_forward.6} parent=63 // pred_region
        %s582 = smul.u32 2, %s21
        %p583 = scmp.lt.s32.totalorder %s582, 3
        %s584 = scalar_select %p583, %s582, 3
        %s585 = smul.addr %s584, 8
        %s586 = scalar_lea.vmem %s9, %s585
      $region68: #{sfrgnn_forward.6} parent=63 // pred_fallthru
        _
    $region64: #{sfrgnn_forward.6} parent=5 // pred_fallthru
      _
  $region6: #{sfrgnn_forward.6} parent=0 // loop_footer
    %s19 = sadd.s32 1, %s15
  $region7: #{sfrgnn_forward.6} parent=0 // loop_footer_branch
    %14 = sbr.rel target = $region3
  $region8: #{sfrgnn_forward.6} parent=0 // loop_exit
    _

// kernel: sfrgnn_forward.9
$region0: #{sfrgnn_forward.9}
  #allocation0 [shape = 'u32[]', space=smem, size = 0x4, offset = 0x4, fixed_abs, tag = 'smem constant byte address 0x4 - core index']
  #allocation1 [shape = 'u32[72,128]{1,0:T(1,128)}', space=vmem, size = 0x9000, scoped, tag = 'internal scratch']
  %s0 = inlined_call_operand.vmem [shape: f32[128,32], index: 0, kind: input, shape index: {}]
  %s1 = inlined_call_operand.vmem [shape: f32[128,32], index: 1, kind: input, shape index: {}]
  %s2 = inlined_call_operand.vmem [shape: f32[128,128], index: 2, kind: output, shape index: {}]
  %s3 = sld [smem:[#allocation0]]
  $region41: #{sfrgnn_forward.9} parent=0
    _
  %s5 = ssub.s32 1, %s3
  %s6 = scalar_select 0, %s5, %s3
  loop: start=0, step=1, limit=4
  $region2: #{sfrgnn_forward.9} parent=0 // loop_pre_header
    _
  $region3: #{sfrgnn_forward.9} parent=0 // loop_header
    %s8 = sphi 0, %s12
    %p9 = scmp.ge.s32.totalorder %s8, 4
    %s15 = sphi 0, %s27
    %s16 = sphi 0, %s23
    %s17 = sphi 0, %s15
    %s18 = sphi 0, %s16
    %s19 = sphi 0, %s17
    %s20 = sphi 0, %s18
    %s30 = sphi 0, %s32
    %s33 = sphi 0, %s30
    %s34 = sphi 0, %s33
    %s50 = sphi 0, %s34
    %s56 = sphi 0, %s58
    %s59 = sphi 0, %s56
    %s60 = sphi 0, %s59
    %s76 = sphi 0, %s60
    %s84 = sphi 0, %s86
    %s87 = sphi 0, %s84
    %s88 = sphi 0, %s87
    %s104 = sphi 0, %s88
  $region4: #{sfrgnn_forward.9} parent=0 // loop_header_branch
    %11 = sbr.rel (%p9) target = $region8
  $region5: #{sfrgnn_forward.9} parent=0 // loop_body
    %s13 = ssub.s32 %s8, 1
    %s14 = ssub.s32 %s8, 2
    %s21 = sadd.s32 1, %s16
    %p22 = scmp.ge.s32.totalorder %s21, 1
    %s23 = scalar_select %p22, 0, %s21
    %s24 = sadd.s32 1, %s15
    %s25 = scalar_select %p22, %s24, %s15
    %p26 = scmp.ge.s32.totalorder %s25, 2
    %s27 = scalar_select %p26, 0, %s25
    %s28 = ssub.s32 %s15, %s27
    %p29 = scmp.eq.s32.totalorder %s28, 0
    %s31 = sadd.s32 %s30, 1
    %s32 = scalar_select %p29, %s30, %s31
    %p35 = pneg %p29
    %p36 = scmp.eq.s32.totalorder %s8, 1
    %p37 = por %p35, %p36
    %p38 = scmp.ne.s32.totalorder %s30, %s33
    %p39 = scmp.eq.s32.totalorder %s8, 0
    %p40 = por %p38, %p39
    %p41 = scmp.ne.s32.totalorder %s30, %s33
    %p42 = scmp.eq.s32.totalorder %s13, 1
    %p43 = por %p41, %p42
    %p44 = scmp.ne.s32.totalorder %s33, %s34
    %p45 = scmp.eq.s32.totalorder %s13, 0
    %p46 = por %p44, %p45
    %p47 = scmp.ne.s32.totalorder %s33, %s34
    %p48 = scmp.eq.s32.totalorder %s14, 1
    %p49 = por %p47, %p48
    %p51 = scmp.ne.s32.totalorder %s34, %s50
    %p52 = scmp.eq.s32.totalorder %s14, 0
    %p53 = por %p51, %p52
    %s54 = ssub.s32 %s16, %s23
    %p55 = scmp.eq.s32.totalorder %s54, 0
    %s57 = sadd.s32 %s56, 1
    %s58 = scalar_select %p55, %s56, %s57
    %p61 = pneg %p55
    %p62 = scmp.eq.s32.totalorder %s8, 1
    %p63 = por %p61, %p62
    %p64 = scmp.ne.s32.totalorder %s56, %s59
    %p65 = scmp.eq.s32.totalorder %s8, 0
    %p66 = por %p64, %p65
    %p67 = scmp.ne.s32.totalorder %s56, %s59
    %p68 = scmp.eq.s32.totalorder %s13, 1
    %p69 = por %p67, %p68
    %p70 = scmp.ne.s32.totalorder %s59, %s60
    %p71 = scmp.eq.s32.totalorder %s13, 0
    %p72 = por %p70, %p71
    %p73 = scmp.ne.s32.totalorder %s59, %s60
    %p74 = scmp.eq.s32.totalorder %s14, 1
    %p75 = por %p73, %p74
    %p77 = scmp.ne.s32.totalorder %s60, %s76
    %p78 = scmp.eq.s32.totalorder %s14, 0
    %p79 = por %p77, %p78
    %s80 = ssub.s32 %s15, %s27
    %s81 = ssub.s32 %s16, %s23
    %s82 = sor.u32 %s80, %s81
    %p83 = scmp.eq.s32.totalorder %s82, 0
    %s85 = sadd.s32 %s84, 1
    %s86 = scalar_select %p83, %s84, %s85
    %p89 = pneg %p83
    %p90 = scmp.eq.s32.totalorder %s8, 1
    %p91 = por %p89, %p90
    %p92 = scmp.ne.s32.totalorder %s84, %s87
    %p93 = scmp.eq.s32.totalorder %s8, 0
    %p94 = por %p92, %p93
    %p95 = scmp.ne.s32.totalorder %s84, %s87
    %p96 = scmp.eq.s32.totalorder %s13, 1
    %p97 = por %p95, %p96
    %p98 = scmp.ne.s32.totalorder %s87, %s88
    %p99 = scmp.eq.s32.totalorder %s13, 0
    %p100 = por %p98, %p99
    %p101 = scmp.ne.s32.totalorder %s87, %s88
    %p102 = scmp.eq.s32.totalorder %s14, 1
    %p103 = por %p101, %p102
    %p105 = scmp.ne.s32.totalorder %s88, %s104
    %p106 = scmp.eq.s32.totalorder %s14, 0
    %p107 = por %p105, %p106
    %p108 = scmp.le.s32.totalorder 1, %s8
    %p109 = scmp.lt.s32.totalorder %s8, 3
    %p110 = pnand %p108, %p109
    %p111 = pneg %p110
    // Predicated region
    $region9: #{sfrgnn_forward.9} parent=5 // pred_check
      _
    $region10: #{sfrgnn_forward.9} parent=5 // pred_check_branch
      %113 = sbr.rel (%p110) target = $region12
    $region11: #{sfrgnn_forward.9} parent=5 // pred_region
      %s114 = ssub.s32 %s8, 1
      // Predicated region
      $region13: #{sfrgnn_forward.9} parent=11 // pred_check
        %p115 = pneg %p72
      $region14: #{sfrgnn_forward.9} parent=11 // pred_check_branch
        %117 = sbr.rel (%p115) target = $region16
      $region15: #{sfrgnn_forward.9} parent=11 // pred_region
        %s118 = smul.u32 16, %s18
        %p119 = scmp.lt.s32.totalorder %s118, 15
        %s120 = scalar_select %p119, %s118, 15
        %s121 = smul.addr %s120, 8
        %s122 = scalar_lea.vmem %s1, %s121
        %s123 = smul.u32 16, %s18
      $region16: #{sfrgnn_forward.9} parent=11 // pred_fallthru
        _
    $region12: #{sfrgnn_forward.9} parent=5 // pred_fallthru
      _
    %p124 = scmp.lt.s32.totalorder %s8, 2
    // Predicated region
    $region17: #{sfrgnn_forward.9} parent=5 // pred_check
      %p125 = pneg %p124
    $region18: #{sfrgnn_forward.9} parent=5 // pred_check_branch
      %127 = sbr.rel (%p125) target = $region20
    $region19: #{sfrgnn_forward.9} parent=5 // pred_region
      // Predicated region
      $region21: #{sfrgnn_forward.9} parent=19 // pred_check
        %p128 = pneg %p40
      $region22: #{sfrgnn_forward.9} parent=19 // pred_check_branch
        %130 = sbr.rel (%p128) target = $region24
      $region23: #{sfrgnn_forward.9} parent=19 // pred_region
        %s131 = smul.u32 8, %s15
        %p132 = scmp.lt.s32.totalorder %s131, 15
        %s133 = scalar_select %p132, %s131, 15
        %s134 = smul.addr %s133, 8
        %s135 = scalar_lea.vmem %s0, %s134
        %s136 = smul.u32 8, %s15
      $region24: #{sfrgnn_forward.9} parent=19 // pred_fallthru
        _
    $region20: #{sfrgnn_forward.9} parent=5 // pred_fallthru
      _
    %p137 = scmp.le.s32.totalorder 1, %s8
    %p138 = scmp.lt.s32.totalorder %s8, 3
    %p139 = pnand %p137, %p138
    %p140 = pneg %p139
    // Predicated region
    $region25: #{sfrgnn_forward.9} parent=5 // pred_check
      _
    $region26: #{sfrgnn_forward.9} parent=5 // pred_check_branch
      %142 = sbr.rel (%p139) target = $region28
    $region27: #{sfrgnn_forward.9} parent=5 // pred_region
      %s143 = ssub.s32 %s8, 1
      %s144 = smul.u32 8, %s17
      %p145 = scmp.lt.s32.totalorder %s144, 15
      %s146 = scalar_select %p145, %s144, 15
      %s147 = smul.addr %s146, 8
      %s148 = scalar_lea.vmem %s0, %s147
      %p149 = pneg %p46
      %p150 = pneg %p43
      %s151 = smul.u32 16, %s18
      %p152 = scmp.lt.s32.totalorder %s151, 15
      %s153 = scalar_select %p152, %s151, 15
      %s154 = smul.addr %s153, 8
      %s155 = scalar_lea.vmem %s1, %s154
      %p156 = pneg %p72
      %p157 = pneg %p69
      %p158 = pneg %p100
      %p159 = pneg %p97
      %s160 = smul.u32 8, %s17
      %p161 = scmp.lt.s32.totalorder %s160, 15
      %s162 = scalar_select %p161, %s160, 15
      %p163 = scmp.lt.s32.totalorder %s18, 0
      %s164 = scalar_select %p163, %s18, 0
      %s165 = sadd.s32 %s164, %s162
      %s166 = smul.addr %s165, 8
      %s167 = scalar_lea.vmem %s2, %s166
      %s168 = smul.u32 8, %s17
      %p169 = scmp.lt.s32.totalorder %s168, 15
      %s170 = scalar_select %p169, %s168, 15
      %s171 = smul.addr %s170, 8
      %s172 = scalar_lea.vmem %s0, %s171
      %s173 = smul.u32 8, %s17
      %s174 = smul.u32 16, %s18
      %p175 = scmp.lt.s32.totalorder %s174, 15
      %s176 = scalar_select %p175, %s174, 15
      %s177 = smul.addr %s176, 8
      %s178 = scalar_lea.vmem %s1, %s177
      %s179 = smul.u32 16, %s18
      %s180 = smul.u32 8, %s17
      %p181 = scmp.lt.s32.totalorder %s180, 15
      %s182 = scalar_select %p181, %s180, 15
      %p183 = scmp.lt.s32.totalorder %s18, 0
      %s184 = scalar_select %p183, %s18, 0
      %s185 = sadd.s32 %s184, %s182
      %s186 = smul.addr %s185, 8
      %s187 = scalar_lea.vmem %s2, %s186
      %s188 = smul.u32 8, %s17
      %v189 = vld [vmem:[%s172] sm:$0xff]
      %v190 = vld [vmem:[%s172 + $0x8] sm:$0xff]
      %v191 = vld [vmem:[%s172 + $0x10] sm:$0xff]
      %v192 = vld [vmem:[%s172 + $0x18] sm:$0xff]
      %v193 = vld [vmem:[%s172 + $0x20] sm:$0xff]
      %v194 = vld [vmem:[%s172 + $0x28] sm:$0xff]
      %v195 = vld [vmem:[%s172 + $0x30] sm:$0xff]
      %v196 = vld [vmem:[%s172 + $0x38] sm:$0xff]
      %v197 = vpack.c.bf16 %v190, %v189
      %v198 = vpack.c.bf16 %v192, %v191
      %v199 = vpack.c.bf16 %v194, %v193
      %v200 = vpack.c.bf16 %v196, %v195
      %v201 = vld [vmem:[%s178] sm:$0xff]
      %v202 = vld [vmem:[%s178 + $0x8] sm:$0xff]
      %v203 = vld [vmem:[%s178 + $0x10] sm:$0xff]
      %v204 = vld [vmem:[%s178 + $0x18] sm:$0xff]
      %v205 = vld [vmem:[%s178 + $0x20] sm:$0xff]
      %v206 = vld [vmem:[%s178 + $0x28] sm:$0xff]
      %v207 = vld [vmem:[%s178 + $0x30] sm:$0xff]
      %v208 = vld [vmem:[%s178 + $0x38] sm:$0xff]
      %v209 = vld [vmem:[%s178 + $0x40] sm:$0xff]
      %v210 = vld [vmem:[%s178 + $0x48] sm:$0xff]
      %v211 = vld [vmem:[%s178 + $0x50] sm:$0xff]
      %v212 = vld [vmem:[%s178 + $0x58] sm:$0xff]
      %v213 = vld [vmem:[%s178 + $0x60] sm:$0xff]
      %v214 = vld [vmem:[%s178 + $0x68] sm:$0xff]
      %v215 = vld [vmem:[%s178 + $0x70] sm:$0xff]
      %v216 = vld [vmem:[%s178 + $0x78] sm:$0xff]
      %v217 = vpack.c.bf16 %v202, %v201
      %v218 = vpack.c.bf16 %v204, %v203
      %v219 = vpack.c.bf16 %v206, %v205
      %v220 = vpack.c.bf16 %v208, %v207
      %v221 = vpack.c.bf16 %v210, %v209
      %v222 = vpack.c.bf16 %v212, %v211
      %v223 = vpack.c.bf16 %v214, %v213
      %v224 = vpack.c.bf16 %v216, %v215
      %vm225 = vcmask 261120
      %v227 = vsel %vm225, %v197, 0
      %v230 = vsel %vm225, %v198, 0
      %v233 = vsel %vm225, %v199, 0
      %v236 = vsel %vm225, %v200, 0
      %v239 = vsel %vm225, %v217, 0
      %v242 = vsel %vm225, %v218, 0
      %v245 = vsel %vm225, %v219, 0
      %v248 = vsel %vm225, %v220, 0
      %v251 = vsel %vm225, %v221, 0
      %v254 = vsel %vm225, %v222, 0
      %v257 = vsel %vm225, %v223, 0
      %v260 = vsel %vm225, %v224, 0
      %262 = vmatpush.bf16.xpose.msra.mxu0 %v260
      %263 = vmatpush.bf16.xpose.msra.mxu0 %v257
      %264 = vmatpush.bf16.xpose.msra.mxu0 %v254
      %265 = vmatpush.bf16.xpose.msra.mxu0 %v251
      %266 = vmatpush.bf16.xpose.msra.mxu0 %v248
      %267 = vmatpush.bf16.xpose.msra.mxu0 %v245
      %268 = vmatpush.bf16.xpose.msra.mxu0 %v242
      %269 = vmatpush.bf16.xpose.msra.mxu0 %v239
      %270 = vmatmul.bf16.gmra.mxu0 %v227
      %v271 = vpop.f32.mrf.mxu0
      %v272 = vadd.f32 0.0, %v271
      %v273 = vpop.f32.mrf.mxu0
      %v274 = vadd.f32 0.0, %v273
      %275 = vmatmul.bf16.gmra.mxu0 %v230
      %v276 = vpop.f32.mrf.mxu0
      %v277 = vadd.f32 0.0, %v276
      %v278 = vpop.f32.mrf.mxu0
      %v279 = vadd.f32 0.0, %v278
      %280 = vmatmul.bf16.gmra.mxu0 %v233
      %v281 = vpop.f32.mrf.mxu0
      %v282 = vadd.f32 0.0, %v281
      %v283 = vpop.f32.mrf.mxu0
      %v284 = vadd.f32 0.0, %v283
      %285 = vmatmul.bf16.gmra.mxu0 %v236
      %v286 = vpop.f32.mrf.mxu0
      %v287 = vadd.f32 0.0, %v286
      %v288 = vpop.f32.mrf.mxu0
      %v289 = vadd.f32 0.0, %v288
      %290 = vdwg.mxu0
      %v291 = vsub.f32 0.0, %v272
      %v292 = vsub.f32 0.0, %v274
      %v293 = vsub.f32 0.0, %v277
      %v294 = vsub.f32 0.0, %v279
      %v295 = vsub.f32 0.0, %v282
      %v296 = vsub.f32 0.0, %v284
      %v297 = vsub.f32 0.0, %v287
      %v298 = vsub.f32 0.0, %v289
      %v299 = vmul.f32 %v291, 1.442695
      %v300 = vpow.pop %v299
      %v301 = vmul.f32 %v292, 1.442695
      %v302 = vpow.pop %v301
      %v303 = vmul.f32 %v293, 1.442695
      %v304 = vpow.pop %v303
      %v305 = vmul.f32 %v294, 1.442695
      %v306 = vpow.pop %v305
      %v307 = vmul.f32 %v295, 1.442695
      %v308 = vpow.pop %v307
      %v309 = vmul.f32 %v296, 1.442695
      %v310 = vpow.pop %v309
      %v311 = vmul.f32 %v297, 1.442695
      %v312 = vpow.pop %v311
      %v313 = vmul.f32 %v298, 1.442695
      %v314 = vpow.pop %v313
      %v315 = vadd.f32 %v300, 1.0
      %v316 = vadd.f32 %v302, 1.0
      %v317 = vadd.f32 %v304, 1.0
      %v318 = vadd.f32 %v306, 1.0
      %v319 = vadd.f32 %v308, 1.0
      %v320 = vadd.f32 %v310, 1.0
      %v321 = vadd.f32 %v312, 1.0
      %v322 = vadd.f32 %v314, 1.0
      %v323 = vrcp.pop %v315
      %v324 = vrcp.pop %v316
      %v325 = vrcp.pop %v317
      %v326 = vrcp.pop %v318
      %v327 = vrcp.pop %v319
      %v328 = vrcp.pop %v320
      %v329 = vrcp.pop %v321
      %v330 = vrcp.pop %v322
      %331 = vst [vmem:[%s187] sm:$0xff] %v323
      %332 = vst [vmem:[%s187 + $0x8] sm:$0xff] %v324
      %333 = vst [vmem:[%s187 + $0x10] sm:$0xff] %v325
      %334 = vst [vmem:[%s187 + $0x18] sm:$0xff] %v326
      %335 = vst [vmem:[%s187 + $0x20] sm:$0xff] %v327
      %336 = vst [vmem:[%s187 + $0x28] sm:$0xff] %v328
      %337 = vst [vmem:[%s187 + $0x30] sm:$0xff] %v329
      %338 = vst [vmem:[%s187 + $0x38] sm:$0xff] %v330
      %s339 = smul.u32 8, %s17
      %p340 = scmp.lt.s32.totalorder %s339, 15
      %s341 = scalar_select %p340, %s339, 15
      %p342 = scmp.lt.s32.totalorder %s18, 0
      %s343 = scalar_select %p342, %s18, 0
      %s344 = sadd.s32 %s343, %s341
      %s345 = smul.addr %s344, 8
      %s346 = scalar_lea.vmem %s2, %s345
      // Predicated region
      $region29: #{sfrgnn_forward.9} parent=27 // pred_check
        %p347 = pneg %p97
      $region30: #{sfrgnn_forward.9} parent=27 // pred_check_branch
        %349 = sbr.rel (%p347) target = $region32
      $region31: #{sfrgnn_forward.9} parent=27 // pred_region
        %s350 = smul.u32 8, %s17
      $region32: #{sfrgnn_forward.9} parent=27 // pred_fallthru
        _
    $region28: #{sfrgnn_forward.9} parent=5 // pred_fallthru
      _
    %p351 = scmp.le.s32.totalorder 2, %s8
    // Predicated region
    $region33: #{sfrgnn_forward.9} parent=5 // pred_check
      %p352 = pneg %p351
    $region34: #{sfrgnn_forward.9} parent=5 // pred_check_branch
      %354 = sbr.rel (%p352) target = $region36
    $region35: #{sfrgnn_forward.9} parent=5 // pred_region
      %s355 = ssub.s32 %s8, 2
      // Predicated region
      $region37: #{sfrgnn_forward.9} parent=35 // pred_check
        %p356 = pneg %p103
      $region38: #{sfrgnn_forward.9} parent=35 // pred_check_branch
        %358 = sbr.rel (%p356) target = $region40
      $region39: #{sfrgnn_forward.9} parent=35 // pred_region
        %s359 = smul.u32 8, %s19
        %p360 = scmp.lt.s32.totalorder %s359, 15
        %s361 = scalar_select %p360, %s359, 15
        %p362 = scmp.lt.s32.totalorder %s20, 0
        %s363 = scalar_select %p362, %s20, 0
        %s364 = sadd.s32 %s363, %s361
        %s365 = smul.addr %s364, 8
        %s366 = scalar_lea.vmem %s2, %s365
      $region40: #{sfrgnn_forward.9} parent=35 // pred_fallthru
        _
    $region36: #{sfrgnn_forward.9} parent=5 // pred_fallthru
      _
  $region6: #{sfrgnn_forward.9} parent=0 // loop_footer
    %s12 = sadd.s32 1, %s8
  $region7: #{sfrgnn_forward.9} parent=0 // loop_footer_branch
    %7 = sbr.rel target = $region3
  $region8: #{sfrgnn_forward.9} parent=0 // loop_exit
    _

// kernel: sfrgnn_forward.8
$region0: #{sfrgnn_forward.8}
  #allocation0 [shape = 'u32[]', space=smem, size = 0x4, offset = 0x4, fixed_abs, tag = 'smem constant byte address 0x4 - core index']
  #allocation1 [shape = 'u32[72,128]{1,0:T(1,128)}', space=vmem, size = 0x9000, scoped, tag = 'internal scratch']
  %s0 = inlined_call_operand.vmem [shape: f32[16,64], index: 0, kind: input, shape index: {}]
  %s1 = inlined_call_operand.vmem [shape: bf16[64,128], index: 1, kind: input, shape index: {}]
  %s2 = inlined_call_operand.vmem [shape: f32[1,128], index: 2, kind: input, shape index: {}]
  %s3 = inlined_call_operand.vmem [shape: f32[1,128], index: 3, kind: input, shape index: {}]
  %s4 = inlined_call_operand.vmem [shape: f32[1,128], index: 4, kind: input, shape index: {}]
  %s5 = inlined_call_operand.vmem [shape: bf16[128,128], index: 5, kind: input, shape index: {}]
  %s6 = inlined_call_operand.vmem [shape: bf16[128,128], index: 6, kind: input, shape index: {}]
  %s7 = inlined_call_operand.vmem [shape: f32[1,128], index: 7, kind: input, shape index: {}]
  %s8 = inlined_call_operand.vmem [shape: f32[1,128], index: 8, kind: input, shape index: {}]
  %s9 = inlined_call_operand.vmem [shape: f32[1,128], index: 9, kind: input, shape index: {}]
  %s10 = inlined_call_operand.vmem [shape: bf16[128,128], index: 10, kind: input, shape index: {}]
  %s11 = inlined_call_operand.vmem [shape: f32[1,128], index: 11, kind: input, shape index: {}]
  %s12 = inlined_call_operand.vmem [shape: f32[16,128], index: 12, kind: output, shape index: {}]
  %s13 = sld [smem:[#allocation0]]
  $region81: #{sfrgnn_forward.8} parent=0
    _
  %s15 = ssub.s32 1, %s13
  %s16 = scalar_select 0, %s15, %s13
  loop: start=0, step=1, limit=4
  $region2: #{sfrgnn_forward.8} parent=0 // loop_pre_header
    _
  $region3: #{sfrgnn_forward.8} parent=0 // loop_header
    %s18 = sphi 0, %s22
    %p19 = scmp.ge.s32.totalorder %s18, 4
    %s28 = sphi 0, %s30
    %s31 = sphi 0, %s28
    %s32 = sphi 0, %s31
    %s48 = sphi 0, %s32
    %s52 = sphi 0, %s52
    %s54 = sphi 0, %s52
    %s55 = sphi 0, %s54
    %s69 = sphi 0, %s55
    %s73 = sphi 0, %s73
    %s75 = sphi 0, %s73
    %s76 = sphi 0, %s75
    %s90 = sphi 0, %s76
    %s94 = sphi 0, %s94
    %s96 = sphi 0, %s94
    %s97 = sphi 0, %s96
    %s111 = sphi 0, %s97
    %s115 = sphi 0, %s115
    %s117 = sphi 0, %s115
    %s118 = sphi 0, %s117
    %s132 = sphi 0, %s118
    %s136 = sphi 0, %s136
    %s138 = sphi 0, %s136
    %s139 = sphi 0, %s138
    %s153 = sphi 0, %s139
    %s157 = sphi 0, %s157
    %s159 = sphi 0, %s157
    %s160 = sphi 0, %s159
    %s174 = sphi 0, %s160
    %s178 = sphi 0, %s178
    %s180 = sphi 0, %s178
    %s181 = sphi 0, %s180
    %s195 = sphi 0, %s181
    %s199 = sphi 0, %s199
    %s201 = sphi 0, %s199
    %s202 = sphi 0, %s201
    %s216 = sphi 0, %s202
    %s220 = sphi 0, %s220
    %s222 = sphi 0, %s220
    %s223 = sphi 0, %s222
    %s237 = sphi 0, %s223
    %s241 = sphi 0, %s241
    %s243 = sphi 0, %s241
    %s244 = sphi 0, %s243
    %s258 = sphi 0, %s244
    %s262 = sphi 0, %s262
    %s264 = sphi 0, %s262
    %s265 = sphi 0, %s264
    %s279 = sphi 0, %s265
    %s285 = sphi 0, %s287
    %s288 = sphi 0, %s285
    %s289 = sphi 0, %s288
    %s305 = sphi 0, %s289
  $region4: #{sfrgnn_forward.8} parent=0 // loop_header_branch
    %21 = sbr.rel (%p19) target = $region8
  $region5: #{sfrgnn_forward.8} parent=0 // loop_body
    %s23 = ssub.s32 %s18, 1
    %s24 = ssub.s32 %s18, 2
    %s25 = sadd.s32 %s18, 1
    %s26 = ssub.s32 %s18, %s25
    %p27 = scmp.eq.s32.totalorder %s26, 0
    %s29 = sadd.s32 %s28, 1
    %s30 = scalar_select %p27, %s28, %s29
    %p33 = pneg %p27
    %p34 = scmp.eq.s32.totalorder %s18, 1
    %p35 = por %p33, %p34
    %p36 = scmp.ne.s32.totalorder %s28, %s31
    %p37 = scmp.eq.s32.totalorder %s18, 0
    %p38 = por %p36, %p37
    %p39 = scmp.ne.s32.totalorder %s28, %s31
    %p40 = scmp.eq.s32.totalorder %s23, 1
    %p41 = por %p39, %p40
    %p42 = scmp.ne.s32.totalorder %s31, %s32
    %p43 = scmp.eq.s32.totalorder %s23, 0
    %p44 = por %p42, %p43
    %p45 = scmp.ne.s32.totalorder %s31, %s32
    %p46 = scmp.eq.s32.totalorder %s24, 1
    %p47 = por %p45, %p46
    %p49 = scmp.ne.s32.totalorder %s32, %s48
    %p50 = scmp.eq.s32.totalorder %s24, 0
    %p51 = por %p49, %p50
    %s53 = sadd.s32 %s52, 1
    %p56 = scmp.eq.s32.totalorder %s18, 1
    %p57 = scmp.ne.s32.totalorder %s52, %s54
    %p58 = scmp.eq.s32.totalorder %s18, 0
    %p59 = por %p57, %p58
    %p60 = scmp.ne.s32.totalorder %s52, %s54
    %p61 = scmp.eq.s32.totalorder %s23, 1
    %p62 = por %p60, %p61
    %p63 = scmp.ne.s32.totalorder %s54, %s55
    %p64 = scmp.eq.s32.totalorder %s23, 0
    %p65 = por %p63, %p64
    %p66 = scmp.ne.s32.totalorder %s54, %s55
    %p67 = scmp.eq.s32.totalorder %s24, 1
    %p68 = por %p66, %p67
    %p70 = scmp.ne.s32.totalorder %s55, %s69
    %p71 = scmp.eq.s32.totalorder %s24, 0
    %p72 = por %p70, %p71
    %s74 = sadd.s32 %s73, 1
    %p77 = scmp.eq.s32.totalorder %s18, 1
    %p78 = scmp.ne.s32.totalorder %s73, %s75
    %p79 = scmp.eq.s32.totalorder %s18, 0
    %p80 = por %p78, %p79
    %p81 = scmp.ne.s32.totalorder %s73, %s75
    %p82 = scmp.eq.s32.totalorder %s23, 1
    %p83 = por %p81, %p82
    %p84 = scmp.ne.s32.totalorder %s75, %s76
    %p85 = scmp.eq.s32.totalorder %s23, 0
    %p86 = por %p84, %p85
    %p87 = scmp.ne.s32.totalorder %s75, %s76
    %p88 = scmp.eq.s32.totalorder %s24, 1
    %p89 = por %p87, %p88
    %p91 = scmp.ne.s32.totalorder %s76, %s90
    %p92 = scmp.eq.s32.totalorder %s24, 0
    %p93 = por %p91, %p92
    %s95 = sadd.s32 %s94, 1
    %p98 = scmp.eq.s32.totalorder %s18, 1
    %p99 = scmp.ne.s32.totalorder %s94, %s96
    %p100 = scmp.eq.s32.totalorder %s18, 0
    %p101 = por %p99, %p100
    %p102 = scmp.ne.s32.totalorder %s94, %s96
    %p103 = scmp.eq.s32.totalorder %s23, 1
    %p104 = por %p102, %p103
    %p105 = scmp.ne.s32.totalorder %s96, %s97
    %p106 = scmp.eq.s32.totalorder %s23, 0
    %p107 = por %p105, %p106
    %p108 = scmp.ne.s32.totalorder %s96, %s97
    %p109 = scmp.eq.s32.totalorder %s24, 1
    %p110 = por %p108, %p109
    %p112 = scmp.ne.s32.totalorder %s97, %s111
    %p113 = scmp.eq.s32.totalorder %s24, 0
    %p114 = por %p112, %p113
    %s116 = sadd.s32 %s115, 1
    %p119 = scmp.eq.s32.totalorder %s18, 1
    %p120 = scmp.ne.s32.totalorder %s115, %s117
    %p121 = scmp.eq.s32.totalorder %s18, 0
    %p122 = por %p120, %p121
    %p123 = scmp.ne.s32.totalorder %s115, %s117
    %p124 = scmp.eq.s32.totalorder %s23, 1
    %p125 = por %p123, %p124
    %p126 = scmp.ne.s32.totalorder %s117, %s118
    %p127 = scmp.eq.s32.totalorder %s23, 0
    %p128 = por %p126, %p127
    %p129 = scmp.ne.s32.totalorder %s117, %s118
    %p130 = scmp.eq.s32.totalorder %s24, 1
    %p131 = por %p129, %p130
    %p133 = scmp.ne.s32.totalorder %s118, %s132
    %p134 = scmp.eq.s32.totalorder %s24, 0
    %p135 = por %p133, %p134
    %s137 = sadd.s32 %s136, 1
    %p140 = scmp.eq.s32.totalorder %s18, 1
    %p141 = scmp.ne.s32.totalorder %s136, %s138
    %p142 = scmp.eq.s32.totalorder %s18, 0
    %p143 = por %p141, %p142
    %p144 = scmp.ne.s32.totalorder %s136, %s138
    %p145 = scmp.eq.s32.totalorder %s23, 1
    %p146 = por %p144, %p145
    %p147 = scmp.ne.s32.totalorder %s138, %s139
    %p148 = scmp.eq.s32.totalorder %s23, 0
    %p149 = por %p147, %p148
    %p150 = scmp.ne.s32.totalorder %s138, %s139
    %p151 = scmp.eq.s32.totalorder %s24, 1
    %p152 = por %p150, %p151
    %p154 = scmp.ne.s32.totalorder %s139, %s153
    %p155 = scmp.eq.s32.totalorder %s24, 0
    %p156 = por %p154, %p155
    %s158 = sadd.s32 %s157, 1
    %p161 = scmp.eq.s32.totalorder %s18, 1
    %p162 = scmp.ne.s32.totalorder %s157, %s159
    %p163 = scmp.eq.s32.totalorder %s18, 0
    %p164 = por %p162, %p163
    %p165 = scmp.ne.s32.totalorder %s157, %s159
    %p166 = scmp.eq.s32.totalorder %s23, 1
    %p167 = por %p165, %p166
    %p168 = scmp.ne.s32.totalorder %s159, %s160
    %p169 = scmp.eq.s32.totalorder %s23, 0
    %p170 = por %p168, %p169
    %p171 = scmp.ne.s32.totalorder %s159, %s160
    %p172 = scmp.eq.s32.totalorder %s24, 1
    %p173 = por %p171, %p172
    %p175 = scmp.ne.s32.totalorder %s160, %s174
    %p176 = scmp.eq.s32.totalorder %s24, 0
    %p177 = por %p175, %p176
    %s179 = sadd.s32 %s178, 1
    %p182 = scmp.eq.s32.totalorder %s18, 1
    %p183 = scmp.ne.s32.totalorder %s178, %s180
    %p184 = scmp.eq.s32.totalorder %s18, 0
    %p185 = por %p183, %p184
    %p186 = scmp.ne.s32.totalorder %s178, %s180
    %p187 = scmp.eq.s32.totalorder %s23, 1
    %p188 = por %p186, %p187
    %p189 = scmp.ne.s32.totalorder %s180, %s181
    %p190 = scmp.eq.s32.totalorder %s23, 0
    %p191 = por %p189, %p190
    %p192 = scmp.ne.s32.totalorder %s180, %s181
    %p193 = scmp.eq.s32.totalorder %s24, 1
    %p194 = por %p192, %p193
    %p196 = scmp.ne.s32.totalorder %s181, %s195
    %p197 = scmp.eq.s32.totalorder %s24, 0
    %p198 = por %p196, %p197
    %s200 = sadd.s32 %s199, 1
    %p203 = scmp.eq.s32.totalorder %s18, 1
    %p204 = scmp.ne.s32.totalorder %s199, %s201
    %p205 = scmp.eq.s32.totalorder %s18, 0
    %p206 = por %p204, %p205
    %p207 = scmp.ne.s32.totalorder %s199, %s201
    %p208 = scmp.eq.s32.totalorder %s23, 1
    %p209 = por %p207, %p208
    %p210 = scmp.ne.s32.totalorder %s201, %s202
    %p211 = scmp.eq.s32.totalorder %s23, 0
    %p212 = por %p210, %p211
    %p213 = scmp.ne.s32.totalorder %s201, %s202
    %p214 = scmp.eq.s32.totalorder %s24, 1
    %p215 = por %p213, %p214
    %p217 = scmp.ne.s32.totalorder %s202, %s216
    %p218 = scmp.eq.s32.totalorder %s24, 0
    %p219 = por %p217, %p218
    %s221 = sadd.s32 %s220, 1
    %p224 = scmp.eq.s32.totalorder %s18, 1
    %p225 = scmp.ne.s32.totalorder %s220, %s222
    %p226 = scmp.eq.s32.totalorder %s18, 0
    %p227 = por %p225, %p226
    %p228 = scmp.ne.s32.totalorder %s220, %s222
    %p229 = scmp.eq.s32.totalorder %s23, 1
    %p230 = por %p228, %p229
    %p231 = scmp.ne.s32.totalorder %s222, %s223
    %p232 = scmp.eq.s32.totalorder %s23, 0
    %p233 = por %p231, %p232
    %p234 = scmp.ne.s32.totalorder %s222, %s223
    %p235 = scmp.eq.s32.totalorder %s24, 1
    %p236 = por %p234, %p235
    %p238 = scmp.ne.s32.totalorder %s223, %s237
    %p239 = scmp.eq.s32.totalorder %s24, 0
    %p240 = por %p238, %p239
    %s242 = sadd.s32 %s241, 1
    %p245 = scmp.eq.s32.totalorder %s18, 1
    %p246 = scmp.ne.s32.totalorder %s241, %s243
    %p247 = scmp.eq.s32.totalorder %s18, 0
    %p248 = por %p246, %p247
    %p249 = scmp.ne.s32.totalorder %s241, %s243
    %p250 = scmp.eq.s32.totalorder %s23, 1
    %p251 = por %p249, %p250
    %p252 = scmp.ne.s32.totalorder %s243, %s244
    %p253 = scmp.eq.s32.totalorder %s23, 0
    %p254 = por %p252, %p253
    %p255 = scmp.ne.s32.totalorder %s243, %s244
    %p256 = scmp.eq.s32.totalorder %s24, 1
    %p257 = por %p255, %p256
    %p259 = scmp.ne.s32.totalorder %s244, %s258
    %p260 = scmp.eq.s32.totalorder %s24, 0
    %p261 = por %p259, %p260
    %s263 = sadd.s32 %s262, 1
    %p266 = scmp.eq.s32.totalorder %s18, 1
    %p267 = scmp.ne.s32.totalorder %s262, %s264
    %p268 = scmp.eq.s32.totalorder %s18, 0
    %p269 = por %p267, %p268
    %p270 = scmp.ne.s32.totalorder %s262, %s264
    %p271 = scmp.eq.s32.totalorder %s23, 1
    %p272 = por %p270, %p271
    %p273 = scmp.ne.s32.totalorder %s264, %s265
    %p274 = scmp.eq.s32.totalorder %s23, 0
    %p275 = por %p273, %p274
    %p276 = scmp.ne.s32.totalorder %s264, %s265
    %p277 = scmp.eq.s32.totalorder %s24, 1
    %p278 = por %p276, %p277
    %p280 = scmp.ne.s32.totalorder %s265, %s279
    %p281 = scmp.eq.s32.totalorder %s24, 0
    %p282 = por %p280, %p281
    %s283 = ssub.s32 %s18, %s25
    %p284 = scmp.eq.s32.totalorder %s283, 0
    %s286 = sadd.s32 %s285, 1
    %s287 = scalar_select %p284, %s285, %s286
    %p290 = pneg %p284
    %p291 = scmp.eq.s32.totalorder %s18, 1
    %p292 = por %p290, %p291
    %p293 = scmp.ne.s32.totalorder %s285, %s288
    %p294 = scmp.eq.s32.totalorder %s18, 0
    %p295 = por %p293, %p294
    %p296 = scmp.ne.s32.totalorder %s285, %s288
    %p297 = scmp.eq.s32.totalorder %s23, 1
    %p298 = por %p296, %p297
    %p299 = scmp.ne.s32.totalorder %s288, %s289
    %p300 = scmp.eq.s32.totalorder %s23, 0
    %p301 = por %p299, %p300
    %p302 = scmp.ne.s32.totalorder %s288, %s289
    %p303 = scmp.eq.s32.totalorder %s24, 1
    %p304 = por %p302, %p303
    %p306 = scmp.ne.s32.totalorder %s289, %s305
    %p307 = scmp.eq.s32.totalorder %s24, 0
    %p308 = por %p306, %p307
    %p309 = scmp.le.s32.totalorder 1, %s18
    %p310 = scmp.lt.s32.totalorder %s18, 3
    %p311 = pnand %p309, %p310
    %p312 = pneg %p311
    // Predicated region
    $region9: #{sfrgnn_forward.8} parent=5 // pred_check
      _
    $region10: #{sfrgnn_forward.8} parent=5 // pred_check_branch
      %314 = sbr.rel (%p311) target = $region12
    $region11: #{sfrgnn_forward.8} parent=5 // pred_region
      %s315 = ssub.s32 %s18, 1
      // Predicated region
      $region13: #{sfrgnn_forward.8} parent=11 // pred_check
        %p316 = pneg %p65
      $region14: #{sfrgnn_forward.8} parent=11 // pred_check_branch
        %318 = sbr.rel (%p316) target = $region16
      $region15: #{sfrgnn_forward.8} parent=11 // pred_region
        _
      $region16: #{sfrgnn_forward.8} parent=11 // pred_fallthru
        _
      // Predicated region
      $region17: #{sfrgnn_forward.8} parent=11 // pred_check
        %p319 = pneg %p86
      $region18: #{sfrgnn_forward.8} parent=11 // pred_check_branch
        %321 = sbr.rel (%p319) target = $region20
      $region19: #{sfrgnn_forward.8} parent=11 // pred_region
        _
      $region20: #{sfrgnn_forward.8} parent=11 // pred_fallthru
        _
      // Predicated region
      $region21: #{sfrgnn_forward.8} parent=11 // pred_check
        %p322 = pneg %p107
      $region22: #{sfrgnn_forward.8} parent=11 // pred_check_branch
        %324 = sbr.rel (%p322) target = $region24
      $region23: #{sfrgnn_forward.8} parent=11 // pred_region
        _
      $region24: #{sfrgnn_forward.8} parent=11 // pred_fallthru
        _
      // Predicated region
      $region25: #{sfrgnn_forward.8} parent=11 // pred_check
        %p325 = pneg %p128
      $region26: #{sfrgnn_forward.8} parent=11 // pred_check_branch
        %327 = sbr.rel (%p325) target = $region28
      $region27: #{sfrgnn_forward.8} parent=11 // pred_region
        _
      $region28: #{sfrgnn_forward.8} parent=11 // pred_fallthru
        _
      // Predicated region
      $region29: #{sfrgnn_forward.8} parent=11 // pred_check
        %p328 = pneg %p149
      $region30: #{sfrgnn_forward.8} parent=11 // pred_check_branch
        %330 = sbr.rel (%p328) target = $region32
      $region31: #{sfrgnn_forward.8} parent=11 // pred_region
        _
      $region32: #{sfrgnn_forward.8} parent=11 // pred_fallthru
        _
      // Predicated region
      $region33: #{sfrgnn_forward.8} parent=11 // pred_check
        %p331 = pneg %p170
      $region34: #{sfrgnn_forward.8} parent=11 // pred_check_branch
        %333 = sbr.rel (%p331) target = $region36
      $region35: #{sfrgnn_forward.8} parent=11 // pred_region
        _
      $region36: #{sfrgnn_forward.8} parent=11 // pred_fallthru
        _
      // Predicated region
      $region37: #{sfrgnn_forward.8} parent=11 // pred_check
        %p334 = pneg %p191
      $region38: #{sfrgnn_forward.8} parent=11 // pred_check_branch
        %336 = sbr.rel (%p334) target = $region40
      $region39: #{sfrgnn_forward.8} parent=11 // pred_region
        _
      $region40: #{sfrgnn_forward.8} parent=11 // pred_fallthru
        _
      // Predicated region
      $region41: #{sfrgnn_forward.8} parent=11 // pred_check
        %p337 = pneg %p212
      $region42: #{sfrgnn_forward.8} parent=11 // pred_check_branch
        %339 = sbr.rel (%p337) target = $region44
      $region43: #{sfrgnn_forward.8} parent=11 // pred_region
        _
      $region44: #{sfrgnn_forward.8} parent=11 // pred_fallthru
        _
      // Predicated region
      $region45: #{sfrgnn_forward.8} parent=11 // pred_check
        %p340 = pneg %p233
      $region46: #{sfrgnn_forward.8} parent=11 // pred_check_branch
        %342 = sbr.rel (%p340) target = $region48
      $region47: #{sfrgnn_forward.8} parent=11 // pred_region
        _
      $region48: #{sfrgnn_forward.8} parent=11 // pred_fallthru
        _
      // Predicated region
      $region49: #{sfrgnn_forward.8} parent=11 // pred_check
        %p343 = pneg %p254
      $region50: #{sfrgnn_forward.8} parent=11 // pred_check_branch
        %345 = sbr.rel (%p343) target = $region52
      $region51: #{sfrgnn_forward.8} parent=11 // pred_region
        _
      $region52: #{sfrgnn_forward.8} parent=11 // pred_fallthru
        _
      // Predicated region
      $region53: #{sfrgnn_forward.8} parent=11 // pred_check
        %p346 = pneg %p275
      $region54: #{sfrgnn_forward.8} parent=11 // pred_check_branch
        %348 = sbr.rel (%p346) target = $region56
      $region55: #{sfrgnn_forward.8} parent=11 // pred_region
        _
      $region56: #{sfrgnn_forward.8} parent=11 // pred_fallthru
        _
    $region12: #{sfrgnn_forward.8} parent=5 // pred_fallthru
      _
    %p349 = scmp.lt.s32.totalorder %s18, 2
    // Predicated region
    $region57: #{sfrgnn_forward.8} parent=5 // pred_check
      %p350 = pneg %p349
    $region58: #{sfrgnn_forward.8} parent=5 // pred_check_branch
      %352 = sbr.rel (%p350) target = $region60
    $region59: #{sfrgnn_forward.8} parent=5 // pred_region
      // Predicated region
      $region61: #{sfrgnn_forward.8} parent=59 // pred_check
        %p353 = pneg %p38
      $region62: #{sfrgnn_forward.8} parent=59 // pred_check_branch
        %355 = sbr.rel (%p353) target = $region64
      $region63: #{sfrgnn_forward.8} parent=59 // pred_region
        %p356 = scmp.lt.s32.totalorder %s18, 1
        %s357 = scalar_select %p356, %s18, 1
        %s358 = smul.addr %s357, 8
        %s359 = scalar_lea.vmem %s0, %s358
      $region64: #{sfrgnn_forward.8} parent=59 // pred_fallthru
        _
    $region60: #{sfrgnn_forward.8} parent=5 // pred_fallthru
      _
    %p360 = scmp.le.s32.totalorder 1, %s18
    %p361 = scmp.lt.s32.totalorder %s18, 3
    %p362 = pnand %p360, %p361
    %p363 = pneg %p362
    // Predicated region
    $region65: #{sfrgnn_forward.8} parent=5 // pred_check
      _
    $region66: #{sfrgnn_forward.8} parent=5 // pred_check_branch
      %365 = sbr.rel (%p362) target = $region68
    $region67: #{sfrgnn_forward.8} parent=5 // pred_region
      %s366 = ssub.s32 %s18, 1
      %p367 = scmp.lt.s32.totalorder %s23, 1
      %s368 = scalar_select %p367, %s23, 1
      %s369 = smul.addr %s368, 8
      %s370 = scalar_lea.vmem %s0, %s369
      %p371 = pneg %p44
      %p372 = pneg %p41
      %p373 = pneg %p65
      %p374 = pneg %p62
      %p375 = pneg %p86
      %p376 = pneg %p83
      %p377 = pneg %p107
      %p378 = pneg %p104
      %p379 = pneg %p128
      %p380 = pneg %p125
      %p381 = pneg %p149
      %p382 = pneg %p146
      %p383 = pneg %p170
      %p384 = pneg %p167
      %p385 = pneg %p191
      %p386 = pneg %p188
      %p387 = pneg %p212
      %p388 = pneg %p209
      %p389 = pneg %p233
      %p390 = pneg %p230
      %p391 = pneg %p254
      %p392 = pneg %p251
      %p393 = pneg %p275
      %p394 = pneg %p272
      %p395 = pneg %p301
      %p396 = pneg %p298
      %p397 = scmp.lt.s32.totalorder %s23, 1
      %s398 = scalar_select %p397, %s23, 1
      %s399 = smul.addr %s398, 8
      %s400 = scalar_lea.vmem %s12, %s399
      %p401 = scmp.lt.s32.totalorder %s23, 1
      %s402 = scalar_select %p401, %s23, 1
      %s403 = smul.addr %s402, 8
      %s404 = scalar_lea.vmem %s0, %s403
      %p405 = scmp.lt.s32.totalorder %s23, 1
      %s406 = scalar_select %p405, %s23, 1
      %s407 = smul.addr %s406, 8
      %s408 = scalar_lea.vmem %s12, %s407
      %v410 = vlaneseq
      %v411 = vand.u32 %v410, 127
      %v412 = vld [vmem:[%s404] sm:$0xff]
      %v413 = vpack.c.bf16 %v412, %v412
      %v414 = vld [vmem:[%s1] sm:$0xf]
      %v415 = vld [vmem:[%s1 + $0x4] sm:$0xf]
      %v416 = vld [vmem:[%s1 + $0x8] sm:$0xf]
      %v417 = vld [vmem:[%s1 + $0xc] sm:$0xf]
      %v418 = vld [vmem:[%s1 + $0x10] sm:$0xf]
      %v419 = vld [vmem:[%s1 + $0x14] sm:$0xf]
      %v420 = vld [vmem:[%s1 + $0x18] sm:$0xf]
      %v421 = vld [vmem:[%s1 + $0x1c] sm:$0xf]
      %v422 = vld [vmem:[%s2] sm:$0x1]
      %v424 = vperm.slane %v422, 0
      %v434 = vunpack.c.l.b16 %v414
      %v435 = vunpack.c.l.b16 %v415
      %v436 = vunpack.c.l.b16 %v416
      %v437 = vunpack.c.l.b16 %v417
      %v438 = vunpack.c.l.b16 %v418
      %v439 = vunpack.c.l.b16 %v419
      %v440 = vunpack.c.l.b16 %v420
      %v441 = vunpack.c.l.b16 %v421
      %v442 = vpack.c.b16 %v435, %v434
      %v443 = vpack.c.b16 %v437, %v436
      %v444 = vpack.c.b16 %v439, %v438
      %v445 = vpack.c.b16 %v441, %v440
      %vm450 = vcmask 523264
      %v452 = vsel %vm450, %v413, 0
      %454 = vmatpush.bf16.msra.mxu0 0
      %455 = vmatpush.bf16.msra.mxu0 0
      %456 = vmatpush.bf16.msra.mxu0 0
      %457 = vmatpush.bf16.msra.mxu0 0
      %458 = vmatpush.bf16.msra.mxu0 %v445
      %459 = vmatpush.bf16.msra.mxu0 %v444
      %460 = vmatpush.bf16.msra.mxu0 %v443
      %461 = vmatpush.bf16.msra.mxu0 %v442
      %462 = vmatmul.bf16.gmra.mxu0 %v452
      %v463 = vpop.f32.mrf.mxu0
      %v464 = vadd.f32 %v424, %v463
      %v465 = vpop.f32.mrf.mxu0
      %466 = vdwg.mxu0
      %v467 = vpack.c.bf16 %v464, %v464
      %v468 = vld [vmem:[%s5] sm:$0xf]
      %v469 = vld [vmem:[%s5 + $0x4] sm:$0xf]
      %v470 = vld [vmem:[%s5 + $0x8] sm:$0xf]
      %v471 = vld [vmem:[%s5 + $0xc] sm:$0xf]
      %v472 = vld [vmem:[%s5 + $0x10] sm:$0xf]
      %v473 = vld [vmem:[%s5 + $0x14] sm:$0xf]
      %v474 = vld [vmem:[%s5 + $0x18] sm:$0xf]
      %v475 = vld [vmem:[%s5 + $0x1c] sm:$0xf]
      %v476 = vld [vmem:[%s5 + $0x20] sm:$0xf]
      %v477 = vld [vmem:[%s5 + $0x24] sm:$0xf]
      %v478 = vld [vmem:[%s5 + $0x28] sm:$0xf]
      %v479 = vld [vmem:[%s5 + $0x2c] sm:$0xf]
      %v480 = vld [vmem:[%s5 + $0x30] sm:$0xf]
      %v481 = vld [vmem:[%s5 + $0x34] sm:$0xf]
      %v482 = vld [vmem:[%s5 + $0x38] sm:$0xf]
      %v483 = vld [vmem:[%s5 + $0x3c] sm:$0xf]
      %v500 = vunpack.c.l.b16 %v468
      %v501 = vunpack.c.l.b16 %v469
      %v502 = vunpack.c.l.b16 %v470
      %v503 = vunpack.c.l.b16 %v471
      %v504 = vunpack.c.l.b16 %v472
      %v505 = vunpack.c.l.b16 %v473
      %v506 = vunpack.c.l.b16 %v474
      %v507 = vunpack.c.l.b16 %v475
      %v508 = vunpack.c.l.b16 %v476
      %v509 = vunpack.c.l.b16 %v477
      %v510 = vunpack.c.l.b16 %v478
      %v511 = vunpack.c.l.b16 %v479
      %v512 = vunpack.c.l.b16 %v480
      %v513 = vunpack.c.l.b16 %v481
      %v514 = vunpack.c.l.b16 %v482
      %v515 = vunpack.c.l.b16 %v483
      %v516 = vpack.c.b16 %v501, %v500
      %v517 = vpack.c.b16 %v503, %v502
      %v518 = vpack.c.b16 %v505, %v504
      %v519 = vpack.c.b16 %v507, %v506
      %v520 = vpack.c.b16 %v509, %v508
      %v521 = vpack.c.b16 %v511, %v510
      %v522 = vpack.c.b16 %v513, %v512
      %v523 = vpack.c.b16 %v515, %v514
      %532 = vmatpush.bf16.msra.mxu0 %v523
      %533 = vmatpush.bf16.msra.mxu0 %v522
      %534 = vmatpush.bf16.msra.mxu0 %v521
      %535 = vmatpush.bf16.msra.mxu0 %v520
      %536 = vmatpush.bf16.msra.mxu0 %v519
      %537 = vmatpush.bf16.msra.mxu0 %v518
      %538 = vmatpush.bf16.msra.mxu0 %v517
      %539 = vmatpush.bf16.msra.mxu0 %v516
      %540 = vmatmul.bf16.gmra.mxu0 %v467
      %v541 = vpop.f32.mrf.mxu0
      %v542 = vadd.f32 0.0, %v541
      %v543 = vpop.f32.mrf.mxu0
      %544 = vdwg.mxu0
      %v545 = vsub.f32 %v464, %v542
      %v546 = vmul.f32 %v545, %v545
      %v547 = vpack.c.bf16 %v546, %v546
      %548 = vmatpush.bf16.msra.mxu0 %v523
      %549 = vmatpush.bf16.msra.mxu0 %v522
      %550 = vmatpush.bf16.msra.mxu0 %v521
      %551 = vmatpush.bf16.msra.mxu0 %v520
      %552 = vmatpush.bf16.msra.mxu0 %v519
      %553 = vmatpush.bf16.msra.mxu0 %v518
      %554 = vmatpush.bf16.msra.mxu0 %v517
      %555 = vmatpush.bf16.msra.mxu0 %v516
      %556 = vmatmul.bf16.gmra.mxu0 %v547
      %v557 = vpop.f32.mrf.mxu0
      %v558 = vadd.f32 1e-05, %v557
      %v559 = vpop.f32.mrf.mxu0
      %560 = vdwg.mxu0
      %v561 = vrsqrt.pop %v558
      %v562 = vmul.f32 %v561, %v558
      %v563 = vmul.f32 %v562, %v561
      %v564 = vmul.f32 0.5, %v563
      %v565 = vsub.f32 1.5, %v564
      %v566 = vmul.f32 %v561, %v565
      %vm567 = vweird.f32 %v558
      %vm568 = vweird.f32 %v561
      %vm569 = vmor %vm567, %vm568
      %v570 = vsel %vm569, %v561, %v566
      %v571 = vmul.f32 %v545, %v570
      %v572 = vld [vmem:[%s3] sm:$0x1]
      %v574 = vperm.slane %v572, 0
      %v576 = vmul.f32 %v571, %v574
      %v577 = vld [vmem:[%s4] sm:$0x1]
      %v579 = vperm.slane %v577, 0
      %v581 = vadd.f32 %v576, %v579
      %vm582 = vcmp.lt.s32.totalorder %v411, 96
      %v583 = vmul.f32 %v581, 1.442695
      %v584 = vpow.pop %v583
      %v585 = vadd.f32 %v584, 1.0
      %v586 = vmul.f32 %v585, %v585
      %v587 = vadd.f32 %v586, 1.0
      %v588 = vrcp.pop %v587
      %v589 = vmul.f32 %v587, %v588
      %v590 = vsub.f32 1.0, %v589
      %v591 = vmul.f32 %v588, %v590
      %v592 = vadd.f32 %v588, %v591
      %vm593 = vweird.f32 %v587
      %vm594 = vweird.f32 %v588
      %vm595 = vmor %vm593, %vm594
      %v596 = vsel %vm595, %v588, %v592
      %v597 = vand.u32 2147483647, %v587
      %vm598 = vcmp.eq.f32.partialorder %v597, 8.507059e+37
      %v599 = vand.u32 %v587, 2147483648
      %v600 = vor.u32 1.1754944e-38, %v599
      %v601 = vsel %vm598, %v600, %v596
      %v602 = vmul.f32 2.0, %v601
      %v603 = vsub.f32 1.0, %v602
      %v604 = vmul.f32 %v581, %v603
      %v605 = vmul.f32 %v581, 0.5
      %v606 = vmul.f32 %v581, 0.70710677
      %v607 = vmul.f32 %v606, %v606
      %v608 = vmin.f32 16.0, %v607
      %v609 = vmul.f32 %v608, 2.1237322e-06
      %v610 = vadd.f32 %v609, 0.00028619796
      %v611 = vmul.f32 %v608, %v610
      %v612 = vadd.f32 %v611, 0.0036580483
      %v613 = vmul.f32 %v608, %v612
      %v614 = vadd.f32 %v613, 0.05243302
      %v615 = vmul.f32 %v608, %v614
      %v616 = vadd.f32 %v615, 0.18741608
      %v617 = vmul.f32 %v608, %v616
      %v618 = vadd.f32 %v617, 1.1283791
      %v619 = vmul.f32 %v606, %v618
      %v620 = vmul.f32 %v608, 3.8918573e-05
      %v621 = vadd.f32 %v620, 0.001143296
      %v622 = vmul.f32 %v608, %v621
      %v623 = vadd.f32 %v622, 0.014752088
      %v624 = vmul.f32 %v608, %v623
      %v625 = vadd.f32 %v624, 0.112945676
      %v626 = vmul.f32 %v608, %v625
      %v627 = vadd.f32 %v626, 0.4994258
      %v628 = vmul.f32 %v608, %v627
      %v629 = vadd.f32 %v628, 1.0
      %v630 = vrcp.pop %v629
      %v631 = vmul.f32 %v629, %v630
      %v632 = vsub.f32 1.0, %v631
      %v633 = vmul.f32 %v630, %v632
      %v634 = vadd.f32 %v630, %v633
      %vm635 = vweird.f32 %v629
      %vm636 = vweird.f32 %v630
      %vm637 = vmor %vm635, %vm636
      %v638 = vsel %vm637, %v630, %v634
      %v639 = vand.u32 2147483647, %v629
      %vm640 = vcmp.eq.f32.partialorder %v639, 8.507059e+37
      %v641 = vand.u32 %v629, 2147483648
      %v642 = vor.u32 1.1754944e-38, %v641
      %v643 = vsel %vm640, %v642, %v638
      %v644 = vmul.f32 %v619, %v643
      %v645 = vmin.f32 %v644, 1.0
      %v646 = vmax.f32 %v645, -1.0
      %v647 = vadd.f32 %v646, 1.0
      %v648 = vmul.f32 %v605, %v647
      %v649 = vsel %vm582, 1, 0
      %vm650 = vcmp.eq.s32.totalorder %v649, 1
      %v651 = vsel %vm650, %v604, %v648
      %v652 = vpack.c.bf16 %v651, %v651
      %v653 = vld [vmem:[%s6] sm:$0xf]
      %v654 = vld [vmem:[%s6 + $0x4] sm:$0xf]
      %v655 = vld [vmem:[%s6 + $0x8] sm:$0xf]
      %v656 = vld [vmem:[%s6 + $0xc] sm:$0xf]
      %v657 = vld [vmem:[%s6 + $0x10] sm:$0xf]
      %v658 = vld [vmem:[%s6 + $0x14] sm:$0xf]
      %v659 = vld [vmem:[%s6 + $0x18] sm:$0xf]
      %v660 = vld [vmem:[%s6 + $0x1c] sm:$0xf]
      %v661 = vld [vmem:[%s6 + $0x20] sm:$0xf]
      %v662 = vld [vmem:[%s6 + $0x24] sm:$0xf]
      %v663 = vld [vmem:[%s6 + $0x28] sm:$0xf]
      %v664 = vld [vmem:[%s6 + $0x2c] sm:$0xf]
      %v665 = vld [vmem:[%s6 + $0x30] sm:$0xf]
      %v666 = vld [vmem:[%s6 + $0x34] sm:$0xf]
      %v667 = vld [vmem:[%s6 + $0x38] sm:$0xf]
      %v668 = vld [vmem:[%s6 + $0x3c] sm:$0xf]
      %v669 = vld [vmem:[%s7] sm:$0x1]
      %v671 = vperm.slane %v669, 0
      %v689 = vunpack.c.l.b16 %v653
      %v690 = vunpack.c.l.b16 %v654
      %v691 = vunpack.c.l.b16 %v655
      %v692 = vunpack.c.l.b16 %v656
      %v693 = vunpack.c.l.b16 %v657
      %v694 = vunpack.c.l.b16 %v658
      %v695 = vunpack.c.l.b16 %v659
      %v696 = vunpack.c.l.b16 %v660
      %v697 = vunpack.c.l.b16 %v661
      %v698 = vunpack.c.l.b16 %v662
      %v699 = vunpack.c.l.b16 %v663
      %v700 = vunpack.c.l.b16 %v664
      %v701 = vunpack.c.l.b16 %v665
      %v702 = vunpack.c.l.b16 %v666
      %v703 = vunpack.c.l.b16 %v667
      %v704 = vunpack.c.l.b16 %v668
      %v705 = vpack.c.b16 %v690, %v689
      %v706 = vpack.c.b16 %v692, %v691
      %v707 = vpack.c.b16 %v694, %v693
      %v708 = vpack.c.b16 %v696, %v695
      %v709 = vpack.c.b16 %v698, %v697
      %v710 = vpack.c.b16 %v700, %v699
      %v711 = vpack.c.b16 %v702, %v701
      %v712 = vpack.c.b16 %v704, %v703
      %721 = vmatpush.bf16.msra.mxu0 %v712
      %722 = vmatpush.bf16.msra.mxu0 %v711
      %723 = vmatpush.bf16.msra.mxu0 %v710
      %724 = vmatpush.bf16.msra.mxu0 %v709
      %725 = vmatpush.bf16.msra.mxu0 %v708
      %726 = vmatpush.bf16.msra.mxu0 %v707
      %727 = vmatpush.bf16.msra.mxu0 %v706
      %728 = vmatpush.bf16.msra.mxu0 %v705
      %729 = vmatmul.bf16.gmra.mxu0 %v652
      %v730 = vpop.f32.mrf.mxu0
      %v731 = vadd.f32 %v671, %v730
      %v732 = vpop.f32.mrf.mxu0
      %733 = vdwg.mxu0
      %v734 = vpack.c.bf16 %v731, %v731
      %735 = vmatpush.bf16.msra.mxu0 %v523
      %736 = vmatpush.bf16.msra.mxu0 %v522
      %737 = vmatpush.bf16.msra.mxu0 %v521
      %738 = vmatpush.bf16.msra.mxu0 %v520
      %739 = vmatpush.bf16.msra.mxu0 %v519
      %740 = vmatpush.bf16.msra.mxu0 %v518
      %741 = vmatpush.bf16.msra.mxu0 %v517
      %742 = vmatpush.bf16.msra.mxu0 %v516
      %743 = vmatmul.bf16.gmra.mxu0 %v734
      %v744 = vpop.f32.mrf.mxu0
      %v745 = vadd.f32 0.0, %v744
      %v746 = vpop.f32.mrf.mxu0
      %747 = vdwg.mxu0
      %v748 = vsub.f32 %v731, %v745
      %v749 = vmul.f32 %v748, %v748
      %v750 = vpack.c.bf16 %v749, %v749
      %751 = vmatpush.bf16.msra.mxu0 %v523
      %752 = vmatpush.bf16.msra.mxu0 %v522
      %753 = vmatpush.bf16.msra.mxu0 %v521
      %754 = vmatpush.bf16.msra.mxu0 %v520
      %755 = vmatpush.bf16.msra.mxu0 %v519
      %756 = vmatpush.bf16.msra.mxu0 %v518
      %757 = vmatpush.bf16.msra.mxu0 %v517
      %758 = vmatpush.bf16.msra.mxu0 %v516
      %759 = vmatmul.bf16.gmra.mxu0 %v750
      %v760 = vpop.f32.mrf.mxu0
      %v761 = vadd.f32 1e-05, %v760
      %v762 = vpop.f32.mrf.mxu0
      %763 = vdwg.mxu0
      %v764 = vrsqrt.pop %v761
      %v765 = vmul.f32 %v764, %v761
      %v766 = vmul.f32 %v765, %v764
      %v767 = vmul.f32 0.5, %v766
      %v768 = vsub.f32 1.5, %v767
      %v769 = vmul.f32 %v764, %v768
      %vm770 = vweird.f32 %v761
      %vm771 = vweird.f32 %v764
      %vm772 = vmor %vm770, %vm771
      %v773 = vsel %vm772, %v764, %v769
      %v774 = vmul.f32 %v748, %v773
      %v775 = vld [vmem:[%s8] sm:$0x1]
      %v777 = vperm.slane %v775, 0
      %v779 = vmul.f32 %v774, %v777
      %v780 = vld [vmem:[%s9] sm:$0x1]
      %v782 = vperm.slane %v780, 0
      %v784 = vadd.f32 %v779, %v782
      %v785 = vsel %vm650, %v784, %v731
      %vm786 = vcmp.ge.s32.totalorder %v411, 64
      %vm787 = vmand %vm786, %vm582
      %v788 = vmul.f32 %v785, 0.5
      %v789 = vmul.f32 %v785, 0.70710677
      %v790 = vmul.f32 %v789, %v789
      %v791 = vmin.f32 16.0, %v790
      %v792 = vmul.f32 %v791, 2.1237322e-06
      %v793 = vadd.f32 %v792, 0.00028619796
      %v794 = vmul.f32 %v791, %v793
      %v795 = vadd.f32 %v794, 0.0036580483
      %v796 = vmul.f32 %v791, %v795
      %v797 = vadd.f32 %v796, 0.05243302
      %v798 = vmul.f32 %v791, %v797
      %v799 = vadd.f32 %v798, 0.18741608
      %v800 = vmul.f32 %v791, %v799
      %v801 = vadd.f32 %v800, 1.1283791
      %v802 = vmul.f32 %v789, %v801
      %v803 = vmul.f32 %v791, 3.8918573e-05
      %v804 = vadd.f32 %v803, 0.001143296
      %v805 = vmul.f32 %v791, %v804
      %v806 = vadd.f32 %v805, 0.014752088
      %v807 = vmul.f32 %v791, %v806
      %v808 = vadd.f32 %v807, 0.112945676
      %v809 = vmul.f32 %v791, %v808
      %v810 = vadd.f32 %v809, 0.4994258
      %v811 = vmul.f32 %v791, %v810
      %v812 = vadd.f32 %v811, 1.0
      %v813 = vrcp.pop %v812
      %v814 = vmul.f32 %v812, %v813
      %v815 = vsub.f32 1.0, %v814
      %v816 = vmul.f32 %v813, %v815
      %v817 = vadd.f32 %v813, %v816
      %vm818 = vweird.f32 %v812
      %vm819 = vweird.f32 %v813
      %vm820 = vmor %vm818, %vm819
      %v821 = vsel %vm820, %v813, %v817
      %v822 = vand.u32 2147483647, %v812
      %vm823 = vcmp.eq.f32.partialorder %v822, 8.507059e+37
      %v824 = vand.u32 %v812, 2147483648
      %v825 = vor.u32 1.1754944e-38, %v824
      %v826 = vsel %vm823, %v825, %v821
      %v827 = vmul.f32 %v802, %v826
      %v828 = vmin.f32 %v827, 1.0
      %v829 = vmax.f32 %v828, -1.0
      %v830 = vadd.f32 %v829, 1.0
      %v831 = vmul.f32 %v788, %v830
      %v832 = vsel %vm787, 1, 0
      %vm833 = vcmp.eq.s32.totalorder %v832, 1
      %v834 = vsel %vm833, %v831, %v785
      %v835 = vpack.c.bf16 %v834, %v834
      %v836 = vld [vmem:[%s10] sm:$0xf]
      %v837 = vld [vmem:[%s10 + $0x4] sm:$0xf]
      %v838 = vld [vmem:[%s10 + $0x8] sm:$0xf]
      %v839 = vld [vmem:[%s10 + $0xc] sm:$0xf]
      %v840 = vld [vmem:[%s10 + $0x10] sm:$0xf]
      %v841 = vld [vmem:[%s10 + $0x14] sm:$0xf]
      %v842 = vld [vmem:[%s10 + $0x18] sm:$0xf]
      %v843 = vld [vmem:[%s10 + $0x1c] sm:$0xf]
      %v844 = vld [vmem:[%s10 + $0x20] sm:$0xf]
      %v845 = vld [vmem:[%s10 + $0x24] sm:$0xf]
      %v846 = vld [vmem:[%s10 + $0x28] sm:$0xf]
      %v847 = vld [vmem:[%s10 + $0x2c] sm:$0xf]
      %v848 = vld [vmem:[%s10 + $0x30] sm:$0xf]
      %v849 = vld [vmem:[%s10 + $0x34] sm:$0xf]
      %v850 = vld [vmem:[%s10 + $0x38] sm:$0xf]
      %v851 = vld [vmem:[%s10 + $0x3c] sm:$0xf]
      %v852 = vld [vmem:[%s11] sm:$0x1]
      %v854 = vperm.slane %v852, 0
      %v872 = vunpack.c.l.b16 %v836
      %v873 = vunpack.c.l.b16 %v837
      %v874 = vunpack.c.l.b16 %v838
      %v875 = vunpack.c.l.b16 %v839
      %v876 = vunpack.c.l.b16 %v840
      %v877 = vunpack.c.l.b16 %v841
      %v878 = vunpack.c.l.b16 %v842
      %v879 = vunpack.c.l.b16 %v843
      %v880 = vunpack.c.l.b16 %v844
      %v881 = vunpack.c.l.b16 %v845
      %v882 = vunpack.c.l.b16 %v846
      %v883 = vunpack.c.l.b16 %v847
      %v884 = vunpack.c.l.b16 %v848
      %v885 = vunpack.c.l.b16 %v849
      %v886 = vunpack.c.l.b16 %v850
      %v887 = vunpack.c.l.b16 %v851
      %v888 = vpack.c.b16 %v873, %v872
      %v889 = vpack.c.b16 %v875, %v874
      %v890 = vpack.c.b16 %v877, %v876
      %v891 = vpack.c.b16 %v879, %v878
      %v892 = vpack.c.b16 %v881, %v880
      %v893 = vpack.c.b16 %v883, %v882
      %v894 = vpack.c.b16 %v885, %v884
      %v895 = vpack.c.b16 %v887, %v886
      %904 = vmatpush.bf16.msra.mxu0 %v895
      %905 = vmatpush.bf16.msra.mxu0 %v894
      %906 = vmatpush.bf16.msra.mxu0 %v893
      %907 = vmatpush.bf16.msra.mxu0 %v892
      %908 = vmatpush.bf16.msra.mxu0 %v891
      %909 = vmatpush.bf16.msra.mxu0 %v890
      %910 = vmatpush.bf16.msra.mxu0 %v889
      %911 = vmatpush.bf16.msra.mxu0 %v888
      %912 = vmatmul.bf16.gmra.mxu0 %v835
      %v913 = vpop.f32.mrf.mxu0
      %v914 = vadd.f32 %v854, %v913
      %v915 = vpop.f32.mrf.mxu0
      %916 = vdwg.mxu0
      %917 = vst [vmem:[%s408] sm:$0xff] %v914
      %p918 = scmp.lt.s32.totalorder %s23, 1
      %s919 = scalar_select %p918, %s23, 1
      %s920 = smul.addr %s919, 8
      %s921 = scalar_lea.vmem %s12, %s920
      // Predicated region
      $region69: #{sfrgnn_forward.8} parent=67 // pred_check
        %p922 = pneg %p298
      $region70: #{sfrgnn_forward.8} parent=67 // pred_check_branch
        %924 = sbr.rel (%p922) target = $region72
      $region71: #{sfrgnn_forward.8} parent=67 // pred_region
        _
      $region72: #{sfrgnn_forward.8} parent=67 // pred_fallthru
        _
    $region68: #{sfrgnn_forward.8} parent=5 // pred_fallthru
      _
    %p925 = scmp.le.s32.totalorder 2, %s18
    // Predicated region
    $region73: #{sfrgnn_forward.8} parent=5 // pred_check
      %p926 = pneg %p925
    $region74: #{sfrgnn_forward.8} parent=5 // pred_check_branch
      %928 = sbr.rel (%p926) target = $region76
    $region75: #{sfrgnn_forward.8} parent=5 // pred_region
      %s929 = ssub.s32 %s18, 2
      // Predicated region
      $region77: #{sfrgnn_forward.8} parent=75 // pred_check
        %p930 = pneg %p304
      $region78: #{sfrgnn_forward.8} parent=75 // pred_check_branch
        %932 = sbr.rel (%p930) target = $region80
      $region79: #{sfrgnn_forward.8} parent=75 // pred_region
        %p933 = scmp.lt.s32.totalorder %s24, 1
        %s934 = scalar_select %p933, %s24, 1
        %s935 = smul.addr %s934, 8
        %s936 = scalar_lea.vmem %s12, %s935
      $region80: #{sfrgnn_forward.8} parent=75 // pred_fallthru
        _
    $region76: #{sfrgnn_forward.8} parent=5 // pred_fallthru
      _
  $region6: #{sfrgnn_forward.8} parent=0 // loop_footer
    %s22 = sadd.s32 1, %s18
  $region7: #{sfrgnn_forward.8} parent=0 // loop_footer_branch
    %17 = sbr.rel target = $region3
  $region8: #{sfrgnn_forward.8} parent=0 // loop_exit
    _

// kernel: sfrgnn_forward.5
$region0: #{sfrgnn_forward.5}
  #allocation0 [shape = 'u32[]', space=smem, size = 0x4, offset = 0x4, fixed_abs, tag = 'smem constant byte address 0x4 - core index']
  #allocation1 [shape = 'u32[72,128]{1,0:T(1,128)}', space=vmem, size = 0x9000, scoped, tag = 'internal scratch']
  %s0 = inlined_call_operand.vmem [shape: f32[16,8], index: 0, kind: input, shape index: {}]
  %s1 = inlined_call_operand.vmem [shape: f32[16,256], index: 1, kind: input, shape index: {}]
  %s2 = inlined_call_operand.vmem [shape: bf16[8,256], index: 2, kind: input, shape index: {}]
  %s3 = inlined_call_operand.vmem [shape: f32[1,256], index: 3, kind: input, shape index: {}]
  %s4 = inlined_call_operand.vmem [shape: bf16[256,16], index: 4, kind: input, shape index: {}]
  %s5 = inlined_call_operand.vmem [shape: f32[1,16], index: 5, kind: input, shape index: {}]
  %s6 = inlined_call_operand.vmem [shape: f32[1,16], index: 6, kind: input, shape index: {}]
  %s7 = inlined_call_operand.vmem [shape: f32[1,16], index: 7, kind: input, shape index: {}]
  %s8 = inlined_call_operand.vmem [shape: bf16[16,16], index: 8, kind: input, shape index: {}]
  %s9 = inlined_call_operand.vmem [shape: f32[1,16], index: 9, kind: input, shape index: {}]
  %s10 = inlined_call_operand.vmem [shape: f32[1,16], index: 10, kind: input, shape index: {}]
  %s11 = inlined_call_operand.vmem [shape: f32[1,16], index: 11, kind: input, shape index: {}]
  %s12 = inlined_call_operand.hbm [shape: bf16[256,256], index: 12, kind: input, shape index: {}]
  %s13 = inlined_call_operand.vmem [shape: f32[1,256], index: 13, kind: input, shape index: {}]
  %s14 = inlined_call_operand.vmem [shape: bf16[256,512], index: 14, kind: input, shape index: {}]
  %s15 = inlined_call_operand.vmem [shape: f32[1,512], index: 15, kind: input, shape index: {}]
  %s16 = inlined_call_operand.hbm [shape: bf16[512,1024], index: 16, kind: input, shape index: {}]
  %s17 = inlined_call_operand.vmem [shape: f32[1,1024], index: 17, kind: input, shape index: {}]
  %s18 = inlined_call_operand.vmem [shape: bf16[1024,16], index: 18, kind: input, shape index: {}]
  %s19 = inlined_call_operand.vmem [shape: f32[16,32], index: 19, kind: output, shape index: {}]
  %s20 = sld [smem:[#allocation0]]
  $region117: #{sfrgnn_forward.5} parent=0
    _
  %s22 = ssub.s32 1, %s20
  %s23 = scalar_select 0, %s22, %s20
  $region1: #{sfrgnn_forward.5} parent=0
    #allocation2 [shape = 'u8[131072]{0}', space=vmem, size = 0x20000, scoped, tag = 'input window, operand 12, single buffered']
    #allocation3 [shape = 's32[2]{0}', space=sflag, size = 0x8, scoped, tag = 'scoped memory for sfrgnn_forward.5']
    #allocation4 [shape = 'u8[1048576]{0}', space=vmem, size = 0x100000, scoped, tag = 'input window, operand 16, single buffered']
    #allocation5 [shape = 's32[1]{0}', space=sflag, size = 0x4, scoped, tag = 'scoped memory for sfrgnn_forward.5']
    %24 = vsyncpa [#allocation3], 0
    %25 = vsyncpa [#allocation5], 0
    loop: start=0, step=1, limit=4
    $region2: #{sfrgnn_forward.5} parent=1 // loop_pre_header
      _
    $region3: #{sfrgnn_forward.5} parent=1 // loop_header
      %s27 = sphi 0, %s31
      %p28 = scmp.ge.s32.totalorder %s27, 4
      %s37 = sphi 0, %s39
      %s40 = sphi 0, %s37
      %s41 = sphi 0, %s40
      %s57 = sphi 0, %s41
      %s63 = sphi 0, %s65
      %s66 = sphi 0, %s63
      %s67 = sphi 0, %s66
      %s83 = sphi 0, %s67
      %s87 = sphi 0, %s87
      %s89 = sphi 0, %s87
      %s90 = sphi 0, %s89
      %s104 = sphi 0, %s90
      %s108 = sphi 0, %s108
      %s110 = sphi 0, %s108
      %s111 = sphi 0, %s110
      %s125 = sphi 0, %s111
      %s129 = sphi 0, %s129
      %s131 = sphi 0, %s129
      %s132 = sphi 0, %s131
      %s146 = sphi 0, %s132
      %s150 = sphi 0, %s150
      %s152 = sphi 0, %s150
      %s153 = sphi 0, %s152
      %s167 = sphi 0, %s153
      %s171 = sphi 0, %s171
      %s173 = sphi 0, %s171
      %s174 = sphi 0, %s173
      %s188 = sphi 0, %s174
      %s192 = sphi 0, %s192
      %s194 = sphi 0, %s192
      %s195 = sphi 0, %s194
      %s209 = sphi 0, %s195
      %s213 = sphi 0, %s213
      %s215 = sphi 0, %s213
      %s216 = sphi 0, %s215
      %s230 = sphi 0, %s216
      %s234 = sphi 0, %s234
      %s236 = sphi 0, %s234
      %s237 = sphi 0, %s236
      %s251 = sphi 0, %s237
      %s255 = sphi 0, %s255
      %s257 = sphi 0, %s255
      %s258 = sphi 0, %s257
      %s272 = sphi 0, %s258
      %s276 = sphi 0, %s276
      %s278 = sphi 0, %s276
      %s279 = sphi 0, %s278
      %s293 = sphi 0, %s279
      %s297 = sphi 0, %s297
      %s299 = sphi 0, %s297
      %s300 = sphi 0, %s299
      %s314 = sphi 0, %s300
      %s318 = sphi 0, %s318
      %s320 = sphi 0, %s318
      %s321 = sphi 0, %s320
      %s335 = sphi 0, %s321
      %s339 = sphi 0, %s339
      %s341 = sphi 0, %s339
      %s342 = sphi 0, %s341
      %s356 = sphi 0, %s342
      %s360 = sphi 0, %s360
      %s362 = sphi 0, %s360
      %s363 = sphi 0, %s362
      %s377 = sphi 0, %s363
      %s381 = sphi 0, %s381
      %s383 = sphi 0, %s381
      %s384 = sphi 0, %s383
      %s398 = sphi 0, %s384
      %s402 = sphi 0, %s402
      %s404 = sphi 0, %s402
      %s405 = sphi 0, %s404
      %s419 = sphi 0, %s405
      %s423 = sphi 0, %s423
      %s425 = sphi 0, %s423
      %s426 = sphi 0, %s425
      %s440 = sphi 0, %s426
      %s446 = sphi 0, %s448
      %s449 = sphi 0, %s446
      %s450 = sphi 0, %s449
      %s466 = sphi 0, %s450
    $region4: #{sfrgnn_forward.5} parent=1 // loop_header_branch
      %30 = sbr.rel (%p28) target = $region8
    $region5: #{sfrgnn_forward.5} parent=1 // loop_body
      %s32 = ssub.s32 %s27, 1
      %s33 = ssub.s32 %s27, 2
      %s34 = sadd.s32 %s27, 1
      %s35 = ssub.s32 %s27, %s34
      %p36 = scmp.eq.s32.totalorder %s35, 0
      %s38 = sadd.s32 %s37, 1
      %s39 = scalar_select %p36, %s37, %s38
      %p42 = pneg %p36
      %p43 = scmp.eq.s32.totalorder %s27, 1
      %p44 = por %p42, %p43
      %p45 = scmp.ne.s32.totalorder %s37, %s40
      %p46 = scmp.eq.s32.totalorder %s27, 0
      %p47 = por %p45, %p46
      %p48 = scmp.ne.s32.totalorder %s37, %s40
      %p49 = scmp.eq.s32.totalorder %s32, 1
      %p50 = por %p48, %p49
      %p51 = scmp.ne.s32.totalorder %s40, %s41
      %p52 = scmp.eq.s32.totalorder %s32, 0
      %p53 = por %p51, %p52
      %p54 = scmp.ne.s32.totalorder %s40, %s41
      %p55 = scmp.eq.s32.totalorder %s33, 1
      %p56 = por %p54, %p55
      %p58 = scmp.ne.s32.totalorder %s41, %s57
      %p59 = scmp.eq.s32.totalorder %s33, 0
      %p60 = por %p58, %p59
      %s61 = ssub.s32 %s27, %s34
      %p62 = scmp.eq.s32.totalorder %s61, 0
      %s64 = sadd.s32 %s63, 1
      %s65 = scalar_select %p62, %s63, %s64
      %p68 = pneg %p62
      %p69 = scmp.eq.s32.totalorder %s27, 1
      %p70 = por %p68, %p69
      %p71 = scmp.ne.s32.totalorder %s63, %s66
      %p72 = scmp.eq.s32.totalorder %s27, 0
      %p73 = por %p71, %p72
      %p74 = scmp.ne.s32.totalorder %s63, %s66
      %p75 = scmp.eq.s32.totalorder %s32, 1
      %p76 = por %p74, %p75
      %p77 = scmp.ne.s32.totalorder %s66, %s67
      %p78 = scmp.eq.s32.totalorder %s32, 0
      %p79 = por %p77, %p78
      %p80 = scmp.ne.s32.totalorder %s66, %s67
      %p81 = scmp.eq.s32.totalorder %s33, 1
      %p82 = por %p80, %p81
      %p84 = scmp.ne.s32.totalorder %s67, %s83
      %p85 = scmp.eq.s32.totalorder %s33, 0
      %p86 = por %p84, %p85
      %s88 = sadd.s32 %s87, 1
      %p91 = scmp.eq.s32.totalorder %s27, 1
      %p92 = scmp.ne.s32.totalorder %s87, %s89
      %p93 = scmp.eq.s32.totalorder %s27, 0
      %p94 = por %p92, %p93
      %p95 = scmp.ne.s32.totalorder %s87, %s89
      %p96 = scmp.eq.s32.totalorder %s32, 1
      %p97 = por %p95, %p96
      %p98 = scmp.ne.s32.totalorder %s89, %s90
      %p99 = scmp.eq.s32.totalorder %s32, 0
      %p100 = por %p98, %p99
      %p101 = scmp.ne.s32.totalorder %s89, %s90
      %p102 = scmp.eq.s32.totalorder %s33, 1
      %p103 = por %p101, %p102
      %p105 = scmp.ne.s32.totalorder %s90, %s104
      %p106 = scmp.eq.s32.totalorder %s33, 0
      %p107 = por %p105, %p106
      %s109 = sadd.s32 %s108, 1
      %p112 = scmp.eq.s32.totalorder %s27, 1
      %p113 = scmp.ne.s32.totalorder %s108, %s110
      %p114 = scmp.eq.s32.totalorder %s27, 0
      %p115 = por %p113, %p114
      %p116 = scmp.ne.s32.totalorder %s108, %s110
      %p117 = scmp.eq.s32.totalorder %s32, 1
      %p118 = por %p116, %p117
      %p119 = scmp.ne.s32.totalorder %s110, %s111
      %p120 = scmp.eq.s32.totalorder %s32, 0
      %p121 = por %p119, %p120
      %p122 = scmp.ne.s32.totalorder %s110, %s111
      %p123 = scmp.eq.s32.totalorder %s33, 1
      %p124 = por %p122, %p123
      %p126 = scmp.ne.s32.totalorder %s111, %s125
      %p127 = scmp.eq.s32.totalorder %s33, 0
      %p128 = por %p126, %p127
      %s130 = sadd.s32 %s129, 1
      %p133 = scmp.eq.s32.totalorder %s27, 1
      %p134 = scmp.ne.s32.totalorder %s129, %s131
      %p135 = scmp.eq.s32.totalorder %s27, 0
      %p136 = por %p134, %p135
      %p137 = scmp.ne.s32.totalorder %s129, %s131
      %p138 = scmp.eq.s32.totalorder %s32, 1
      %p139 = por %p137, %p138
      %p140 = scmp.ne.s32.totalorder %s131, %s132
      %p141 = scmp.eq.s32.totalorder %s32, 0
      %p142 = por %p140, %p141
      %p143 = scmp.ne.s32.totalorder %s131, %s132
      %p144 = scmp.eq.s32.totalorder %s33, 1
      %p145 = por %p143, %p144
      %p147 = scmp.ne.s32.totalorder %s132, %s146
      %p148 = scmp.eq.s32.totalorder %s33, 0
      %p149 = por %p147, %p148
      %s151 = sadd.s32 %s150, 1
      %p154 = scmp.eq.s32.totalorder %s27, 1
      %p155 = scmp.ne.s32.totalorder %s150, %s152
      %p156 = scmp.eq.s32.totalorder %s27, 0
      %p157 = por %p155, %p156
      %p158 = scmp.ne.s32.totalorder %s150, %s152
      %p159 = scmp.eq.s32.totalorder %s32, 1
      %p160 = por %p158, %p159
      %p161 = scmp.ne.s32.totalorder %s152, %s153
      %p162 = scmp.eq.s32.totalorder %s32, 0
      %p163 = por %p161, %p162
      %p164 = scmp.ne.s32.totalorder %s152, %s153
      %p165 = scmp.eq.s32.totalorder %s33, 1
      %p166 = por %p164, %p165
      %p168 = scmp.ne.s32.totalorder %s153, %s167
      %p169 = scmp.eq.s32.totalorder %s33, 0
      %p170 = por %p168, %p169
      %s172 = sadd.s32 %s171, 1
      %p175 = scmp.eq.s32.totalorder %s27, 1
      %p176 = scmp.ne.s32.totalorder %s171, %s173
      %p177 = scmp.eq.s32.totalorder %s27, 0
      %p178 = por %p176, %p177
      %p179 = scmp.ne.s32.totalorder %s171, %s173
      %p180 = scmp.eq.s32.totalorder %s32, 1
      %p181 = por %p179, %p180
      %p182 = scmp.ne.s32.totalorder %s173, %s174
      %p183 = scmp.eq.s32.totalorder %s32, 0
      %p184 = por %p182, %p183
      %p185 = scmp.ne.s32.totalorder %s173, %s174
      %p186 = scmp.eq.s32.totalorder %s33, 1
      %p187 = por %p185, %p186
      %p189 = scmp.ne.s32.totalorder %s174, %s188
      %p190 = scmp.eq.s32.totalorder %s33, 0
      %p191 = por %p189, %p190
      %s193 = sadd.s32 %s192, 1
      %p196 = scmp.eq.s32.totalorder %s27, 1
      %p197 = scmp.ne.s32.totalorder %s192, %s194
      %p198 = scmp.eq.s32.totalorder %s27, 0
      %p199 = por %p197, %p198
      %p200 = scmp.ne.s32.totalorder %s192, %s194
      %p201 = scmp.eq.s32.totalorder %s32, 1
      %p202 = por %p200, %p201
      %p203 = scmp.ne.s32.totalorder %s194, %s195
      %p204 = scmp.eq.s32.totalorder %s32, 0
      %p205 = por %p203, %p204
      %p206 = scmp.ne.s32.totalorder %s194, %s195
      %p207 = scmp.eq.s32.totalorder %s33, 1
      %p208 = por %p206, %p207
      %p210 = scmp.ne.s32.totalorder %s195, %s209
      %p211 = scmp.eq.s32.totalorder %s33, 0
      %p212 = por %p210, %p211
      %s214 = sadd.s32 %s213, 1
      %p217 = scmp.eq.s32.totalorder %s27, 1
      %p218 = scmp.ne.s32.totalorder %s213, %s215
      %p219 = scmp.eq.s32.totalorder %s27, 0
      %p220 = por %p218, %p219
      %p221 = scmp.ne.s32.totalorder %s213, %s215
      %p222 = scmp.eq.s32.totalorder %s32, 1
      %p223 = por %p221, %p222
      %p224 = scmp.ne.s32.totalorder %s215, %s216
      %p225 = scmp.eq.s32.totalorder %s32, 0
      %p226 = por %p224, %p225
      %p227 = scmp.ne.s32.totalorder %s215, %s216
      %p228 = scmp.eq.s32.totalorder %s33, 1
      %p229 = por %p227, %p228
      %p231 = scmp.ne.s32.totalorder %s216, %s230
      %p232 = scmp.eq.s32.totalorder %s33, 0
      %p233 = por %p231, %p232
      %s235 = sadd.s32 %s234, 1
      %p238 = scmp.eq.s32.totalorder %s27, 1
      %p239 = scmp.ne.s32.totalorder %s234, %s236
      %p240 = scmp.eq.s32.totalorder %s27, 0
      %p241 = por %p239, %p240
      %p242 = scmp.ne.s32.totalorder %s234, %s236
      %p243 = scmp.eq.s32.totalorder %s32, 1
      %p244 = por %p242, %p243
      %p245 = scmp.ne.s32.totalorder %s236, %s237
      %p246 = scmp.eq.s32.totalorder %s32, 0
      %p247 = por %p245, %p246
      %p248 = scmp.ne.s32.totalorder %s236, %s237
      %p249 = scmp.eq.s32.totalorder %s33, 1
      %p250 = por %p248, %p249
      %p252 = scmp.ne.s32.totalorder %s237, %s251
      %p253 = scmp.eq.s32.totalorder %s33, 0
      %p254 = por %p252, %p253
      %s256 = sadd.s32 %s255, 1
      %p259 = scmp.eq.s32.totalorder %s27, 1
      %p260 = scmp.ne.s32.totalorder %s255, %s257
      %p261 = scmp.eq.s32.totalorder %s27, 0
      %p262 = por %p260, %p261
      %p263 = scmp.ne.s32.totalorder %s255, %s257
      %p264 = scmp.eq.s32.totalorder %s32, 1
      %p265 = por %p263, %p264
      %p266 = scmp.ne.s32.totalorder %s257, %s258
      %p267 = scmp.eq.s32.totalorder %s32, 0
      %p268 = por %p266, %p267
      %p269 = scmp.ne.s32.totalorder %s257, %s258
      %p270 = scmp.eq.s32.totalorder %s33, 1
      %p271 = por %p269, %p270
      %p273 = scmp.ne.s32.totalorder %s258, %s272
      %p274 = scmp.eq.s32.totalorder %s33, 0
      %p275 = por %p273, %p274
      %s277 = sadd.s32 %s276, 1
      %p280 = scmp.eq.s32.totalorder %s27, 1
      %p281 = scmp.ne.s32.totalorder %s276, %s278
      %p282 = scmp.eq.s32.totalorder %s27, 0
      %p283 = por %p281, %p282
      %p284 = scmp.ne.s32.totalorder %s276, %s278
      %p285 = scmp.eq.s32.totalorder %s32, 1
      %p286 = por %p284, %p285
      %p287 = scmp.ne.s32.totalorder %s278, %s279
      %p288 = scmp.eq.s32.totalorder %s32, 0
      %p289 = por %p287, %p288
      %p290 = scmp.ne.s32.totalorder %s278, %s279
      %p291 = scmp.eq.s32.totalorder %s33, 1
      %p292 = por %p290, %p291
      %p294 = scmp.ne.s32.totalorder %s279, %s293
      %p295 = scmp.eq.s32.totalorder %s33, 0
      %p296 = por %p294, %p295
      %s298 = sadd.s32 %s297, 1
      %p301 = scmp.eq.s32.totalorder %s27, 1
      %p302 = scmp.ne.s32.totalorder %s297, %s299
      %p303 = scmp.eq.s32.totalorder %s27, 0
      %p304 = por %p302, %p303
      %p305 = scmp.ne.s32.totalorder %s297, %s299
      %p306 = scmp.eq.s32.totalorder %s32, 1
      %p307 = por %p305, %p306
      %p308 = scmp.ne.s32.totalorder %s299, %s300
      %p309 = scmp.eq.s32.totalorder %s32, 0
      %p310 = por %p308, %p309
      %p311 = scmp.ne.s32.totalorder %s299, %s300
      %p312 = scmp.eq.s32.totalorder %s33, 1
      %p313 = por %p311, %p312
      %p315 = scmp.ne.s32.totalorder %s300, %s314
      %p316 = scmp.eq.s32.totalorder %s33, 0
      %p317 = por %p315, %p316
      %s319 = sadd.s32 %s318, 1
      %p322 = scmp.eq.s32.totalorder %s27, 1
      %p323 = scmp.ne.s32.totalorder %s318, %s320
      %p324 = scmp.eq.s32.totalorder %s27, 0
      %p325 = por %p323, %p324
      %p326 = scmp.ne.s32.totalorder %s318, %s320
      %p327 = scmp.eq.s32.totalorder %s32, 1
      %p328 = por %p326, %p327
      %p329 = scmp.ne.s32.totalorder %s320, %s321
      %p330 = scmp.eq.s32.totalorder %s32, 0
      %p331 = por %p329, %p330
      %p332 = scmp.ne.s32.totalorder %s320, %s321
      %p333 = scmp.eq.s32.totalorder %s33, 1
      %p334 = por %p332, %p333
      %p336 = scmp.ne.s32.totalorder %s321, %s335
      %p337 = scmp.eq.s32.totalorder %s33, 0
      %p338 = por %p336, %p337
      %s340 = sadd.s32 %s339, 1
      %p343 = scmp.eq.s32.totalorder %s27, 1
      %p344 = scmp.ne.s32.totalorder %s339, %s341
      %p345 = scmp.eq.s32.totalorder %s27, 0
      %p346 = por %p344, %p345
      %p347 = scmp.ne.s32.totalorder %s339, %s341
      %p348 = scmp.eq.s32.totalorder %s32, 1
      %p349 = por %p347, %p348
      %p350 = scmp.ne.s32.totalorder %s341, %s342
      %p351 = scmp.eq.s32.totalorder %s32, 0
      %p352 = por %p350, %p351
      %p353 = scmp.ne.s32.totalorder %s341, %s342
      %p354 = scmp.eq.s32.totalorder %s33, 1
      %p355 = por %p353, %p354
      %p357 = scmp.ne.s32.totalorder %s342, %s356
      %p358 = scmp.eq.s32.totalorder %s33, 0
      %p359 = por %p357, %p358
      %s361 = sadd.s32 %s360, 1
      %p364 = scmp.eq.s32.totalorder %s27, 1
      %p365 = scmp.ne.s32.totalorder %s360, %s362
      %p366 = scmp.eq.s32.totalorder %s27, 0
      %p367 = por %p365, %p366
      %p368 = scmp.ne.s32.totalorder %s360, %s362
      %p369 = scmp.eq.s32.totalorder %s32, 1
      %p370 = por %p368, %p369
      %p371 = scmp.ne.s32.totalorder %s362, %s363
      %p372 = scmp.eq.s32.totalorder %s32, 0
      %p373 = por %p371, %p372
      %p374 = scmp.ne.s32.totalorder %s362, %s363
      %p375 = scmp.eq.s32.totalorder %s33, 1
      %p376 = por %p374, %p375
      %p378 = scmp.ne.s32.totalorder %s363, %s377
      %p379 = scmp.eq.s32.totalorder %s33, 0
      %p380 = por %p378, %p379
      %s382 = sadd.s32 %s381, 1
      %p385 = scmp.eq.s32.totalorder %s27, 1
      %p386 = scmp.ne.s32.totalorder %s381, %s383
      %p387 = scmp.eq.s32.totalorder %s27, 0
      %p388 = por %p386, %p387
      %p389 = scmp.ne.s32.totalorder %s381, %s383
      %p390 = scmp.eq.s32.totalorder %s32, 1
      %p391 = por %p389, %p390
      %p392 = scmp.ne.s32.totalorder %s383, %s384
      %p393 = scmp.eq.s32.totalorder %s32, 0
      %p394 = por %p392, %p393
      %p395 = scmp.ne.s32.totalorder %s383, %s384
      %p396 = scmp.eq.s32.totalorder %s33, 1
      %p397 = por %p395, %p396
      %p399 = scmp.ne.s32.totalorder %s384, %s398
      %p400 = scmp.eq.s32.totalorder %s33, 0
      %p401 = por %p399, %p400
      %s403 = sadd.s32 %s402, 1
      %p406 = scmp.eq.s32.totalorder %s27, 1
      %p407 = scmp.ne.s32.totalorder %s402, %s404
      %p408 = scmp.eq.s32.totalorder %s27, 0
      %p409 = por %p407, %p408
      %p410 = scmp.ne.s32.totalorder %s402, %s404
      %p411 = scmp.eq.s32.totalorder %s32, 1
      %p412 = por %p410, %p411
      %p413 = scmp.ne.s32.totalorder %s404, %s405
      %p414 = scmp.eq.s32.totalorder %s32, 0
      %p415 = por %p413, %p414
      %p416 = scmp.ne.s32.totalorder %s404, %s405
      %p417 = scmp.eq.s32.totalorder %s33, 1
      %p418 = por %p416, %p417
      %p420 = scmp.ne.s32.totalorder %s405, %s419
      %p421 = scmp.eq.s32.totalorder %s33, 0
      %p422 = por %p420, %p421
      %s424 = sadd.s32 %s423, 1
      %p427 = scmp.eq.s32.totalorder %s27, 1
      %p428 = scmp.ne.s32.totalorder %s423, %s425
      %p429 = scmp.eq.s32.totalorder %s27, 0
      %p430 = por %p428, %p429
      %p431 = scmp.ne.s32.totalorder %s423, %s425
      %p432 = scmp.eq.s32.totalorder %s32, 1
      %p433 = por %p431, %p432
      %p434 = scmp.ne.s32.totalorder %s425, %s426
      %p435 = scmp.eq.s32.totalorder %s32, 0
      %p436 = por %p434, %p435
      %p437 = scmp.ne.s32.totalorder %s425, %s426
      %p438 = scmp.eq.s32.totalorder %s33, 1
      %p439 = por %p437, %p438
      %p441 = scmp.ne.s32.totalorder %s426, %s440
      %p442 = scmp.eq.s32.totalorder %s33, 0
      %p443 = por %p441, %p442
      %s444 = ssub.s32 %s27, %s34
      %p445 = scmp.eq.s32.totalorder %s444, 0
      %s447 = sadd.s32 %s446, 1
      %s448 = scalar_select %p445, %s446, %s447
      %p451 = pneg %p445
      %p452 = scmp.eq.s32.totalorder %s27, 1
      %p453 = por %p451, %p452
      %p454 = scmp.ne.s32.totalorder %s446, %s449
      %p455 = scmp.eq.s32.totalorder %s27, 0
      %p456 = por %p454, %p455
      %p457 = scmp.ne.s32.totalorder %s446, %s449
      %p458 = scmp.eq.s32.totalorder %s32, 1
      %p459 = por %p457, %p458
      %p460 = scmp.ne.s32.totalorder %s449, %s450
      %p461 = scmp.eq.s32.totalorder %s32, 0
      %p462 = por %p460, %p461
      %p463 = scmp.ne.s32.totalorder %s449, %s450
      %p464 = scmp.eq.s32.totalorder %s33, 1
      %p465 = por %p463, %p464
      %p467 = scmp.ne.s32.totalorder %s450, %s466
      %p468 = scmp.eq.s32.totalorder %s33, 0
      %p469 = por %p467, %p468
      %p470 = scmp.le.s32.totalorder 1, %s27
      %p471 = scmp.lt.s32.totalorder %s27, 3
      %p472 = pnand %p470, %p471
      %p473 = pneg %p472
      // Predicated region
      $region9: #{sfrgnn_forward.5} parent=5 // pred_check
        _
      $region10: #{sfrgnn_forward.5} parent=5 // pred_check_branch
        %475 = sbr.rel (%p472) target = $region12
      $region11: #{sfrgnn_forward.5} parent=5 // pred_region
        %s476 = ssub.s32 %s27, 1
        // Predicated region
        $region13: #{sfrgnn_forward.5} parent=11 // pred_check
          %p477 = pneg %p100
        $region14: #{sfrgnn_forward.5} parent=11 // pred_check_branch
          %479 = sbr.rel (%p477) target = $region16
        $region15: #{sfrgnn_forward.5} parent=11 // pred_region
          _
        $region16: #{sfrgnn_forward.5} parent=11 // pred_fallthru
          _
        // Predicated region
        $region17: #{sfrgnn_forward.5} parent=11 // pred_check
          %p480 = pneg %p121
        $region18: #{sfrgnn_forward.5} parent=11 // pred_check_branch
          %482 = sbr.rel (%p480) target = $region20
        $region19: #{sfrgnn_forward.5} parent=11 // pred_region
          _
        $region20: #{sfrgnn_forward.5} parent=11 // pred_fallthru
          _
        // Predicated region
        $region21: #{sfrgnn_forward.5} parent=11 // pred_check
          %p483 = pneg %p142
        $region22: #{sfrgnn_forward.5} parent=11 // pred_check_branch
          %485 = sbr.rel (%p483) target = $region24
        $region23: #{sfrgnn_forward.5} parent=11 // pred_region
          _
        $region24: #{sfrgnn_forward.5} parent=11 // pred_fallthru
          _
        // Predicated region
        $region25: #{sfrgnn_forward.5} parent=11 // pred_check
          %p486 = pneg %p163
        $region26: #{sfrgnn_forward.5} parent=11 // pred_check_branch
          %488 = sbr.rel (%p486) target = $region28
        $region27: #{sfrgnn_forward.5} parent=11 // pred_region
          _
        $region28: #{sfrgnn_forward.5} parent=11 // pred_fallthru
          _
        // Predicated region
        $region29: #{sfrgnn_forward.5} parent=11 // pred_check
          %p489 = pneg %p184
        $region30: #{sfrgnn_forward.5} parent=11 // pred_check_branch
          %491 = sbr.rel (%p489) target = $region32
        $region31: #{sfrgnn_forward.5} parent=11 // pred_region
          _
        $region32: #{sfrgnn_forward.5} parent=11 // pred_fallthru
          _
        // Predicated region
        $region33: #{sfrgnn_forward.5} parent=11 // pred_check
          %p492 = pneg %p205
        $region34: #{sfrgnn_forward.5} parent=11 // pred_check_branch
          %494 = sbr.rel (%p492) target = $region36
        $region35: #{sfrgnn_forward.5} parent=11 // pred_region
          _
        $region36: #{sfrgnn_forward.5} parent=11 // pred_fallthru
          _
        // Predicated region
        $region37: #{sfrgnn_forward.5} parent=11 // pred_check
          %p495 = pneg %p226
        $region38: #{sfrgnn_forward.5} parent=11 // pred_check_branch
          %497 = sbr.rel (%p495) target = $region40
        $region39: #{sfrgnn_forward.5} parent=11 // pred_region
          _
        $region40: #{sfrgnn_forward.5} parent=11 // pred_fallthru
          _
        // Predicated region
        $region41: #{sfrgnn_forward.5} parent=11 // pred_check
          %p498 = pneg %p247
        $region42: #{sfrgnn_forward.5} parent=11 // pred_check_branch
          %500 = sbr.rel (%p498) target = $region44
        $region43: #{sfrgnn_forward.5} parent=11 // pred_region
          _
        $region44: #{sfrgnn_forward.5} parent=11 // pred_fallthru
          _
        // Predicated region
        $region45: #{sfrgnn_forward.5} parent=11 // pred_check
          %p501 = pneg %p268
        $region46: #{sfrgnn_forward.5} parent=11 // pred_check_branch
          %503 = sbr.rel (%p501) target = $region48
        $region47: #{sfrgnn_forward.5} parent=11 // pred_region
          _
        $region48: #{sfrgnn_forward.5} parent=11 // pred_fallthru
          _
        // Predicated region
        $region49: #{sfrgnn_forward.5} parent=11 // pred_check
          %p504 = pneg %p289
        $region50: #{sfrgnn_forward.5} parent=11 // pred_check_branch
          %506 = sbr.rel (%p504) target = $region52
        $region51: #{sfrgnn_forward.5} parent=11 // pred_region
          _
        $region52: #{sfrgnn_forward.5} parent=11 // pred_fallthru
          _
        // Predicated region
        $region53: #{sfrgnn_forward.5} parent=11 // pred_check
          %p507 = pneg %p310
        $region54: #{sfrgnn_forward.5} parent=11 // pred_check_branch
          %509 = sbr.rel (%p507) target = $region56
        $region55: #{sfrgnn_forward.5} parent=11 // pred_region
          %511 = vsyncadd [#allocation3], 0
          %s512 = sshll.u32 %s12, 4
          %s513 = int_to_ptr.hbm [resolvable:$true] %s512
          %s514 = sshll.u32 [#allocation2], 4
          %s515 = int_to_ptr.vmem [resolvable:$true] %s514
          %520 = dma.hbm_to_vmem [thread:$0]  %s513, 4096, %s515, [#allocation3], 128, 128, 8
        $region56: #{sfrgnn_forward.5} parent=11 // pred_fallthru
          _
        // Predicated region
        $region57: #{sfrgnn_forward.5} parent=11 // pred_check
          %p521 = pneg %p331
        $region58: #{sfrgnn_forward.5} parent=11 // pred_check_branch
          %523 = sbr.rel (%p521) target = $region60
        $region59: #{sfrgnn_forward.5} parent=11 // pred_region
          _
        $region60: #{sfrgnn_forward.5} parent=11 // pred_fallthru
          _
        // Predicated region
        $region61: #{sfrgnn_forward.5} parent=11 // pred_check
          %p524 = pneg %p352
        $region62: #{sfrgnn_forward.5} parent=11 // pred_check_branch
          %526 = sbr.rel (%p524) target = $region64
        $region63: #{sfrgnn_forward.5} parent=11 // pred_region
          _
        $region64: #{sfrgnn_forward.5} parent=11 // pred_fallthru
          _
        // Predicated region
        $region65: #{sfrgnn_forward.5} parent=11 // pred_check
          %p527 = pneg %p373
        $region66: #{sfrgnn_forward.5} parent=11 // pred_check_branch
          %529 = sbr.rel (%p527) target = $region68
        $region67: #{sfrgnn_forward.5} parent=11 // pred_region
          _
        $region68: #{sfrgnn_forward.5} parent=11 // pred_fallthru
          _
        // Predicated region
        $region69: #{sfrgnn_forward.5} parent=11 // pred_check
          %p530 = pneg %p394
        $region70: #{sfrgnn_forward.5} parent=11 // pred_check_branch
          %532 = sbr.rel (%p530) target = $region72
        $region71: #{sfrgnn_forward.5} parent=11 // pred_region
          %534 = vsyncadd [#allocation5], 0
          %s535 = sshll.u32 %s16, 4
          %s536 = int_to_ptr.hbm [resolvable:$true] %s535
          %s537 = sshll.u32 [#allocation4], 4
          %s538 = int_to_ptr.vmem [resolvable:$true] %s537
          %543 = dma.hbm_to_vmem [thread:$0]  %s536, 32768, %s538, [#allocation5], 512, 512, 32
        $region72: #{sfrgnn_forward.5} parent=11 // pred_fallthru
          _
        // Predicated region
        $region73: #{sfrgnn_forward.5} parent=11 // pred_check
          %p544 = pneg %p415
        $region74: #{sfrgnn_forward.5} parent=11 // pred_check_branch
          %546 = sbr.rel (%p544) target = $region76
        $region75: #{sfrgnn_forward.5} parent=11 // pred_region
          _
        $region76: #{sfrgnn_forward.5} parent=11 // pred_fallthru
          _
        // Predicated region
        $region77: #{sfrgnn_forward.5} parent=11 // pred_check
          %p547 = pneg %p436
        $region78: #{sfrgnn_forward.5} parent=11 // pred_check_branch
          %549 = sbr.rel (%p547) target = $region80
        $region79: #{sfrgnn_forward.5} parent=11 // pred_region
          _
        $region80: #{sfrgnn_forward.5} parent=11 // pred_fallthru
          _
      $region12: #{sfrgnn_forward.5} parent=5 // pred_fallthru
        _
      %p550 = scmp.lt.s32.totalorder %s27, 2
      // Predicated region
      $region81: #{sfrgnn_forward.5} parent=5 // pred_check
        %p551 = pneg %p550
      $region82: #{sfrgnn_forward.5} parent=5 // pred_check_branch
        %553 = sbr.rel (%p551) target = $region84
      $region83: #{sfrgnn_forward.5} parent=5 // pred_region
        // Predicated region
        $region85: #{sfrgnn_forward.5} parent=83 // pred_check
          %p554 = pneg %p47
        $region86: #{sfrgnn_forward.5} parent=83 // pred_check_branch
          %556 = sbr.rel (%p554) target = $region88
        $region87: #{sfrgnn_forward.5} parent=83 // pred_region
          %p557 = scmp.lt.s32.totalorder %s27, 1
          %s558 = scalar_select %p557, %s27, 1
          %s559 = smul.addr %s558, 8
          %s560 = scalar_lea.vmem %s0, %s559
        $region88: #{sfrgnn_forward.5} parent=83 // pred_fallthru
          _
        // Predicated region
        $region89: #{sfrgnn_forward.5} parent=83 // pred_check
          %p561 = pneg %p73
        $region90: #{sfrgnn_forward.5} parent=83 // pred_check_branch
          %563 = sbr.rel (%p561) target = $region92
        $region91: #{sfrgnn_forward.5} parent=83 // pred_region
          %p564 = scmp.lt.s32.totalorder %s27, 1
          %s565 = scalar_select %p564, %s27, 1
          %s566 = smul.addr %s565, 2
          %s567 = smul.addr %s566, 8
          %s568 = scalar_lea.vmem %s1, %s567
        $region92: #{sfrgnn_forward.5} parent=83 // pred_fallthru
          _
      $region84: #{sfrgnn_forward.5} parent=5 // pred_fallthru
        _
      %p569 = scmp.le.s32.totalorder 1, %s27
      %p570 = scmp.lt.s32.totalorder %s27, 3
      %p571 = pnand %p569, %p570
      %p572 = pneg %p571
      // Predicated region
      $region93: #{sfrgnn_forward.5} parent=5 // pred_check
        _
      $region94: #{sfrgnn_forward.5} parent=5 // pred_check_branch
        %574 = sbr.rel (%p571) target = $region96
      $region95: #{sfrgnn_forward.5} parent=5 // pred_region
        %s575 = ssub.s32 %s27, 1
        // Predicated region
        $region97: #{sfrgnn_forward.5} parent=95 // pred_check
          %p576 = pneg %p310
        $region98: #{sfrgnn_forward.5} parent=95 // pred_check_branch
          %578 = sbr.rel (%p576) target = $region100
        $region99: #{sfrgnn_forward.5} parent=95 // pred_region
          %580 = dma.done [#allocation3], 4096
        $region100: #{sfrgnn_forward.5} parent=95 // pred_fallthru
          _
        // Predicated region
        $region101: #{sfrgnn_forward.5} parent=95 // pred_check
          %p581 = pneg %p394
        $region102: #{sfrgnn_forward.5} parent=95 // pred_check_branch
          %583 = sbr.rel (%p581) target = $region104
        $region103: #{sfrgnn_forward.5} parent=95 // pred_region
          %585 = dma.done [#allocation5], 32768
        $region104: #{sfrgnn_forward.5} parent=95 // pred_fallthru
          _
        %p586 = scmp.lt.s32.totalorder %s32, 1
        %s587 = scalar_select %p586, %s32, 1
        %s588 = smul.addr %s587, 8
        %s589 = scalar_lea.vmem %s0, %s588
        %p590 = pneg %p53
        %p591 = pneg %p50
        %p592 = scmp.lt.s32.totalorder %s32, 1
        %s593 = scalar_select %p592, %s32, 1
        %s594 = smul.addr %s593, 2
        %s595 = smul.addr %s594, 8
        %s596 = scalar_lea.vmem %s1, %s595
        %p597 = pneg %p79
        %p598 = pneg %p76
        %p599 = pneg %p100
        %p600 = pneg %p97
        %p601 = pneg %p121
        %p602 = pneg %p118
        %p603 = pneg %p142
        %p604 = pneg %p139
        %p605 = pneg %p163
        %p606 = pneg %p160
        %p607 = pneg %p184
        %p608 = pneg %p181
        %p609 = pneg %p205
        %p610 = pneg %p202
        %p611 = pneg %p226
        %p612 = pneg %p223
        %p613 = pneg %p247
        %p614 = pneg %p244
        %p615 = pneg %p268
        %p616 = pneg %p265
        %p617 = pneg %p289
        %p618 = pneg %p286
        %p619 = pneg %p310
        %p620 = pneg %p307
        %p621 = pneg %p331
        %p622 = pneg %p328
        %p623 = pneg %p352
        %p624 = pneg %p349
        %p625 = pneg %p373
        %p626 = pneg %p370
        %p627 = pneg %p394
        %p628 = pneg %p391
        %p629 = pneg %p415
        %p630 = pneg %p412
        %p631 = pneg %p436
        %p632 = pneg %p433
        %p633 = pneg %p462
        %p634 = pneg %p459
        %p635 = scmp.lt.s32.totalorder %s32, 1
        %s636 = scalar_select %p635, %s32, 1
        %s637 = smul.addr %s636, 8
        %s638 = scalar_lea.vmem %s19, %s637
        %p639 = scmp.lt.s32.totalorder %s32, 1
        %s640 = scalar_select %p639, %s32, 1
        %s641 = smul.addr %s640, 8
        %s642 = scalar_lea.vmem %s0, %s641
        %p643 = scmp.lt.s32.totalorder %s32, 1
        %s644 = scalar_select %p643, %s32, 1
        %s645 = smul.addr %s644, 2
        %s646 = smul.addr %s645, 8
        %s647 = scalar_lea.vmem %s1, %s646
        %p648 = scmp.lt.s32.totalorder %s32, 1
        %s649 = scalar_select %p648, %s32, 1
        %s650 = smul.addr %s649, 8
        %s651 = scalar_lea.vmem %s19, %s650
        %v653 = vld [vmem:[%s642] sm:$0xff]
        %v654 = vpack.c.bf16 %v653, %v653
        %v655 = vld [vmem:[%s2] sm:$0xff]
        %v656 = vld [vmem:[%s3] sm:$0x3]
        %v658 = vperm.slane %v656, 0
        %v659 = vperm.slane %v656, 1
        %v663 = vunpack.c.l.b16 %v655
        %v664 = vunpack.c.h.b16 %v655
        %v665 = vpack.c.b16 %v663, %v663
        %v666 = vpack.c.b16 %v664, %v664
        %vm667 = vcmask 64512
        %v669 = vsel %vm667, %v654, 0
        %vm671 = vcmask 1043456
        %v673 = vsel %vm671, %v665, 0
        %v676 = vsel %vm671, %v666, 0
        %678 = vmatpush.bf16.msra.mxu0 0
        %679 = vmatpush.bf16.msra.mxu0 0
        %680 = vmatpush.bf16.msra.mxu0 0
        %681 = vmatpush.bf16.msra.mxu0 0
        %682 = vmatpush.bf16.msra.mxu0 0
        %683 = vmatpush.bf16.msra.mxu0 0
        %684 = vmatpush.bf16.msra.mxu0 0
        %685 = vmatpush.bf16.msra.mxu0 %v673
        %686 = vmatmul.bf16.gmra.mxu0 %v669
        %v687 = vpop.f32.mrf.mxu0
        %v688 = vadd.f32 %v658, %v687
        %v689 = vpop.f32.mrf.mxu0
        %690 = vdwg.mxu0
        %691 = vmatpush.bf16.msra.mxu0 0
        %692 = vmatpush.bf16.msra.mxu0 0
        %693 = vmatpush.bf16.msra.mxu0 0
        %694 = vmatpush.bf16.msra.mxu0 0
        %695 = vmatpush.bf16.msra.mxu0 0
        %696 = vmatpush.bf16.msra.mxu0 0
        %697 = vmatpush.bf16.msra.mxu0 0
        %698 = vmatpush.bf16.msra.mxu0 %v676
        %699 = vmatmul.bf16.gmra.mxu0 %v669
        %v700 = vpop.f32.mrf.mxu0
        %v701 = vadd.f32 %v659, %v700
        %v702 = vpop.f32.mrf.mxu0
        %703 = vdwg.mxu0
        %v704 = vmax.f32 %v688, 0.0
        %v705 = vmax.f32 %v701, 0.0
        %v706 = vpack.c.bf16 %v704, %v704
        %v707 = vpack.c.bf16 %v705, %v705
        %v708 = vld [vmem:[%s4] sm:$0xf]
        %v709 = vld [vmem:[%s4 + $0x4] sm:$0xf]
        %v710 = vld [vmem:[%s4 + $0x8] sm:$0xf]
        %v711 = vld [vmem:[%s4 + $0xc] sm:$0xf]
        %v712 = vld [vmem:[%s4 + $0x10] sm:$0xf]
        %v713 = vld [vmem:[%s4 + $0x14] sm:$0xf]
        %v714 = vld [vmem:[%s4 + $0x18] sm:$0xf]
        %v715 = vld [vmem:[%s4 + $0x1c] sm:$0xf]
        %v716 = vld [vmem:[%s4 + $0x20] sm:$0xf]
        %v717 = vld [vmem:[%s4 + $0x24] sm:$0xf]
        %v718 = vld [vmem:[%s4 + $0x28] sm:$0xf]
        %v719 = vld [vmem:[%s4 + $0x2c] sm:$0xf]
        %v720 = vld [vmem:[%s4 + $0x30] sm:$0xf]
        %v721 = vld [vmem:[%s4 + $0x34] sm:$0xf]
        %v722 = vld [vmem:[%s4 + $0x38] sm:$0xf]
        %v723 = vld [vmem:[%s4 + $0x3c] sm:$0xf]
        %v724 = vld [vmem:[%s4 + $0x40] sm:$0xf]
        %v725 = vld [vmem:[%s4 + $0x44] sm:$0xf]
        %v726 = vld [vmem:[%s4 + $0x48] sm:$0xf]
        %v727 = vld [vmem:[%s4 + $0x4c] sm:$0xf]
        %v728 = vld [vmem:[%s4 + $0x50] sm:$0xf]
        %v729 = vld [vmem:[%s4 + $0x54] sm:$0xf]
        %v730 = vld [vmem:[%s4 + $0x58] sm:$0xf]
        %v731 = vld [vmem:[%s4 + $0x5c] sm:$0xf]
        %v732 = vld [vmem:[%s4 + $0x60] sm:$0xf]
        %v733 = vld [vmem:[%s4 + $0x64] sm:$0xf]
        %v734 = vld [vmem:[%s4 + $0x68] sm:$0xf]
        %v735 = vld [vmem:[%s4 + $0x6c] sm:$0xf]
        %v736 = vld [vmem:[%s4 + $0x70] sm:$0xf]
        %v737 = vld [vmem:[%s4 + $0x74] sm:$0xf]
        %v738 = vld [vmem:[%s4 + $0x78] sm:$0xf]
        %v739 = vld [vmem:[%s4 + $0x7c] sm:$0xf]
        %v740 = vld [vmem:[%s5] sm:$0x1]
        %v742 = vperm.slane %v740, 0
        %v776 = vunpack.c.l.b16 %v708
        %v777 = vunpack.c.l.b16 %v709
        %v778 = vunpack.c.l.b16 %v710
        %v779 = vunpack.c.l.b16 %v711
        %v780 = vunpack.c.l.b16 %v712
        %v781 = vunpack.c.l.b16 %v713
        %v782 = vunpack.c.l.b16 %v714
        %v783 = vunpack.c.l.b16 %v715
        %v784 = vunpack.c.l.b16 %v716
        %v785 = vunpack.c.l.b16 %v717
        %v786 = vunpack.c.l.b16 %v718
        %v787 = vunpack.c.l.b16 %v719
        %v788 = vunpack.c.l.b16 %v720
        %v789 = vunpack.c.l.b16 %v721
        %v790 = vunpack.c.l.b16 %v722
        %v791 = vunpack.c.l.b16 %v723
        %v792 = vunpack.c.l.b16 %v724
        %v793 = vunpack.c.l.b16 %v725
        %v794 = vunpack.c.l.b16 %v726
        %v795 = vunpack.c.l.b16 %v727
        %v796 = vunpack.c.l.b16 %v728
        %v797 = vunpack.c.l.b16 %v729
        %v798 = vunpack.c.l.b16 %v730
        %v799 = vunpack.c.l.b16 %v731
        %v800 = vunpack.c.l.b16 %v732
        %v801 = vunpack.c.l.b16 %v733
        %v802 = vunpack.c.l.b16 %v734
        %v803 = vunpack.c.l.b16 %v735
        %v804 = vunpack.c.l.b16 %v736
        %v805 = vunpack.c.l.b16 %v737
        %v806 = vunpack.c.l.b16 %v738
        %v807 = vunpack.c.l.b16 %v739
        %v808 = vpack.c.b16 %v777, %v776
        %v809 = vpack.c.b16 %v779, %v778
        %v810 = vpack.c.b16 %v781, %v780
        %v811 = vpack.c.b16 %v783, %v782
        %v812 = vpack.c.b16 %v785, %v784
        %v813 = vpack.c.b16 %v787, %v786
        %v814 = vpack.c.b16 %v789, %v788
        %v815 = vpack.c.b16 %v791, %v790
        %v816 = vpack.c.b16 %v793, %v792
        %v817 = vpack.c.b16 %v795, %v794
        %v818 = vpack.c.b16 %v797, %v796
        %v819 = vpack.c.b16 %v799, %v798
        %v820 = vpack.c.b16 %v801, %v800
        %v821 = vpack.c.b16 %v803, %v802
        %v822 = vpack.c.b16 %v805, %v804
        %v823 = vpack.c.b16 %v807, %v806
        %840 = vmatpush.bf16.msra.mxu0 %v815
        %841 = vmatpush.bf16.msra.mxu0 %v814
        %842 = vmatpush.bf16.msra.mxu0 %v813
        %843 = vmatpush.bf16.msra.mxu0 %v812
        %844 = vmatpush.bf16.msra.mxu0 %v811
        %845 = vmatpush.bf16.msra.mxu0 %v810
        %846 = vmatpush.bf16.msra.mxu0 %v809
        %847 = vmatpush.bf16.msra.mxu0 %v808
        %848 = vmatmul.bf16.gmra.mxu0 %v706
        %v849 = vpop.f32.mrf.mxu0
        %v850 = vadd.f32 %v742, %v849
        %v851 = vpop.f32.mrf.mxu0
        %852 = vdwg.mxu0
        %853 = vmatpush.bf16.msra.mxu0 %v823
        %854 = vmatpush.bf16.msra.mxu0 %v822
        %855 = vmatpush.bf16.msra.mxu0 %v821
        %856 = vmatpush.bf16.msra.mxu0 %v820
        %857 = vmatpush.bf16.msra.mxu0 %v819
        %858 = vmatpush.bf16.msra.mxu0 %v818
        %859 = vmatpush.bf16.msra.mxu0 %v817
        %860 = vmatpush.bf16.msra.mxu0 %v816
        %861 = vmatmul.bf16.gmra.mxu0 %v707
        %v862 = vpop.f32.mrf.mxu0
        %v863 = vadd.f32 %v850, %v862
        %v864 = vpop.f32.mrf.mxu0
        %865 = vdwg.mxu0
        %v866 = vld [vmem:[%s6] sm:$0x1]
        %v867 = vld [vmem:[%s7] sm:$0x1]
        %vm868 = vcmask 130048
        %v869 = vsel %vm868, %v863, 0.0
        %870 = vadd.xlane.f32.xlu0 %v869
        %v871 = vpop.xlane.xlu0 %870
        %v872 = vrcp.pop 16.0
        %v873 = vmul.f32 16.0, %v872
        %v874 = vsub.f32 1.0, %v873
        %v875 = vmul.f32 %v872, %v874
        %v876 = vadd.f32 %v872, %v875
        %vm877 = vweird.f32 %v872
        %v878 = vsel %vm877, %v872, %v876
        %v879 = vmul.f32 %v871, %v878
        %v880 = vsub.f32 %v863, %v879
        %v881 = vmul.f32 %v880, %v880
        %v882 = vsel %vm868, %v881, 0.0
        %883 = vadd.xlane.f32.xlu0 %v882
        %v884 = vpop.xlane.xlu0 %883
        %v885 = vmul.f32 %v884, %v878
        %v886 = vadd.f32 %v885, 1e-05
        %v887 = vrsqrt.pop %v886
        %v888 = vmul.f32 %v887, %v886
        %v889 = vmul.f32 %v888, %v887
        %v890 = vmul.f32 0.5, %v889
        %v891 = vsub.f32 1.5, %v890
        %v892 = vmul.f32 %v887, %v891
        %vm893 = vweird.f32 %v886
        %vm894 = vweird.f32 %v887
        %vm895 = vmor %vm893, %vm894
        %v896 = vsel %vm895, %v887, %v892
        %v897 = vmul.f32 %v880, %v896
        %v899 = vperm.slane %v866, 0
        %v901 = vmul.f32 %v897, %v899
        %v903 = vperm.slane %v867, 0
        %v905 = vadd.f32 %v901, %v903
        %v906 = vmax.f32 %v905, 0.0
        %v907 = vpack.c.bf16 %v906, %v906
        %v908 = vld [vmem:[%s8] sm:$0xf]
        %v909 = vld [vmem:[%s8 + $0x4] sm:$0xf]
        %v910 = vld [vmem:[%s9] sm:$0x1]
        %v912 = vperm.slane %v910, 0
        %v916 = vunpack.c.l.b16 %v908
        %v917 = vunpack.c.l.b16 %v909
        %v918 = vpack.c.b16 %v917, %v916
        %v921 = vsel %vm868, %v907, 0
        %923 = vmatpush.bf16.msra.mxu0 0
        %924 = vmatpush.bf16.msra.mxu0 0
        %925 = vmatpush.bf16.msra.mxu0 0
        %926 = vmatpush.bf16.msra.mxu0 0
        %927 = vmatpush.bf16.msra.mxu0 0
        %928 = vmatpush.bf16.msra.mxu0 0
        %929 = vmatpush.bf16.msra.mxu0 0
        %930 = vmatpush.bf16.msra.mxu0 %v918
        %931 = vmatmul.bf16.gmra.mxu0 %v921
        %v932 = vpop.f32.mrf.mxu0
        %v933 = vadd.f32 %v912, %v932
        %v934 = vpop.f32.mrf.mxu0
        %935 = vdwg.mxu0
        %v936 = vld [vmem:[%s10] sm:$0x1]
        %v937 = vld [vmem:[%s11] sm:$0x1]
        %v938 = vsel %vm868, %v933, 0.0
        %939 = vadd.xlane.f32.xlu0 %v938
        %v940 = vpop.xlane.xlu0 %939
        %v941 = vmul.f32 %v940, %v878
        %v942 = vsub.f32 %v933, %v941
        %v943 = vmul.f32 %v942, %v942
        %v944 = vsel %vm868, %v943, 0.0
        %945 = vadd.xlane.f32.xlu0 %v944
        %v946 = vpop.xlane.xlu0 %945
        %v947 = vmul.f32 %v946, %v878
        %v948 = vadd.f32 %v947, 1e-05
        %v949 = vrsqrt.pop %v948
        %v950 = vmul.f32 %v949, %v948
        %v951 = vmul.f32 %v950, %v949
        %v952 = vmul.f32 0.5, %v951
        %v953 = vsub.f32 1.5, %v952
        %v954 = vmul.f32 %v949, %v953
        %vm955 = vweird.f32 %v948
        %vm956 = vweird.f32 %v949
        %vm957 = vmor %vm955, %vm956
        %v958 = vsel %vm957, %v949, %v954
        %v959 = vmul.f32 %v942, %v958
        %v961 = vperm.slane %v936, 0
        %v963 = vmul.f32 %v959, %v961
        %v965 = vperm.slane %v937, 0
        %v967 = vadd.f32 %v963, %v965
        %v968 = vmul.f32 %v967, 1.442695
        %v969 = vpow.pop %v968
        %v970 = vadd.f32 %v969, 1.0
        %v971 = vmul.f32 %v970, %v970
        %v972 = vadd.f32 %v971, 1.0
        %v973 = vrcp.pop %v972
        %v974 = vmul.f32 %v972, %v973
        %v975 = vsub.f32 1.0, %v974
        %v976 = vmul.f32 %v973, %v975
        %v977 = vadd.f32 %v973, %v976
        %vm978 = vweird.f32 %v972
        %vm979 = vweird.f32 %v973
        %vm980 = vmor %vm978, %vm979
        %v981 = vsel %vm980, %v973, %v977
        %v982 = vand.u32 2147483647, %v972
        %vm983 = vcmp.eq.f32.partialorder %v982, 8.507059e+37
        %v984 = vand.u32 %v972, 2147483648
        %v985 = vor.u32 1.1754944e-38, %v984
        %v986 = vsel %vm983, %v985, %v981
        %v987 = vmul.f32 2.0, %v986
        %v988 = vsub.f32 1.0, %v987
        %v989 = vmul.f32 %v967, %v988
        %v990 = vld [vmem:[%s647] sm:$0xff]
        %v991 = vld [vmem:[%s647 + $0x8] sm:$0xff]
        %v992 = vpack.c.bf16 %v990, %v990
        %v993 = vpack.c.bf16 %v991, %v991
        %v994 = vld [vmem:[#allocation2] sm:$0xff]
        %v995 = vld [vmem:[#allocation2 + $0x8] sm:$0xff]
        %v996 = vld [vmem:[#allocation2 + $0x10] sm:$0xff]
        %v997 = vld [vmem:[#allocation2 + $0x18] sm:$0xff]
        %v998 = vld [vmem:[#allocation2 + $0x20] sm:$0xff]
        %v999 = vld [vmem:[#allocation2 + $0x28] sm:$0xff]
        %v1000 = vld [vmem:[#allocation2 + $0x30] sm:$0xff]
        %v1001 = vld [vmem:[#allocation2 + $0x38] sm:$0xff]
        %v1002 = vld [vmem:[#allocation2 + $0x40] sm:$0xff]
        %v1003 = vld [vmem:[#allocation2 + $0x48] sm:$0xff]
        %v1004 = vld [vmem:[#allocation2 + $0x50] sm:$0xff]
        %v1005 = vld [vmem:[#allocation2 + $0x58] sm:$0xff]
        %v1006 = vld [vmem:[#allocation2 + $0x60] sm:$0xff]
        %v1007 = vld [vmem:[#allocation2 + $0x68] sm:$0xff]
        %v1008 = vld [vmem:[#allocation2 + $0x70] sm:$0xff]
        %v1009 = vld [vmem:[#allocation2 + $0x78] sm:$0xff]
        %v1010 = vld [vmem:[#allocation2 + $0x80] sm:$0xff]
        %v1011 = vld [vmem:[#allocation2 + $0x88] sm:$0xff]
        %v1012 = vld [vmem:[#allocation2 + $0x90] sm:$0xff]
        %v1013 = vld [vmem:[#allocation2 + $0x98] sm:$0xff]
        %v1014 = vld [vmem:[#allocation2 + $0xa0] sm:$0xff]
        %v1015 = vld [vmem:[#allocation2 + $0xa8] sm:$0xff]
        %v1016 = vld [vmem:[#allocation2 + $0xb0] sm:$0xff]
        %v1017 = vld [vmem:[#allocation2 + $0xb8] sm:$0xff]
        %v1018 = vld [vmem:[#allocation2 + $0xc0] sm:$0xff]
        %v1019 = vld [vmem:[#allocation2 + $0xc8] sm:$0xff]
        %v1020 = vld [vmem:[#allocation2 + $0xd0] sm:$0xff]
        %v1021 = vld [vmem:[#allocation2 + $0xd8] sm:$0xff]
        %v1022 = vld [vmem:[#allocation2 + $0xe0] sm:$0xff]
        %v1023 = vld [vmem:[#allocation2 + $0xe8] sm:$0xff]
        %v1024 = vld [vmem:[#allocation2 + $0xf0] sm:$0xff]
        %v1025 = vld [vmem:[#allocation2 + $0xf8] sm:$0xff]
        %v1026 = vld [vmem:[%s13] sm:$0x3]
        %v1028 = vperm.slane %v1026, 0
        %v1029 = vperm.slane %v1026, 1
        %v1064 = vunpack.c.l.b16 %v994
        %v1065 = vunpack.c.h.b16 %v994
        %v1066 = vunpack.c.l.b16 %v995
        %v1067 = vunpack.c.h.b16 %v995
        %v1068 = vunpack.c.l.b16 %v996
        %v1069 = vunpack.c.h.b16 %v996
        %v1070 = vunpack.c.l.b16 %v997
        %v1071 = vunpack.c.h.b16 %v997
        %v1072 = vunpack.c.l.b16 %v998
        %v1073 = vunpack.c.h.b16 %v998
        %v1074 = vunpack.c.l.b16 %v999
        %v1075 = vunpack.c.h.b16 %v999
        %v1076 = vunpack.c.l.b16 %v1000
        %v1077 = vunpack.c.h.b16 %v1000
        %v1078 = vunpack.c.l.b16 %v1001
        %v1079 = vunpack.c.h.b16 %v1001
        %v1080 = vunpack.c.l.b16 %v1002
        %v1081 = vunpack.c.h.b16 %v1002
        %v1082 = vunpack.c.l.b16 %v1003
        %v1083 = vunpack.c.h.b16 %v1003
        %v1084 = vunpack.c.l.b16 %v1004
        %v1085 = vunpack.c.h.b16 %v1004
        %v1086 = vunpack.c.l.b16 %v1005
        %v1087 = vunpack.c.h.b16 %v1005
        %v1088 = vunpack.c.l.b16 %v1006
        %v1089 = vunpack.c.h.b16 %v1006
        %v1090 = vunpack.c.l.b16 %v1007
        %v1091 = vunpack.c.h.b16 %v1007
        %v1092 = vunpack.c.l.b16 %v1008
        %v1093 = vunpack.c.h.b16 %v1008
        %v1094 = vunpack.c.l.b16 %v1009
        %v1095 = vunpack.c.h.b16 %v1009
        %v1096 = vunpack.c.l.b16 %v1010
        %v1097 = vunpack.c.h.b16 %v1010
        %v1098 = vunpack.c.l.b16 %v1011
        %v1099 = vunpack.c.h.b16 %v1011
        %v1100 = vunpack.c.l.b16 %v1012
        %v1101 = vunpack.c.h.b16 %v1012
        %v1102 = vunpack.c.l.b16 %v1013
        %v1103 = vunpack.c.h.b16 %v1013
        %v1104 = vunpack.c.l.b16 %v1014
        %v1105 = vunpack.c.h.b16 %v1014
        %v1106 = vunpack.c.l.b16 %v1015
        %v1107 = vunpack.c.h.b16 %v1015
        %v1108 = vunpack.c.l.b16 %v1016
        %v1109 = vunpack.c.h.b16 %v1016
        %v1110 = vunpack.c.l.b16 %v1017
        %v1111 = vunpack.c.h.b16 %v1017
        %v1112 = vunpack.c.l.b16 %v1018
        %v1113 = vunpack.c.h.b16 %v1018
        %v1114 = vunpack.c.l.b16 %v1019
        %v1115 = vunpack.c.h.b16 %v1019
        %v1116 = vunpack.c.l.b16 %v1020
        %v1117 = vunpack.c.h.b16 %v1020
        %v1118 = vunpack.c.l.b16 %v1021
        %v1119 = vunpack.c.h.b16 %v1021
        %v1120 = vunpack.c.l.b16 %v1022
        %v1121 = vunpack.c.h.b16 %v1022
        %v1122 = vunpack.c.l.b16 %v1023
        %v1123 = vunpack.c.h.b16 %v1023
        %v1124 = vunpack.c.l.b16 %v1024
        %v1125 = vunpack.c.h.b16 %v1024
        %v1126 = vunpack.c.l.b16 %v1025
        %v1127 = vunpack.c.h.b16 %v1025
        %v1128 = vpack.c.b16 %v1066, %v1064
        %v1129 = vpack.c.b16 %v1067, %v1065
        %v1130 = vpack.c.b16 %v1070, %v1068
        %v1131 = vpack.c.b16 %v1071, %v1069
        %v1132 = vpack.c.b16 %v1074, %v1072
        %v1133 = vpack.c.b16 %v1075, %v1073
        %v1134 = vpack.c.b16 %v1078, %v1076
        %v1135 = vpack.c.b16 %v1079, %v1077
        %v1136 = vpack.c.b16 %v1082, %v1080
        %v1137 = vpack.c.b16 %v1083, %v1081
        %v1138 = vpack.c.b16 %v1086, %v1084
        %v1139 = vpack.c.b16 %v1087, %v1085
        %v1140 = vpack.c.b16 %v1090, %v1088
        %v1141 = vpack.c.b16 %v1091, %v1089
        %v1142 = vpack.c.b16 %v1094, %v1092
        %v1143 = vpack.c.b16 %v1095, %v1093
        %v1144 = vpack.c.b16 %v1098, %v1096
        %v1145 = vpack.c.b16 %v1099, %v1097
        %v1146 = vpack.c.b16 %v1102, %v1100
        %v1147 = vpack.c.b16 %v1103, %v1101
        %v1148 = vpack.c.b16 %v1106, %v1104
        %v1149 = vpack.c.b16 %v1107, %v1105
        %v1150 = vpack.c.b16 %v1110, %v1108
        %v1151 = vpack.c.b16 %v1111, %v1109
        %v1152 = vpack.c.b16 %v1114, %v1112
        %v1153 = vpack.c.b16 %v1115, %v1113
        %v1154 = vpack.c.b16 %v1118, %v1116
        %v1155 = vpack.c.b16 %v1119, %v1117
        %v1156 = vpack.c.b16 %v1122, %v1120
        %v1157 = vpack.c.b16 %v1123, %v1121
        %v1158 = vpack.c.b16 %v1126, %v1124
        %v1159 = vpack.c.b16 %v1127, %v1125
        %1192 = vmatpush.bf16.msra.mxu0 %v1142
        %1193 = vmatpush.bf16.msra.mxu0 %v1140
        %1194 = vmatpush.bf16.msra.mxu0 %v1138
        %1195 = vmatpush.bf16.msra.mxu0 %v1136
        %1196 = vmatpush.bf16.msra.mxu0 %v1134
        %1197 = vmatpush.bf16.msra.mxu0 %v1132
        %1198 = vmatpush.bf16.msra.mxu0 %v1130
        %1199 = vmatpush.bf16.msra.mxu0 %v1128
        %1200 = vmatmul.bf16.gmra.mxu0 %v992
        %v1201 = vpop.f32.mrf.mxu0
        %v1202 = vadd.f32 %v1028, %v1201
        %v1203 = vpop.f32.mrf.mxu0
        %1204 = vdwg.mxu0
        %1205 = vmatpush.bf16.msra.mxu0 %v1158
        %1206 = vmatpush.bf16.msra.mxu0 %v1156
        %1207 = vmatpush.bf16.msra.mxu0 %v1154
        %1208 = vmatpush.bf16.msra.mxu0 %v1152
        %1209 = vmatpush.bf16.msra.mxu0 %v1150
        %1210 = vmatpush.bf16.msra.mxu0 %v1148
        %1211 = vmatpush.bf16.msra.mxu0 %v1146
        %1212 = vmatpush.bf16.msra.mxu0 %v1144
        %1213 = vmatmul.bf16.gmra.mxu0 %v993
        %v1214 = vpop.f32.mrf.mxu0
        %v1215 = vadd.f32 %v1202, %v1214
        %v1216 = vpop.f32.mrf.mxu0
        %1217 = vdwg.mxu0
        %1218 = vmatpush.bf16.msra.mxu0 %v1143
        %1219 = vmatpush.bf16.msra.mxu0 %v1141
        %1220 = vmatpush.bf16.msra.mxu0 %v1139
        %1221 = vmatpush.bf16.msra.mxu0 %v1137
        %1222 = vmatpush.bf16.msra.mxu0 %v1135
        %1223 = vmatpush.bf16.msra.mxu0 %v1133
        %1224 = vmatpush.bf16.msra.mxu0 %v1131
        %1225 = vmatpush.bf16.msra.mxu0 %v1129
        %1226 = vmatmul.bf16.gmra.mxu0 %v992
        %v1227 = vpop.f32.mrf.mxu0
        %v1228 = vadd.f32 %v1029, %v1227
        %v1229 = vpop.f32.mrf.mxu0
        %1230 = vdwg.mxu0
        %1231 = vmatpush.bf16.msra.mxu0 %v1159
        %1232 = vmatpush.bf16.msra.mxu0 %v1157
        %1233 = vmatpush.bf16.msra.mxu0 %v1155
        %1234 = vmatpush.bf16.msra.mxu0 %v1153
        %1235 = vmatpush.bf16.msra.mxu0 %v1151
        %1236 = vmatpush.bf16.msra.mxu0 %v1149
        %1237 = vmatpush.bf16.msra.mxu0 %v1147
        %1238 = vmatpush.bf16.msra.mxu0 %v1145
        %1239 = vmatmul.bf16.gmra.mxu0 %v993
        %v1240 = vpop.f32.mrf.mxu0
        %v1241 = vadd.f32 %v1228, %v1240
        %v1242 = vpop.f32.mrf.mxu0
        %1243 = vdwg.mxu0
        %v1244 = vmul.f32 %v1215, 1.442695
        %v1245 = vpow.pop %v1244
        %v1246 = vmul.f32 %v1241, 1.442695
        %v1247 = vpow.pop %v1246
        %v1248 = vadd.f32 %v1245, 1.0
        %v1249 = vadd.f32 %v1247, 1.0
        %v1250 = vmul.f32 %v1248, %v1248
        %v1251 = vmul.f32 %v1249, %v1249
        %v1252 = vadd.f32 %v1250, 1.0
        %v1253 = vadd.f32 %v1251, 1.0
        %v1254 = vrcp.pop %v1252
        %v1255 = vmul.f32 %v1252, %v1254
        %v1256 = vsub.f32 1.0, %v1255
        %v1257 = vmul.f32 %v1254, %v1256
        %v1258 = vadd.f32 %v1254, %v1257
        %vm1259 = vweird.f32 %v1252
        %vm1260 = vweird.f32 %v1254
        %vm1261 = vmor %vm1259, %vm1260
        %v1262 = vsel %vm1261, %v1254, %v1258
        %v1263 = vand.u32 2147483647, %v1252
        %vm1264 = vcmp.eq.f32.partialorder %v1263, 8.507059e+37
        %v1265 = vand.u32 %v1252, 2147483648
        %v1266 = vor.u32 1.1754944e-38, %v1265
        %v1267 = vsel %vm1264, %v1266, %v1262
        %v1268 = vmul.f32 2.0, %v1267
        %v1269 = vrcp.pop %v1253
        %v1270 = vmul.f32 %v1253, %v1269
        %v1271 = vsub.f32 1.0, %v1270
        %v1272 = vmul.f32 %v1269, %v1271
        %v1273 = vadd.f32 %v1269, %v1272
        %vm1274 = vweird.f32 %v1253
        %vm1275 = vweird.f32 %v1269
        %vm1276 = vmor %vm1274, %vm1275
        %v1277 = vsel %vm1276, %v1269, %v1273
        %v1278 = vand.u32 2147483647, %v1253
        %vm1279 = vcmp.eq.f32.partialorder %v1278, 8.507059e+37
        %v1280 = vand.u32 %v1253, 2147483648
        %v1281 = vor.u32 1.1754944e-38, %v1280
        %v1282 = vsel %vm1279, %v1281, %v1277
        %v1283 = vmul.f32 2.0, %v1282
        %v1284 = vsub.f32 1.0, %v1268
        %v1285 = vsub.f32 1.0, %v1283
        %v1286 = vmul.f32 %v1215, %v1284
        %v1287 = vmul.f32 %v1241, %v1285
        %v1288 = vpack.c.bf16 %v1286, %v1286
        %v1289 = vpack.c.bf16 %v1287, %v1287
        %v1290 = vld [vmem:[%s14] sm:$0xff]
        %v1291 = vld [vmem:[%s14 + $0x8] sm:$0xff]
        %v1292 = vld [vmem:[%s14 + $0x10] sm:$0xff]
        %v1293 = vld [vmem:[%s14 + $0x18] sm:$0xff]
        %v1294 = vld [vmem:[%s14 + $0x20] sm:$0xff]
        %v1295 = vld [vmem:[%s14 + $0x28] sm:$0xff]
        %v1296 = vld [vmem:[%s14 + $0x30] sm:$0xff]
        %v1297 = vld [vmem:[%s14 + $0x38] sm:$0xff]
        %v1298 = vld [vmem:[%s14 + $0x40] sm:$0xff]
        %v1299 = vld [vmem:[%s14 + $0x48] sm:$0xff]
        %v1300 = vld [vmem:[%s14 + $0x50] sm:$0xff]
        %v1301 = vld [vmem:[%s14 + $0x58] sm:$0xff]
        %v1302 = vld [vmem:[%s14 + $0x60] sm:$0xff]
        %v1303 = vld [vmem:[%s14 + $0x68] sm:$0xff]
        %v1304 = vld [vmem:[%s14 + $0x70] sm:$0xff]
        %v1305 = vld [vmem:[%s14 + $0x78] sm:$0xff]
        %v1306 = vld [vmem:[%s14 + $0x80] sm:$0xff]
        %v1307 = vld [vmem:[%s14 + $0x88] sm:$0xff]
        %v1308 = vld [vmem:[%s14 + $0x90] sm:$0xff]
        %v1309 = vld [vmem:[%s14 + $0x98] sm:$0xff]
        %v1310 = vld [vmem:[%s14 + $0xa0] sm:$0xff]
        %v1311 = vld [vmem:[%s14 + $0xa8] sm:$0xff]
        %v1312 = vld [vmem:[%s14 + $0xb0] sm:$0xff]
        %v1313 = vld [vmem:[%s14 + $0xb8] sm:$0xff]
        %v1314 = vld [vmem:[%s14 + $0xc0] sm:$0xff]
        %v1315 = vld [vmem:[%s14 + $0xc8] sm:$0xff]
        %v1316 = vld [vmem:[%s14 + $0xd0] sm:$0xff]
        %v1317 = vld [vmem:[%s14 + $0xd8] sm:$0xff]
        %v1318 = vld [vmem:[%s14 + $0xe0] sm:$0xff]
        %v1319 = vld [vmem:[%s14 + $0xe8] sm:$0xff]
        %v1320 = vld [vmem:[%s14 + $0xf0] sm:$0xff]
        %v1321 = vld [vmem:[%s14 + $0xf8] sm:$0xff]
        %v1322 = vld [vmem:[%s14 + $0x100] sm:$0xff]
        %v1323 = vld [vmem:[%s14 + $0x108] sm:$0xff]
        %v1324 = vld [vmem:[%s14 + $0x110] sm:$0xff]
        %v1325 = vld [vmem:[%s14 + $0x118] sm:$0xff]
        %v1326 = vld [vmem:[%s14 + $0x120] sm:$0xff]
        %v1327 = vld [vmem:[%s14 + $0x128] sm:$0xff]
        %v1328 = vld [vmem:[%s14 + $0x130] sm:$0xff]
        %v1329 = vld [vmem:[%s14 + $0x138] sm:$0xff]
        %v1330 = vld [vmem:[%s14 + $0x140] sm:$0xff]
        %v1331 = vld [vmem:[%s14 + $0x148] sm:$0xff]
        %v1332 = vld [vmem:[%s14 + $0x150] sm:$0xff]
        %v1333 = vld [vmem:[%s14 + $0x158] sm:$0xff]
        %v1334 = vld [vmem:[%s14 + $0x160] sm:$0xff]
        %v1335 = vld [vmem:[%s14 + $0x168] sm:$0xff]
        %v1336 = vld [vmem:[%s14 + $0x170] sm:$0xff]
        %v1337 = vld [vmem:[%s14 + $0x178] sm:$0xff]
        %v1338 = vld [vmem:[%s14 + $0x180] sm:$0xff]
        %v1339 = vld [vmem:[%s14 + $0x188] sm:$0xff]
        %v1340 = vld [vmem:[%s14 + $0x190] sm:$0xff]
        %v1341 = vld [vmem:[%s14 + $0x198] sm:$0xff]
        %v1342 = vld [vmem:[%s14 + $0x1a0] sm:$0xff]
        %v1343 = vld [vmem:[%s14 + $0x1a8] sm:$0xff]
        %v1344 = vld [vmem:[%s14 + $0x1b0] sm:$0xff]
        %v1345 = vld [vmem:[%s14 + $0x1b8] sm:$0xff]
        %v1346 = vld [vmem:[%s14 + $0x1c0] sm:$0xff]
        %v1347 = vld [vmem:[%s14 + $0x1c8] sm:$0xff]
        %v1348 = vld [vmem:[%s14 + $0x1d0] sm:$0xff]
        %v1349 = vld [vmem:[%s14 + $0x1d8] sm:$0xff]
        %v1350 = vld [vmem:[%s14 + $0x1e0] sm:$0xff]
        %v1351 = vld [vmem:[%s14 + $0x1e8] sm:$0xff]
        %v1352 = vld [vmem:[%s14 + $0x1f0] sm:$0xff]
        %v1353 = vld [vmem:[%s14 + $0x1f8] sm:$0xff]
        %v1354 = vld [vmem:[%s15] sm:$0xf]
        %v1356 = vperm.slane %v1354, 0
        %v1357 = vperm.slane %v1354, 1
        %v1358 = vperm.slane %v1354, 2
        %v1359 = vperm.slane %v1354, 3
        %v1428 = vunpack.c.l.b16 %v1290
        %v1429 = vunpack.c.h.b16 %v1290
        %v1430 = vunpack.c.l.b16 %v1291
        %v1431 = vunpack.c.h.b16 %v1291
        %v1432 = vunpack.c.l.b16 %v1292
        %v1433 = vunpack.c.h.b16 %v1292
        %v1434 = vunpack.c.l.b16 %v1293
        %v1435 = vunpack.c.h.b16 %v1293
        %v1436 = vunpack.c.l.b16 %v1294
        %v1437 = vunpack.c.h.b16 %v1294
        %v1438 = vunpack.c.l.b16 %v1295
        %v1439 = vunpack.c.h.b16 %v1295
        %v1440 = vunpack.c.l.b16 %v1296
        %v1441 = vunpack.c.h.b16 %v1296
        %v1442 = vunpack.c.l.b16 %v1297
        %v1443 = vunpack.c.h.b16 %v1297
        %v1444 = vunpack.c.l.b16 %v1298
        %v1445 = vunpack.c.h.b16 %v1298
        %v1446 = vunpack.c.l.b16 %v1299
        %v1447 = vunpack.c.h.b16 %v1299
        %v1448 = vunpack.c.l.b16 %v1300
        %v1449 = vunpack.c.h.b16 %v1300
        %v1450 = vunpack.c.l.b16 %v1301
        %v1451 = vunpack.c.h.b16 %v1301
        %v1452 = vunpack.c.l.b16 %v1302
        %v1453 = vunpack.c.h.b16 %v1302
        %v1454 = vunpack.c.l.b16 %v1303
        %v1455 = vunpack.c.h.b16 %v1303
        %v1456 = vunpack.c.l.b16 %v1304
        %v1457 = vunpack.c.h.b16 %v1304
        %v1458 = vunpack.c.l.b16 %v1305
        %v1459 = vunpack.c.h.b16 %v1305
        %v1460 = vunpack.c.l.b16 %v1306
        %v1461 = vunpack.c.h.b16 %v1306
        %v1462 = vunpack.c.l.b16 %v1307
        %v1463 = vunpack.c.h.b16 %v1307
        %v1464 = vunpack.c.l.b16 %v1308
        %v1465 = vunpack.c.h.b16 %v1308
        %v1466 = vunpack.c.l.b16 %v1309
        %v1467 = vunpack.c.h.b16 %v1309
        %v1468 = vunpack.c.l.b16 %v1310
        %v1469 = vunpack.c.h.b16 %v1310
        %v1470 = vunpack.c.l.b16 %v1311
        %v1471 = vunpack.c.h.b16 %v1311
        %v1472 = vunpack.c.l.b16 %v1312
        %v1473 = vunpack.c.h.b16 %v1312
        %v1474 = vunpack.c.l.b16 %v1313
        %v1475 = vunpack.c.h.b16 %v1313
        %v1476 = vunpack.c.l.b16 %v1314
        %v1477 = vunpack.c.h.b16 %v1314
        %v1478 = vunpack.c.l.b16 %v1315
        %v1479 = vunpack.c.h.b16 %v1315
        %v1480 = vunpack.c.l.b16 %v1316
        %v1481 = vunpack.c.h.b16 %v1316
        %v1482 = vunpack.c.l.b16 %v1317
        %v1483 = vunpack.c.h.b16 %v1317
        %v1484 = vunpack.c.l.b16 %v1318
        %v1485 = vunpack.c.h.b16 %v1318
        %v1486 = vunpack.c.l.b16 %v1319
        %v1487 = vunpack.c.h.b16 %v1319
        %v1488 = vunpack.c.l.b16 %v1320
        %v1489 = vunpack.c.h.b16 %v1320
        %v1490 = vunpack.c.l.b16 %v1321
        %v1491 = vunpack.c.h.b16 %v1321
        %v1492 = vunpack.c.l.b16 %v1322
        %v1493 = vunpack.c.h.b16 %v1322
        %v1494 = vunpack.c.l.b16 %v1323
        %v1495 = vunpack.c.h.b16 %v1323
        %v1496 = vunpack.c.l.b16 %v1324
        %v1497 = vunpack.c.h.b16 %v1324
        %v1498 = vunpack.c.l.b16 %v1325
        %v1499 = vunpack.c.h.b16 %v1325
        %v1500 = vunpack.c.l.b16 %v1326
        %v1501 = vunpack.c.h.b16 %v1326
        %v1502 = vunpack.c.l.b16 %v1327
        %v1503 = vunpack.c.h.b16 %v1327
        %v1504 = vunpack.c.l.b16 %v1328
        %v1505 = vunpack.c.h.b16 %v1328
        %v1506 = vunpack.c.l.b16 %v1329
        %v1507 = vunpack.c.h.b16 %v1329
        %v1508 = vunpack.c.l.b16 %v1330
        %v1509 = vunpack.c.h.b16 %v1330
        %v1510 = vunpack.c.l.b16 %v1331
        %v1511 = vunpack.c.h.b16 %v1331
        %v1512 = vunpack.c.l.b16 %v1332
        %v1513 = vunpack.c.h.b16 %v1332
        %v1514 = vunpack.c.l.b16 %v1333
        %v1515 = vunpack.c.h.b16 %v1333
        %v1516 = vunpack.c.l.b16 %v1334
        %v1517 = vunpack.c.h.b16 %v1334
        %v1518 = vunpack.c.l.b16 %v1335
        %v1519 = vunpack.c.h.b16 %v1335
        %v1520 = vunpack.c.l.b16 %v1336
        %v1521 = vunpack.c.h.b16 %v1336
        %v1522 = vunpack.c.l.b16 %v1337
        %v1523 = vunpack.c.h.b16 %v1337
        %v1524 = vunpack.c.l.b16 %v1338
        %v1525 = vunpack.c.h.b16 %v1338
        %v1526 = vunpack.c.l.b16 %v1339
        %v1527 = vunpack.c.h.b16 %v1339
        %v1528 = vunpack.c.l.b16 %v1340
        %v1529 = vunpack.c.h.b16 %v1340
        %v1530 = vunpack.c.l.b16 %v1341
        %v1531 = vunpack.c.h.b16 %v1341
        %v1532 = vunpack.c.l.b16 %v1342
        %v1533 = vunpack.c.h.b16 %v1342
        %v1534 = vunpack.c.l.b16 %v1343
        %v1535 = vunpack.c.h.b16 %v1343
        %v1536 = vunpack.c.l.b16 %v1344
        %v1537 = vunpack.c.h.b16 %v1344
        %v1538 = vunpack.c.l.b16 %v1345
        %v1539 = vunpack.c.h.b16 %v1345
        %v1540 = vunpack.c.l.b16 %v1346
        %v1541 = vunpack.c.h.b16 %v1346
        %v1542 = vunpack.c.l.b16 %v1347
        %v1543 = vunpack.c.h.b16 %v1347
        %v1544 = vunpack.c.l.b16 %v1348
        %v1545 = vunpack.c.h.b16 %v1348
        %v1546 = vunpack.c.l.b16 %v1349
        %v1547 = vunpack.c.h.b16 %v1349
        %v1548 = vunpack.c.l.b16 %v1350
        %v1549 = vunpack.c.h.b16 %v1350
        %v1550 = vunpack.c.l.b16 %v1351
        %v1551 = vunpack.c.h.b16 %v1351
        %v1552 = vunpack.c.l.b16 %v1352
        %v1553 = vunpack.c.h.b16 %v1352
        %v1554 = vunpack.c.l.b16 %v1353
        %v1555 = vunpack.c.h.b16 %v1353
        %v1556 = vpack.c.b16 %v1432, %v1428
        %v1557 = vpack.c.b16 %v1433, %v1429
        %v1558 = vpack.c.b16 %v1434, %v1430
        %v1559 = vpack.c.b16 %v1435, %v1431
        %v1560 = vpack.c.b16 %v1440, %v1436
        %v1561 = vpack.c.b16 %v1441, %v1437
        %v1562 = vpack.c.b16 %v1442, %v1438
        %v1563 = vpack.c.b16 %v1443, %v1439
        %v1564 = vpack.c.b16 %v1448, %v1444
        %v1565 = vpack.c.b16 %v1449, %v1445
        %v1566 = vpack.c.b16 %v1450, %v1446
        %v1567 = vpack.c.b16 %v1451, %v1447
        %v1568 = vpack.c.b16 %v1456, %v1452
        %v1569 = vpack.c.b16 %v1457, %v1453
        %v1570 = vpack.c.b16 %v1458, %v1454
        %v1571 = vpack.c.b16 %v1459, %v1455
        %v1572 = vpack.c.b16 %v1464, %v1460
        %v1573 = vpack.c.b16 %v1465, %v1461
        %v1574 = vpack.c.b16 %v1466, %v1462
        %v1575 = vpack.c.b16 %v1467, %v1463
        %v1576 = vpack.c.b16 %v1472, %v1468
        %v1577 = vpack.c.b16 %v1473, %v1469
        %v1578 = vpack.c.b16 %v1474, %v1470
        %v1579 = vpack.c.b16 %v1475, %v1471
        %v1580 = vpack.c.b16 %v1480, %v1476
        %v1581 = vpack.c.b16 %v1481, %v1477
        %v1582 = vpack.c.b16 %v1482, %v1478
        %v1583 = vpack.c.b16 %v1483, %v1479
        %v1584 = vpack.c.b16 %v1488, %v1484
        %v1585 = vpack.c.b16 %v1489, %v1485
        %v1586 = vpack.c.b16 %v1490, %v1486
        %v1587 = vpack.c.b16 %v1491, %v1487
        %v1588 = vpack.c.b16 %v1496, %v1492
        %v1589 = vpack.c.b16 %v1497, %v1493
        %v1590 = vpack.c.b16 %v1498, %v1494
        %v1591 = vpack.c.b16 %v1499, %v1495
        %v1592 = vpack.c.b16 %v1504, %v1500
        %v1593 = vpack.c.b16 %v1505, %v1501
        %v1594 = vpack.c.b16 %v1506, %v1502
        %v1595 = vpack.c.b16 %v1507, %v1503
        %v1596 = vpack.c.b16 %v1512, %v1508
        %v1597 = vpack.c.b16 %v1513, %v1509
        %v1598 = vpack.c.b16 %v1514, %v1510
        %v1599 = vpack.c.b16 %v1515, %v1511
        %v1600 = vpack.c.b16 %v1520, %v1516
        %v1601 = vpack.c.b16 %v1521, %v1517
        %v1602 = vpack.c.b16 %v1522, %v1518
        %v1603 = vpack.c.b16 %v1523, %v1519
        %v1604 = vpack.c.b16 %v1528, %v1524
        %v1605 = vpack.c.b16 %v1529, %v1525
        %v1606 = vpack.c.b16 %v1530, %v1526
        %v1607 = vpack.c.b16 %v1531, %v1527
        %v1608 = vpack.c.b16 %v1536, %v1532
        %v1609 = vpack.c.b16 %v1537, %v1533
        %v1610 = vpack.c.b16 %v1538, %v1534
        %v1611 = vpack.c.b16 %v1539, %v1535
        %v1612 = vpack.c.b16 %v1544, %v1540
        %v1613 = vpack.c.b16 %v1545, %v1541
        %v1614 = vpack.c.b16 %v1546, %v1542
        %v1615 = vpack.c.b16 %v1547, %v1543
        %v1616 = vpack.c.b16 %v1552, %v1548
        %v1617 = vpack.c.b16 %v1553, %v1549
        %v1618 = vpack.c.b16 %v1554, %v1550
        %v1619 = vpack.c.b16 %v1555, %v1551
        %1684 = vmatpush.bf16.msra.mxu0 %v1584
        %1685 = vmatpush.bf16.msra.mxu0 %v1580
        %1686 = vmatpush.bf16.msra.mxu0 %v1576
        %1687 = vmatpush.bf16.msra.mxu0 %v1572
        %1688 = vmatpush.bf16.msra.mxu0 %v1568
        %1689 = vmatpush.bf16.msra.mxu0 %v1564
        %1690 = vmatpush.bf16.msra.mxu0 %v1560
        %1691 = vmatpush.bf16.msra.mxu0 %v1556
        %1692 = vmatmul.bf16.gmra.mxu0 %v1288
        %v1693 = vpop.f32.mrf.mxu0
        %v1694 = vadd.f32 %v1356, %v1693
        %v1695 = vpop.f32.mrf.mxu0
        %1696 = vdwg.mxu0
        %1697 = vmatpush.bf16.msra.mxu0 %v1616
        %1698 = vmatpush.bf16.msra.mxu0 %v1612
        %1699 = vmatpush.bf16.msra.mxu0 %v1608
        %1700 = vmatpush.bf16.msra.mxu0 %v1604
        %1701 = vmatpush.bf16.msra.mxu0 %v1600
        %1702 = vmatpush.bf16.msra.mxu0 %v1596
        %1703 = vmatpush.bf16.msra.mxu0 %v1592
        %1704 = vmatpush.bf16.msra.mxu0 %v1588
        %1705 = vmatmul.bf16.gmra.mxu0 %v1289
        %v1706 = vpop.f32.mrf.mxu0
        %v1707 = vadd.f32 %v1694, %v1706
        %v1708 = vpop.f32.mrf.mxu0
        %1709 = vdwg.mxu0
        %1710 = vmatpush.bf16.msra.mxu0 %v1585
        %1711 = vmatpush.bf16.msra.mxu0 %v1581
        %1712 = vmatpush.bf16.msra.mxu0 %v1577
        %1713 = vmatpush.bf16.msra.mxu0 %v1573
        %1714 = vmatpush.bf16.msra.mxu0 %v1569
        %1715 = vmatpush.bf16.msra.mxu0 %v1565
        %1716 = vmatpush.bf16.msra.mxu0 %v1561
        %1717 = vmatpush.bf16.msra.mxu0 %v1557
        %1718 = vmatmul.bf16.gmra.mxu0 %v1288
        %v1719 = vpop.f32.mrf.mxu0
        %v1720 = vadd.f32 %v1357, %v1719
        %v1721 = vpop.f32.mrf.mxu0
        %1722 = vdwg.mxu0
        %1723 = vmatpush.bf16.msra.mxu0 %v1617
        %1724 = vmatpush.bf16.msra.mxu0 %v1613
        %1725 = vmatpush.bf16.msra.mxu0 %v1609
        %1726 = vmatpush.bf16.msra.mxu0 %v1605
        %1727 = vmatpush.bf16.msra.mxu0 %v1601
        %1728 = vmatpush.bf16.msra.mxu0 %v1597
        %1729 = vmatpush.bf16.msra.mxu0 %v1593
        %1730 = vmatpush.bf16.msra.mxu0 %v1589
        %1731 = vmatmul.bf16.gmra.mxu0 %v1289
        %v1732 = vpop.f32.mrf.mxu0
        %v1733 = vadd.f32 %v1720, %v1732
        %v1734 = vpop.f32.mrf.mxu0
        %1735 = vdwg.mxu0
        %1736 = vmatpush.bf16.msra.mxu0 %v1586
        %1737 = vmatpush.bf16.msra.mxu0 %v1582
        %1738 = vmatpush.bf16.msra.mxu0 %v1578
        %1739 = vmatpush.bf16.msra.mxu0 %v1574
        %1740 = vmatpush.bf16.msra.mxu0 %v1570
        %1741 = vmatpush.bf16.msra.mxu0 %v1566
        %1742 = vmatpush.bf16.msra.mxu0 %v1562
        %1743 = vmatpush.bf16.msra.mxu0 %v1558
        %1744 = vmatmul.bf16.gmra.mxu0 %v1288
        %v1745 = vpop.f32.mrf.mxu0
        %v1746 = vadd.f32 %v1358, %v1745
        %v1747 = vpop.f32.mrf.mxu0
        %1748 = vdwg.mxu0
        %1749 = vmatpush.bf16.msra.mxu0 %v1618
        %1750 = vmatpush.bf16.msra.mxu0 %v1614
        %1751 = vmatpush.bf16.msra.mxu0 %v1610
        %1752 = vmatpush.bf16.msra.mxu0 %v1606
        %1753 = vmatpush.bf16.msra.mxu0 %v1602
        %1754 = vmatpush.bf16.msra.mxu0 %v1598
        %1755 = vmatpush.bf16.msra.mxu0 %v1594
        %1756 = vmatpush.bf16.msra.mxu0 %v1590
        %1757 = vmatmul.bf16.gmra.mxu0 %v1289
        %v1758 = vpop.f32.mrf.mxu0
        %v1759 = vadd.f32 %v1746, %v1758
        %v1760 = vpop.f32.mrf.mxu0
        %1761 = vdwg.mxu0
        %1762 = vmatpush.bf16.msra.mxu0 %v1587
        %1763 = vmatpush.bf16.msra.mxu0 %v1583
        %1764 = vmatpush.bf16.msra.mxu0 %v1579
        %1765 = vmatpush.bf16.msra.mxu0 %v1575
        %1766 = vmatpush.bf16.msra.mxu0 %v1571
        %1767 = vmatpush.bf16.msra.mxu0 %v1567
        %1768 = vmatpush.bf16.msra.mxu0 %v1563
        %1769 = vmatpush.bf16.msra.mxu0 %v1559
        %1770 = vmatmul.bf16.gmra.mxu0 %v1288
        %v1771 = vpop.f32.mrf.mxu0
        %v1772 = vadd.f32 %v1359, %v1771
        %v1773 = vpop.f32.mrf.mxu0
        %1774 = vdwg.mxu0
        %1775 = vmatpush.bf16.msra.mxu0 %v1619
        %1776 = vmatpush.bf16.msra.mxu0 %v1615
        %1777 = vmatpush.bf16.msra.mxu0 %v1611
        %1778 = vmatpush.bf16.msra.mxu0 %v1607
        %1779 = vmatpush.bf16.msra.mxu0 %v1603
        %1780 = vmatpush.bf16.msra.mxu0 %v1599
        %1781 = vmatpush.bf16.msra.mxu0 %v1595
        %1782 = vmatpush.bf16.msra.mxu0 %v1591
        %1783 = vmatmul.bf16.gmra.mxu0 %v1289
        %v1784 = vpop.f32.mrf.mxu0
        %v1785 = vadd.f32 %v1772, %v1784
        %v1786 = vpop.f32.mrf.mxu0
        %1787 = vdwg.mxu0
        %v1788 = vmul.f32 %v1707, 1.442695
        %v1789 = vpow.pop %v1788
        %v1790 = vmul.f32 %v1733, 1.442695
        %v1791 = vpow.pop %v1790
        %v1792 = vmul.f32 %v1759, 1.442695
        %v1793 = vpow.pop %v1792
        %v1794 = vmul.f32 %v1785, 1.442695
        %v1795 = vpow.pop %v1794
        %v1796 = vadd.f32 %v1789, 1.0
        %v1797 = vadd.f32 %v1791, 1.0
        %v1798 = vadd.f32 %v1793, 1.0
        %v1799 = vadd.f32 %v1795, 1.0
        %v1800 = vmul.f32 %v1796, %v1796
        %v1801 = vmul.f32 %v1797, %v1797
        %v1802 = vmul.f32 %v1798, %v1798
        %v1803 = vmul.f32 %v1799, %v1799
        %v1804 = vadd.f32 %v1800, 1.0
        %v1805 = vadd.f32 %v1801, 1.0
        %v1806 = vadd.f32 %v1802, 1.0
        %v1807 = vadd.f32 %v1803, 1.0
        %v1808 = vrcp.pop %v1804
        %v1809 = vmul.f32 %v1804, %v1808
        %v1810 = vsub.f32 1.0, %v1809
        %v1811 = vmul.f32 %v1808, %v1810
        %v1812 = vadd.f32 %v1808, %v1811
        %vm1813 = vweird.f32 %v1804
        %vm1814 = vweird.f32 %v1808
        %vm1815 = vmor %vm1813, %vm1814
        %v1816 = vsel %vm1815, %v1808, %v1812
        %v1817 = vand.u32 2147483647, %v1804
        %vm1818 = vcmp.eq.f32.partialorder %v1817, 8.507059e+37
        %v1819 = vand.u32 %v1804, 2147483648
        %v1820 = vor.u32 1.1754944e-38, %v1819
        %v1821 = vsel %vm1818, %v1820, %v1816
        %v1822 = vmul.f32 2.0, %v1821
        %v1823 = vrcp.pop %v1805
        %v1824 = vmul.f32 %v1805, %v1823
        %v1825 = vsub.f32 1.0, %v1824
        %v1826 = vmul.f32 %v1823, %v1825
        %v1827 = vadd.f32 %v1823, %v1826
        %vm1828 = vweird.f32 %v1805
        %vm1829 = vweird.f32 %v1823
        %vm1830 = vmor %vm1828, %vm1829
        %v1831 = vsel %vm1830, %v1823, %v1827
        %v1832 = vand.u32 2147483647, %v1805
        %vm1833 = vcmp.eq.f32.partialorder %v1832, 8.507059e+37
        %v1834 = vand.u32 %v1805, 2147483648
        %v1835 = vor.u32 1.1754944e-38, %v1834
        %v1836 = vsel %vm1833, %v1835, %v1831
        %v1837 = vmul.f32 2.0, %v1836
        %v1838 = vrcp.pop %v1806
        %v1839 = vmul.f32 %v1806, %v1838
        %v1840 = vsub.f32 1.0, %v1839
        %v1841 = vmul.f32 %v1838, %v1840
        %v1842 = vadd.f32 %v1838, %v1841
        %vm1843 = vweird.f32 %v1806
        %vm1844 = vweird.f32 %v1838
        %vm1845 = vmor %vm1843, %vm1844
        %v1846 = vsel %vm1845, %v1838, %v1842
        %v1847 = vand.u32 2147483647, %v1806
        %vm1848 = vcmp.eq.f32.partialorder %v1847, 8.507059e+37
        %v1849 = vand.u32 %v1806, 2147483648
        %v1850 = vor.u32 1.1754944e-38, %v1849
        %v1851 = vsel %vm1848, %v1850, %v1846
        %v1852 = vmul.f32 2.0, %v1851
        %v1853 = vrcp.pop %v1807
        %v1854 = vmul.f32 %v1807, %v1853
        %v1855 = vsub.f32 1.0, %v1854
        %v1856 = vmul.f32 %v1853, %v1855
        %v1857 = vadd.f32 %v1853, %v1856
        %vm1858 = vweird.f32 %v1807
        %vm1859 = vweird.f32 %v1853
        %vm1860 = vmor %vm1858, %vm1859
        %v1861 = vsel %vm1860, %v1853, %v1857
        %v1862 = vand.u32 2147483647, %v1807
        %vm1863 = vcmp.eq.f32.partialorder %v1862, 8.507059e+37
        %v1864 = vand.u32 %v1807, 2147483648
        %v1865 = vor.u32 1.1754944e-38, %v1864
        %v1866 = vsel %vm1863, %v1865, %v1861
        %v1867 = vmul.f32 2.0, %v1866
        %v1868 = vsub.f32 1.0, %v1822
        %v1869 = vsub.f32 1.0, %v1837
        %v1870 = vsub.f32 1.0, %v1852
        %v1871 = vsub.f32 1.0, %v1867
        %v1872 = vmul.f32 %v1707, %v1868
        %v1873 = vmul.f32 %v1733, %v1869
        %v1874 = vmul.f32 %v1759, %v1870
        %v1875 = vmul.f32 %v1785, %v1871
        %v1876 = vpack.c.bf16 %v1872, %v1872
        %v1877 = vpack.c.bf16 %v1873, %v1873
        %v1878 = vpack.c.bf16 %v1874, %v1874
        %v1879 = vpack.c.bf16 %v1875, %v1875
        %v1880 = vld [vmem:[#allocation4] sm:$0xff]
        %v1881 = vld [vmem:[#allocation4 + $0x8] sm:$0xff]
        %v1882 = vld [vmem:[#allocation4 + $0x10] sm:$0xff]
        %v1883 = vld [vmem:[#allocation4 + $0x18] sm:$0xff]
        %v1884 = vld [vmem:[#allocation4 + $0x20] sm:$0xff]
        %v1885 = vld [vmem:[#allocation4 + $0x28] sm:$0xff]
        %v1886 = vld [vmem:[#allocation4 + $0x30] sm:$0xff]
        %v1887 = vld [vmem:[#allocation4 + $0x38] sm:$0xff]
        %v1888 = vld [vmem:[#allocation4 + $0x40] sm:$0xff]
        %v1889 = vld [vmem:[#allocation4 + $0x48] sm:$0xff]
        %v1890 = vld [vmem:[#allocation4 + $0x50] sm:$0xff]
        %v1891 = vld [vmem:[#allocation4 + $0x58] sm:$0xff]
        %v1892 = vld [vmem:[#allocation4 + $0x60] sm:$0xff]
        %v1893 = vld [vmem:[#allocation4 + $0x68] sm:$0xff]
        %v1894 = vld [vmem:[#allocation4 + $0x70] sm:$0xff]
        %v1895 = vld [vmem:[#allocation4 + $0x78] sm:$0xff]
        %v1896 = vld [vmem:[#allocation4 + $0x80] sm:$0xff]
        %v1897 = vld [vmem:[#allocation4 + $0x88] sm:$0xff]
        %v1898 = vld [vmem:[#allocation4 + $0x90] sm:$0xff]
        %v1899 = vld [vmem:[#allocation4 + $0x98] sm:$0xff]
        %v1900 = vld [vmem:[#allocation4 + $0xa0] sm:$0xff]
        %v1901 = vld [vmem:[#allocation4 + $0xa8] sm:$0xff]
        %v1902 = vld [vmem:[#allocation4 + $0xb0] sm:$0xff]
        %v1903 = vld [vmem:[#allocation4 + $0xb8] sm:$0xff]
        %v1904 = vld [vmem:[#allocation4 + $0xc0] sm:$0xff]
        %v1905 = vld [vmem:[#allocation4 + $0xc8] sm:$0xff]
        %v1906 = vld [vmem:[#allocation4 + $0xd0] sm:$0xff]
        %v1907 = vld [vmem:[#allocation4 + $0xd8] sm:$0xff]
        %v1908 = vld [vmem:[#allocation4 + $0xe0] sm:$0xff]
        %v1909 = vld [vmem:[#allocation4 + $0xe8] sm:$0xff]
        %v1910 = vld [vmem:[#allocation4 + $0xf0] sm:$0xff]
        %v1911 = vld [vmem:[#allocation4 + $0xf8] sm:$0xff]
        %v1912 = vld [vmem:[#allocation4 + $0x100] sm:$0xff]
        %v1913 = vld [vmem:[#allocation4 + $0x108] sm:$0xff]
        %v1914 = vld [vmem:[#allocation4 + $0x110] sm:$0xff]
        %v1915 = vld [vmem:[#allocation4 + $0x118] sm:$0xff]
        %v1916 = vld [vmem:[#allocation4 + $0x120] sm:$0xff]
        %v1917 = vld [vmem:[#allocation4 + $0x128] sm:$0xff]
        %v1918 = vld [vmem:[#allocation4 + $0x130] sm:$0xff]
        %v1919 = vld [vmem:[#allocation4 + $0x138] sm:$0xff]
        %v1920 = vld [vmem:[#allocation4 + $0x140] sm:$0xff]
        %v1921 = vld [vmem:[#allocation4 + $0x148] sm:$0xff]
        %v1922 = vld [vmem:[#allocation4 + $0x150] sm:$0xff]
        %v1923 = vld [vmem:[#allocation4 + $0x158] sm:$0xff]
        %v1924 = vld [vmem:[#allocation4 + $0x160] sm:$0xff]
        %v1925 = vld [vmem:[#allocation4 + $0x168] sm:$0xff]
        %v1926 = vld [vmem:[#allocation4 + $0x170] sm:$0xff]
        %v1927 = vld [vmem:[#allocation4 + $0x178] sm:$0xff]
        %v1928 = vld [vmem:[#allocation4 + $0x180] sm:$0xff]
        %v1929 = vld [vmem:[#allocation4 + $0x188] sm:$0xff]
        %v1930 = vld [vmem:[#allocation4 + $0x190] sm:$0xff]
        %v1931 = vld [vmem:[#allocation4 + $0x198] sm:$0xff]
        %v1932 = vld [vmem:[#allocation4 + $0x1a0] sm:$0xff]
        %v1933 = vld [vmem:[#allocation4 + $0x1a8] sm:$0xff]
        %v1934 = vld [vmem:[#allocation4 + $0x1b0] sm:$0xff]
        %v1935 = vld [vmem:[#allocation4 + $0x1b8] sm:$0xff]
        %v1936 = vld [vmem:[#allocation4 + $0x1c0] sm:$0xff]
        %v1937 = vld [vmem:[#allocation4 + $0x1c8] sm:$0xff]
        %v1938 = vld [vmem:[#allocation4 + $0x1d0] sm:$0xff]
        %v1939 = vld [vmem:[#allocation4 + $0x1d8] sm:$0xff]
        %v1940 = vld [vmem:[#allocation4 + $0x1e0] sm:$0xff]
        %v1941 = vld [vmem:[#allocation4 + $0x1e8] sm:$0xff]
        %v1942 = vld [vmem:[#allocation4 + $0x1f0] sm:$0xff]
        %v1943 = vld [vmem:[#allocation4 + $0x1f8] sm:$0xff]
        %v1944 = vld [vmem:[#allocation4 + $0x200] sm:$0xff]
        %v1945 = vld [vmem:[#allocation4 + $0x208] sm:$0xff]
        %v1946 = vld [vmem:[#allocation4 + $0x210] sm:$0xff]
        %v1947 = vld [vmem:[#allocation4 + $0x218] sm:$0xff]
        %v1948 = vld [vmem:[#allocation4 + $0x220] sm:$0xff]
        %v1949 = vld [vmem:[#allocation4 + $0x228] sm:$0xff]
        %v1950 = vld [vmem:[#allocation4 + $0x230] sm:$0xff]
        %v1951 = vld [vmem:[#allocation4 + $0x238] sm:$0xff]
        %v1952 = vld [vmem:[#allocation4 + $0x240] sm:$0xff]
        %v1953 = vld [vmem:[#allocation4 + $0x248] sm:$0xff]
        %v1954 = vld [vmem:[#allocation4 + $0x250] sm:$0xff]
        %v1955 = vld [vmem:[#allocation4 + $0x258] sm:$0xff]
        %v1956 = vld [vmem:[#allocation4 + $0x260] sm:$0xff]
        %v1957 = vld [vmem:[#allocation4 + $0x268] sm:$0xff]
        %v1958 = vld [vmem:[#allocation4 + $0x270] sm:$0xff]
        %v1959 = vld [vmem:[#allocation4 + $0x278] sm:$0xff]
        %v1960 = vld [vmem:[#allocation4 + $0x280] sm:$0xff]
        %v1961 = vld [vmem:[#allocation4 + $0x288] sm:$0xff]
        %v1962 = vld [vmem:[#allocation4 + $0x290] sm:$0xff]
        %v1963 = vld [vmem:[#allocation4 + $0x298] sm:$0xff]
        %v1964 = vld [vmem:[#allocation4 + $0x2a0] sm:$0xff]
        %v1965 = vld [vmem:[#allocation4 + $0x2a8] sm:$0xff]
        %v1966 = vld [vmem:[#allocation4 + $0x2b0] sm:$0xff]
        %v1967 = vld [vmem:[#allocation4 + $0x2b8] sm:$0xff]
        %v1968 = vld [vmem:[#allocation4 + $0x2c0] sm:$0xff]
        %v1969 = vld [vmem:[#allocation4 + $0x2c8] sm:$0xff]
        %v1970 = vld [vmem:[#allocation4 + $0x2d0] sm:$0xff]
        %v1971 = vld [vmem:[#allocation4 + $0x2d8] sm:$0xff]
        %v1972 = vld [vmem:[#allocation4 + $0x2e0] sm:$0xff]
        %v1973 = vld [vmem:[#allocation4 + $0x2e8] sm:$0xff]
        %v1974 = vld [vmem:[#allocation4 + $0x2f0] sm:$0xff]
        %v1975 = vld [vmem:[#allocation4 + $0x2f8] sm:$0xff]
        %v1976 = vld [vmem:[#allocation4 + $0x300] sm:$0xff]
        %v1977 = vld [vmem:[#allocation4 + $0x308] sm:$0xff]
        %v1978 = vld [vmem:[#allocation4 + $0x310] sm:$0xff]
        %v1979 = vld [vmem:[#allocation4 + $0x318] sm:$0xff]
        %v1980 = vld [vmem:[#allocation4 + $0x320] sm:$0xff]
        %v1981 = vld [vmem:[#allocation4 + $0x328] sm:$0xff]
        %v1982 = vld [vmem:[#allocation4 + $0x330] sm:$0xff]
        %v1983 = vld [vmem:[#allocation4 + $0x338] sm:$0xff]
        %v1984 = vld [vmem:[#allocation4 + $0x340] sm:$0xff]
        %v1985 = vld [vmem:[#allocation4 + $0x348] sm:$0xff]
        %v1986 = vld [vmem:[#allocation4 + $0x350] sm:$0xff]
        %v1987 = vld [vmem:[#allocation4 + $0x358] sm:$0xff]
        %v1988 = vld [vmem:[#allocation4 + $0x360] sm:$0xff]
        %v1989 = vld [vmem:[#allocation4 + $0x368] sm:$0xff]
        %v1990 = vld [vmem:[#allocation4 + $0x370] sm:$0xff]
        %v1991 = vld [vmem:[#allocation4 + $0x378] sm:$0xff]
        %v1992 = vld [vmem:[#allocation4 + $0x380] sm:$0xff]
        %v1993 = vld [vmem:[#allocation4 + $0x388] sm:$0xff]
        %v1994 = vld [vmem:[#allocation4 + $0x390] sm:$0xff]
        %v1995 = vld [vmem:[#allocation4 + $0x398] sm:$0xff]
        %v1996 = vld [vmem:[#allocation4 + $0x3a0] sm:$0xff]
        %v1997 = vld [vmem:[#allocation4 + $0x3a8] sm:$0xff]
        %v1998 = vld [vmem:[#allocation4 + $0x3b0] sm:$0xff]
        %v1999 = vld [vmem:[#allocation4 + $0x3b8] sm:$0xff]
        %v2000 = vld [vmem:[#allocation4 + $0x3c0] sm:$0xff]
        %v2001 = vld [vmem:[#allocation4 + $0x3c8] sm:$0xff]
        %v2002 = vld [vmem:[#allocation4 + $0x3d0] sm:$0xff]
        %v2003 = vld [vmem:[#allocation4 + $0x3d8] sm:$0xff]
        %v2004 = vld [vmem:[#allocation4 + $0x3e0] sm:$0xff]
        %v2005 = vld [vmem:[#allocation4 + $0x3e8] sm:$0xff]
        %v2006 = vld [vmem:[#allocation4 + $0x3f0] sm:$0xff]
        %v2007 = vld [vmem:[#allocation4 + $0x3f8] sm:$0xff]
        %v2008 = vld [vmem:[#allocation4 + $0x400] sm:$0xff]
        %v2009 = vld [vmem:[#allocation4 + $0x408] sm:$0xff]
        %v2010 = vld [vmem:[#allocation4 + $0x410] sm:$0xff]
        %v2011 = vld [vmem:[#allocation4 + $0x418] sm:$0xff]
        %v2012 = vld [vmem:[#allocation4 + $0x420] sm:$0xff]
        %v2013 = vld [vmem:[#allocation4 + $0x428] sm:$0xff]
        %v2014 = vld [vmem:[#allocation4 + $0x430] sm:$0xff]
        %v2015 = vld [vmem:[#allocation4 + $0x438] sm:$0xff]
        %v2016 = vld [vmem:[#allocation4 + $0x440] sm:$0xff]
        %v2017 = vld [vmem:[#allocation4 + $0x448] sm:$0xff]
        %v2018 = vld [vmem:[#allocation4 + $0x450] sm:$0xff]
        %v2019 = vld [vmem:[#allocation4 + $0x458] sm:$0xff]
        %v2020 = vld [vmem:[#allocation4 + $0x460] sm:$0xff]
        %v2021 = vld [vmem:[#allocation4 + $0x468] sm:$0xff]
        %v2022 = vld [vmem:[#allocation4 + $0x470] sm:$0xff]
        %v2023 = vld [vmem:[#allocation4 + $0x478] sm:$0xff]
        %v2024 = vld [vmem:[#allocation4 + $0x480] sm:$0xff]
        %v2025 = vld [vmem:[#allocation4 + $0x488] sm:$0xff]
        %v2026 = vld [vmem:[#allocation4 + $0x490] sm:$0xff]
        %v2027 = vld [vmem:[#allocation4 + $0x498] sm:$0xff]
        %v2028 = vld [vmem:[#allocation4 + $0x4a0] sm:$0xff]
        %v2029 = vld [vmem:[#allocation4 + $0x4a8] sm:$0xff]
        %v2030 = vld [vmem:[#allocation4 + $0x4b0] sm:$0xff]
        %v2031 = vld [vmem:[#allocation4 + $0x4b8] sm:$0xff]
        %v2032 = vld [vmem:[#allocation4 + $0x4c0] sm:$0xff]
        %v2033 = vld [vmem:[#allocation4 + $0x4c8] sm:$0xff]
        %v2034 = vld [vmem:[#allocation4 + $0x4d0] sm:$0xff]
        %v2035 = vld [vmem:[#allocation4 + $0x4d8] sm:$0xff]
        %v2036 = vld [vmem:[#allocation4 + $0x4e0] sm:$0xff]
        %v2037 = vld [vmem:[#allocation4 + $0x4e8] sm:$0xff]
        %v2038 = vld [vmem:[#allocation4 + $0x4f0] sm:$0xff]
        %v2039 = vld [vmem:[#allocation4 + $0x4f8] sm:$0xff]
        %v2040 = vld [vmem:[#allocation4 + $0x500] sm:$0xff]
        %v2041 = vld [vmem:[#allocation4 + $0x508] sm:$0xff]
        %v2042 = vld [vmem:[#allocation4 + $0x510] sm:$0xff]
        %v2043 = vld [vmem:[#allocation4 + $0x518] sm:$0xff]
        %v2044 = vld [vmem:[#allocation4 + $0x520] sm:$0xff]
        %v2045 = vld [vmem:[#allocation4 + $0x528] sm:$0xff]
        %v2046 = vld [vmem:[#allocation4 + $0x530] sm:$0xff]
        %v2047 = vld [vmem:[#allocation4 + $0x538] sm:$0xff]
        %v2048 = vld [vmem:[#allocation4 + $0x540] sm:$0xff]
        %v2049 = vld [vmem:[#allocation4 + $0x548] sm:$0xff]
        %v2050 = vld [vmem:[#allocation4 + $0x550] sm:$0xff]
        %v2051 = vld [vmem:[#allocation4 + $0x558] sm:$0xff]
        %v2052 = vld [vmem:[#allocation4 + $0x560] sm:$0xff]
        %v2053 = vld [vmem:[#allocation4 + $0x568] sm:$0xff]
        %v2054 = vld [vmem:[#allocation4 + $0x570] sm:$0xff]
        %v2055 = vld [vmem:[#allocation4 + $0x578] sm:$0xff]
        %v2056 = vld [vmem:[#allocation4 + $0x580] sm:$0xff]
        %v2057 = vld [vmem:[#allocation4 + $0x588] sm:$0xff]
        %v2058 = vld [vmem:[#allocation4 + $0x590] sm:$0xff]
        %v2059 = vld [vmem:[#allocation4 + $0x598] sm:$0xff]
        %v2060 = vld [vmem:[#allocation4 + $0x5a0] sm:$0xff]
        %v2061 = vld [vmem:[#allocation4 + $0x5a8] sm:$0xff]
        %v2062 = vld [vmem:[#allocation4 + $0x5b0] sm:$0xff]
        %v2063 = vld [vmem:[#allocation4 + $0x5b8] sm:$0xff]
        %v2064 = vld [vmem:[#allocation4 + $0x5c0] sm:$0xff]
        %v2065 = vld [vmem:[#allocation4 + $0x5c8] sm:$0xff]
        %v2066 = vld [vmem:[#allocation4 + $0x5d0] sm:$0xff]
        %v2067 = vld [vmem:[#allocation4 + $0x5d8] sm:$0xff]
        %v2068 = vld [vmem:[#allocation4 + $0x5e0] sm:$0xff]
        %v2069 = vld [vmem:[#allocation4 + $0x5e8] sm:$0xff]
        %v2070 = vld [vmem:[#allocation4 + $0x5f0] sm:$0xff]
        %v2071 = vld [vmem:[#allocation4 + $0x5f8] sm:$0xff]
        %v2072 = vld [vmem:[#allocation4 + $0x600] sm:$0xff]
        %v2073 = vld [vmem:[#allocation4 + $0x608] sm:$0xff]
        %v2074 = vld [vmem:[#allocation4 + $0x610] sm:$0xff]
        %v2075 = vld [vmem:[#allocation4 + $0x618] sm:$0xff]
        %v2076 = vld [vmem:[#allocation4 + $0x620] sm:$0xff]
        %v2077 = vld [vmem:[#allocation4 + $0x628] sm:$0xff]
        %v2078 = vld [vmem:[#allocation4 + $0x630] sm:$0xff]
        %v2079 = vld [vmem:[#allocation4 + $0x638] sm:$0xff]
        %v2080 = vld [vmem:[#allocation4 + $0x640] sm:$0xff]
        %v2081 = vld [vmem:[#allocation4 + $0x648] sm:$0xff]
        %v2082 = vld [vmem:[#allocation4 + $0x650] sm:$0xff]
        %v2083 = vld [vmem:[#allocation4 + $0x658] sm:$0xff]
        %v2084 = vld [vmem:[#allocation4 + $0x660] sm:$0xff]
        %v2085 = vld [vmem:[#allocation4 + $0x668] sm:$0xff]
        %v2086 = vld [vmem:[#allocation4 + $0x670] sm:$0xff]
        %v2087 = vld [vmem:[#allocation4 + $0x678] sm:$0xff]
        %v2088 = vld [vmem:[#allocation4 + $0x680] sm:$0xff]
        %v2089 = vld [vmem:[#allocation4 + $0x688] sm:$0xff]
        %v2090 = vld [vmem:[#allocation4 + $0x690] sm:$0xff]
        %v2091 = vld [vmem:[#allocation4 + $0x698] sm:$0xff]
        %v2092 = vld [vmem:[#allocation4 + $0x6a0] sm:$0xff]
        %v2093 = vld [vmem:[#allocation4 + $0x6a8] sm:$0xff]
        %v2094 = vld [vmem:[#allocation4 + $0x6b0] sm:$0xff]
        %v2095 = vld [vmem:[#allocation4 + $0x6b8] sm:$0xff]
        %v2096 = vld [vmem:[#allocation4 + $0x6c0] sm:$0xff]
        %v2097 = vld [vmem:[#allocation4 + $0x6c8] sm:$0xff]
        %v2098 = vld [vmem:[#allocation4 + $0x6d0] sm:$0xff]
        %v2099 = vld [vmem:[#allocation4 + $0x6d8] sm:$0xff]
        %v2100 = vld [vmem:[#allocation4 + $0x6e0] sm:$0xff]
        %v2101 = vld [vmem:[#allocation4 + $0x6e8] sm:$0xff]
        %v2102 = vld [vmem:[#allocation4 + $0x6f0] sm:$0xff]
        %v2103 = vld [vmem:[#allocation4 + $0x6f8] sm:$0xff]
        %v2104 = vld [vmem:[#allocation4 + $0x700] sm:$0xff]
        %v2105 = vld [vmem:[#allocation4 + $0x708] sm:$0xff]
        %v2106 = vld [vmem:[#allocation4 + $0x710] sm:$0xff]
        %v2107 = vld [vmem:[#allocation4 + $0x718] sm:$0xff]
        %v2108 = vld [vmem:[#allocation4 + $0x720] sm:$0xff]
        %v2109 = vld [vmem:[#allocation4 + $0x728] sm:$0xff]
        %v2110 = vld [vmem:[#allocation4 + $0x730] sm:$0xff]
        %v2111 = vld [vmem:[#allocation4 + $0x738] sm:$0xff]
        %v2112 = vld [vmem:[#allocation4 + $0x740] sm:$0xff]
        %v2113 = vld [vmem:[#allocation4 + $0x748] sm:$0xff]
        %v2114 = vld [vmem:[#allocation4 + $0x750] sm:$0xff]
        %v2115 = vld [vmem:[#allocation4 + $0x758] sm:$0xff]
        %v2116 = vld [vmem:[#allocation4 + $0x760] sm:$0xff]
        %v2117 = vld [vmem:[#allocation4 + $0x768] sm:$0xff]
        %v2118 = vld [vmem:[#allocation4 + $0x770] sm:$0xff]
        %v2119 = vld [vmem:[#allocation4 + $0x778] sm:$0xff]
        %v2120 = vld [vmem:[#allocation4 + $0x780] sm:$0xff]
        %v2121 = vld [vmem:[#allocation4 + $0x788] sm:$0xff]
        %v2122 = vld [vmem:[#allocation4 + $0x790] sm:$0xff]
        %v2123 = vld [vmem:[#allocation4 + $0x798] sm:$0xff]
        %v2124 = vld [vmem:[#allocation4 + $0x7a0] sm:$0xff]
        %v2125 = vld [vmem:[#allocation4 + $0x7a8] sm:$0xff]
        %v2126 = vld [vmem:[#allocation4 + $0x7b0] sm:$0xff]
        %v2127 = vld [vmem:[#allocation4 + $0x7b8] sm:$0xff]
        %v2128 = vld [vmem:[#allocation4 + $0x7c0] sm:$0xff]
        %v2129 = vld [vmem:[#allocation4 + $0x7c8] sm:$0xff]
        %v2130 = vld [vmem:[#allocation4 + $0x7d0] sm:$0xff]
        %v2131 = vld [vmem:[#allocation4 + $0x7d8] sm:$0xff]
        %v2132 = vld [vmem:[#allocation4 + $0x7e0] sm:$0xff]
        %v2133 = vld [vmem:[#allocation4 + $0x7e8] sm:$0xff]
        %v2134 = vld [vmem:[#allocation4 + $0x7f0] sm:$0xff]
        %v2135 = vld [vmem:[#allocation4 + $0x7f8] sm:$0xff]
        %v2136 = vld [vmem:[%s17] sm:$0xff]
        %v2138 = vperm.slane %v2136, 0
        %v2139 = vperm.slane %v2136, 1
        %v2140 = vperm.slane %v2136, 2
        %v2141 = vperm.slane %v2136, 3
        %v2142 = vperm.slane %v2136, 4
        %v2143 = vperm.slane %v2136, 5
        %v2144 = vperm.slane %v2136, 6
        %v2145 = vperm.slane %v2136, 7
        %v2410 = vunpack.c.l.b16 %v1880
        %v2411 = vunpack.c.h.b16 %v1880
        %v2412 = vunpack.c.l.b16 %v1881
        %v2413 = vunpack.c.h.b16 %v1881
        %v2414 = vunpack.c.l.b16 %v1882
        %v2415 = vunpack.c.h.b16 %v1882
        %v2416 = vunpack.c.l.b16 %v1883
        %v2417 = vunpack.c.h.b16 %v1883
        %v2418 = vunpack.c.l.b16 %v1884
        %v2419 = vunpack.c.h.b16 %v1884
        %v2420 = vunpack.c.l.b16 %v1885
        %v2421 = vunpack.c.h.b16 %v1885
        %v2422 = vunpack.c.l.b16 %v1886
        %v2423 = vunpack.c.h.b16 %v1886
        %v2424 = vunpack.c.l.b16 %v1887
        %v2425 = vunpack.c.h.b16 %v1887
        %v2426 = vunpack.c.l.b16 %v1888
        %v2427 = vunpack.c.h.b16 %v1888
        %v2428 = vunpack.c.l.b16 %v1889
        %v2429 = vunpack.c.h.b16 %v1889
        %v2430 = vunpack.c.l.b16 %v1890
        %v2431 = vunpack.c.h.b16 %v1890
        %v2432 = vunpack.c.l.b16 %v1891
        %v2433 = vunpack.c.h.b16 %v1891
        %v2434 = vunpack.c.l.b16 %v1892
        %v2435 = vunpack.c.h.b16 %v1892
        %v2436 = vunpack.c.l.b16 %v1893
        %v2437 = vunpack.c.h.b16 %v1893
        %v2438 = vunpack.c.l.b16 %v1894
        %v2439 = vunpack.c.h.b16 %v1894
        %v2440 = vunpack.c.l.b16 %v1895
        %v2441 = vunpack.c.h.b16 %v1895
        %v2442 = vunpack.c.l.b16 %v1896
        %v2443 = vunpack.c.h.b16 %v1896
        %v2444 = vunpack.c.l.b16 %v1897
        %v2445 = vunpack.c.h.b16 %v1897
        %v2446 = vunpack.c.l.b16 %v1898
        %v2447 = vunpack.c.h.b16 %v1898
        %v2448 = vunpack.c.l.b16 %v1899
        %v2449 = vunpack.c.h.b16 %v1899
        %v2450 = vunpack.c.l.b16 %v1900
        %v2451 = vunpack.c.h.b16 %v1900
        %v2452 = vunpack.c.l.b16 %v1901
        %v2453 = vunpack.c.h.b16 %v1901
        %v2454 = vunpack.c.l.b16 %v1902
        %v2455 = vunpack.c.h.b16 %v1902
        %v2456 = vunpack.c.l.b16 %v1903
        %v2457 = vunpack.c.h.b16 %v1903
        %v2458 = vunpack.c.l.b16 %v1904
        %v2459 = vunpack.c.h.b16 %v1904
        %v2460 = vunpack.c.l.b16 %v1905
        %v2461 = vunpack.c.h.b16 %v1905
        %v2462 = vunpack.c.l.b16 %v1906
        %v2463 = vunpack.c.h.b16 %v1906
        %v2464 = vunpack.c.l.b16 %v1907
        %v2465 = vunpack.c.h.b16 %v1907
        %v2466 = vunpack.c.l.b16 %v1908
        %v2467 = vunpack.c.h.b16 %v1908
        %v2468 = vunpack.c.l.b16 %v1909
        %v2469 = vunpack.c.h.b16 %v1909
        %v2470 = vunpack.c.l.b16 %v1910
        %v2471 = vunpack.c.h.b16 %v1910
        %v2472 = vunpack.c.l.b16 %v1911
        %v2473 = vunpack.c.h.b16 %v1911
        %v2474 = vunpack.c.l.b16 %v1912
        %v2475 = vunpack.c.h.b16 %v1912
        %v2476 = vunpack.c.l.b16 %v1913
        %v2477 = vunpack.c.h.b16 %v1913
        %v2478 = vunpack.c.l.b16 %v1914
        %v2479 = vunpack.c.h.b16 %v1914
        %v2480 = vunpack.c.l.b16 %v1915
        %v2481 = vunpack.c.h.b16 %v1915
        %v2482 = vunpack.c.l.b16 %v1916
        %v2483 = vunpack.c.h.b16 %v1916
        %v2484 = vunpack.c.l.b16 %v1917
        %v2485 = vunpack.c.h.b16 %v1917
        %v2486 = vunpack.c.l.b16 %v1918
        %v2487 = vunpack.c.h.b16 %v1918
        %v2488 = vunpack.c.l.b16 %v1919
        %v2489 = vunpack.c.h.b16 %v1919
        %v2490 = vunpack.c.l.b16 %v1920
        %v2491 = vunpack.c.h.b16 %v1920
        %v2492 = vunpack.c.l.b16 %v1921
        %v2493 = vunpack.c.h.b16 %v1921
        %v2494 = vunpack.c.l.b16 %v1922
        %v2495 = vunpack.c.h.b16 %v1922
        %v2496 = vunpack.c.l.b16 %v1923
        %v2497 = vunpack.c.h.b16 %v1923
        %v2498 = vunpack.c.l.b16 %v1924
        %v2499 = vunpack.c.h.b16 %v1924
        %v2500 = vunpack.c.l.b16 %v1925
        %v2501 = vunpack.c.h.b16 %v1925
        %v2502 = vunpack.c.l.b16 %v1926
        %v2503 = vunpack.c.h.b16 %v1926
        %v2504 = vunpack.c.l.b16 %v1927
        %v2505 = vunpack.c.h.b16 %v1927
        %v2506 = vunpack.c.l.b16 %v1928
        %v2507 = vunpack.c.h.b16 %v1928
        %v2508 = vunpack.c.l.b16 %v1929
        %v2509 = vunpack.c.h.b16 %v1929
        %v2510 = vunpack.c.l.b16 %v1930
        %v2511 = vunpack.c.h.b16 %v1930
        %v2512 = vunpack.c.l.b16 %v1931
        %v2513 = vunpack.c.h.b16 %v1931
        %v2514 = vunpack.c.l.b16 %v1932
        %v2515 = vunpack.c.h.b16 %v1932
        %v2516 = vunpack.c.l.b16 %v1933
        %v2517 = vunpack.c.h.b16 %v1933
        %v2518 = vunpack.c.l.b16 %v1934
        %v2519 = vunpack.c.h.b16 %v1934
        %v2520 = vunpack.c.l.b16 %v1935
        %v2521 = vunpack.c.h.b16 %v1935
        %v2522 = vunpack.c.l.b16 %v1936
        %v2523 = vunpack.c.h.b16 %v1936
        %v2524 = vunpack.c.l.b16 %v1937
        %v2525 = vunpack.c.h.b16 %v1937
        %v2526 = vunpack.c.l.b16 %v1938
        %v2527 = vunpack.c.h.b16 %v1938
        %v2528 = vunpack.c.l.b16 %v1939
        %v2529 = vunpack.c.h.b16 %v1939
        %v2530 = vunpack.c.l.b16 %v1940
        %v2531 = vunpack.c.h.b16 %v1940
        %v2532 = vunpack.c.l.b16 %v1941
        %v2533 = vunpack.c.h.b16 %v1941
        %v2534 = vunpack.c.l.b16 %v1942
        %v2535 = vunpack.c.h.b16 %v1942
        %v2536 = vunpack.c.l.b16 %v1943
        %v2537 = vunpack.c.h.b16 %v1943
        %v2538 = vunpack.c.l.b16 %v1944
        %v2539 = vunpack.c.h.b16 %v1944
        %v2540 = vunpack.c.l.b16 %v1945
        %v2541 = vunpack.c.h.b16 %v1945
        %v2542 = vunpack.c.l.b16 %v1946
        %v2543 = vunpack.c.h.b16 %v1946
        %v2544 = vunpack.c.l.b16 %v1947
        %v2545 = vunpack.c.h.b16 %v1947
        %v2546 = vunpack.c.l.b16 %v1948
        %v2547 = vunpack.c.h.b16 %v1948
        %v2548 = vunpack.c.l.b16 %v1949
        %v2549 = vunpack.c.h.b16 %v1949
        %v2550 = vunpack.c.l.b16 %v1950
        %v2551 = vunpack.c.h.b16 %v1950
        %v2552 = vunpack.c.l.b16 %v1951
        %v2553 = vunpack.c.h.b16 %v1951
        %v2554 = vunpack.c.l.b16 %v1952
        %v2555 = vunpack.c.h.b16 %v1952
        %v2556 = vunpack.c.l.b16 %v1953
        %v2557 = vunpack.c.h.b16 %v1953
        %v2558 = vunpack.c.l.b16 %v1954
        %v2559 = vunpack.c.h.b16 %v1954
        %v2560 = vunpack.c.l.b16 %v1955
        %v2561 = vunpack.c.h.b16 %v1955
        %v2562 = vunpack.c.l.b16 %v1956
        %v2563 = vunpack.c.h.b16 %v1956
        %v2564 = vunpack.c.l.b16 %v1957
        %v2565 = vunpack.c.h.b16 %v1957
        %v2566 = vunpack.c.l.b16 %v1958
        %v2567 = vunpack.c.h.b16 %v1958
        %v2568 = vunpack.c.l.b16 %v1959
        %v2569 = vunpack.c.h.b16 %v1959
        %v2570 = vunpack.c.l.b16 %v1960
        %v2571 = vunpack.c.h.b16 %v1960
        %v2572 = vunpack.c.l.b16 %v1961
        %v2573 = vunpack.c.h.b16 %v1961
        %v2574 = vunpack.c.l.b16 %v1962
        %v2575 = vunpack.c.h.b16 %v1962
        %v2576 = vunpack.c.l.b16 %v1963
        %v2577 = vunpack.c.h.b16 %v1963
        %v2578 = vunpack.c.l.b16 %v1964
        %v2579 = vunpack.c.h.b16 %v1964
        %v2580 = vunpack.c.l.b16 %v1965
        %v2581 = vunpack.c.h.b16 %v1965
        %v2582 = vunpack.c.l.b16 %v1966
        %v2583 = vunpack.c.h.b16 %v1966
        %v2584 = vunpack.c.l.b16 %v1967
        %v2585 = vunpack.c.h.b16 %v1967
        %v2586 = vunpack.c.l.b16 %v1968
        %v2587 = vunpack.c.h.b16 %v1968
        %v2588 = vunpack.c.l.b16 %v1969
        %v2589 = vunpack.c.h.b16 %v1969
        %v2590 = vunpack.c.l.b16 %v1970
        %v2591 = vunpack.c.h.b16 %v1970
        %v2592 = vunpack.c.l.b16 %v1971
        %v2593 = vunpack.c.h.b16 %v1971
        %v2594 = vunpack.c.l.b16 %v1972
        %v2595 = vunpack.c.h.b16 %v1972
        %v2596 = vunpack.c.l.b16 %v1973
        %v2597 = vunpack.c.h.b16 %v1973
        %v2598 = vunpack.c.l.b16 %v1974
        %v2599 = vunpack.c.h.b16 %v1974
        %v2600 = vunpack.c.l.b16 %v1975
        %v2601 = vunpack.c.h.b16 %v1975
        %v2602 = vunpack.c.l.b16 %v1976
        %v2603 = vunpack.c.h.b16 %v1976
        %v2604 = vunpack.c.l.b16 %v1977
        %v2605 = vunpack.c.h.b16 %v1977
        %v2606 = vunpack.c.l.b16 %v1978
        %v2607 = vunpack.c.h.b16 %v1978
        %v2608 = vunpack.c.l.b16 %v1979
        %v2609 = vunpack.c.h.b16 %v1979
        %v2610 = vunpack.c.l.b16 %v1980
        %v2611 = vunpack.c.h.b16 %v1980
        %v2612 = vunpack.c.l.b16 %v1981
        %v2613 = vunpack.c.h.b16 %v1981
        %v2614 = vunpack.c.l.b16 %v1982
        %v2615 = vunpack.c.h.b16 %v1982
        %v2616 = vunpack.c.l.b16 %v1983
        %v2617 = vunpack.c.h.b16 %v1983
        %v2618 = vunpack.c.l.b16 %v1984
        %v2619 = vunpack.c.h.b16 %v1984
        %v2620 = vunpack.c.l.b16 %v1985
        %v2621 = vunpack.c.h.b16 %v1985
        %v2622 = vunpack.c.l.b16 %v1986
        %v2623 = vunpack.c.h.b16 %v1986
        %v2624 = vunpack.c.l.b16 %v1987
        %v2625 = vunpack.c.h.b16 %v1987
        %v2626 = vunpack.c.l.b16 %v1988
        %v2627 = vunpack.c.h.b16 %v1988
        %v2628 = vunpack.c.l.b16 %v1989
        %v2629 = vunpack.c.h.b16 %v1989
        %v2630 = vunpack.c.l.b16 %v1990
        %v2631 = vunpack.c.h.b16 %v1990
        %v2632 = vunpack.c.l.b16 %v1991
        %v2633 = vunpack.c.h.b16 %v1991
        %v2634 = vunpack.c.l.b16 %v1992
        %v2635 = vunpack.c.h.b16 %v1992
        %v2636 = vunpack.c.l.b16 %v1993
        %v2637 = vunpack.c.h.b16 %v1993
        %v2638 = vunpack.c.l.b16 %v1994
        %v2639 = vunpack.c.h.b16 %v1994
        %v2640 = vunpack.c.l.b16 %v1995
        %v2641 = vunpack.c.h.b16 %v1995
        %v2642 = vunpack.c.l.b16 %v1996
        %v2643 = vunpack.c.h.b16 %v1996
        %v2644 = vunpack.c.l.b16 %v1997
        %v2645 = vunpack.c.h.b16 %v1997
        %v2646 = vunpack.c.l.b16 %v1998
        %v2647 = vunpack.c.h.b16 %v1998
        %v2648 = vunpack.c.l.b16 %v1999
        %v2649 = vunpack.c.h.b16 %v1999
        %v2650 = vunpack.c.l.b16 %v2000
        %v2651 = vunpack.c.h.b16 %v2000
        %v2652 = vunpack.c.l.b16 %v2001
        %v2653 = vunpack.c.h.b16 %v2001
        %v2654 = vunpack.c.l.b16 %v2002
        %v2655 = vunpack.c.h.b16 %v2002
        %v2656 = vunpack.c.l.b16 %v2003
        %v2657 = vunpack.c.h.b16 %v2003
        %v2658 = vunpack.c.l.b16 %v2004
        %v2659 = vunpack.c.h.b16 %v2004
        %v2660 = vunpack.c.l.b16 %v2005
        %v2661 = vunpack.c.h.b16 %v2005
        %v2662 = vunpack.c.l.b16 %v2006
        %v2663 = vunpack.c.h.b16 %v2006
        %v2664 = vunpack.c.l.b16 %v2007
        %v2665 = vunpack.c.h.b16 %v2007
        %v2666 = vunpack.c.l.b16 %v2008
        %v2667 = vunpack.c.h.b16 %v2008
        %v2668 = vunpack.c.l.b16 %v2009
        %v2669 = vunpack.c.h.b16 %v2009
        %v2670 = vunpack.c.l.b16 %v2010
        %v2671 = vunpack.c.h.b16 %v2010
        %v2672 = vunpack.c.l.b16 %v2011
        %v2673 = vunpack.c.h.b16 %v2011
        %v2674 = vunpack.c.l.b16 %v2012
        %v2675 = vunpack.c.h.b16 %v2012
        %v2676 = vunpack.c.l.b16 %v2013
        %v2677 = vunpack.c.h.b16 %v2013
        %v2678 = vunpack.c.l.b16 %v2014
        %v2679 = vunpack.c.h.b16 %v2014
        %v2680 = vunpack.c.l.b16 %v2015
        %v2681 = vunpack.c.h.b16 %v2015
        %v2682 = vunpack.c.l.b16 %v2016
        %v2683 = vunpack.c.h.b16 %v2016
        %v2684 = vunpack.c.l.b16 %v2017
        %v2685 = vunpack.c.h.b16 %v2017
        %v2686 = vunpack.c.l.b16 %v2018
        %v2687 = vunpack.c.h.b16 %v2018
        %v2688 = vunpack.c.l.b16 %v2019
        %v2689 = vunpack.c.h.b16 %v2019
        %v2690 = vunpack.c.l.b16 %v2020
        %v2691 = vunpack.c.h.b16 %v2020
        %v2692 = vunpack.c.l.b16 %v2021
        %v2693 = vunpack.c.h.b16 %v2021
        %v2694 = vunpack.c.l.b16 %v2022
        %v2695 = vunpack.c.h.b16 %v2022
        %v2696 = vunpack.c.l.b16 %v2023
        %v2697 = vunpack.c.h.b16 %v2023
        %v2698 = vunpack.c.l.b16 %v2024
        %v2699 = vunpack.c.h.b16 %v2024
        %v2700 = vunpack.c.l.b16 %v2025
        %v2701 = vunpack.c.h.b16 %v2025
        %v2702 = vunpack.c.l.b16 %v2026
        %v2703 = vunpack.c.h.b16 %v2026
        %v2704 = vunpack.c.l.b16 %v2027
        %v2705 = vunpack.c.h.b16 %v2027
        %v2706 = vunpack.c.l.b16 %v2028
        %v2707 = vunpack.c.h.b16 %v2028
        %v2708 = vunpack.c.l.b16 %v2029
        %v2709 = vunpack.c.h.b16 %v2029
        %v2710 = vunpack.c.l.b16 %v2030
        %v2711 = vunpack.c.h.b16 %v2030
        %v2712 = vunpack.c.l.b16 %v2031
        %v2713 = vunpack.c.h.b16 %v2031
        %v2714 = vunpack.c.l.b16 %v2032
        %v2715 = vunpack.c.h.b16 %v2032
        %v2716 = vunpack.c.l.b16 %v2033
        %v2717 = vunpack.c.h.b16 %v2033
        %v2718 = vunpack.c.l.b16 %v2034
        %v2719 = vunpack.c.h.b16 %v2034
        %v2720 = vunpack.c.l.b16 %v2035
        %v2721 = vunpack.c.h.b16 %v2035
        %v2722 = vunpack.c.l.b16 %v2036
        %v2723 = vunpack.c.h.b16 %v2036
        %v2724 = vunpack.c.l.b16 %v2037
        %v2725 = vunpack.c.h.b16 %v2037
        %v2726 = vunpack.c.l.b16 %v2038
        %v2727 = vunpack.c.h.b16 %v2038
        %v2728 = vunpack.c.l.b16 %v2039
        %v2729 = vunpack.c.h.b16 %v2039
        %v2730 = vunpack.c.l.b16 %v2040
        %v2731 = vunpack.c.h.b16 %v2040
        %v2732 = vunpack.c.l.b16 %v2041
        %v2733 = vunpack.c.h.b16 %v2041
        %v2734 = vunpack.c.l.b16 %v2042
        %v2735 = vunpack.c.h.b16 %v2042
        %v2736 = vunpack.c.l.b16 %v2043
        %v2737 = vunpack.c.h.b16 %v2043
        %v2738 = vunpack.c.l.b16 %v2044
        %v2739 = vunpack.c.h.b16 %v2044
        %v2740 = vunpack.c.l.b16 %v2045
        %v2741 = vunpack.c.h.b16 %v2045
        %v2742 = vunpack.c.l.b16 %v2046
        %v2743 = vunpack.c.h.b16 %v2046
        %v2744 = vunpack.c.l.b16 %v2047
        %v2745 = vunpack.c.h.b16 %v2047
        %v2746 = vunpack.c.l.b16 %v2048
        %v2747 = vunpack.c.h.b16 %v2048
        %v2748 = vunpack.c.l.b16 %v2049
        %v2749 = vunpack.c.h.b16 %v2049
        %v2750 = vunpack.c.l.b16 %v2050
        %v2751 = vunpack.c.h.b16 %v2050
        %v2752 = vunpack.c.l.b16 %v2051
        %v2753 = vunpack.c.h.b16 %v2051
        %v2754 = vunpack.c.l.b16 %v2052
        %v2755 = vunpack.c.h.b16 %v2052
        %v2756 = vunpack.c.l.b16 %v2053
        %v2757 = vunpack.c.h.b16 %v2053
        %v2758 = vunpack.c.l.b16 %v2054
        %v2759 = vunpack.c.h.b16 %v2054
        %v2760 = vunpack.c.l.b16 %v2055
        %v2761 = vunpack.c.h.b16 %v2055
        %v2762 = vunpack.c.l.b16 %v2056
        %v2763 = vunpack.c.h.b16 %v2056
        %v2764 = vunpack.c.l.b16 %v2057
        %v2765 = vunpack.c.h.b16 %v2057
        %v2766 = vunpack.c.l.b16 %v2058
        %v2767 = vunpack.c.h.b16 %v2058
        %v2768 = vunpack.c.l.b16 %v2059
        %v2769 = vunpack.c.h.b16 %v2059
        %v2770 = vunpack.c.l.b16 %v2060
        %v2771 = vunpack.c.h.b16 %v2060
        %v2772 = vunpack.c.l.b16 %v2061
        %v2773 = vunpack.c.h.b16 %v2061
        %v2774 = vunpack.c.l.b16 %v2062
        %v2775 = vunpack.c.h.b16 %v2062
        %v2776 = vunpack.c.l.b16 %v2063
        %v2777 = vunpack.c.h.b16 %v2063
        %v2778 = vunpack.c.l.b16 %v2064
        %v2779 = vunpack.c.h.b16 %v2064
        %v2780 = vunpack.c.l.b16 %v2065
        %v2781 = vunpack.c.h.b16 %v2065
        %v2782 = vunpack.c.l.b16 %v2066
        %v2783 = vunpack.c.h.b16 %v2066
        %v2784 = vunpack.c.l.b16 %v2067
        %v2785 = vunpack.c.h.b16 %v2067
        %v2786 = vunpack.c.l.b16 %v2068
        %v2787 = vunpack.c.h.b16 %v2068
        %v2788 = vunpack.c.l.b16 %v2069
        %v2789 = vunpack.c.h.b16 %v2069
        %v2790 = vunpack.c.l.b16 %v2070
        %v2791 = vunpack.c.h.b16 %v2070
        %v2792 = vunpack.c.l.b16 %v2071
        %v2793 = vunpack.c.h.b16 %v2071
        %v2794 = vunpack.c.l.b16 %v2072
        %v2795 = vunpack.c.h.b16 %v2072
        %v2796 = vunpack.c.l.b16 %v2073
        %v2797 = vunpack.c.h.b16 %v2073
        %v2798 = vunpack.c.l.b16 %v2074
        %v2799 = vunpack.c.h.b16 %v2074
        %v2800 = vunpack.c.l.b16 %v2075
        %v2801 = vunpack.c.h.b16 %v2075
        %v2802 = vunpack.c.l.b16 %v2076
        %v2803 = vunpack.c.h.b16 %v2076
        %v2804 = vunpack.c.l.b16 %v2077
        %v2805 = vunpack.c.h.b16 %v2077
        %v2806 = vunpack.c.l.b16 %v2078
        %v2807 = vunpack.c.h.b16 %v2078
        %v2808 = vunpack.c.l.b16 %v2079
        %v2809 = vunpack.c.h.b16 %v2079
        %v2810 = vunpack.c.l.b16 %v2080
        %v2811 = vunpack.c.h.b16 %v2080
        %v2812 = vunpack.c.l.b16 %v2081
        %v2813 = vunpack.c.h.b16 %v2081
        %v2814 = vunpack.c.l.b16 %v2082
        %v2815 = vunpack.c.h.b16 %v2082
        %v2816 = vunpack.c.l.b16 %v2083
        %v2817 = vunpack.c.h.b16 %v2083
        %v2818 = vunpack.c.l.b16 %v2084
        %v2819 = vunpack.c.h.b16 %v2084
        %v2820 = vunpack.c.l.b16 %v2085
        %v2821 = vunpack.c.h.b16 %v2085
        %v2822 = vunpack.c.l.b16 %v2086
        %v2823 = vunpack.c.h.b16 %v2086
        %v2824 = vunpack.c.l.b16 %v2087
        %v2825 = vunpack.c.h.b16 %v2087
        %v2826 = vunpack.c.l.b16 %v2088
        %v2827 = vunpack.c.h.b16 %v2088
        %v2828 = vunpack.c.l.b16 %v2089
        %v2829 = vunpack.c.h.b16 %v2089
        %v2830 = vunpack.c.l.b16 %v2090
        %v2831 = vunpack.c.h.b16 %v2090
        %v2832 = vunpack.c.l.b16 %v2091
        %v2833 = vunpack.c.h.b16 %v2091
        %v2834 = vunpack.c.l.b16 %v2092
        %v2835 = vunpack.c.h.b16 %v2092
        %v2836 = vunpack.c.l.b16 %v2093
        %v2837 = vunpack.c.h.b16 %v2093
        %v2838 = vunpack.c.l.b16 %v2094
        %v2839 = vunpack.c.h.b16 %v2094
        %v2840 = vunpack.c.l.b16 %v2095
        %v2841 = vunpack.c.h.b16 %v2095
        %v2842 = vunpack.c.l.b16 %v2096
        %v2843 = vunpack.c.h.b16 %v2096
        %v2844 = vunpack.c.l.b16 %v2097
        %v2845 = vunpack.c.h.b16 %v2097
        %v2846 = vunpack.c.l.b16 %v2098
        %v2847 = vunpack.c.h.b16 %v2098
        %v2848 = vunpack.c.l.b16 %v2099
        %v2849 = vunpack.c.h.b16 %v2099
        %v2850 = vunpack.c.l.b16 %v2100
        %v2851 = vunpack.c.h.b16 %v2100
        %v2852 = vunpack.c.l.b16 %v2101
        %v2853 = vunpack.c.h.b16 %v2101
        %v2854 = vunpack.c.l.b16 %v2102
        %v2855 = vunpack.c.h.b16 %v2102
        %v2856 = vunpack.c.l.b16 %v2103
        %v2857 = vunpack.c.h.b16 %v2103
        %v2858 = vunpack.c.l.b16 %v2104
        %v2859 = vunpack.c.h.b16 %v2104
        %v2860 = vunpack.c.l.b16 %v2105
        %v2861 = vunpack.c.h.b16 %v2105
        %v2862 = vunpack.c.l.b16 %v2106
        %v2863 = vunpack.c.h.b16 %v2106
        %v2864 = vunpack.c.l.b16 %v2107
        %v2865 = vunpack.c.h.b16 %v2107
        %v2866 = vunpack.c.l.b16 %v2108
        %v2867 = vunpack.c.h.b16 %v2108
        %v2868 = vunpack.c.l.b16 %v2109
        %v2869 = vunpack.c.h.b16 %v2109
        %v2870 = vunpack.c.l.b16 %v2110
        %v2871 = vunpack.c.h.b16 %v2110
        %v2872 = vunpack.c.l.b16 %v2111
        %v2873 = vunpack.c.h.b16 %v2111
        %v2874 = vunpack.c.l.b16 %v2112
        %v2875 = vunpack.c.h.b16 %v2112
        %v2876 = vunpack.c.l.b16 %v2113
        %v2877 = vunpack.c.h.b16 %v2113
        %v2878 = vunpack.c.l.b16 %v2114
        %v2879 = vunpack.c.h.b16 %v2114
        %v2880 = vunpack.c.l.b16 %v2115
        %v2881 = vunpack.c.h.b16 %v2115
        %v2882 = vunpack.c.l.b16 %v2116
        %v2883 = vunpack.c.h.b16 %v2116
        %v2884 = vunpack.c.l.b16 %v2117
        %v2885 = vunpack.c.h.b16 %v2117
        %v2886 = vunpack.c.l.b16 %v2118
        %v2887 = vunpack.c.h.b16 %v2118
        %v2888 = vunpack.c.l.b16 %v2119
        %v2889 = vunpack.c.h.b16 %v2119
        %v2890 = vunpack.c.l.b16 %v2120
        %v2891 = vunpack.c.h.b16 %v2120
        %v2892 = vunpack.c.l.b16 %v2121
        %v2893 = vunpack.c.h.b16 %v2121
        %v2894 = vunpack.c.l.b16 %v2122
        %v2895 = vunpack.c.h.b16 %v2122
        %v2896 = vunpack.c.l.b16 %v2123
        %v2897 = vunpack.c.h.b16 %v2123
        %v2898 = vunpack.c.l.b16 %v2124
        %v2899 = vunpack.c.h.b16 %v2124
        %v2900 = vunpack.c.l.b16 %v2125
        %v2901 = vunpack.c.h.b16 %v2125
        %v2902 = vunpack.c.l.b16 %v2126
        %v2903 = vunpack.c.h.b16 %v2126
        %v2904 = vunpack.c.l.b16 %v2127
        %v2905 = vunpack.c.h.b16 %v2127
        %v2906 = vunpack.c.l.b16 %v2128
        %v2907 = vunpack.c.h.b16 %v2128
        %v2908 = vunpack.c.l.b16 %v2129
        %v2909 = vunpack.c.h.b16 %v2129
        %v2910 = vunpack.c.l.b16 %v2130
        %v2911 = vunpack.c.h.b16 %v2130
        %v2912 = vunpack.c.l.b16 %v2131
        %v2913 = vunpack.c.h.b16 %v2131
        %v2914 = vunpack.c.l.b16 %v2132
        %v2915 = vunpack.c.h.b16 %v2132
        %v2916 = vunpack.c.l.b16 %v2133
        %v2917 = vunpack.c.h.b16 %v2133
        %v2918 = vunpack.c.l.b16 %v2134
        %v2919 = vunpack.c.h.b16 %v2134
        %v2920 = vunpack.c.l.b16 %v2135
        %v2921 = vunpack.c.h.b16 %v2135
        %v2922 = vpack.c.b16 %v2418, %v2410
        %v2923 = vpack.c.b16 %v2419, %v2411
        %v2924 = vpack.c.b16 %v2420, %v2412
        %v2925 = vpack.c.b16 %v2421, %v2413
        %v2926 = vpack.c.b16 %v2422, %v2414
        %v2927 = vpack.c.b16 %v2423, %v2415
        %v2928 = vpack.c.b16 %v2424, %v2416
        %v2929 = vpack.c.b16 %v2425, %v2417
        %v2930 = vpack.c.b16 %v2434, %v2426
        %v2931 = vpack.c.b16 %v2435, %v2427
        %v2932 = vpack.c.b16 %v2436, %v2428
        %v2933 = vpack.c.b16 %v2437, %v2429
        %v2934 = vpack.c.b16 %v2438, %v2430
        %v2935 = vpack.c.b16 %v2439, %v2431
        %v2936 = vpack.c.b16 %v2440, %v2432
        %v2937 = vpack.c.b16 %v2441, %v2433
        %v2938 = vpack.c.b16 %v2450, %v2442
        %v2939 = vpack.c.b16 %v2451, %v2443
        %v2940 = vpack.c.b16 %v2452, %v2444
        %v2941 = vpack.c.b16 %v2453, %v2445
        %v2942 = vpack.c.b16 %v2454, %v2446
        %v2943 = vpack.c.b16 %v2455, %v2447
        %v2944 = vpack.c.b16 %v2456, %v2448
        %v2945 = vpack.c.b16 %v2457, %v2449
        %v2946 = vpack.c.b16 %v2466, %v2458
        %v2947 = vpack.c.b16 %v2467, %v2459
        %v2948 = vpack.c.b16 %v2468, %v2460
        %v2949 = vpack.c.b16 %v2469, %v2461
        %v2950 = vpack.c.b16 %v2470, %v2462
        %v2951 = vpack.c.b16 %v2471, %v2463
        %v2952 = vpack.c.b16 %v2472, %v2464
        %v2953 = vpack.c.b16 %v2473, %v2465
        %v2954 = vpack.c.b16 %v2482, %v2474
        %v2955 = vpack.c.b16 %v2483, %v2475
        %v2956 = vpack.c.b16 %v2484, %v2476
        %v2957 = vpack.c.b16 %v2485, %v2477
        %v2958 = vpack.c.b16 %v2486, %v2478
        %v2959 = vpack.c.b16 %v2487, %v2479
        %v2960 = vpack.c.b16 %v2488, %v2480
        %v2961 = vpack.c.b16 %v2489, %v2481
        %v2962 = vpack.c.b16 %v2498, %v2490
        %v2963 = vpack.c.b16 %v2499, %v2491
        %v2964 = vpack.c.b16 %v2500, %v2492
        %v2965 = vpack.c.b16 %v2501, %v2493
        %v2966 = vpack.c.b16 %v2502, %v2494
        %v2967 = vpack.c.b16 %v2503, %v2495
        %v2968 = vpack.c.b16 %v2504, %v2496
        %v2969 = vpack.c.b16 %v2505, %v2497
        %v2970 = vpack.c.b16 %v2514, %v2506
        %v2971 = vpack.c.b16 %v2515, %v2507
        %v2972 = vpack.c.b16 %v2516, %v2508
        %v2973 = vpack.c.b16 %v2517, %v2509
        %v2974 = vpack.c.b16 %v2518, %v2510
        %v2975 = vpack.c.b16 %v2519, %v2511
        %v2976 = vpack.c.b16 %v2520, %v2512
        %v2977 = vpack.c.b16 %v2521, %v2513
        %v2978 = vpack.c.b16 %v2530, %v2522
        %v2979 = vpack.c.b16 %v2531, %v2523
        %v2980 = vpack.c.b16 %v2532, %v2524
        %v2981 = vpack.c.b16 %v2533, %v2525
        %v2982 = vpack.c.b16 %v2534, %v2526
        %v2983 = vpack.c.b16 %v2535, %v2527
        %v2984 = vpack.c.b16 %v2536, %v2528
        %v2985 = vpack.c.b16 %v2537, %v2529
        %v2986 = vpack.c.b16 %v2546, %v2538
        %v2987 = vpack.c.b16 %v2547, %v2539
        %v2988 = vpack.c.b16 %v2548, %v2540
        %v2989 = vpack.c.b16 %v2549, %v2541
        %v2990 = vpack.c.b16 %v2550, %v2542
        %v2991 = vpack.c.b16 %v2551, %v2543
        %v2992 = vpack.c.b16 %v2552, %v2544
        %v2993 = vpack.c.b16 %v2553, %v2545
        %v2994 = vpack.c.b16 %v2562, %v2554
        %v2995 = vpack.c.b16 %v2563, %v2555
        %v2996 = vpack.c.b16 %v2564, %v2556
        %v2997 = vpack.c.b16 %v2565, %v2557
        %v2998 = vpack.c.b16 %v2566, %v2558
        %v2999 = vpack.c.b16 %v2567, %v2559
        %v3000 = vpack.c.b16 %v2568, %v2560
        %v3001 = vpack.c.b16 %v2569, %v2561
        %v3002 = vpack.c.b16 %v2578, %v2570
        %v3003 = vpack.c.b16 %v2579, %v2571
        %v3004 = vpack.c.b16 %v2580, %v2572
        %v3005 = vpack.c.b16 %v2581, %v2573
        %v3006 = vpack.c.b16 %v2582, %v2574
        %v3007 = vpack.c.b16 %v2583, %v2575
        %v3008 = vpack.c.b16 %v2584, %v2576
        %v3009 = vpack.c.b16 %v2585, %v2577
        %v3010 = vpack.c.b16 %v2594, %v2586
        %v3011 = vpack.c.b16 %v2595, %v2587
        %v3012 = vpack.c.b16 %v2596, %v2588
        %v3013 = vpack.c.b16 %v2597, %v2589
        %v3014 = vpack.c.b16 %v2598, %v2590
        %v3015 = vpack.c.b16 %v2599, %v2591
        %v3016 = vpack.c.b16 %v2600, %v2592
        %v3017 = vpack.c.b16 %v2601, %v2593
        %v3018 = vpack.c.b16 %v2610, %v2602
        %v3019 = vpack.c.b16 %v2611, %v2603
        %v3020 = vpack.c.b16 %v2612, %v2604
        %v3021 = vpack.c.b16 %v2613, %v2605
        %v3022 = vpack.c.b16 %v2614, %v2606
        %v3023 = vpack.c.b16 %v2615, %v2607
        %v3024 = vpack.c.b16 %v2616, %v2608
        %v3025 = vpack.c.b16 %v2617, %v2609
        %v3026 = vpack.c.b16 %v2626, %v2618
        %v3027 = vpack.c.b16 %v2627, %v2619
        %v3028 = vpack.c.b16 %v2628, %v2620
        %v3029 = vpack.c.b16 %v2629, %v2621
        %v3030 = vpack.c.b16 %v2630, %v2622
        %v3031 = vpack.c.b16 %v2631, %v2623
        %v3032 = vpack.c.b16 %v2632, %v2624
        %v3033 = vpack.c.b16 %v2633, %v2625
        %v3034 = vpack.c.b16 %v2642, %v2634
        %v3035 = vpack.c.b16 %v2643, %v2635
        %v3036 = vpack.c.b16 %v2644, %v2636
        %v3037 = vpack.c.b16 %v2645, %v2637
        %v3038 = vpack.c.b16 %v2646, %v2638
        %v3039 = vpack.c.b16 %v2647, %v2639
        %v3040 = vpack.c.b16 %v2648, %v2640
        %v3041 = vpack.c.b16 %v2649, %v2641
        %v3042 = vpack.c.b16 %v2658, %v2650
        %v3043 = vpack.c.b16 %v2659, %v2651
        %v3044 = vpack.c.b16 %v2660, %v2652
        %v3045 = vpack.c.b16 %v2661, %v2653
        %v3046 = vpack.c.b16 %v2662, %v2654
        %v3047 = vpack.c.b16 %v2663, %v2655
        %v3048 = vpack.c.b16 %v2664, %v2656
        %v3049 = vpack.c.b16 %v2665, %v2657
        %v3050 = vpack.c.b16 %v2674, %v2666
        %v3051 = vpack.c.b16 %v2675, %v2667
        %v3052 = vpack.c.b16 %v2676, %v2668
        %v3053 = vpack.c.b16 %v2677, %v2669
        %v3054 = vpack.c.b16 %v2678, %v2670
        %v3055 = vpack.c.b16 %v2679, %v2671
        %v3056 = vpack.c.b16 %v2680, %v2672
        %v3057 = vpack.c.b16 %v2681, %v2673
        %v3058 = vpack.c.b16 %v2690, %v2682
        %v3059 = vpack.c.b16 %v2691, %v2683
        %v3060 = vpack.c.b16 %v2692, %v2684
        %v3061 = vpack.c.b16 %v2693, %v2685
        %v3062 = vpack.c.b16 %v2694, %v2686
        %v3063 = vpack.c.b16 %v2695, %v2687
        %v3064 = vpack.c.b16 %v2696, %v2688
        %v3065 = vpack.c.b16 %v2697, %v2689
        %v3066 = vpack.c.b16 %v2706, %v2698
        %v3067 = vpack.c.b16 %v2707, %v2699
        %v3068 = vpack.c.b16 %v2708, %v2700
        %v3069 = vpack.c.b16 %v2709, %v2701
        %v3070 = vpack.c.b16 %v2710, %v2702
        %v3071 = vpack.c.b16 %v2711, %v2703
        %v3072 = vpack.c.b16 %v2712, %v2704
        %v3073 = vpack.c.b16 %v2713, %v2705
        %v3074 = vpack.c.b16 %v2722, %v2714
        %v3075 = vpack.c.b16 %v2723, %v2715
        %v3076 = vpack.c.b16 %v2724, %v2716
        %v3077 = vpack.c.b16 %v2725, %v2717
        %v3078 = vpack.c.b16 %v2726, %v2718
        %v3079 = vpack.c.b16 %v2727, %v2719
        %v3080 = vpack.c.b16 %v2728, %v2720
        %v3081 = vpack.c.b16 %v2729, %v2721
        %v3082 = vpack.c.b16 %v2738, %v2730
        %v3083 = vpack.c.b16 %v2739, %v2731
        %v3084 = vpack.c.b16 %v2740, %v2732
        %v3085 = vpack.c.b16 %v2741, %v2733
        %v3086 = vpack.c.b16 %v2742, %v2734
        %v3087 = vpack.c.b16 %v2743, %v2735
        %v3088 = vpack.c.b16 %v2744, %v2736
        %v3089 = vpack.c.b16 %v2745, %v2737
        %v3090 = vpack.c.b16 %v2754, %v2746
        %v3091 = vpack.c.b16 %v2755, %v2747
        %v3092 = vpack.c.b16 %v2756, %v2748
        %v3093 = vpack.c.b16 %v2757, %v2749
        %v3094 = vpack.c.b16 %v2758, %v2750
        %v3095 = vpack.c.b16 %v2759, %v2751
        %v3096 = vpack.c.b16 %v2760, %v2752
        %v3097 = vpack.c.b16 %v2761, %v2753
        %v3098 = vpack.c.b16 %v2770, %v2762
        %v3099 = vpack.c.b16 %v2771, %v2763
        %v3100 = vpack.c.b16 %v2772, %v2764
        %v3101 = vpack.c.b16 %v2773, %v2765
        %v3102 = vpack.c.b16 %v2774, %v2766
        %v3103 = vpack.c.b16 %v2775, %v2767
        %v3104 = vpack.c.b16 %v2776, %v2768
        %v3105 = vpack.c.b16 %v2777, %v2769
        %v3106 = vpack.c.b16 %v2786, %v2778
        %v3107 = vpack.c.b16 %v2787, %v2779
        %v3108 = vpack.c.b16 %v2788, %v2780
        %v3109 = vpack.c.b16 %v2789, %v2781
        %v3110 = vpack.c.b16 %v2790, %v2782
        %v3111 = vpack.c.b16 %v2791, %v2783
        %v3112 = vpack.c.b16 %v2792, %v2784
        %v3113 = vpack.c.b16 %v2793, %v2785
        %v3114 = vpack.c.b16 %v2802, %v2794
        %v3115 = vpack.c.b16 %v2803, %v2795
        %v3116 = vpack.c.b16 %v2804, %v2796
        %v3117 = vpack.c.b16 %v2805, %v2797
        %v3118 = vpack.c.b16 %v2806, %v2798
        %v3119 = vpack.c.b16 %v2807, %v2799
        %v3120 = vpack.c.b16 %v2808, %v2800
        %v3121 = vpack.c.b16 %v2809, %v2801
        %v3122 = vpack.c.b16 %v2818, %v2810
        %v3123 = vpack.c.b16 %v2819, %v2811
        %v3124 = vpack.c.b16 %v2820, %v2812
        %v3125 = vpack.c.b16 %v2821, %v2813
        %v3126 = vpack.c.b16 %v2822, %v2814
        %v3127 = vpack.c.b16 %v2823, %v2815
        %v3128 = vpack.c.b16 %v2824, %v2816
        %v3129 = vpack.c.b16 %v2825, %v2817
        %v3130 = vpack.c.b16 %v2834, %v2826
        %v3131 = vpack.c.b16 %v2835, %v2827
        %v3132 = vpack.c.b16 %v2836, %v2828
        %v3133 = vpack.c.b16 %v2837, %v2829
        %v3134 = vpack.c.b16 %v2838, %v2830
        %v3135 = vpack.c.b16 %v2839, %v2831
        %v3136 = vpack.c.b16 %v2840, %v2832
        %v3137 = vpack.c.b16 %v2841, %v2833
        %v3138 = vpack.c.b16 %v2850, %v2842
        %v3139 = vpack.c.b16 %v2851, %v2843
        %v3140 = vpack.c.b16 %v2852, %v2844
        %v3141 = vpack.c.b16 %v2853, %v2845
        %v3142 = vpack.c.b16 %v2854, %v2846
        %v3143 = vpack.c.b16 %v2855, %v2847
        %v3144 = vpack.c.b16 %v2856, %v2848
        %v3145 = vpack.c.b16 %v2857, %v2849
        %v3146 = vpack.c.b16 %v2866, %v2858
        %v3147 = vpack.c.b16 %v2867, %v2859
        %v3148 = vpack.c.b16 %v2868, %v2860
        %v3149 = vpack.c.b16 %v2869, %v2861
        %v3150 = vpack.c.b16 %v2870, %v2862
        %v3151 = vpack.c.b16 %v2871, %v2863
        %v3152 = vpack.c.b16 %v2872, %v2864
        %v3153 = vpack.c.b16 %v2873, %v2865
        %v3154 = vpack.c.b16 %v2882, %v2874
        %v3155 = vpack.c.b16 %v2883, %v2875
        %v3156 = vpack.c.b16 %v2884, %v2876
        %v3157 = vpack.c.b16 %v2885, %v2877
        %v3158 = vpack.c.b16 %v2886, %v2878
        %v3159 = vpack.c.b16 %v2887, %v2879
        %v3160 = vpack.c.b16 %v2888, %v2880
        %v3161 = vpack.c.b16 %v2889, %v2881
        %v3162 = vpack.c.b16 %v2898, %v2890
        %v3163 = vpack.c.b16 %v2899, %v2891
        %v3164 = vpack.c.b16 %v2900, %v2892
        %v3165 = vpack.c.b16 %v2901, %v2893
        %v3166 = vpack.c.b16 %v2902, %v2894
        %v3167 = vpack.c.b16 %v2903, %v2895
        %v3168 = vpack.c.b16 %v2904, %v2896
        %v3169 = vpack.c.b16 %v2905, %v2897
        %v3170 = vpack.c.b16 %v2914, %v2906
        %v3171 = vpack.c.b16 %v2915, %v2907
        %v3172 = vpack.c.b16 %v2916, %v2908
        %v3173 = vpack.c.b16 %v2917, %v2909
        %v3174 = vpack.c.b16 %v2918, %v2910
        %v3175 = vpack.c.b16 %v2919, %v2911
        %v3176 = vpack.c.b16 %v2920, %v2912
        %v3177 = vpack.c.b16 %v2921, %v2913
        %3434 = vmatpush.bf16.msra.mxu0 %v2978
        %3435 = vmatpush.bf16.msra.mxu0 %v2970
        %3436 = vmatpush.bf16.msra.mxu0 %v2962
        %3437 = vmatpush.bf16.msra.mxu0 %v2954
        %3438 = vmatpush.bf16.msra.mxu0 %v2946
        %3439 = vmatpush.bf16.msra.mxu0 %v2938
        %3440 = vmatpush.bf16.msra.mxu0 %v2930
        %3441 = vmatpush.bf16.msra.mxu0 %v2922
        %3442 = vmatmul.bf16.gmra.mxu0 %v1876
        %v3443 = vpop.f32.mrf.mxu0
        %v3444 = vadd.f32 %v2138, %v3443
        %v3445 = vpop.f32.mrf.mxu0
        %3446 = vdwg.mxu0
        %3447 = vmatpush.bf16.msra.mxu0 %v3042
        %3448 = vmatpush.bf16.msra.mxu0 %v3034
        %3449 = vmatpush.bf16.msra.mxu0 %v3026
        %3450 = vmatpush.bf16.msra.mxu0 %v3018
        %3451 = vmatpush.bf16.msra.mxu0 %v3010
        %3452 = vmatpush.bf16.msra.mxu0 %v3002
        %3453 = vmatpush.bf16.msra.mxu0 %v2994
        %3454 = vmatpush.bf16.msra.mxu0 %v2986
        %3455 = vmatmul.bf16.gmra.mxu0 %v1877
        %v3456 = vpop.f32.mrf.mxu0
        %v3457 = vadd.f32 %v3444, %v3456
        %v3458 = vpop.f32.mrf.mxu0
        %3459 = vdwg.mxu0
        %3460 = vmatpush.bf16.msra.mxu0 %v3106
        %3461 = vmatpush.bf16.msra.mxu0 %v3098
        %3462 = vmatpush.bf16.msra.mxu0 %v3090
        %3463 = vmatpush.bf16.msra.mxu0 %v3082
        %3464 = vmatpush.bf16.msra.mxu0 %v3074
        %3465 = vmatpush.bf16.msra.mxu0 %v3066
        %3466 = vmatpush.bf16.msra.mxu0 %v3058
        %3467 = vmatpush.bf16.msra.mxu0 %v3050
        %3468 = vmatmul.bf16.gmra.mxu0 %v1878
        %v3469 = vpop.f32.mrf.mxu0
        %v3470 = vadd.f32 %v3457, %v3469
        %v3471 = vpop.f32.mrf.mxu0
        %3472 = vdwg.mxu0
        %3473 = vmatpush.bf16.msra.mxu0 %v3170
        %3474 = vmatpush.bf16.msra.mxu0 %v3162
        %3475 = vmatpush.bf16.msra.mxu0 %v3154
        %3476 = vmatpush.bf16.msra.mxu0 %v3146
        %3477 = vmatpush.bf16.msra.mxu0 %v3138
        %3478 = vmatpush.bf16.msra.mxu0 %v3130
        %3479 = vmatpush.bf16.msra.mxu0 %v3122
        %3480 = vmatpush.bf16.msra.mxu0 %v3114
        %3481 = vmatmul.bf16.gmra.mxu0 %v1879
        %v3482 = vpop.f32.mrf.mxu0
        %v3483 = vadd.f32 %v3470, %v3482
        %v3484 = vpop.f32.mrf.mxu0
        %3485 = vdwg.mxu0
        %3486 = vmatpush.bf16.msra.mxu0 %v2979
        %3487 = vmatpush.bf16.msra.mxu0 %v2971
        %3488 = vmatpush.bf16.msra.mxu0 %v2963
        %3489 = vmatpush.bf16.msra.mxu0 %v2955
        %3490 = vmatpush.bf16.msra.mxu0 %v2947
        %3491 = vmatpush.bf16.msra.mxu0 %v2939
        %3492 = vmatpush.bf16.msra.mxu0 %v2931
        %3493 = vmatpush.bf16.msra.mxu0 %v2923
        %3494 = vmatmul.bf16.gmra.mxu0 %v1876
        %v3495 = vpop.f32.mrf.mxu0
        %v3496 = vadd.f32 %v2139, %v3495
        %v3497 = vpop.f32.mrf.mxu0
        %3498 = vdwg.mxu0
        %3499 = vmatpush.bf16.msra.mxu0 %v3043
        %3500 = vmatpush.bf16.msra.mxu0 %v3035
        %3501 = vmatpush.bf16.msra.mxu0 %v3027
        %3502 = vmatpush.bf16.msra.mxu0 %v3019
        %3503 = vmatpush.bf16.msra.mxu0 %v3011
        %3504 = vmatpush.bf16.msra.mxu0 %v3003
        %3505 = vmatpush.bf16.msra.mxu0 %v2995
        %3506 = vmatpush.bf16.msra.mxu0 %v2987
        %3507 = vmatmul.bf16.gmra.mxu0 %v1877
        %v3508 = vpop.f32.mrf.mxu0
        %v3509 = vadd.f32 %v3496, %v3508
        %v3510 = vpop.f32.mrf.mxu0
        %3511 = vdwg.mxu0
        %3512 = vmatpush.bf16.msra.mxu0 %v3107
        %3513 = vmatpush.bf16.msra.mxu0 %v3099
        %3514 = vmatpush.bf16.msra.mxu0 %v3091
        %3515 = vmatpush.bf16.msra.mxu0 %v3083
        %3516 = vmatpush.bf16.msra.mxu0 %v3075
        %3517 = vmatpush.bf16.msra.mxu0 %v3067
        %3518 = vmatpush.bf16.msra.mxu0 %v3059
        %3519 = vmatpush.bf16.msra.mxu0 %v3051
        %3520 = vmatmul.bf16.gmra.mxu0 %v1878
        %v3521 = vpop.f32.mrf.mxu0
        %v3522 = vadd.f32 %v3509, %v3521
        %v3523 = vpop.f32.mrf.mxu0
        %3524 = vdwg.mxu0
        %3525 = vmatpush.bf16.msra.mxu0 %v3171
        %3526 = vmatpush.bf16.msra.mxu0 %v3163
        %3527 = vmatpush.bf16.msra.mxu0 %v3155
        %3528 = vmatpush.bf16.msra.mxu0 %v3147
        %3529 = vmatpush.bf16.msra.mxu0 %v3139
        %3530 = vmatpush.bf16.msra.mxu0 %v3131
        %3531 = vmatpush.bf16.msra.mxu0 %v3123
        %3532 = vmatpush.bf16.msra.mxu0 %v3115
        %3533 = vmatmul.bf16.gmra.mxu0 %v1879
        %v3534 = vpop.f32.mrf.mxu0
        %v3535 = vadd.f32 %v3522, %v3534
        %v3536 = vpop.f32.mrf.mxu0
        %3537 = vdwg.mxu0
        %3538 = vmatpush.bf16.msra.mxu0 %v2980
        %3539 = vmatpush.bf16.msra.mxu0 %v2972
        %3540 = vmatpush.bf16.msra.mxu0 %v2964
        %3541 = vmatpush.bf16.msra.mxu0 %v2956
        %3542 = vmatpush.bf16.msra.mxu0 %v2948
        %3543 = vmatpush.bf16.msra.mxu0 %v2940
        %3544 = vmatpush.bf16.msra.mxu0 %v2932
        %3545 = vmatpush.bf16.msra.mxu0 %v2924
        %3546 = vmatmul.bf16.gmra.mxu0 %v1876
        %v3547 = vpop.f32.mrf.mxu0
        %v3548 = vadd.f32 %v2140, %v3547
        %v3549 = vpop.f32.mrf.mxu0
        %3550 = vdwg.mxu0
        %3551 = vmatpush.bf16.msra.mxu0 %v3044
        %3552 = vmatpush.bf16.msra.mxu0 %v3036
        %3553 = vmatpush.bf16.msra.mxu0 %v3028
        %3554 = vmatpush.bf16.msra.mxu0 %v3020
        %3555 = vmatpush.bf16.msra.mxu0 %v3012
        %3556 = vmatpush.bf16.msra.mxu0 %v3004
        %3557 = vmatpush.bf16.msra.mxu0 %v2996
        %3558 = vmatpush.bf16.msra.mxu0 %v2988
        %3559 = vmatmul.bf16.gmra.mxu0 %v1877
        %v3560 = vpop.f32.mrf.mxu0
        %v3561 = vadd.f32 %v3548, %v3560
        %v3562 = vpop.f32.mrf.mxu0
        %3563 = vdwg.mxu0
        %3564 = vmatpush.bf16.msra.mxu0 %v3108
        %3565 = vmatpush.bf16.msra.mxu0 %v3100
        %3566 = vmatpush.bf16.msra.mxu0 %v3092
        %3567 = vmatpush.bf16.msra.mxu0 %v3084
        %3568 = vmatpush.bf16.msra.mxu0 %v3076
        %3569 = vmatpush.bf16.msra.mxu0 %v3068
        %3570 = vmatpush.bf16.msra.mxu0 %v3060
        %3571 = vmatpush.bf16.msra.mxu0 %v3052
        %3572 = vmatmul.bf16.gmra.mxu0 %v1878
        %v3573 = vpop.f32.mrf.mxu0
        %v3574 = vadd.f32 %v3561, %v3573
        %v3575 = vpop.f32.mrf.mxu0
        %3576 = vdwg.mxu0
        %3577 = vmatpush.bf16.msra.mxu0 %v3172
        %3578 = vmatpush.bf16.msra.mxu0 %v3164
        %3579 = vmatpush.bf16.msra.mxu0 %v3156
        %3580 = vmatpush.bf16.msra.mxu0 %v3148
        %3581 = vmatpush.bf16.msra.mxu0 %v3140
        %3582 = vmatpush.bf16.msra.mxu0 %v3132
        %3583 = vmatpush.bf16.msra.mxu0 %v3124
        %3584 = vmatpush.bf16.msra.mxu0 %v3116
        %3585 = vmatmul.bf16.gmra.mxu0 %v1879
        %v3586 = vpop.f32.mrf.mxu0
        %v3587 = vadd.f32 %v3574, %v3586
        %v3588 = vpop.f32.mrf.mxu0
        %3589 = vdwg.mxu0
        %3590 = vmatpush.bf16.msra.mxu0 %v2981
        %3591 = vmatpush.bf16.msra.mxu0 %v2973
        %3592 = vmatpush.bf16.msra.mxu0 %v2965
        %3593 = vmatpush.bf16.msra.mxu0 %v2957
        %3594 = vmatpush.bf16.msra.mxu0 %v2949
        %3595 = vmatpush.bf16.msra.mxu0 %v2941
        %3596 = vmatpush.bf16.msra.mxu0 %v2933
        %3597 = vmatpush.bf16.msra.mxu0 %v2925
        %3598 = vmatmul.bf16.gmra.mxu0 %v1876
        %v3599 = vpop.f32.mrf.mxu0
        %v3600 = vadd.f32 %v2141, %v3599
        %v3601 = vpop.f32.mrf.mxu0
        %3602 = vdwg.mxu0
        %3603 = vmatpush.bf16.msra.mxu0 %v3045
        %3604 = vmatpush.bf16.msra.mxu0 %v3037
        %3605 = vmatpush.bf16.msra.mxu0 %v3029
        %3606 = vmatpush.bf16.msra.mxu0 %v3021
        %3607 = vmatpush.bf16.msra.mxu0 %v3013
        %3608 = vmatpush.bf16.msra.mxu0 %v3005
        %3609 = vmatpush.bf16.msra.mxu0 %v2997
        %3610 = vmatpush.bf16.msra.mxu0 %v2989
        %3611 = vmatmul.bf16.gmra.mxu0 %v1877
        %v3612 = vpop.f32.mrf.mxu0
        %v3613 = vadd.f32 %v3600, %v3612
        %v3614 = vpop.f32.mrf.mxu0
        %3615 = vdwg.mxu0
        %3616 = vmatpush.bf16.msra.mxu0 %v3109
        %3617 = vmatpush.bf16.msra.mxu0 %v3101
        %3618 = vmatpush.bf16.msra.mxu0 %v3093
        %3619 = vmatpush.bf16.msra.mxu0 %v3085
        %3620 = vmatpush.bf16.msra.mxu0 %v3077
        %3621 = vmatpush.bf16.msra.mxu0 %v3069
        %3622 = vmatpush.bf16.msra.mxu0 %v3061
        %3623 = vmatpush.bf16.msra.mxu0 %v3053
        %3624 = vmatmul.bf16.gmra.mxu0 %v1878
        %v3625 = vpop.f32.mrf.mxu0
        %v3626 = vadd.f32 %v3613, %v3625
        %v3627 = vpop.f32.mrf.mxu0
        %3628 = vdwg.mxu0
        %3629 = vmatpush.bf16.msra.mxu0 %v3173
        %3630 = vmatpush.bf16.msra.mxu0 %v3165
        %3631 = vmatpush.bf16.msra.mxu0 %v3157
        %3632 = vmatpush.bf16.msra.mxu0 %v3149
        %3633 = vmatpush.bf16.msra.mxu0 %v3141
        %3634 = vmatpush.bf16.msra.mxu0 %v3133
        %3635 = vmatpush.bf16.msra.mxu0 %v3125
        %3636 = vmatpush.bf16.msra.mxu0 %v3117
        %3637 = vmatmul.bf16.gmra.mxu0 %v1879
        %v3638 = vpop.f32.mrf.mxu0
        %v3639 = vadd.f32 %v3626, %v3638
        %v3640 = vpop.f32.mrf.mxu0
        %3641 = vdwg.mxu0
        %3642 = vmatpush.bf16.msra.mxu0 %v2982
        %3643 = vmatpush.bf16.msra.mxu0 %v2974
        %3644 = vmatpush.bf16.msra.mxu0 %v2966
        %3645 = vmatpush.bf16.msra.mxu0 %v2958
        %3646 = vmatpush.bf16.msra.mxu0 %v2950
        %3647 = vmatpush.bf16.msra.mxu0 %v2942
        %3648 = vmatpush.bf16.msra.mxu0 %v2934
        %3649 = vmatpush.bf16.msra.mxu0 %v2926
        %3650 = vmatmul.bf16.gmra.mxu0 %v1876
        %v3651 = vpop.f32.mrf.mxu0
        %v3652 = vadd.f32 %v2142, %v3651
        %v3653 = vpop.f32.mrf.mxu0
        %3654 = vdwg.mxu0
        %3655 = vmatpush.bf16.msra.mxu0 %v3046
        %3656 = vmatpush.bf16.msra.mxu0 %v3038
        %3657 = vmatpush.bf16.msra.mxu0 %v3030
        %3658 = vmatpush.bf16.msra.mxu0 %v3022
        %3659 = vmatpush.bf16.msra.mxu0 %v3014
        %3660 = vmatpush.bf16.msra.mxu0 %v3006
        %3661 = vmatpush.bf16.msra.mxu0 %v2998
        %3662 = vmatpush.bf16.msra.mxu0 %v2990
        %3663 = vmatmul.bf16.gmra.mxu0 %v1877
        %v3664 = vpop.f32.mrf.mxu0
        %v3665 = vadd.f32 %v3652, %v3664
        %v3666 = vpop.f32.mrf.mxu0
        %3667 = vdwg.mxu0
        %3668 = vmatpush.bf16.msra.mxu0 %v3110
        %3669 = vmatpush.bf16.msra.mxu0 %v3102
        %3670 = vmatpush.bf16.msra.mxu0 %v3094
        %3671 = vmatpush.bf16.msra.mxu0 %v3086
        %3672 = vmatpush.bf16.msra.mxu0 %v3078
        %3673 = vmatpush.bf16.msra.mxu0 %v3070
        %3674 = vmatpush.bf16.msra.mxu0 %v3062
        %3675 = vmatpush.bf16.msra.mxu0 %v3054
        %3676 = vmatmul.bf16.gmra.mxu0 %v1878
        %v3677 = vpop.f32.mrf.mxu0
        %v3678 = vadd.f32 %v3665, %v3677
        %v3679 = vpop.f32.mrf.mxu0
        %3680 = vdwg.mxu0
        %3681 = vmatpush.bf16.msra.mxu0 %v3174
        %3682 = vmatpush.bf16.msra.mxu0 %v3166
        %3683 = vmatpush.bf16.msra.mxu0 %v3158
        %3684 = vmatpush.bf16.msra.mxu0 %v3150
        %3685 = vmatpush.bf16.msra.mxu0 %v3142
        %3686 = vmatpush.bf16.msra.mxu0 %v3134
        %3687 = vmatpush.bf16.msra.mxu0 %v3126
        %3688 = vmatpush.bf16.msra.mxu0 %v3118
        %3689 = vmatmul.bf16.gmra.mxu0 %v1879
        %v3690 = vpop.f32.mrf.mxu0
        %v3691 = vadd.f32 %v3678, %v3690
        %v3692 = vpop.f32.mrf.mxu0
        %3693 = vdwg.mxu0
        %3694 = vmatpush.bf16.msra.mxu0 %v2983
        %3695 = vmatpush.bf16.msra.mxu0 %v2975
        %3696 = vmatpush.bf16.msra.mxu0 %v2967
        %3697 = vmatpush.bf16.msra.mxu0 %v2959
        %3698 = vmatpush.bf16.msra.mxu0 %v2951
        %3699 = vmatpush.bf16.msra.mxu0 %v2943
        %3700 = vmatpush.bf16.msra.mxu0 %v2935
        %3701 = vmatpush.bf16.msra.mxu0 %v2927
        %3702 = vmatmul.bf16.gmra.mxu0 %v1876
        %v3703 = vpop.f32.mrf.mxu0
        %v3704 = vadd.f32 %v2143, %v3703
        %v3705 = vpop.f32.mrf.mxu0
        %3706 = vdwg.mxu0
        %3707 = vmatpush.bf16.msra.mxu0 %v3047
        %3708 = vmatpush.bf16.msra.mxu0 %v3039
        %3709 = vmatpush.bf16.msra.mxu0 %v3031
        %3710 = vmatpush.bf16.msra.mxu0 %v3023
        %3711 = vmatpush.bf16.msra.mxu0 %v3015
        %3712 = vmatpush.bf16.msra.mxu0 %v3007
        %3713 = vmatpush.bf16.msra.mxu0 %v2999
        %3714 = vmatpush.bf16.msra.mxu0 %v2991
        %3715 = vmatmul.bf16.gmra.mxu0 %v1877
        %v3716 = vpop.f32.mrf.mxu0
        %v3717 = vadd.f32 %v3704, %v3716
        %v3718 = vpop.f32.mrf.mxu0
        %3719 = vdwg.mxu0
        %3720 = vmatpush.bf16.msra.mxu0 %v3111
        %3721 = vmatpush.bf16.msra.mxu0 %v3103
        %3722 = vmatpush.bf16.msra.mxu0 %v3095
        %3723 = vmatpush.bf16.msra.mxu0 %v3087
        %3724 = vmatpush.bf16.msra.mxu0 %v3079
        %3725 = vmatpush.bf16.msra.mxu0 %v3071
        %3726 = vmatpush.bf16.msra.mxu0 %v3063
        %3727 = vmatpush.bf16.msra.mxu0 %v3055
        %3728 = vmatmul.bf16.gmra.mxu0 %v1878
        %v3729 = vpop.f32.mrf.mxu0
        %v3730 = vadd.f32 %v3717, %v3729
        %v3731 = vpop.f32.mrf.mxu0
        %3732 = vdwg.mxu0
        %3733 = vmatpush.bf16.msra.mxu0 %v3175
        %3734 = vmatpush.bf16.msra.mxu0 %v3167
        %3735 = vmatpush.bf16.msra.mxu0 %v3159
        %3736 = vmatpush.bf16.msra.mxu0 %v3151
        %3737 = vmatpush.bf16.msra.mxu0 %v3143
        %3738 = vmatpush.bf16.msra.mxu0 %v3135
        %3739 = vmatpush.bf16.msra.mxu0 %v3127
        %3740 = vmatpush.bf16.msra.mxu0 %v3119
        %3741 = vmatmul.bf16.gmra.mxu0 %v1879
        %v3742 = vpop.f32.mrf.mxu0
        %v3743 = vadd.f32 %v3730, %v3742
        %v3744 = vpop.f32.mrf.mxu0
        %3745 = vdwg.mxu0
        %3746 = vmatpush.bf16.msra.mxu0 %v2984
        %3747 = vmatpush.bf16.msra.mxu0 %v2976
        %3748 = vmatpush.bf16.msra.mxu0 %v2968
        %3749 = vmatpush.bf16.msra.mxu0 %v2960
        %3750 = vmatpush.bf16.msra.mxu0 %v2952
        %3751 = vmatpush.bf16.msra.mxu0 %v2944
        %3752 = vmatpush.bf16.msra.mxu0 %v2936
        %3753 = vmatpush.bf16.msra.mxu0 %v2928
        %3754 = vmatmul.bf16.gmra.mxu0 %v1876
        %v3755 = vpop.f32.mrf.mxu0
        %v3756 = vadd.f32 %v2144, %v3755
        %v3757 = vpop.f32.mrf.mxu0
        %3758 = vdwg.mxu0
        %3759 = vmatpush.bf16.msra.mxu0 %v3048
        %3760 = vmatpush.bf16.msra.mxu0 %v3040
        %3761 = vmatpush.bf16.msra.mxu0 %v3032
        %3762 = vmatpush.bf16.msra.mxu0 %v3024
        %3763 = vmatpush.bf16.msra.mxu0 %v3016
        %3764 = vmatpush.bf16.msra.mxu0 %v3008
        %3765 = vmatpush.bf16.msra.mxu0 %v3000
        %3766 = vmatpush.bf16.msra.mxu0 %v2992
        %3767 = vmatmul.bf16.gmra.mxu0 %v1877
        %v3768 = vpop.f32.mrf.mxu0
        %v3769 = vadd.f32 %v3756, %v3768
        %v3770 = vpop.f32.mrf.mxu0
        %3771 = vdwg.mxu0
        %3772 = vmatpush.bf16.msra.mxu0 %v3112
        %3773 = vmatpush.bf16.msra.mxu0 %v3104
        %3774 = vmatpush.bf16.msra.mxu0 %v3096
        %3775 = vmatpush.bf16.msra.mxu0 %v3088
        %3776 = vmatpush.bf16.msra.mxu0 %v3080
        %3777 = vmatpush.bf16.msra.mxu0 %v3072
        %3778 = vmatpush.bf16.msra.mxu0 %v3064
        %3779 = vmatpush.bf16.msra.mxu0 %v3056
        %3780 = vmatmul.bf16.gmra.mxu0 %v1878
        %v3781 = vpop.f32.mrf.mxu0
        %v3782 = vadd.f32 %v3769, %v3781
        %v3783 = vpop.f32.mrf.mxu0
        %3784 = vdwg.mxu0
        %3785 = vmatpush.bf16.msra.mxu0 %v3176
        %3786 = vmatpush.bf16.msra.mxu0 %v3168
        %3787 = vmatpush.bf16.msra.mxu0 %v3160
        %3788 = vmatpush.bf16.msra.mxu0 %v3152
        %3789 = vmatpush.bf16.msra.mxu0 %v3144
        %3790 = vmatpush.bf16.msra.mxu0 %v3136
        %3791 = vmatpush.bf16.msra.mxu0 %v3128
        %3792 = vmatpush.bf16.msra.mxu0 %v3120
        %3793 = vmatmul.bf16.gmra.mxu0 %v1879
        %v3794 = vpop.f32.mrf.mxu0
        %v3795 = vadd.f32 %v3782, %v3794
        %v3796 = vpop.f32.mrf.mxu0
        %3797 = vdwg.mxu0
        %3798 = vmatpush.bf16.msra.mxu0 %v2985
        %3799 = vmatpush.bf16.msra.mxu0 %v2977
        %3800 = vmatpush.bf16.msra.mxu0 %v2969
        %3801 = vmatpush.bf16.msra.mxu0 %v2961
        %3802 = vmatpush.bf16.msra.mxu0 %v2953
        %3803 = vmatpush.bf16.msra.mxu0 %v2945
        %3804 = vmatpush.bf16.msra.mxu0 %v2937
        %3805 = vmatpush.bf16.msra.mxu0 %v2929
        %3806 = vmatmul.bf16.gmra.mxu0 %v1876
        %v3807 = vpop.f32.mrf.mxu0
        %v3808 = vadd.f32 %v2145, %v3807
        %v3809 = vpop.f32.mrf.mxu0
        %3810 = vdwg.mxu0
        %3811 = vmatpush.bf16.msra.mxu0 %v3049
        %3812 = vmatpush.bf16.msra.mxu0 %v3041
        %3813 = vmatpush.bf16.msra.mxu0 %v3033
        %3814 = vmatpush.bf16.msra.mxu0 %v3025
        %3815 = vmatpush.bf16.msra.mxu0 %v3017
        %3816 = vmatpush.bf16.msra.mxu0 %v3009
        %3817 = vmatpush.bf16.msra.mxu0 %v3001
        %3818 = vmatpush.bf16.msra.mxu0 %v2993
        %3819 = vmatmul.bf16.gmra.mxu0 %v1877
        %v3820 = vpop.f32.mrf.mxu0
        %v3821 = vadd.f32 %v3808, %v3820
        %v3822 = vpop.f32.mrf.mxu0
        %3823 = vdwg.mxu0
        %3824 = vmatpush.bf16.msra.mxu0 %v3113
        %3825 = vmatpush.bf16.msra.mxu0 %v3105
        %3826 = vmatpush.bf16.msra.mxu0 %v3097
        %3827 = vmatpush.bf16.msra.mxu0 %v3089
        %3828 = vmatpush.bf16.msra.mxu0 %v3081
        %3829 = vmatpush.bf16.msra.mxu0 %v3073
        %3830 = vmatpush.bf16.msra.mxu0 %v3065
        %3831 = vmatpush.bf16.msra.mxu0 %v3057
        %3832 = vmatmul.bf16.gmra.mxu0 %v1878
        %v3833 = vpop.f32.mrf.mxu0
        %v3834 = vadd.f32 %v3821, %v3833
        %v3835 = vpop.f32.mrf.mxu0
        %3836 = vdwg.mxu0
        %3837 = vmatpush.bf16.msra.mxu0 %v3177
        %3838 = vmatpush.bf16.msra.mxu0 %v3169
        %3839 = vmatpush.bf16.msra.mxu0 %v3161
        %3840 = vmatpush.bf16.msra.mxu0 %v3153
        %3841 = vmatpush.bf16.msra.mxu0 %v3145
        %3842 = vmatpush.bf16.msra.mxu0 %v3137
        %3843 = vmatpush.bf16.msra.mxu0 %v3129
        %3844 = vmatpush.bf16.msra.mxu0 %v3121
        %3845 = vmatmul.bf16.gmra.mxu0 %v1879
        %v3846 = vpop.f32.mrf.mxu0
        %v3847 = vadd.f32 %v3834, %v3846
        %v3848 = vpop.f32.mrf.mxu0
        %3849 = vdwg.mxu0
        %v3850 = vmul.f32 %v3483, 1.442695
        %v3851 = vpow.pop %v3850
        %v3852 = vmul.f32 %v3535, 1.442695
        %v3853 = vpow.pop %v3852
        %v3854 = vmul.f32 %v3587, 1.442695
        %v3855 = vpow.pop %v3854
        %v3856 = vmul.f32 %v3639, 1.442695
        %v3857 = vpow.pop %v3856
        %v3858 = vmul.f32 %v3691, 1.442695
        %v3859 = vpow.pop %v3858
        %v3860 = vmul.f32 %v3743, 1.442695
        %v3861 = vpow.pop %v3860
        %v3862 = vmul.f32 %v3795, 1.442695
        %v3863 = vpow.pop %v3862
        %v3864 = vmul.f32 %v3847, 1.442695
        %v3865 = vpow.pop %v3864
        %v3866 = vadd.f32 %v3851, 1.0
        %v3867 = vadd.f32 %v3853, 1.0
        %v3868 = vadd.f32 %v3855, 1.0
        %v3869 = vadd.f32 %v3857, 1.0
        %v3870 = vadd.f32 %v3859, 1.0
        %v3871 = vadd.f32 %v3861, 1.0
        %v3872 = vadd.f32 %v3863, 1.0
        %v3873 = vadd.f32 %v3865, 1.0
        %v3874 = vmul.f32 %v3866, %v3866
        %v3875 = vmul.f32 %v3867, %v3867
        %v3876 = vmul.f32 %v3868, %v3868
        %v3877 = vmul.f32 %v3869, %v3869
        %v3878 = vmul.f32 %v3870, %v3870
        %v3879 = vmul.f32 %v3871, %v3871
        %v3880 = vmul.f32 %v3872, %v3872
        %v3881 = vmul.f32 %v3873, %v3873
        %v3882 = vadd.f32 %v3874, 1.0
        %v3883 = vadd.f32 %v3875, 1.0
        %v3884 = vadd.f32 %v3876, 1.0
        %v3885 = vadd.f32 %v3877, 1.0
        %v3886 = vadd.f32 %v3878, 1.0
        %v3887 = vadd.f32 %v3879, 1.0
        %v3888 = vadd.f32 %v3880, 1.0
        %v3889 = vadd.f32 %v3881, 1.0
        %v3890 = vrcp.pop %v3882
        %v3891 = vmul.f32 %v3882, %v3890
        %v3892 = vsub.f32 1.0, %v3891
        %v3893 = vmul.f32 %v3890, %v3892
        %v3894 = vadd.f32 %v3890, %v3893
        %vm3895 = vweird.f32 %v3882
        %vm3896 = vweird.f32 %v3890
        %vm3897 = vmor %vm3895, %vm3896
        %v3898 = vsel %vm3897, %v3890, %v3894
        %v3899 = vand.u32 2147483647, %v3882
        %vm3900 = vcmp.eq.f32.partialorder %v3899, 8.507059e+37
        %v3901 = vand.u32 %v3882, 2147483648
        %v3902 = vor.u32 1.1754944e-38, %v3901
        %v3903 = vsel %vm3900, %v3902, %v3898
        %v3904 = vmul.f32 2.0, %v3903
        %v3905 = vrcp.pop %v3883
        %v3906 = vmul.f32 %v3883, %v3905
        %v3907 = vsub.f32 1.0, %v3906
        %v3908 = vmul.f32 %v3905, %v3907
        %v3909 = vadd.f32 %v3905, %v3908
        %vm3910 = vweird.f32 %v3883
        %vm3911 = vweird.f32 %v3905
        %vm3912 = vmor %vm3910, %vm3911
        %v3913 = vsel %vm3912, %v3905, %v3909
        %v3914 = vand.u32 2147483647, %v3883
        %vm3915 = vcmp.eq.f32.partialorder %v3914, 8.507059e+37
        %v3916 = vand.u32 %v3883, 2147483648
        %v3917 = vor.u32 1.1754944e-38, %v3916
        %v3918 = vsel %vm3915, %v3917, %v3913
        %v3919 = vmul.f32 2.0, %v3918
        %v3920 = vrcp.pop %v3884
        %v3921 = vmul.f32 %v3884, %v3920
        %v3922 = vsub.f32 1.0, %v3921
        %v3923 = vmul.f32 %v3920, %v3922
        %v3924 = vadd.f32 %v3920, %v3923
        %vm3925 = vweird.f32 %v3884
        %vm3926 = vweird.f32 %v3920
        %vm3927 = vmor %vm3925, %vm3926
        %v3928 = vsel %vm3927, %v3920, %v3924
        %v3929 = vand.u32 2147483647, %v3884
        %vm3930 = vcmp.eq.f32.partialorder %v3929, 8.507059e+37
        %v3931 = vand.u32 %v3884, 2147483648
        %v3932 = vor.u32 1.1754944e-38, %v3931
        %v3933 = vsel %vm3930, %v3932, %v3928
        %v3934 = vmul.f32 2.0, %v3933
        %v3935 = vrcp.pop %v3885
        %v3936 = vmul.f32 %v3885, %v3935
        %v3937 = vsub.f32 1.0, %v3936
        %v3938 = vmul.f32 %v3935, %v3937
        %v3939 = vadd.f32 %v3935, %v3938
        %vm3940 = vweird.f32 %v3885
        %vm3941 = vweird.f32 %v3935
        %vm3942 = vmor %vm3940, %vm3941
        %v3943 = vsel %vm3942, %v3935, %v3939
        %v3944 = vand.u32 2147483647, %v3885
        %vm3945 = vcmp.eq.f32.partialorder %v3944, 8.507059e+37
        %v3946 = vand.u32 %v3885, 2147483648
        %v3947 = vor.u32 1.1754944e-38, %v3946
        %v3948 = vsel %vm3945, %v3947, %v3943
        %v3949 = vmul.f32 2.0, %v3948
        %v3950 = vrcp.pop %v3886
        %v3951 = vmul.f32 %v3886, %v3950
        %v3952 = vsub.f32 1.0, %v3951
        %v3953 = vmul.f32 %v3950, %v3952
        %v3954 = vadd.f32 %v3950, %v3953
        %vm3955 = vweird.f32 %v3886
        %vm3956 = vweird.f32 %v3950
        %vm3957 = vmor %vm3955, %vm3956
        %v3958 = vsel %vm3957, %v3950, %v3954
        %v3959 = vand.u32 2147483647, %v3886
        %vm3960 = vcmp.eq.f32.partialorder %v3959, 8.507059e+37
        %v3961 = vand.u32 %v3886, 2147483648
        %v3962 = vor.u32 1.1754944e-38, %v3961
        %v3963 = vsel %vm3960, %v3962, %v3958
        %v3964 = vmul.f32 2.0, %v3963
        %v3965 = vrcp.pop %v3887
        %v3966 = vmul.f32 %v3887, %v3965
        %v3967 = vsub.f32 1.0, %v3966
        %v3968 = vmul.f32 %v3965, %v3967
        %v3969 = vadd.f32 %v3965, %v3968
        %vm3970 = vweird.f32 %v3887
        %vm3971 = vweird.f32 %v3965
        %vm3972 = vmor %vm3970, %vm3971
        %v3973 = vsel %vm3972, %v3965, %v3969
        %v3974 = vand.u32 2147483647, %v3887
        %vm3975 = vcmp.eq.f32.partialorder %v3974, 8.507059e+37
        %v3976 = vand.u32 %v3887, 2147483648
        %v3977 = vor.u32 1.1754944e-38, %v3976
        %v3978 = vsel %vm3975, %v3977, %v3973
        %v3979 = vmul.f32 2.0, %v3978
        %v3980 = vrcp.pop %v3888
        %v3981 = vmul.f32 %v3888, %v3980
        %v3982 = vsub.f32 1.0, %v3981
        %v3983 = vmul.f32 %v3980, %v3982
        %v3984 = vadd.f32 %v3980, %v3983
        %vm3985 = vweird.f32 %v3888
        %vm3986 = vweird.f32 %v3980
        %vm3987 = vmor %vm3985, %vm3986
        %v3988 = vsel %vm3987, %v3980, %v3984
        %v3989 = vand.u32 2147483647, %v3888
        %vm3990 = vcmp.eq.f32.partialorder %v3989, 8.507059e+37
        %v3991 = vand.u32 %v3888, 2147483648
        %v3992 = vor.u32 1.1754944e-38, %v3991
        %v3993 = vsel %vm3990, %v3992, %v3988
        %v3994 = vmul.f32 2.0, %v3993
        %v3995 = vrcp.pop %v3889
        %v3996 = vmul.f32 %v3889, %v3995
        %v3997 = vsub.f32 1.0, %v3996
        %v3998 = vmul.f32 %v3995, %v3997
        %v3999 = vadd.f32 %v3995, %v3998
        %vm4000 = vweird.f32 %v3889
        %vm4001 = vweird.f32 %v3995
        %vm4002 = vmor %vm4000, %vm4001
        %v4003 = vsel %vm4002, %v3995, %v3999
        %v4004 = vand.u32 2147483647, %v3889
        %vm4005 = vcmp.eq.f32.partialorder %v4004, 8.507059e+37
        %v4006 = vand.u32 %v3889, 2147483648
        %v4007 = vor.u32 1.1754944e-38, %v4006
        %v4008 = vsel %vm4005, %v4007, %v4003
        %v4009 = vmul.f32 2.0, %v4008
        %v4010 = vsub.f32 1.0, %v3904
        %v4011 = vsub.f32 1.0, %v3919
        %v4012 = vsub.f32 1.0, %v3934
        %v4013 = vsub.f32 1.0, %v3949
        %v4014 = vsub.f32 1.0, %v3964
        %v4015 = vsub.f32 1.0, %v3979
        %v4016 = vsub.f32 1.0, %v3994
        %v4017 = vsub.f32 1.0, %v4009
        %v4018 = vmul.f32 %v3483, %v4010
        %v4019 = vmul.f32 %v3535, %v4011
        %v4020 = vmul.f32 %v3587, %v4012
        %v4021 = vmul.f32 %v3639, %v4013
        %v4022 = vmul.f32 %v3691, %v4014
        %v4023 = vmul.f32 %v3743, %v4015
        %v4024 = vmul.f32 %v3795, %v4016
        %v4025 = vmul.f32 %v3847, %v4017
        %v4026 = vpack.c.bf16 %v4018, %v4018
        %v4027 = vpack.c.bf16 %v4019, %v4019
        %v4028 = vpack.c.bf16 %v4020, %v4020
        %v4029 = vpack.c.bf16 %v4021, %v4021
        %v4030 = vpack.c.bf16 %v4022, %v4022
        %v4031 = vpack.c.bf16 %v4023, %v4023
        %v4032 = vpack.c.bf16 %v4024, %v4024
        %v4033 = vpack.c.bf16 %v4025, %v4025
        %v4034 = vld [vmem:[%s18] sm:$0xf]
        %v4035 = vld [vmem:[%s18 + $0x4] sm:$0xf]
        %v4036 = vld [vmem:[%s18 + $0x8] sm:$0xf]
        %v4037 = vld [vmem:[%s18 + $0xc] sm:$0xf]
        %v4038 = vld [vmem:[%s18 + $0x10] sm:$0xf]
        %v4039 = vld [vmem:[%s18 + $0x14] sm:$0xf]
        %v4040 = vld [vmem:[%s18 + $0x18] sm:$0xf]
        %v4041 = vld [vmem:[%s18 + $0x1c] sm:$0xf]
        %v4042 = vld [vmem:[%s18 + $0x20] sm:$0xf]
        %v4043 = vld [vmem:[%s18 + $0x24] sm:$0xf]
        %v4044 = vld [vmem:[%s18 + $0x28] sm:$0xf]
        %v4045 = vld [vmem:[%s18 + $0x2c] sm:$0xf]
        %v4046 = vld [vmem:[%s18 + $0x30] sm:$0xf]
        %v4047 = vld [vmem:[%s18 + $0x34] sm:$0xf]
        %v4048 = vld [vmem:[%s18 + $0x38] sm:$0xf]
        %v4049 = vld [vmem:[%s18 + $0x3c] sm:$0xf]
        %v4050 = vld [vmem:[%s18 + $0x40] sm:$0xf]
        %v4051 = vld [vmem:[%s18 + $0x44] sm:$0xf]
        %v4052 = vld [vmem:[%s18 + $0x48] sm:$0xf]
        %v4053 = vld [vmem:[%s18 + $0x4c] sm:$0xf]
        %v4054 = vld [vmem:[%s18 + $0x50] sm:$0xf]
        %v4055 = vld [vmem:[%s18 + $0x54] sm:$0xf]
        %v4056 = vld [vmem:[%s18 + $0x58] sm:$0xf]
        %v4057 = vld [vmem:[%s18 + $0x5c] sm:$0xf]
        %v4058 = vld [vmem:[%s18 + $0x60] sm:$0xf]
        %v4059 = vld [vmem:[%s18 + $0x64] sm:$0xf]
        %v4060 = vld [vmem:[%s18 + $0x68] sm:$0xf]
        %v4061 = vld [vmem:[%s18 + $0x6c] sm:$0xf]
        %v4062 = vld [vmem:[%s18 + $0x70] sm:$0xf]
        %v4063 = vld [vmem:[%s18 + $0x74] sm:$0xf]
        %v4064 = vld [vmem:[%s18 + $0x78] sm:$0xf]
        %v4065 = vld [vmem:[%s18 + $0x7c] sm:$0xf]
        %v4066 = vld [vmem:[%s18 + $0x80] sm:$0xf]
        %v4067 = vld [vmem:[%s18 + $0x84] sm:$0xf]
        %v4068 = vld [vmem:[%s18 + $0x88] sm:$0xf]
        %v4069 = vld [vmem:[%s18 + $0x8c] sm:$0xf]
        %v4070 = vld [vmem:[%s18 + $0x90] sm:$0xf]
        %v4071 = vld [vmem:[%s18 + $0x94] sm:$0xf]
        %v4072 = vld [vmem:[%s18 + $0x98] sm:$0xf]
        %v4073 = vld [vmem:[%s18 + $0x9c] sm:$0xf]
        %v4074 = vld [vmem:[%s18 + $0xa0] sm:$0xf]
        %v4075 = vld [vmem:[%s18 + $0xa4] sm:$0xf]
        %v4076 = vld [vmem:[%s18 + $0xa8] sm:$0xf]
        %v4077 = vld [vmem:[%s18 + $0xac] sm:$0xf]
        %v4078 = vld [vmem:[%s18 + $0xb0] sm:$0xf]
        %v4079 = vld [vmem:[%s18 + $0xb4] sm:$0xf]
        %v4080 = vld [vmem:[%s18 + $0xb8] sm:$0xf]
        %v4081 = vld [vmem:[%s18 + $0xbc] sm:$0xf]
        %v4082 = vld [vmem:[%s18 + $0xc0] sm:$0xf]
        %v4083 = vld [vmem:[%s18 + $0xc4] sm:$0xf]
        %v4084 = vld [vmem:[%s18 + $0xc8] sm:$0xf]
        %v4085 = vld [vmem:[%s18 + $0xcc] sm:$0xf]
        %v4086 = vld [vmem:[%s18 + $0xd0] sm:$0xf]
        %v4087 = vld [vmem:[%s18 + $0xd4] sm:$0xf]
        %v4088 = vld [vmem:[%s18 + $0xd8] sm:$0xf]
        %v4089 = vld [vmem:[%s18 + $0xdc] sm:$0xf]
        %v4090 = vld [vmem:[%s18 + $0xe0] sm:$0xf]
        %v4091 = vld [vmem:[%s18 + $0xe4] sm:$0xf]
        %v4092 = vld [vmem:[%s18 + $0xe8] sm:$0xf]
        %v4093 = vld [vmem:[%s18 + $0xec] sm:$0xf]
        %v4094 = vld [vmem:[%s18 + $0xf0] sm:$0xf]
        %v4095 = vld [vmem:[%s18 + $0xf4] sm:$0xf]
        %v4096 = vld [vmem:[%s18 + $0xf8] sm:$0xf]
        %v4097 = vld [vmem:[%s18 + $0xfc] sm:$0xf]
        %v4098 = vld [vmem:[%s18 + $0x100] sm:$0xf]
        %v4099 = vld [vmem:[%s18 + $0x104] sm:$0xf]
        %v4100 = vld [vmem:[%s18 + $0x108] sm:$0xf]
        %v4101 = vld [vmem:[%s18 + $0x10c] sm:$0xf]
        %v4102 = vld [vmem:[%s18 + $0x110] sm:$0xf]
        %v4103 = vld [vmem:[%s18 + $0x114] sm:$0xf]
        %v4104 = vld [vmem:[%s18 + $0x118] sm:$0xf]
        %v4105 = vld [vmem:[%s18 + $0x11c] sm:$0xf]
        %v4106 = vld [vmem:[%s18 + $0x120] sm:$0xf]
        %v4107 = vld [vmem:[%s18 + $0x124] sm:$0xf]
        %v4108 = vld [vmem:[%s18 + $0x128] sm:$0xf]
        %v4109 = vld [vmem:[%s18 + $0x12c] sm:$0xf]
        %v4110 = vld [vmem:[%s18 + $0x130] sm:$0xf]
        %v4111 = vld [vmem:[%s18 + $0x134] sm:$0xf]
        %v4112 = vld [vmem:[%s18 + $0x138] sm:$0xf]
        %v4113 = vld [vmem:[%s18 + $0x13c] sm:$0xf]
        %v4114 = vld [vmem:[%s18 + $0x140] sm:$0xf]
        %v4115 = vld [vmem:[%s18 + $0x144] sm:$0xf]
        %v4116 = vld [vmem:[%s18 + $0x148] sm:$0xf]
        %v4117 = vld [vmem:[%s18 + $0x14c] sm:$0xf]
        %v4118 = vld [vmem:[%s18 + $0x150] sm:$0xf]
        %v4119 = vld [vmem:[%s18 + $0x154] sm:$0xf]
        %v4120 = vld [vmem:[%s18 + $0x158] sm:$0xf]
        %v4121 = vld [vmem:[%s18 + $0x15c] sm:$0xf]
        %v4122 = vld [vmem:[%s18 + $0x160] sm:$0xf]
        %v4123 = vld [vmem:[%s18 + $0x164] sm:$0xf]
        %v4124 = vld [vmem:[%s18 + $0x168] sm:$0xf]
        %v4125 = vld [vmem:[%s18 + $0x16c] sm:$0xf]
        %v4126 = vld [vmem:[%s18 + $0x170] sm:$0xf]
        %v4127 = vld [vmem:[%s18 + $0x174] sm:$0xf]
        %v4128 = vld [vmem:[%s18 + $0x178] sm:$0xf]
        %v4129 = vld [vmem:[%s18 + $0x17c] sm:$0xf]
        %v4130 = vld [vmem:[%s18 + $0x180] sm:$0xf]
        %v4131 = vld [vmem:[%s18 + $0x184] sm:$0xf]
        %v4132 = vld [vmem:[%s18 + $0x188] sm:$0xf]
        %v4133 = vld [vmem:[%s18 + $0x18c] sm:$0xf]
        %v4134 = vld [vmem:[%s18 + $0x190] sm:$0xf]
        %v4135 = vld [vmem:[%s18 + $0x194] sm:$0xf]
        %v4136 = vld [vmem:[%s18 + $0x198] sm:$0xf]
        %v4137 = vld [vmem:[%s18 + $0x19c] sm:$0xf]
        %v4138 = vld [vmem:[%s18 + $0x1a0] sm:$0xf]
        %v4139 = vld [vmem:[%s18 + $0x1a4] sm:$0xf]
        %v4140 = vld [vmem:[%s18 + $0x1a8] sm:$0xf]
        %v4141 = vld [vmem:[%s18 + $0x1ac] sm:$0xf]
        %v4142 = vld [vmem:[%s18 + $0x1b0] sm:$0xf]
        %v4143 = vld [vmem:[%s18 + $0x1b4] sm:$0xf]
        %v4144 = vld [vmem:[%s18 + $0x1b8] sm:$0xf]
        %v4145 = vld [vmem:[%s18 + $0x1bc] sm:$0xf]
        %v4146 = vld [vmem:[%s18 + $0x1c0] sm:$0xf]
        %v4147 = vld [vmem:[%s18 + $0x1c4] sm:$0xf]
        %v4148 = vld [vmem:[%s18 + $0x1c8] sm:$0xf]
        %v4149 = vld [vmem:[%s18 + $0x1cc] sm:$0xf]
        %v4150 = vld [vmem:[%s18 + $0x1d0] sm:$0xf]
        %v4151 = vld [vmem:[%s18 + $0x1d4] sm:$0xf]
        %v4152 = vld [vmem:[%s18 + $0x1d8] sm:$0xf]
        %v4153 = vld [vmem:[%s18 + $0x1dc] sm:$0xf]
        %v4154 = vld [vmem:[%s18 + $0x1e0] sm:$0xf]
        %v4155 = vld [vmem:[%s18 + $0x1e4] sm:$0xf]
        %v4156 = vld [vmem:[%s18 + $0x1e8] sm:$0xf]
        %v4157 = vld [vmem:[%s18 + $0x1ec] sm:$0xf]
        %v4158 = vld [vmem:[%s18 + $0x1f0] sm:$0xf]
        %v4159 = vld [vmem:[%s18 + $0x1f4] sm:$0xf]
        %v4160 = vld [vmem:[%s18 + $0x1f8] sm:$0xf]
        %v4161 = vld [vmem:[%s18 + $0x1fc] sm:$0xf]
        %v4290 = vunpack.c.l.b16 %v4034
        %v4291 = vunpack.c.l.b16 %v4035
        %v4292 = vunpack.c.l.b16 %v4036
        %v4293 = vunpack.c.l.b16 %v4037
        %v4294 = vunpack.c.l.b16 %v4038
        %v4295 = vunpack.c.l.b16 %v4039
        %v4296 = vunpack.c.l.b16 %v4040
        %v4297 = vunpack.c.l.b16 %v4041
        %v4298 = vunpack.c.l.b16 %v4042
        %v4299 = vunpack.c.l.b16 %v4043
        %v4300 = vunpack.c.l.b16 %v4044
        %v4301 = vunpack.c.l.b16 %v4045
        %v4302 = vunpack.c.l.b16 %v4046
        %v4303 = vunpack.c.l.b16 %v4047
        %v4304 = vunpack.c.l.b16 %v4048
        %v4305 = vunpack.c.l.b16 %v4049
        %v4306 = vunpack.c.l.b16 %v4050
        %v4307 = vunpack.c.l.b16 %v4051
        %v4308 = vunpack.c.l.b16 %v4052
        %v4309 = vunpack.c.l.b16 %v4053
        %v4310 = vunpack.c.l.b16 %v4054
        %v4311 = vunpack.c.l.b16 %v4055
        %v4312 = vunpack.c.l.b16 %v4056
        %v4313 = vunpack.c.l.b16 %v4057
        %v4314 = vunpack.c.l.b16 %v4058
        %v4315 = vunpack.c.l.b16 %v4059
        %v4316 = vunpack.c.l.b16 %v4060
        %v4317 = vunpack.c.l.b16 %v4061
        %v4318 = vunpack.c.l.b16 %v4062
        %v4319 = vunpack.c.l.b16 %v4063
        %v4320 = vunpack.c.l.b16 %v4064
        %v4321 = vunpack.c.l.b16 %v4065
        %v4322 = vunpack.c.l.b16 %v4066
        %v4323 = vunpack.c.l.b16 %v4067
        %v4324 = vunpack.c.l.b16 %v4068
        %v4325 = vunpack.c.l.b16 %v4069
        %v4326 = vunpack.c.l.b16 %v4070
        %v4327 = vunpack.c.l.b16 %v4071
        %v4328 = vunpack.c.l.b16 %v4072
        %v4329 = vunpack.c.l.b16 %v4073
        %v4330 = vunpack.c.l.b16 %v4074
        %v4331 = vunpack.c.l.b16 %v4075
        %v4332 = vunpack.c.l.b16 %v4076
        %v4333 = vunpack.c.l.b16 %v4077
        %v4334 = vunpack.c.l.b16 %v4078
        %v4335 = vunpack.c.l.b16 %v4079
        %v4336 = vunpack.c.l.b16 %v4080
        %v4337 = vunpack.c.l.b16 %v4081
        %v4338 = vunpack.c.l.b16 %v4082
        %v4339 = vunpack.c.l.b16 %v4083
        %v4340 = vunpack.c.l.b16 %v4084
        %v4341 = vunpack.c.l.b16 %v4085
        %v4342 = vunpack.c.l.b16 %v4086
        %v4343 = vunpack.c.l.b16 %v4087
        %v4344 = vunpack.c.l.b16 %v4088
        %v4345 = vunpack.c.l.b16 %v4089
        %v4346 = vunpack.c.l.b16 %v4090
        %v4347 = vunpack.c.l.b16 %v4091
        %v4348 = vunpack.c.l.b16 %v4092
        %v4349 = vunpack.c.l.b16 %v4093
        %v4350 = vunpack.c.l.b16 %v4094
        %v4351 = vunpack.c.l.b16 %v4095
        %v4352 = vunpack.c.l.b16 %v4096
        %v4353 = vunpack.c.l.b16 %v4097
        %v4354 = vunpack.c.l.b16 %v4098
        %v4355 = vunpack.c.l.b16 %v4099
        %v4356 = vunpack.c.l.b16 %v4100
        %v4357 = vunpack.c.l.b16 %v4101
        %v4358 = vunpack.c.l.b16 %v4102
        %v4359 = vunpack.c.l.b16 %v4103
        %v4360 = vunpack.c.l.b16 %v4104
        %v4361 = vunpack.c.l.b16 %v4105
        %v4362 = vunpack.c.l.b16 %v4106
        %v4363 = vunpack.c.l.b16 %v4107
        %v4364 = vunpack.c.l.b16 %v4108
        %v4365 = vunpack.c.l.b16 %v4109
        %v4366 = vunpack.c.l.b16 %v4110
        %v4367 = vunpack.c.l.b16 %v4111
        %v4368 = vunpack.c.l.b16 %v4112
        %v4369 = vunpack.c.l.b16 %v4113
        %v4370 = vunpack.c.l.b16 %v4114
        %v4371 = vunpack.c.l.b16 %v4115
        %v4372 = vunpack.c.l.b16 %v4116
        %v4373 = vunpack.c.l.b16 %v4117
        %v4374 = vunpack.c.l.b16 %v4118
        %v4375 = vunpack.c.l.b16 %v4119
        %v4376 = vunpack.c.l.b16 %v4120
        %v4377 = vunpack.c.l.b16 %v4121
        %v4378 = vunpack.c.l.b16 %v4122
        %v4379 = vunpack.c.l.b16 %v4123
        %v4380 = vunpack.c.l.b16 %v4124
        %v4381 = vunpack.c.l.b16 %v4125
        %v4382 = vunpack.c.l.b16 %v4126
        %v4383 = vunpack.c.l.b16 %v4127
        %v4384 = vunpack.c.l.b16 %v4128
        %v4385 = vunpack.c.l.b16 %v4129
        %v4386 = vunpack.c.l.b16 %v4130
        %v4387 = vunpack.c.l.b16 %v4131
        %v4388 = vunpack.c.l.b16 %v4132
        %v4389 = vunpack.c.l.b16 %v4133
        %v4390 = vunpack.c.l.b16 %v4134
        %v4391 = vunpack.c.l.b16 %v4135
        %v4392 = vunpack.c.l.b16 %v4136
        %v4393 = vunpack.c.l.b16 %v4137
        %v4394 = vunpack.c.l.b16 %v4138
        %v4395 = vunpack.c.l.b16 %v4139
        %v4396 = vunpack.c.l.b16 %v4140
        %v4397 = vunpack.c.l.b16 %v4141
        %v4398 = vunpack.c.l.b16 %v4142
        %v4399 = vunpack.c.l.b16 %v4143
        %v4400 = vunpack.c.l.b16 %v4144
        %v4401 = vunpack.c.l.b16 %v4145
        %v4402 = vunpack.c.l.b16 %v4146
        %v4403 = vunpack.c.l.b16 %v4147
        %v4404 = vunpack.c.l.b16 %v4148
        %v4405 = vunpack.c.l.b16 %v4149
        %v4406 = vunpack.c.l.b16 %v4150
        %v4407 = vunpack.c.l.b16 %v4151
        %v4408 = vunpack.c.l.b16 %v4152
        %v4409 = vunpack.c.l.b16 %v4153
        %v4410 = vunpack.c.l.b16 %v4154
        %v4411 = vunpack.c.l.b16 %v4155
        %v4412 = vunpack.c.l.b16 %v4156
        %v4413 = vunpack.c.l.b16 %v4157
        %v4414 = vunpack.c.l.b16 %v4158
        %v4415 = vunpack.c.l.b16 %v4159
        %v4416 = vunpack.c.l.b16 %v4160
        %v4417 = vunpack.c.l.b16 %v4161
        %v4418 = vpack.c.b16 %v4291, %v4290
        %v4419 = vpack.c.b16 %v4293, %v4292
        %v4420 = vpack.c.b16 %v4295, %v4294
        %v4421 = vpack.c.b16 %v4297, %v4296
        %v4422 = vpack.c.b16 %v4299, %v4298
        %v4423 = vpack.c.b16 %v4301, %v4300
        %v4424 = vpack.c.b16 %v4303, %v4302
        %v4425 = vpack.c.b16 %v4305, %v4304
        %v4426 = vpack.c.b16 %v4307, %v4306
        %v4427 = vpack.c.b16 %v4309, %v4308
        %v4428 = vpack.c.b16 %v4311, %v4310
        %v4429 = vpack.c.b16 %v4313, %v4312
        %v4430 = vpack.c.b16 %v4315, %v4314
        %v4431 = vpack.c.b16 %v4317, %v4316
        %v4432 = vpack.c.b16 %v4319, %v4318
        %v4433 = vpack.c.b16 %v4321, %v4320
        %v4434 = vpack.c.b16 %v4323, %v4322
        %v4435 = vpack.c.b16 %v4325, %v4324
        %v4436 = vpack.c.b16 %v4327, %v4326
        %v4437 = vpack.c.b16 %v4329, %v4328
        %v4438 = vpack.c.b16 %v4331, %v4330
        %v4439 = vpack.c.b16 %v4333, %v4332
        %v4440 = vpack.c.b16 %v4335, %v4334
        %v4441 = vpack.c.b16 %v4337, %v4336
        %v4442 = vpack.c.b16 %v4339, %v4338
        %v4443 = vpack.c.b16 %v4341, %v4340
        %v4444 = vpack.c.b16 %v4343, %v4342
        %v4445 = vpack.c.b16 %v4345, %v4344
        %v4446 = vpack.c.b16 %v4347, %v4346
        %v4447 = vpack.c.b16 %v4349, %v4348
        %v4448 = vpack.c.b16 %v4351, %v4350
        %v4449 = vpack.c.b16 %v4353, %v4352
        %v4450 = vpack.c.b16 %v4355, %v4354
        %v4451 = vpack.c.b16 %v4357, %v4356
        %v4452 = vpack.c.b16 %v4359, %v4358
        %v4453 = vpack.c.b16 %v4361, %v4360
        %v4454 = vpack.c.b16 %v4363, %v4362
        %v4455 = vpack.c.b16 %v4365, %v4364
        %v4456 = vpack.c.b16 %v4367, %v4366
        %v4457 = vpack.c.b16 %v4369, %v4368
        %v4458 = vpack.c.b16 %v4371, %v4370
        %v4459 = vpack.c.b16 %v4373, %v4372
        %v4460 = vpack.c.b16 %v4375, %v4374
        %v4461 = vpack.c.b16 %v4377, %v4376
        %v4462 = vpack.c.b16 %v4379, %v4378
        %v4463 = vpack.c.b16 %v4381, %v4380
        %v4464 = vpack.c.b16 %v4383, %v4382
        %v4465 = vpack.c.b16 %v4385, %v4384
        %v4466 = vpack.c.b16 %v4387, %v4386
        %v4467 = vpack.c.b16 %v4389, %v4388
        %v4468 = vpack.c.b16 %v4391, %v4390
        %v4469 = vpack.c.b16 %v4393, %v4392
        %v4470 = vpack.c.b16 %v4395, %v4394
        %v4471 = vpack.c.b16 %v4397, %v4396
        %v4472 = vpack.c.b16 %v4399, %v4398
        %v4473 = vpack.c.b16 %v4401, %v4400
        %v4474 = vpack.c.b16 %v4403, %v4402
        %v4475 = vpack.c.b16 %v4405, %v4404
        %v4476 = vpack.c.b16 %v4407, %v4406
        %v4477 = vpack.c.b16 %v4409, %v4408
        %v4478 = vpack.c.b16 %v4411, %v4410
        %v4479 = vpack.c.b16 %v4413, %v4412
        %v4480 = vpack.c.b16 %v4415, %v4414
        %v4481 = vpack.c.b16 %v4417, %v4416
        %4546 = vmatpush.bf16.msra.mxu0 %v4425
        %4547 = vmatpush.bf16.msra.mxu0 %v4424
        %4548 = vmatpush.bf16.msra.mxu0 %v4423
        %4549 = vmatpush.bf16.msra.mxu0 %v4422
        %4550 = vmatpush.bf16.msra.mxu0 %v4421
        %4551 = vmatpush.bf16.msra.mxu0 %v4420
        %4552 = vmatpush.bf16.msra.mxu0 %v4419
        %4553 = vmatpush.bf16.msra.mxu0 %v4418
        %4554 = vmatmul.bf16.gmra.mxu0 %v4026
        %v4555 = vpop.f32.mrf.mxu0
        %v4556 = vadd.f32 0.0, %v4555
        %v4557 = vpop.f32.mrf.mxu0
        %4558 = vdwg.mxu0
        %4559 = vmatpush.bf16.msra.mxu0 %v4433
        %4560 = vmatpush.bf16.msra.mxu0 %v4432
        %4561 = vmatpush.bf16.msra.mxu0 %v4431
        %4562 = vmatpush.bf16.msra.mxu0 %v4430
        %4563 = vmatpush.bf16.msra.mxu0 %v4429
        %4564 = vmatpush.bf16.msra.mxu0 %v4428
        %4565 = vmatpush.bf16.msra.mxu0 %v4427
        %4566 = vmatpush.bf16.msra.mxu0 %v4426
        %4567 = vmatmul.bf16.gmra.mxu0 %v4027
        %v4568 = vpop.f32.mrf.mxu0
        %v4569 = vadd.f32 %v4556, %v4568
        %v4570 = vpop.f32.mrf.mxu0
        %4571 = vdwg.mxu0
        %4572 = vmatpush.bf16.msra.mxu0 %v4441
        %4573 = vmatpush.bf16.msra.mxu0 %v4440
        %4574 = vmatpush.bf16.msra.mxu0 %v4439
        %4575 = vmatpush.bf16.msra.mxu0 %v4438
        %4576 = vmatpush.bf16.msra.mxu0 %v4437
        %4577 = vmatpush.bf16.msra.mxu0 %v4436
        %4578 = vmatpush.bf16.msra.mxu0 %v4435
        %4579 = vmatpush.bf16.msra.mxu0 %v4434
        %4580 = vmatmul.bf16.gmra.mxu0 %v4028
        %v4581 = vpop.f32.mrf.mxu0
        %v4582 = vadd.f32 %v4569, %v4581
        %v4583 = vpop.f32.mrf.mxu0
        %4584 = vdwg.mxu0
        %4585 = vmatpush.bf16.msra.mxu0 %v4449
        %4586 = vmatpush.bf16.msra.mxu0 %v4448
        %4587 = vmatpush.bf16.msra.mxu0 %v4447
        %4588 = vmatpush.bf16.msra.mxu0 %v4446
        %4589 = vmatpush.bf16.msra.mxu0 %v4445
        %4590 = vmatpush.bf16.msra.mxu0 %v4444
        %4591 = vmatpush.bf16.msra.mxu0 %v4443
        %4592 = vmatpush.bf16.msra.mxu0 %v4442
        %4593 = vmatmul.bf16.gmra.mxu0 %v4029
        %v4594 = vpop.f32.mrf.mxu0
        %v4595 = vadd.f32 %v4582, %v4594
        %v4596 = vpop.f32.mrf.mxu0
        %4597 = vdwg.mxu0
        %4598 = vmatpush.bf16.msra.mxu0 %v4457
        %4599 = vmatpush.bf16.msra.mxu0 %v4456
        %4600 = vmatpush.bf16.msra.mxu0 %v4455
        %4601 = vmatpush.bf16.msra.mxu0 %v4454
        %4602 = vmatpush.bf16.msra.mxu0 %v4453
        %4603 = vmatpush.bf16.msra.mxu0 %v4452
        %4604 = vmatpush.bf16.msra.mxu0 %v4451
        %4605 = vmatpush.bf16.msra.mxu0 %v4450
        %4606 = vmatmul.bf16.gmra.mxu0 %v4030
        %v4607 = vpop.f32.mrf.mxu0
        %v4608 = vadd.f32 %v4595, %v4607
        %v4609 = vpop.f32.mrf.mxu0
        %4610 = vdwg.mxu0
        %4611 = vmatpush.bf16.msra.mxu0 %v4465
        %4612 = vmatpush.bf16.msra.mxu0 %v4464
        %4613 = vmatpush.bf16.msra.mxu0 %v4463
        %4614 = vmatpush.bf16.msra.mxu0 %v4462
        %4615 = vmatpush.bf16.msra.mxu0 %v4461
        %4616 = vmatpush.bf16.msra.mxu0 %v4460
        %4617 = vmatpush.bf16.msra.mxu0 %v4459
        %4618 = vmatpush.bf16.msra.mxu0 %v4458
        %4619 = vmatmul.bf16.gmra.mxu0 %v4031
        %v4620 = vpop.f32.mrf.mxu0
        %v4621 = vadd.f32 %v4608, %v4620
        %v4622 = vpop.f32.mrf.mxu0
        %4623 = vdwg.mxu0
        %4624 = vmatpush.bf16.msra.mxu0 %v4473
        %4625 = vmatpush.bf16.msra.mxu0 %v4472
        %4626 = vmatpush.bf16.msra.mxu0 %v4471
        %4627 = vmatpush.bf16.msra.mxu0 %v4470
        %4628 = vmatpush.bf16.msra.mxu0 %v4469
        %4629 = vmatpush.bf16.msra.mxu0 %v4468
        %4630 = vmatpush.bf16.msra.mxu0 %v4467
        %4631 = vmatpush.bf16.msra.mxu0 %v4466
        %4632 = vmatmul.bf16.gmra.mxu0 %v4032
        %v4633 = vpop.f32.mrf.mxu0
        %v4634 = vadd.f32 %v4621, %v4633
        %v4635 = vpop.f32.mrf.mxu0
        %4636 = vdwg.mxu0
        %4637 = vmatpush.bf16.msra.mxu0 %v4481
        %4638 = vmatpush.bf16.msra.mxu0 %v4480
        %4639 = vmatpush.bf16.msra.mxu0 %v4479
        %4640 = vmatpush.bf16.msra.mxu0 %v4478
        %4641 = vmatpush.bf16.msra.mxu0 %v4477
        %4642 = vmatpush.bf16.msra.mxu0 %v4476
        %4643 = vmatpush.bf16.msra.mxu0 %v4475
        %4644 = vmatpush.bf16.msra.mxu0 %v4474
        %4645 = vmatmul.bf16.gmra.mxu0 %v4033
        %v4646 = vpop.f32.mrf.mxu0
        %v4647 = vadd.f32 %v4634, %v4646
        %v4648 = vpop.f32.mrf.mxu0
        %4649 = vdwg.mxu0
        %4651 = vrot.lane.b32.xlu0 %v4647, 16
        %v4652 = vpop.permute.xlu0 %4651
        %v4654 = vsel %vm868, %v989, %v4652
        %vm4655 = vcmask 261120
        %4656 = vst.msk [vmem:[%s651] sm:$0xff] %vm4655, %v4654
        %p4657 = scmp.lt.s32.totalorder %s32, 1
        %s4658 = scalar_select %p4657, %s32, 1
        %s4659 = smul.addr %s4658, 8
        %s4660 = scalar_lea.vmem %s19, %s4659
        // Predicated region
        $region105: #{sfrgnn_forward.5} parent=95 // pred_check
          %p4661 = pneg %p459
        $region106: #{sfrgnn_forward.5} parent=95 // pred_check_branch
          %4663 = sbr.rel (%p4661) target = $region108
        $region107: #{sfrgnn_forward.5} parent=95 // pred_region
          _
        $region108: #{sfrgnn_forward.5} parent=95 // pred_fallthru
          _
      $region96: #{sfrgnn_forward.5} parent=5 // pred_fallthru
        _
      %p4664 = scmp.le.s32.totalorder 2, %s27
      // Predicated region
      $region109: #{sfrgnn_forward.5} parent=5 // pred_check
        %p4665 = pneg %p4664
      $region110: #{sfrgnn_forward.5} parent=5 // pred_check_branch
        %4667 = sbr.rel (%p4665) target = $region112
      $region111: #{sfrgnn_forward.5} parent=5 // pred_region
        %s4668 = ssub.s32 %s27, 2
        // Predicated region
        $region113: #{sfrgnn_forward.5} parent=111 // pred_check
          %p4669 = pneg %p465
        $region114: #{sfrgnn_forward.5} parent=111 // pred_check_branch
          %4671 = sbr.rel (%p4669) target = $region116
        $region115: #{sfrgnn_forward.5} parent=111 // pred_region
          %p4672 = scmp.lt.s32.totalorder %s33, 1
          %s4673 = scalar_select %p4672, %s33, 1
          %s4674 = smul.addr %s4673, 8
          %s4675 = scalar_lea.vmem %s19, %s4674
        $region116: #{sfrgnn_forward.5} parent=111 // pred_fallthru
          _
      $region112: #{sfrgnn_forward.5} parent=5 // pred_fallthru
        _
    $region6: #{sfrgnn_forward.5} parent=1 // loop_footer
      %s31 = sadd.s32 1, %s27
    $region7: #{sfrgnn_forward.5} parent=1 // loop_footer_branch
      %26 = sbr.rel target = $region3
    $region8: #{sfrgnn_forward.5} parent=1 // loop_exit
      _
    %4676 = vsyncpa [#allocation3], 1
    %s4677 = scalar_lea.sflag [#allocation3], 1
    %4678 = vsyncpa %s4677, 1
    %4679 = vsyncpa [#allocation5], 1

</llo_original>
